<compile_context>
chip_gen: v7x
topology: tpu7x:2x2x1
jax: 0.10.0
libtpu: 0.0.40
codegen_flags: <defaults>
</compile_context>

<pallas_src>
import functools

import jax
import jax.numpy as jnp
from jax.experimental import pallas as pl
from jax.experimental.pallas import tpu as pltpu


def _round_up(x, m):
    return ((x + m - 1) // m) * m


def _device_kind():
    try:
        return jax.devices()[0].device_kind.lower()
    except Exception:
        return ""


def _autoencoder_kernel(
    x_ref,
    w0_ref, b0_ref,
    w1_ref, b1_ref,
    w2_ref, b2_ref,
    w3_ref, b3_ref,
    w4_ref, b4_ref,
    w5_ref, b5_ref,
    rec_ref, mid_ref,
    *, tanh_dtype,
):
    """Whole 6-layer forward for one (tm, input_size) batch block."""

    def layer(h, w_ref, b_ref, apply_tanh):
        # bf16 operands into the MXU, f32 accumulation, f32 bias epilogue.
        y = jnp.dot(h.astype(jnp.bfloat16), w_ref[...],
                    preferred_element_type=jnp.float32)
        y = y + b_ref[...]                      # (1, N) f32 bias row broadcasts
        if apply_tanh:
            y = jnp.tanh(y.astype(tanh_dtype))  # bf16 tanh on v6e/v7x, f32 on v5e
        return y

    x = x_ref[...]

    # encoder: Linear->Tanh, Linear->Tanh, Linear->Tanh
    h = layer(x, w0_ref, b0_ref, True)
    h = layer(h, w1_ref, b1_ref, True)
    m = layer(h, w2_ref, b2_ref, True)
    mid_ref[...] = m.astype(mid_ref.dtype)

    # decoder: Linear->Tanh, Linear->Tanh, Linear (no activation)
    h = layer(m, w3_ref, b3_ref, True)
    h = layer(h, w4_ref, b4_ref, True)
    rec_ref[...] = layer(h, w5_ref, b5_ref, False).astype(rec_ref.dtype)


def autoencoder_forward(params, x, *, block_m=None, safe_mode=False):
    """Mirrors PyTorch autoencoder.forward: returns (reconstruction, middle_x).

    safe_mode=True disables the optional features (single-buffered parameter
    blocks via pl.Buffered(1), bf16 tanh) while keeping the bf16-weight path.
    """
    (w0, b0), (w1, b1), (w2, b2), (w3, b3), (w4, b4), (w5, b5) = params
    # bf16 weights: halves HBM weight traffic + native-bf16 MXU.  Biases stay
    # f32 so the epilogue (bias add) is exact.
    weights = [w.astype(jnp.bfloat16) for w in (w0, w1, w2, w3, w4, w5)]
    biases = [b.astype(jnp.float32).reshape(1, -1)
              for b in (b0, b1, b2, b3, b4, b5)]

    M, in_size = x.shape
    mid_size = weights[2].shape[1]
    assert weights[5].shape[1] == in_size

    kind = _device_kind()
    is_v7 = "v7" in kind
    is_v6 = "v6" in kind
    is_v5 = "v5" in kind

    # bf16 tanh only where the EUP has a bf16 path (v6e / v7x).
    tanh_dtype = jnp.float32 if safe_mode else (
        jnp.bfloat16 if (is_v6 or is_v7) else jnp.float32)

    # Per-generation batch-tile budget (VMEM: v5e/v6e 128 MiB, v7x 64 MiB).
    if block_m is None:
        block_m = 1024 if is_v7 else (2048 if is_v6 else 512)

    # Adaptive tiling: padding is at most tm-1 rows; on v7x use >= 2 grid
    # steps (when the batch allows) so both TensorCores are used.
    n_blk = max(1, pl.cdiv(M, block_m))
    if is_v7 and M >= 16:
        n_blk = max(n_blk, 2)
    tm = _round_up(pl.cdiv(M, n_blk), 8)
    m_pad = n_blk * tm
    if m_pad != M:
        x = jnp.pad(x, ((0, m_pad - M), (0, 0)))

    def x_map(i):
        return (i, 0)

    def p_map(i):          # parameters: same (whole-array) block every step
        return (0, 0)

    def param_spec(arr):
        if not safe_mode:
            # Grid-invariant blocks: one buffer is enough — double-buffering
            # them wastes VMEM with zero pipelining benefit.
            return pl.BlockSpec(arr.shape, p_map, pipeline_mode=pl.Buffered(1))
        return pl.BlockSpec(arr.shape, p_map)

    in_specs = [pl.BlockSpec((tm, in_size), x_map)]
    for w, b2d in zip(weights, biases):
        in_specs.append(param_spec(w))     # full weight resident in VMEM
        in_specs.append(param_spec(b2d))   # full (1, N) bias row

    out_specs = (
        pl.BlockSpec((tm, in_size), x_map),    # reconstruction (lane-dense)
        pl.BlockSpec((tm, mid_size), x_map),   # middle activation
    )
    out_shape = (
        jax.ShapeDtypeStruct((m_pad, in_size), x.dtype),
        jax.ShapeDtypeStruct((m_pad, mid_size), x.dtype),
    )

    # Explicit scoped-VMEM budget (v5e's default is only 16 MiB; v7x has
    # 64 MiB physical so keep headroom there).
    if is_v7:
        vmem_limit = 48 << 20
    elif is_v6 or is_v5:
        vmem_limit = 96 << 20
    else:
        vmem_limit = None

    cp_kwargs = dict(dimension_semantics=("parallel",))
    if vmem_limit is not None:
        cp_kwargs["vmem_limit_bytes"] = vmem_limit
    compiler_params = pltpu.CompilerParams(**cp_kwargs)

    # Advisory cost estimate so XLA schedules this custom call sensibly.
    flops = 2 * m_pad * sum(w.shape[0] * w.shape[1] for w in weights)
    transcendentals = m_pad * sum(w.shape[1] for w in weights[:5])  # 5 tanh layers
    bytes_accessed = (
        sum(w.size * w.dtype.itemsize for w in weights)
        + sum(b.size * b.dtype.itemsize for b in biases)
        + m_pad * in_size * x.dtype.itemsize
        + m_pad * (in_size + mid_size) * x.dtype.itemsize
    )

    flat_args = [x]
    for w, b2d in zip(weights, biases):
        flat_args += [w, b2d]

    rec, mid = pl.pallas_call(
        functools.partial(_autoencoder_kernel, tanh_dtype=tanh_dtype),
        out_shape=out_shape,
        grid=(n_blk,),
        in_specs=in_specs,
        out_specs=out_specs,
        compiler_params=compiler_params,
        cost_estimate=pl.CostEstimate(
            flops=flops,
            transcendentals=transcendentals,
            bytes_accessed=bytes_accessed,
        ),
    )(*flat_args)

    return rec[:M], mid[:M]


def init_autoencoder_params(key, input_size, middle_size, dtype=jnp.float32):
    """Deterministic PyTorch-style init: U(-1/sqrt(fan_in), 1/sqrt(fan_in)).

    Weights are stored (in, out) so the kernel does y = x @ W + b.
    """
    dims = [
        (input_size, 1024),   # encoder L0
        (1024, 512),          # encoder L1
        (512, middle_size),   # encoder L2
        (middle_size, 512),   # decoder L0
        (512, 1024),          # decoder L1
        (1024, input_size),   # decoder L2
    ]
    params = []
    keys = jax.random.split(key, 2 * len(dims))
    for idx, (fan_in, fan_out) in enumerate(dims):
        bound = 1.0 / (float(fan_in) ** 0.5)
        w = jax.random.uniform(
            keys[2 * idx], (fan_in, fan_out), dtype, minval=-bound, maxval=bound
        )
        b = jax.random.uniform(
            keys[2 * idx + 1], (fan_out,), dtype, minval=-bound, maxval=bound
        )
        params.append((w, b))
    return params


if __name__ == "__main__":
    input_size = 256
    middle_size = 128
    batch = 8

    key = jax.random.PRNGKey(0)
    pkey, xkey = jax.random.split(key)

    params = init_autoencoder_params(pkey, input_size, middle_size)
    x = jax.random.normal(xkey, (batch, input_size), jnp.float32)

    def run(safe_mode):
        fwd = jax.jit(functools.partial(autoencoder_forward, safe_mode=safe_mode))
        out = fwd(params, x)
        jax.block_until_ready(out)
        return out

    try:
        x_rec, middle_x = run(safe_mode=False)
    except Exception:
        # Fallback if this jax build rejects pl.Buffered(1) single-buffered
        # parameter blocks or bf16 tanh: plain double-buffered specs + f32 tanh.
        x_rec, middle_x = run(safe_mode=True)

    # Reference mirrors the kernel's bf16-operand / f32-accumulate numerics
    # (tanh kept in f32; tolerance covers the optional bf16-tanh epilogue).
    def ref_fwd(params, x):
        def lin(h, w, b, act):
            y = jnp.dot(h.astype(jnp.bfloat16), w.astype(jnp.bfloat16),
                        preferred_element_type=jnp.float32) + b
            return jnp.tanh(y) if act else y
        (w0, b0), (w1, b1), (w2, b2), (w3, b3), (w4, b4), (w5, b5) = params
        h = lin(x, w0, b0, True)
        h = lin(h, w1, b1, True)
        m = lin(h, w2, b2, True)
        h = lin(m, w3, b3, True)
        h = lin(h, w4, b4, True)
        return lin(h, w5, b5, False), m

    ref_rec, ref_mid = ref_fwd(params, x)
    assert x_rec.shape == (batch, input_size)
    assert middle_x.shape == (batch, middle_size)
    assert jnp.allclose(x_rec, ref_rec, atol=2e-2, rtol=2e-2)
    assert jnp.allclose(middle_x, ref_mid, atol=2e-2, rtol=2e-2)

    print("KERNEL_OK")
</pallas_src>

<mosaic_0001>
module attributes {stable_mosaic.version = 11 : i64} {
  func.func @_autoencoder_kernel(%arg0: i32, %arg1: memref<8x256xf32, #tpu.memory_space<vmem>>, %arg2: memref<256x1024xbf16, #tpu.memory_space<vmem>>, %arg3: memref<1x1024xf32, #tpu.memory_space<vmem>>, %arg4: memref<1024x512xbf16, #tpu.memory_space<vmem>>, %arg5: memref<1x512xf32, #tpu.memory_space<vmem>>, %arg6: memref<512x128xbf16, #tpu.memory_space<vmem>>, %arg7: memref<1x128xf32, #tpu.memory_space<vmem>>, %arg8: memref<128x512xbf16, #tpu.memory_space<vmem>>, %arg9: memref<1x512xf32, #tpu.memory_space<vmem>>, %arg10: memref<512x1024xbf16, #tpu.memory_space<vmem>>, %arg11: memref<1x1024xf32, #tpu.memory_space<vmem>>, %arg12: memref<1024x256xbf16, #tpu.memory_space<vmem>>, %arg13: memref<1x256xf32, #tpu.memory_space<vmem>>, %arg14: memref<8x256xf32, #tpu.memory_space<vmem>>, %arg15: memref<8x128xf32, #tpu.memory_space<vmem>>) attributes {dimension_semantics = [#tpu.dimension_semantics<parallel>], iteration_bounds = array<i64: 1>, scalar_prefetch = 0 : i64, scratch_operands = 0 : i64, tpu.core_type = #tpu.core_type<tc>, window_params = [{transform_indices = @transform_0, window_bounds = array<i64: 8, 256>}, {pipeline_mode = #tpu.pipeline_mode<synchronous>, transform_indices = @transform_1, window_bounds = array<i64: 256, 1024>}, {pipeline_mode = #tpu.pipeline_mode<synchronous>, transform_indices = @transform_2, window_bounds = array<i64: 1, 1024>}, {pipeline_mode = #tpu.pipeline_mode<synchronous>, transform_indices = @transform_3, window_bounds = array<i64: 1024, 512>}, {pipeline_mode = #tpu.pipeline_mode<synchronous>, transform_indices = @transform_4, window_bounds = array<i64: 1, 512>}, {pipeline_mode = #tpu.pipeline_mode<synchronous>, transform_indices = @transform_5, window_bounds = array<i64: 512, 128>}, {pipeline_mode = #tpu.pipeline_mode<synchronous>, transform_indices = @transform_6, window_bounds = array<i64: 1, 128>}, {pipeline_mode = #tpu.pipeline_mode<synchronous>, transform_indices = @transform_7, window_bounds = array<i64: 128, 512>}, {pipeline_mode = #tpu.pipeline_mode<synchronous>, transform_indices = @transform_8, window_bounds = array<i64: 1, 512>}, {pipeline_mode = #tpu.pipeline_mode<synchronous>, transform_indices = @transform_9, window_bounds = array<i64: 512, 1024>}, {pipeline_mode = #tpu.pipeline_mode<synchronous>, transform_indices = @transform_10, window_bounds = array<i64: 1, 1024>}, {pipeline_mode = #tpu.pipeline_mode<synchronous>, transform_indices = @transform_11, window_bounds = array<i64: 1024, 256>}, {pipeline_mode = #tpu.pipeline_mode<synchronous>, transform_indices = @transform_12, window_bounds = array<i64: 1, 256>}, {transform_indices = @transform_13, window_bounds = array<i64: 8, 256>}, {transform_indices = @transform_14, window_bounds = array<i64: 8, 128>}]} {
    %c0 = arith.constant 0 : index
    %c0_0 = arith.constant 0 : index
    %0 = vector.load %arg1[%c0, %c0_0] : memref<8x256xf32, #tpu.memory_space<vmem>>, vector<8x256xf32>
    %1 = arith.truncf %0 : vector<8x256xf32> to vector<8x256xbf16>
    %c0_1 = arith.constant 0 : index
    %c0_2 = arith.constant 0 : index
    %2 = vector.load %arg2[%c0_1, %c0_2] : memref<256x1024xbf16, #tpu.memory_space<vmem>>, vector<256x1024xbf16>
    %cst = arith.constant dense<0.000000e+00> : vector<8x1024xf32>
    %3 = tpu.matmul %1, %2, %cst {dimension_numbers = #tpu.dot_dimension_numbers<[1], [0], [0], [1], [0, 0, 1, 1], [], []>} : vector<8x256xbf16>, vector<256x1024xbf16>, vector<8x1024xf32> -> vector<8x1024xf32>
    %c0_3 = arith.constant 0 : index
    %c0_4 = arith.constant 0 : index
    %4 = vector.load %arg3[%c0_3, %c0_4] : memref<1x1024xf32, #tpu.memory_space<vmem>>, vector<1x1024xf32>
    %5 = vector.broadcast %4 : vector<1x1024xf32> to vector<8x1024xf32>
    %6 = arith.addf %3, %5 : vector<8x1024xf32>
    %7 = math.tanh %6 : vector<8x1024xf32>
    %8 = arith.truncf %7 : vector<8x1024xf32> to vector<8x1024xbf16>
    %c0_5 = arith.constant 0 : index
    %c0_6 = arith.constant 0 : index
    %9 = vector.load %arg4[%c0_5, %c0_6] : memref<1024x512xbf16, #tpu.memory_space<vmem>>, vector<1024x512xbf16>
    %cst_7 = arith.constant dense<0.000000e+00> : vector<8x512xf32>
    %10 = tpu.matmul %8, %9, %cst_7 {dimension_numbers = #tpu.dot_dimension_numbers<[1], [0], [0], [1], [0, 0, 1, 1], [], []>} : vector<8x1024xbf16>, vector<1024x512xbf16>, vector<8x512xf32> -> vector<8x512xf32>
    %c0_8 = arith.constant 0 : index
    %c0_9 = arith.constant 0 : index
    %11 = vector.load %arg5[%c0_8, %c0_9] : memref<1x512xf32, #tpu.memory_space<vmem>>, vector<1x512xf32>
    %12 = vector.broadcast %11 : vector<1x512xf32> to vector<8x512xf32>
    %13 = arith.addf %10, %12 : vector<8x512xf32>
    %14 = math.tanh %13 : vector<8x512xf32>
    %15 = arith.truncf %14 : vector<8x512xf32> to vector<8x512xbf16>
    %c0_10 = arith.constant 0 : index
    %c0_11 = arith.constant 0 : index
    %16 = vector.load %arg6[%c0_10, %c0_11] : memref<512x128xbf16, #tpu.memory_space<vmem>>, vector<512x128xbf16>
    %cst_12 = arith.constant dense<0.000000e+00> : vector<8x128xf32>
    %17 = tpu.matmul %15, %16, %cst_12 {dimension_numbers = #tpu.dot_dimension_numbers<[1], [0], [0], [1], [0, 0, 1, 1], [], []>} : vector<8x512xbf16>, vector<512x128xbf16>, vector<8x128xf32> -> vector<8x128xf32>
    %c0_13 = arith.constant 0 : index
    %c0_14 = arith.constant 0 : index
    %18 = vector.load %arg7[%c0_13, %c0_14] : memref<1x128xf32, #tpu.memory_space<vmem>>, vector<1x128xf32>
    %19 = vector.broadcast %18 : vector<1x128xf32> to vector<8x128xf32>
    %20 = arith.addf %17, %19 : vector<8x128xf32>
    %21 = math.tanh %20 : vector<8x128xf32>
    %c0_15 = arith.constant 0 : index
    %c0_16 = arith.constant 0 : index
    %22 = vector.load %arg15[%c0_15, %c0_16] : memref<8x128xf32, #tpu.memory_space<vmem>>, vector<8x128xf32>
    tpu.vector_store %arg15[%c0_15, %c0_16], %21 {strides = array<i32>} : memref<8x128xf32, #tpu.memory_space<vmem>>, vector<8x128xf32>,
    %23 = arith.truncf %21 : vector<8x128xf32> to vector<8x128xbf16>
    %c0_17 = arith.constant 0 : index
    %c0_18 = arith.constant 0 : index
    %24 = vector.load %arg8[%c0_17, %c0_18] : memref<128x512xbf16, #tpu.memory_space<vmem>>, vector<128x512xbf16>
    %cst_19 = arith.constant dense<0.000000e+00> : vector<8x512xf32>
    %25 = tpu.matmul %23, %24, %cst_19 {dimension_numbers = #tpu.dot_dimension_numbers<[1], [0], [0], [1], [0, 0, 1, 1], [], []>} : vector<8x128xbf16>, vector<128x512xbf16>, vector<8x512xf32> -> vector<8x512xf32>
    %c0_20 = arith.constant 0 : index
    %c0_21 = arith.constant 0 : index
    %26 = vector.load %arg9[%c0_20, %c0_21] : memref<1x512xf32, #tpu.memory_space<vmem>>, vector<1x512xf32>
    %27 = vector.broadcast %26 : vector<1x512xf32> to vector<8x512xf32>
    %28 = arith.addf %25, %27 : vector<8x512xf32>
    %29 = math.tanh %28 : vector<8x512xf32>
    %30 = arith.truncf %29 : vector<8x512xf32> to vector<8x512xbf16>
    %c0_22 = arith.constant 0 : index
    %c0_23 = arith.constant 0 : index
    %31 = vector.load %arg10[%c0_22, %c0_23] : memref<512x1024xbf16, #tpu.memory_space<vmem>>, vector<512x1024xbf16>
    %cst_24 = arith.constant dense<0.000000e+00> : vector<8x1024xf32>
    %32 = tpu.matmul %30, %31, %cst_24 {dimension_numbers = #tpu.dot_dimension_numbers<[1], [0], [0], [1], [0, 0, 1, 1], [], []>} : vector<8x512xbf16>, vector<512x1024xbf16>, vector<8x1024xf32> -> vector<8x1024xf32>
    %c0_25 = arith.constant 0 : index
    %c0_26 = arith.constant 0 : index
    %33 = vector.load %arg11[%c0_25, %c0_26] : memref<1x1024xf32, #tpu.memory_space<vmem>>, vector<1x1024xf32>
    %34 = vector.broadcast %33 : vector<1x1024xf32> to vector<8x1024xf32>
    %35 = arith.addf %32, %34 : vector<8x1024xf32>
    %36 = math.tanh %35 : vector<8x1024xf32>
    %37 = arith.truncf %36 : vector<8x1024xf32> to vector<8x1024xbf16>
    %c0_27 = arith.constant 0 : index
    %c0_28 = arith.constant 0 : index
    %38 = vector.load %arg12[%c0_27, %c0_28] : memref<1024x256xbf16, #tpu.memory_space<vmem>>, vector<1024x256xbf16>
    %cst_29 = arith.constant dense<0.000000e+00> : vector<8x256xf32>
    %39 = tpu.matmul %37, %38, %cst_29 {dimension_numbers = #tpu.dot_dimension_numbers<[1], [0], [0], [1], [0, 0, 1, 1], [], []>} : vector<8x1024xbf16>, vector<1024x256xbf16>, vector<8x256xf32> -> vector<8x256xf32>
    %c0_30 = arith.constant 0 : index
    %c0_31 = arith.constant 0 : index
    %40 = vector.load %arg13[%c0_30, %c0_31] : memref<1x256xf32, #tpu.memory_space<vmem>>, vector<1x256xf32>
    %41 = vector.broadcast %40 : vector<1x256xf32> to vector<8x256xf32>
    %42 = arith.addf %39, %41 : vector<8x256xf32>
    %c0_32 = arith.constant 0 : index
    %c0_33 = arith.constant 0 : index
    %43 = vector.load %arg14[%c0_32, %c0_33] : memref<8x256xf32, #tpu.memory_space<vmem>>, vector<8x256xf32>
    tpu.vector_store %arg14[%c0_32, %c0_33], %42 {strides = array<i32>} : memref<8x256xf32, #tpu.memory_space<vmem>>, vector<8x256xf32>,
    return
  }
  func.func @transform_0(%arg0: i32) -> (i32, i32) {
    %c0_i32 = arith.constant 0 : i32
    %c0_i32_0 = arith.constant 0 : i32
    return %arg0, %c0_i32 : i32, i32
  }
  func.func @transform_1(%arg0: i32) -> (i32, i32) {
    %c0_i32 = arith.constant 0 : i32
    %c0_i32_0 = arith.constant 0 : i32
    %c0_i32_1 = arith.constant 0 : i32
    return %c0_i32, %c0_i32_0 : i32, i32
  }
  func.func @transform_2(%arg0: i32) -> (i32, i32) {
    %c0_i32 = arith.constant 0 : i32
    %c0_i32_0 = arith.constant 0 : i32
    %c0_i32_1 = arith.constant 0 : i32
    return %c0_i32, %c0_i32_0 : i32, i32
  }
  func.func @transform_3(%arg0: i32) -> (i32, i32) {
    %c0_i32 = arith.constant 0 : i32
    %c0_i32_0 = arith.constant 0 : i32
    %c0_i32_1 = arith.constant 0 : i32
    return %c0_i32, %c0_i32_0 : i32, i32
  }
  func.func @transform_4(%arg0: i32) -> (i32, i32) {
    %c0_i32 = arith.constant 0 : i32
    %c0_i32_0 = arith.constant 0 : i32
    %c0_i32_1 = arith.constant 0 : i32
    return %c0_i32, %c0_i32_0 : i32, i32
  }
  func.func @transform_5(%arg0: i32) -> (i32, i32) {
    %c0_i32 = arith.constant 0 : i32
    %c0_i32_0 = arith.constant 0 : i32
    %c0_i32_1 = arith.constant 0 : i32
    return %c0_i32, %c0_i32_0 : i32, i32
  }
  func.func @transform_6(%arg0: i32) -> (i32, i32) {
    %c0_i32 = arith.constant 0 : i32
    %c0_i32_0 = arith.constant 0 : i32
    %c0_i32_1 = arith.constant 0 : i32
    return %c0_i32, %c0_i32_0 : i32, i32
  }
  func.func @transform_7(%arg0: i32) -> (i32, i32) {
    %c0_i32 = arith.constant 0 : i32
    %c0_i32_0 = arith.constant 0 : i32
    %c0_i32_1 = arith.constant 0 : i32
    return %c0_i32, %c0_i32_0 : i32, i32
  }
  func.func @transform_8(%arg0: i32) -> (i32, i32) {
    %c0_i32 = arith.constant 0 : i32
    %c0_i32_0 = arith.constant 0 : i32
    %c0_i32_1 = arith.constant 0 : i32
    return %c0_i32, %c0_i32_0 : i32, i32
  }
  func.func @transform_9(%arg0: i32) -> (i32, i32) {
    %c0_i32 = arith.constant 0 : i32
    %c0_i32_0 = arith.constant 0 : i32
    %c0_i32_1 = arith.constant 0 : i32
    return %c0_i32, %c0_i32_0 : i32, i32
  }
  func.func @transform_10(%arg0: i32) -> (i32, i32) {
    %c0_i32 = arith.constant 0 : i32
    %c0_i32_0 = arith.constant 0 : i32
    %c0_i32_1 = arith.constant 0 : i32
    return %c0_i32, %c0_i32_0 : i32, i32
  }
  func.func @transform_11(%arg0: i32) -> (i32, i32) {
    %c0_i32 = arith.constant 0 : i32
    %c0_i32_0 = arith.constant 0 : i32
    %c0_i32_1 = arith.constant 0 : i32
    return %c0_i32, %c0_i32_0 : i32, i32
  }
  func.func @transform_12(%arg0: i32) -> (i32, i32) {
    %c0_i32 = arith.constant 0 : i32
    %c0_i32_0 = arith.constant 0 : i32
    %c0_i32_1 = arith.constant 0 : i32
    return %c0_i32, %c0_i32_0 : i32, i32
  }
  func.func @transform_13(%arg0: i32) -> (i32, i32) {
    %c0_i32 = arith.constant 0 : i32
    %c0_i32_0 = arith.constant 0 : i32
    return %arg0, %c0_i32 : i32, i32
  }
  func.func @transform_14(%arg0: i32) -> (i32, i32) {
    %c0_i32 = arith.constant 0 : i32
    %c0_i32_0 = arith.constant 0 : i32
    return %arg0, %c0_i32 : i32, i32
  }
}

module attributes {stable_mosaic.version = 11 : i64} {
  func.func @_autoencoder_kernel(%arg0: i32, %arg1: memref<8x256xf32, #tpu.memory_space<vmem>>, %arg2: memref<256x1024xbf16, #tpu.memory_space<vmem>>, %arg3: memref<1x1024xf32, #tpu.memory_space<vmem>>, %arg4: memref<1024x512xbf16, #tpu.memory_space<vmem>>, %arg5: memref<1x512xf32, #tpu.memory_space<vmem>>, %arg6: memref<512x128xbf16, #tpu.memory_space<vmem>>, %arg7: memref<1x128xf32, #tpu.memory_space<vmem>>, %arg8: memref<128x512xbf16, #tpu.memory_space<vmem>>, %arg9: memref<1x512xf32, #tpu.memory_space<vmem>>, %arg10: memref<512x1024xbf16, #tpu.memory_space<vmem>>, %arg11: memref<1x1024xf32, #tpu.memory_space<vmem>>, %arg12: memref<1024x256xbf16, #tpu.memory_space<vmem>>, %arg13: memref<1x256xf32, #tpu.memory_space<vmem>>, %arg14: memref<8x256xf32, #tpu.memory_space<vmem>>, %arg15: memref<8x128xf32, #tpu.memory_space<vmem>>) attributes {dimension_semantics = [#tpu.dimension_semantics<parallel>], iteration_bounds = array<i64: 1>, scalar_prefetch = 0 : i64, scratch_operands = 0 : i64, tpu.core_type = #tpu.core_type<tc>, window_params = [{transform_indices = @transform_0, window_bounds = array<i64: 8, 256>}, {pipeline_mode = #tpu.pipeline_mode<synchronous>, transform_indices = @transform_1, window_bounds = array<i64: 256, 1024>}, {pipeline_mode = #tpu.pipeline_mode<synchronous>, transform_indices = @transform_2, window_bounds = array<i64: 1, 1024>}, {pipeline_mode = #tpu.pipeline_mode<synchronous>, transform_indices = @transform_3, window_bounds = array<i64: 1024, 512>}, {pipeline_mode = #tpu.pipeline_mode<synchronous>, transform_indices = @transform_4, window_bounds = array<i64: 1, 512>}, {pipeline_mode = #tpu.pipeline_mode<synchronous>, transform_indices = @transform_5, window_bounds = array<i64: 512, 128>}, {pipeline_mode = #tpu.pipeline_mode<synchronous>, transform_indices = @transform_6, window_bounds = array<i64: 1, 128>}, {pipeline_mode = #tpu.pipeline_mode<synchronous>, transform_indices = @transform_7, window_bounds = array<i64: 128, 512>}, {pipeline_mode = #tpu.pipeline_mode<synchronous>, transform_indices = @transform_8, window_bounds = array<i64: 1, 512>}, {pipeline_mode = #tpu.pipeline_mode<synchronous>, transform_indices = @transform_9, window_bounds = array<i64: 512, 1024>}, {pipeline_mode = #tpu.pipeline_mode<synchronous>, transform_indices = @transform_10, window_bounds = array<i64: 1, 1024>}, {pipeline_mode = #tpu.pipeline_mode<synchronous>, transform_indices = @transform_11, window_bounds = array<i64: 1024, 256>}, {pipeline_mode = #tpu.pipeline_mode<synchronous>, transform_indices = @transform_12, window_bounds = array<i64: 1, 256>}, {transform_indices = @transform_13, window_bounds = array<i64: 8, 256>}, {transform_indices = @transform_14, window_bounds = array<i64: 8, 128>}]} {
    %c0 = arith.constant 0 : index
    %c0_0 = arith.constant 0 : index
    %0 = vector.load %arg1[%c0, %c0_0] : memref<8x256xf32, #tpu.memory_space<vmem>>, vector<8x256xf32>
    %1 = arith.truncf %0 : vector<8x256xf32> to vector<8x256xbf16>
    %c0_1 = arith.constant 0 : index
    %c0_2 = arith.constant 0 : index
    %2 = vector.load %arg2[%c0_1, %c0_2] : memref<256x1024xbf16, #tpu.memory_space<vmem>>, vector<256x1024xbf16>
    %cst = arith.constant dense<0.000000e+00> : vector<8x1024xf32>
    %3 = tpu.matmul %1, %2, %cst {dimension_numbers = #tpu.dot_dimension_numbers<[1], [0], [0], [1], [0, 0, 1, 1], [], []>} : vector<8x256xbf16>, vector<256x1024xbf16>, vector<8x1024xf32> -> vector<8x1024xf32>
    %c0_3 = arith.constant 0 : index
    %c0_4 = arith.constant 0 : index
    %4 = vector.load %arg3[%c0_3, %c0_4] : memref<1x1024xf32, #tpu.memory_space<vmem>>, vector<1x1024xf32>
    %5 = vector.broadcast %4 : vector<1x1024xf32> to vector<8x1024xf32>
    %6 = arith.addf %3, %5 : vector<8x1024xf32>
    %7 = math.tanh %6 : vector<8x1024xf32>
    %8 = arith.truncf %7 : vector<8x1024xf32> to vector<8x1024xbf16>
    %c0_5 = arith.constant 0 : index
    %c0_6 = arith.constant 0 : index
    %9 = vector.load %arg4[%c0_5, %c0_6] : memref<1024x512xbf16, #tpu.memory_space<vmem>>, vector<1024x512xbf16>
    %cst_7 = arith.constant dense<0.000000e+00> : vector<8x512xf32>
    %10 = tpu.matmul %8, %9, %cst_7 {dimension_numbers = #tpu.dot_dimension_numbers<[1], [0], [0], [1], [0, 0, 1, 1], [], []>} : vector<8x1024xbf16>, vector<1024x512xbf16>, vector<8x512xf32> -> vector<8x512xf32>
    %c0_8 = arith.constant 0 : index
    %c0_9 = arith.constant 0 : index
    %11 = vector.load %arg5[%c0_8, %c0_9] : memref<1x512xf32, #tpu.memory_space<vmem>>, vector<1x512xf32>
    %12 = vector.broadcast %11 : vector<1x512xf32> to vector<8x512xf32>
    %13 = arith.addf %10, %12 : vector<8x512xf32>
    %14 = math.tanh %13 : vector<8x512xf32>
    %15 = arith.truncf %14 : vector<8x512xf32> to vector<8x512xbf16>
    %c0_10 = arith.constant 0 : index
    %c0_11 = arith.constant 0 : index
    %16 = vector.load %arg6[%c0_10, %c0_11] : memref<512x128xbf16, #tpu.memory_space<vmem>>, vector<512x128xbf16>
    %cst_12 = arith.constant dense<0.000000e+00> : vector<8x128xf32>
    %17 = tpu.matmul %15, %16, %cst_12 {dimension_numbers = #tpu.dot_dimension_numbers<[1], [0], [0], [1], [0, 0, 1, 1], [], []>} : vector<8x512xbf16>, vector<512x128xbf16>, vector<8x128xf32> -> vector<8x128xf32>
    %c0_13 = arith.constant 0 : index
    %c0_14 = arith.constant 0 : index
    %18 = vector.load %arg7[%c0_13, %c0_14] : memref<1x128xf32, #tpu.memory_space<vmem>>, vector<1x128xf32>
    %19 = vector.broadcast %18 : vector<1x128xf32> to vector<8x128xf32>
    %20 = arith.addf %17, %19 : vector<8x128xf32>
    %21 = math.tanh %20 : vector<8x128xf32>
    %c0_15 = arith.constant 0 : index
    %c0_16 = arith.constant 0 : index
    %22 = vector.load %arg15[%c0_15, %c0_16] : memref<8x128xf32, #tpu.memory_space<vmem>>, vector<8x128xf32>
    tpu.vector_store %arg15[%c0_15, %c0_16], %21 {strides = array<i32>} : memref<8x128xf32, #tpu.memory_space<vmem>>, vector<8x128xf32>,
    %23 = arith.truncf %21 : vector<8x128xf32> to vector<8x128xbf16>
    %c0_17 = arith.constant 0 : index
    %c0_18 = arith.constant 0 : index
    %24 = vector.load %arg8[%c0_17, %c0_18] : memref<128x512xbf16, #tpu.memory_space<vmem>>, vector<128x512xbf16>
    %cst_19 = arith.constant dense<0.000000e+00> : vector<8x512xf32>
    %25 = tpu.matmul %23, %24, %cst_19 {dimension_numbers = #tpu.dot_dimension_numbers<[1], [0], [0], [1], [0, 0, 1, 1], [], []>} : vector<8x128xbf16>, vector<128x512xbf16>, vector<8x512xf32> -> vector<8x512xf32>
    %c0_20 = arith.constant 0 : index
    %c0_21 = arith.constant 0 : index
    %26 = vector.load %arg9[%c0_20, %c0_21] : memref<1x512xf32, #tpu.memory_space<vmem>>, vector<1x512xf32>
    %27 = vector.broadcast %26 : vector<1x512xf32> to vector<8x512xf32>
    %28 = arith.addf %25, %27 : vector<8x512xf32>
    %29 = math.tanh %28 : vector<8x512xf32>
    %30 = arith.truncf %29 : vector<8x512xf32> to vector<8x512xbf16>
    %c0_22 = arith.constant 0 : index
    %c0_23 = arith.constant 0 : index
    %31 = vector.load %arg10[%c0_22, %c0_23] : memref<512x1024xbf16, #tpu.memory_space<vmem>>, vector<512x1024xbf16>
    %cst_24 = arith.constant dense<0.000000e+00> : vector<8x1024xf32>
    %32 = tpu.matmul %30, %31, %cst_24 {dimension_numbers = #tpu.dot_dimension_numbers<[1], [0], [0], [1], [0, 0, 1, 1], [], []>} : vector<8x512xbf16>, vector<512x1024xbf16>, vector<8x1024xf32> -> vector<8x1024xf32>
    %c0_25 = arith.constant 0 : index
    %c0_26 = arith.constant 0 : index
    %33 = vector.load %arg11[%c0_25, %c0_26] : memref<1x1024xf32, #tpu.memory_space<vmem>>, vector<1x1024xf32>
    %34 = vector.broadcast %33 : vector<1x1024xf32> to vector<8x1024xf32>
    %35 = arith.addf %32, %34 : vector<8x1024xf32>
    %36 = math.tanh %35 : vector<8x1024xf32>
    %37 = arith.truncf %36 : vector<8x1024xf32> to vector<8x1024xbf16>
    %c0_27 = arith.constant 0 : index
    %c0_28 = arith.constant 0 : index
    %38 = vector.load %arg12[%c0_27, %c0_28] : memref<1024x256xbf16, #tpu.memory_space<vmem>>, vector<1024x256xbf16>
    %cst_29 = arith.constant dense<0.000000e+00> : vector<8x256xf32>
    %39 = tpu.matmul %37, %38, %cst_29 {dimension_numbers = #tpu.dot_dimension_numbers<[1], [0], [0], [1], [0, 0, 1, 1], [], []>} : vector<8x1024xbf16>, vector<1024x256xbf16>, vector<8x256xf32> -> vector<8x256xf32>
    %c0_30 = arith.constant 0 : index
    %c0_31 = arith.constant 0 : index
    %40 = vector.load %arg13[%c0_30, %c0_31] : memref<1x256xf32, #tpu.memory_space<vmem>>, vector<1x256xf32>
    %41 = vector.broadcast %40 : vector<1x256xf32> to vector<8x256xf32>
    %42 = arith.addf %39, %41 : vector<8x256xf32>
    %c0_32 = arith.constant 0 : index
    %c0_33 = arith.constant 0 : index
    %43 = vector.load %arg14[%c0_32, %c0_33] : memref<8x256xf32, #tpu.memory_space<vmem>>, vector<8x256xf32>
    tpu.vector_store %arg14[%c0_32, %c0_33], %42 {strides = array<i32>} : memref<8x256xf32, #tpu.memory_space<vmem>>, vector<8x256xf32>,
    return
  }
  func.func @transform_0(%arg0: i32) -> (i32, i32) {
    %c0_i32 = arith.constant 0 : i32
    %c0_i32_0 = arith.constant 0 : i32
    return %arg0, %c0_i32 : i32, i32
  }
  func.func @transform_1(%arg0: i32) -> (i32, i32) {
    %c0_i32 = arith.constant 0 : i32
    %c0_i32_0 = arith.constant 0 : i32
    %c0_i32_1 = arith.constant 0 : i32
    return %c0_i32, %c0_i32_0 : i32, i32
  }
  func.func @transform_2(%arg0: i32) -> (i32, i32) {
    %c0_i32 = arith.constant 0 : i32
    %c0_i32_0 = arith.constant 0 : i32
    %c0_i32_1 = arith.constant 0 : i32
    return %c0_i32, %c0_i32_0 : i32, i32
  }
  func.func @transform_3(%arg0: i32) -> (i32, i32) {
    %c0_i32 = arith.constant 0 : i32
    %c0_i32_0 = arith.constant 0 : i32
    %c0_i32_1 = arith.constant 0 : i32
    return %c0_i32, %c0_i32_0 : i32, i32
  }
  func.func @transform_4(%arg0: i32) -> (i32, i32) {
    %c0_i32 = arith.constant 0 : i32
    %c0_i32_0 = arith.constant 0 : i32
    %c0_i32_1 = arith.constant 0 : i32
    return %c0_i32, %c0_i32_0 : i32, i32
  }
  func.func @transform_5(%arg0: i32) -> (i32, i32) {
    %c0_i32 = arith.constant 0 : i32
    %c0_i32_0 = arith.constant 0 : i32
    %c0_i32_1 = arith.constant 0 : i32
    return %c0_i32, %c0_i32_0 : i32, i32
  }
  func.func @transform_6(%arg0: i32) -> (i32, i32) {
    %c0_i32 = arith.constant 0 : i32
    %c0_i32_0 = arith.constant 0 : i32
    %c0_i32_1 = arith.constant 0 : i32
    return %c0_i32, %c0_i32_0 : i32, i32
  }
  func.func @transform_7(%arg0: i32) -> (i32, i32) {
    %c0_i32 = arith.constant 0 : i32
    %c0_i32_0 = arith.constant 0 : i32
    %c0_i32_1 = arith.constant 0 : i32
    return %c0_i32, %c0_i32_0 : i32, i32
  }
  func.func @transform_8(%arg0: i32) -> (i32, i32) {
    %c0_i32 = arith.constant 0 : i32
    %c0_i32_0 = arith.constant 0 : i32
    %c0_i32_1 = arith.constant 0 : i32
    return %c0_i32, %c0_i32_0 : i32, i32
  }
  func.func @transform_9(%arg0: i32) -> (i32, i32) {
    %c0_i32 = arith.constant 0 : i32
    %c0_i32_0 = arith.constant 0 : i32
    %c0_i32_1 = arith.constant 0 : i32
    return %c0_i32, %c0_i32_0 : i32, i32
  }
  func.func @transform_10(%arg0: i32) -> (i32, i32) {
    %c0_i32 = arith.constant 0 : i32
    %c0_i32_0 = arith.constant 0 : i32
    %c0_i32_1 = arith.constant 0 : i32
    return %c0_i32, %c0_i32_0 : i32, i32
  }
  func.func @transform_11(%arg0: i32) -> (i32, i32) {
    %c0_i32 = arith.constant 0 : i32
    %c0_i32_0 = arith.constant 0 : i32
    %c0_i32_1 = arith.constant 0 : i32
    return %c0_i32, %c0_i32_0 : i32, i32
  }
  func.func @transform_12(%arg0: i32) -> (i32, i32) {
    %c0_i32 = arith.constant 0 : i32
    %c0_i32_0 = arith.constant 0 : i32
    %c0_i32_1 = arith.constant 0 : i32
    return %c0_i32, %c0_i32_0 : i32, i32
  }
  func.func @transform_13(%arg0: i32) -> (i32, i32) {
    %c0_i32 = arith.constant 0 : i32
    %c0_i32_0 = arith.constant 0 : i32
    return %arg0, %c0_i32 : i32, i32
  }
  func.func @transform_14(%arg0: i32) -> (i32, i32) {
    %c0_i32 = arith.constant 0 : i32
    %c0_i32_0 = arith.constant 0 : i32
    return %arg0, %c0_i32 : i32, i32
  }
}

</mosaic_0001>

<llo_original>
// kernel: autoencoder_forward.1
$region0: #{autoencoder_forward.1}
  #allocation0 [shape = 'u32[]', space=smem, size = 0x4, offset = 0x4, fixed_abs, tag = 'smem constant byte address 0x4 - core index']
  #allocation1 [shape = 'u32[144,128]{1,0:T(1,128)}', space=vmem, size = 0x12000, scoped, tag = 'internal scratch']
  %s0 = inlined_call_operand.vmem [shape: f32[8,256], index: 0, kind: input, shape index: {}]
  %s1 = inlined_call_operand.vmem [shape: bf16[256,1024], index: 1, kind: input, shape index: {}]
  %s2 = inlined_call_operand.vmem [shape: f32[1,1024], index: 2, kind: input, shape index: {}]
  %s3 = inlined_call_operand.vmem [shape: bf16[1024,512], index: 3, kind: input, shape index: {}]
  %s4 = inlined_call_operand.vmem [shape: f32[1,512], index: 4, kind: input, shape index: {}]
  %s5 = inlined_call_operand.vmem [shape: bf16[512,128], index: 5, kind: input, shape index: {}]
  %s6 = inlined_call_operand.vmem [shape: f32[1,128], index: 6, kind: input, shape index: {}]
  %s7 = inlined_call_operand.vmem [shape: bf16[128,512], index: 7, kind: input, shape index: {}]
  %s8 = inlined_call_operand.vmem [shape: f32[1,512], index: 8, kind: input, shape index: {}]
  %s9 = inlined_call_operand.vmem [shape: bf16[512,1024], index: 9, kind: input, shape index: {}]
  %s10 = inlined_call_operand.vmem [shape: f32[1,1024], index: 10, kind: input, shape index: {}]
  %s11 = inlined_call_operand.vmem [shape: bf16[1024,256], index: 11, kind: input, shape index: {}]
  %s12 = inlined_call_operand.vmem [shape: f32[1,256], index: 12, kind: input, shape index: {}]
  %s13 = inlined_call_operand.hbm [shape: f32[8,256], index: 13, kind: output, shape index: {0}]
  %s14 = inlined_call_operand.hbm [shape: f32[8,128], index: 14, kind: output, shape index: {1}]
  %15 = xla_tuple %s13, %s14
  %s16 = sld [smem:[#allocation0]]
  $region70: #{autoencoder_forward.1} parent=0
    _
  %s18 = ssub.s32 1, %s16
  %s19 = scalar_select 0, %s18, %s16
  $region1: #{autoencoder_forward.1} parent=0
    #allocation2 [shape = 'u8[8192]{0}', space=vmem, size = 0x2000, scoped, tag = 'output window, operand 0, single buffered']
    #allocation3 [shape = 's32[1]{0}', space=sflag, size = 0x4, scoped, tag = 'scoped memory for autoencoder_forward.1']
    #allocation4 [shape = 'u8[4096]{0}', space=vmem, size = 0x1000, scoped, tag = 'output window, operand 1, single buffered']
    #allocation5 [shape = 's32[1]{0}', space=sflag, size = 0x4, scoped, tag = 'scoped memory for autoencoder_forward.1']
    %20 = vsyncpa [#allocation3], 0
    %21 = vsyncpa [#allocation5], 0
    // Predicated region
    $region2: #{autoencoder_forward.1} parent=1 // pred_check
      _
    $region3: #{autoencoder_forward.1} parent=1 // pred_check_branch
      %23 = sbr.rel (0) target = $region5
    $region4: #{autoencoder_forward.1} parent=1 // pred_region
      _
    $region5: #{autoencoder_forward.1} parent=1 // pred_fallthru
      _
    // Predicated region
    $region6: #{autoencoder_forward.1} parent=1 // pred_check
      _
    $region7: #{autoencoder_forward.1} parent=1 // pred_check_branch
      %25 = sbr.rel (0) target = $region9
    $region8: #{autoencoder_forward.1} parent=1 // pred_region
      _
    $region9: #{autoencoder_forward.1} parent=1 // pred_fallthru
      _
    // Predicated region
    $region10: #{autoencoder_forward.1} parent=1 // pred_check
      _
    $region11: #{autoencoder_forward.1} parent=1 // pred_check_branch
      %27 = sbr.rel (0) target = $region13
    $region12: #{autoencoder_forward.1} parent=1 // pred_region
      _
    $region13: #{autoencoder_forward.1} parent=1 // pred_fallthru
      _
    // Predicated region
    $region14: #{autoencoder_forward.1} parent=1 // pred_check
      _
    $region15: #{autoencoder_forward.1} parent=1 // pred_check_branch
      %29 = sbr.rel (0) target = $region17
    $region16: #{autoencoder_forward.1} parent=1 // pred_region
      _
    $region17: #{autoencoder_forward.1} parent=1 // pred_fallthru
      _
    // Predicated region
    $region18: #{autoencoder_forward.1} parent=1 // pred_check
      _
    $region19: #{autoencoder_forward.1} parent=1 // pred_check_branch
      %31 = sbr.rel (0) target = $region21
    $region20: #{autoencoder_forward.1} parent=1 // pred_region
      _
    $region21: #{autoencoder_forward.1} parent=1 // pred_fallthru
      _
    // Predicated region
    $region22: #{autoencoder_forward.1} parent=1 // pred_check
      _
    $region23: #{autoencoder_forward.1} parent=1 // pred_check_branch
      %33 = sbr.rel (0) target = $region25
    $region24: #{autoencoder_forward.1} parent=1 // pred_region
      _
    $region25: #{autoencoder_forward.1} parent=1 // pred_fallthru
      _
    // Predicated region
    $region26: #{autoencoder_forward.1} parent=1 // pred_check
      _
    $region27: #{autoencoder_forward.1} parent=1 // pred_check_branch
      %35 = sbr.rel (0) target = $region29
    $region28: #{autoencoder_forward.1} parent=1 // pred_region
      _
    $region29: #{autoencoder_forward.1} parent=1 // pred_fallthru
      _
    // Predicated region
    $region30: #{autoencoder_forward.1} parent=1 // pred_check
      _
    $region31: #{autoencoder_forward.1} parent=1 // pred_check_branch
      %37 = sbr.rel (0) target = $region33
    $region32: #{autoencoder_forward.1} parent=1 // pred_region
      _
    $region33: #{autoencoder_forward.1} parent=1 // pred_fallthru
      _
    // Predicated region
    $region34: #{autoencoder_forward.1} parent=1 // pred_check
      _
    $region35: #{autoencoder_forward.1} parent=1 // pred_check_branch
      %39 = sbr.rel (0) target = $region37
    $region36: #{autoencoder_forward.1} parent=1 // pred_region
      _
    $region37: #{autoencoder_forward.1} parent=1 // pred_fallthru
      _
    // Predicated region
    $region38: #{autoencoder_forward.1} parent=1 // pred_check
      _
    $region39: #{autoencoder_forward.1} parent=1 // pred_check_branch
      %41 = sbr.rel (0) target = $region41
    $region40: #{autoencoder_forward.1} parent=1 // pred_region
      _
    $region41: #{autoencoder_forward.1} parent=1 // pred_fallthru
      _
    // Predicated region
    $region42: #{autoencoder_forward.1} parent=1 // pred_check
      _
    $region43: #{autoencoder_forward.1} parent=1 // pred_check_branch
      %43 = sbr.rel (0) target = $region45
    $region44: #{autoencoder_forward.1} parent=1 // pred_region
      _
    $region45: #{autoencoder_forward.1} parent=1 // pred_fallthru
      _
    // Predicated region
    $region46: #{autoencoder_forward.1} parent=1 // pred_check
      _
    $region47: #{autoencoder_forward.1} parent=1 // pred_check_branch
      %45 = sbr.rel (0) target = $region49
    $region48: #{autoencoder_forward.1} parent=1 // pred_region
      _
    $region49: #{autoencoder_forward.1} parent=1 // pred_fallthru
      _
    // Predicated region
    $region50: #{autoencoder_forward.1} parent=1 // pred_check
      _
    $region51: #{autoencoder_forward.1} parent=1 // pred_check_branch
      %47 = sbr.rel (0) target = $region53
    $region52: #{autoencoder_forward.1} parent=1 // pred_region
      _
    $region53: #{autoencoder_forward.1} parent=1 // pred_fallthru
      _
    %v49 = vld [vmem:[%s0] sm:$0xff]
    %v50 = vld [vmem:[%s0 + $0x8] sm:$0xff]
    %v51 = vpack.c.bf16 %v49, %v49
    %v52 = vpack.c.bf16 %v50, %v50
    %v53 = vld [vmem:[%s1] sm:$0xff]
    %v54 = vld [vmem:[%s1 + $0x8] sm:$0xff]
    %v55 = vld [vmem:[%s1 + $0x10] sm:$0xff]
    %v56 = vld [vmem:[%s1 + $0x18] sm:$0xff]
    %v57 = vld [vmem:[%s1 + $0x20] sm:$0xff]
    %v58 = vld [vmem:[%s1 + $0x28] sm:$0xff]
    %v59 = vld [vmem:[%s1 + $0x30] sm:$0xff]
    %v60 = vld [vmem:[%s1 + $0x38] sm:$0xff]
    %v61 = vld [vmem:[%s1 + $0x40] sm:$0xff]
    %v62 = vld [vmem:[%s1 + $0x48] sm:$0xff]
    %v63 = vld [vmem:[%s1 + $0x50] sm:$0xff]
    %v64 = vld [vmem:[%s1 + $0x58] sm:$0xff]
    %v65 = vld [vmem:[%s1 + $0x60] sm:$0xff]
    %v66 = vld [vmem:[%s1 + $0x68] sm:$0xff]
    %v67 = vld [vmem:[%s1 + $0x70] sm:$0xff]
    %v68 = vld [vmem:[%s1 + $0x78] sm:$0xff]
    %v69 = vld [vmem:[%s1 + $0x80] sm:$0xff]
    %v70 = vld [vmem:[%s1 + $0x88] sm:$0xff]
    %v71 = vld [vmem:[%s1 + $0x90] sm:$0xff]
    %v72 = vld [vmem:[%s1 + $0x98] sm:$0xff]
    %v73 = vld [vmem:[%s1 + $0xa0] sm:$0xff]
    %v74 = vld [vmem:[%s1 + $0xa8] sm:$0xff]
    %v75 = vld [vmem:[%s1 + $0xb0] sm:$0xff]
    %v76 = vld [vmem:[%s1 + $0xb8] sm:$0xff]
    %v77 = vld [vmem:[%s1 + $0xc0] sm:$0xff]
    %v78 = vld [vmem:[%s1 + $0xc8] sm:$0xff]
    %v79 = vld [vmem:[%s1 + $0xd0] sm:$0xff]
    %v80 = vld [vmem:[%s1 + $0xd8] sm:$0xff]
    %v81 = vld [vmem:[%s1 + $0xe0] sm:$0xff]
    %v82 = vld [vmem:[%s1 + $0xe8] sm:$0xff]
    %v83 = vld [vmem:[%s1 + $0xf0] sm:$0xff]
    %v84 = vld [vmem:[%s1 + $0xf8] sm:$0xff]
    %v85 = vld [vmem:[%s1 + $0x100] sm:$0xff]
    %v86 = vld [vmem:[%s1 + $0x108] sm:$0xff]
    %v87 = vld [vmem:[%s1 + $0x110] sm:$0xff]
    %v88 = vld [vmem:[%s1 + $0x118] sm:$0xff]
    %v89 = vld [vmem:[%s1 + $0x120] sm:$0xff]
    %v90 = vld [vmem:[%s1 + $0x128] sm:$0xff]
    %v91 = vld [vmem:[%s1 + $0x130] sm:$0xff]
    %v92 = vld [vmem:[%s1 + $0x138] sm:$0xff]
    %v93 = vld [vmem:[%s1 + $0x140] sm:$0xff]
    %v94 = vld [vmem:[%s1 + $0x148] sm:$0xff]
    %v95 = vld [vmem:[%s1 + $0x150] sm:$0xff]
    %v96 = vld [vmem:[%s1 + $0x158] sm:$0xff]
    %v97 = vld [vmem:[%s1 + $0x160] sm:$0xff]
    %v98 = vld [vmem:[%s1 + $0x168] sm:$0xff]
    %v99 = vld [vmem:[%s1 + $0x170] sm:$0xff]
    %v100 = vld [vmem:[%s1 + $0x178] sm:$0xff]
    %v101 = vld [vmem:[%s1 + $0x180] sm:$0xff]
    %v102 = vld [vmem:[%s1 + $0x188] sm:$0xff]
    %v103 = vld [vmem:[%s1 + $0x190] sm:$0xff]
    %v104 = vld [vmem:[%s1 + $0x198] sm:$0xff]
    %v105 = vld [vmem:[%s1 + $0x1a0] sm:$0xff]
    %v106 = vld [vmem:[%s1 + $0x1a8] sm:$0xff]
    %v107 = vld [vmem:[%s1 + $0x1b0] sm:$0xff]
    %v108 = vld [vmem:[%s1 + $0x1b8] sm:$0xff]
    %v109 = vld [vmem:[%s1 + $0x1c0] sm:$0xff]
    %v110 = vld [vmem:[%s1 + $0x1c8] sm:$0xff]
    %v111 = vld [vmem:[%s1 + $0x1d0] sm:$0xff]
    %v112 = vld [vmem:[%s1 + $0x1d8] sm:$0xff]
    %v113 = vld [vmem:[%s1 + $0x1e0] sm:$0xff]
    %v114 = vld [vmem:[%s1 + $0x1e8] sm:$0xff]
    %v115 = vld [vmem:[%s1 + $0x1f0] sm:$0xff]
    %v116 = vld [vmem:[%s1 + $0x1f8] sm:$0xff]
    %v117 = vld [vmem:[%s1 + $0x200] sm:$0xff]
    %v118 = vld [vmem:[%s1 + $0x208] sm:$0xff]
    %v119 = vld [vmem:[%s1 + $0x210] sm:$0xff]
    %v120 = vld [vmem:[%s1 + $0x218] sm:$0xff]
    %v121 = vld [vmem:[%s1 + $0x220] sm:$0xff]
    %v122 = vld [vmem:[%s1 + $0x228] sm:$0xff]
    %v123 = vld [vmem:[%s1 + $0x230] sm:$0xff]
    %v124 = vld [vmem:[%s1 + $0x238] sm:$0xff]
    %v125 = vld [vmem:[%s1 + $0x240] sm:$0xff]
    %v126 = vld [vmem:[%s1 + $0x248] sm:$0xff]
    %v127 = vld [vmem:[%s1 + $0x250] sm:$0xff]
    %v128 = vld [vmem:[%s1 + $0x258] sm:$0xff]
    %v129 = vld [vmem:[%s1 + $0x260] sm:$0xff]
    %v130 = vld [vmem:[%s1 + $0x268] sm:$0xff]
    %v131 = vld [vmem:[%s1 + $0x270] sm:$0xff]
    %v132 = vld [vmem:[%s1 + $0x278] sm:$0xff]
    %v133 = vld [vmem:[%s1 + $0x280] sm:$0xff]
    %v134 = vld [vmem:[%s1 + $0x288] sm:$0xff]
    %v135 = vld [vmem:[%s1 + $0x290] sm:$0xff]
    %v136 = vld [vmem:[%s1 + $0x298] sm:$0xff]
    %v137 = vld [vmem:[%s1 + $0x2a0] sm:$0xff]
    %v138 = vld [vmem:[%s1 + $0x2a8] sm:$0xff]
    %v139 = vld [vmem:[%s1 + $0x2b0] sm:$0xff]
    %v140 = vld [vmem:[%s1 + $0x2b8] sm:$0xff]
    %v141 = vld [vmem:[%s1 + $0x2c0] sm:$0xff]
    %v142 = vld [vmem:[%s1 + $0x2c8] sm:$0xff]
    %v143 = vld [vmem:[%s1 + $0x2d0] sm:$0xff]
    %v144 = vld [vmem:[%s1 + $0x2d8] sm:$0xff]
    %v145 = vld [vmem:[%s1 + $0x2e0] sm:$0xff]
    %v146 = vld [vmem:[%s1 + $0x2e8] sm:$0xff]
    %v147 = vld [vmem:[%s1 + $0x2f0] sm:$0xff]
    %v148 = vld [vmem:[%s1 + $0x2f8] sm:$0xff]
    %v149 = vld [vmem:[%s1 + $0x300] sm:$0xff]
    %v150 = vld [vmem:[%s1 + $0x308] sm:$0xff]
    %v151 = vld [vmem:[%s1 + $0x310] sm:$0xff]
    %v152 = vld [vmem:[%s1 + $0x318] sm:$0xff]
    %v153 = vld [vmem:[%s1 + $0x320] sm:$0xff]
    %v154 = vld [vmem:[%s1 + $0x328] sm:$0xff]
    %v155 = vld [vmem:[%s1 + $0x330] sm:$0xff]
    %v156 = vld [vmem:[%s1 + $0x338] sm:$0xff]
    %v157 = vld [vmem:[%s1 + $0x340] sm:$0xff]
    %v158 = vld [vmem:[%s1 + $0x348] sm:$0xff]
    %v159 = vld [vmem:[%s1 + $0x350] sm:$0xff]
    %v160 = vld [vmem:[%s1 + $0x358] sm:$0xff]
    %v161 = vld [vmem:[%s1 + $0x360] sm:$0xff]
    %v162 = vld [vmem:[%s1 + $0x368] sm:$0xff]
    %v163 = vld [vmem:[%s1 + $0x370] sm:$0xff]
    %v164 = vld [vmem:[%s1 + $0x378] sm:$0xff]
    %v165 = vld [vmem:[%s1 + $0x380] sm:$0xff]
    %v166 = vld [vmem:[%s1 + $0x388] sm:$0xff]
    %v167 = vld [vmem:[%s1 + $0x390] sm:$0xff]
    %v168 = vld [vmem:[%s1 + $0x398] sm:$0xff]
    %v169 = vld [vmem:[%s1 + $0x3a0] sm:$0xff]
    %v170 = vld [vmem:[%s1 + $0x3a8] sm:$0xff]
    %v171 = vld [vmem:[%s1 + $0x3b0] sm:$0xff]
    %v172 = vld [vmem:[%s1 + $0x3b8] sm:$0xff]
    %v173 = vld [vmem:[%s1 + $0x3c0] sm:$0xff]
    %v174 = vld [vmem:[%s1 + $0x3c8] sm:$0xff]
    %v175 = vld [vmem:[%s1 + $0x3d0] sm:$0xff]
    %v176 = vld [vmem:[%s1 + $0x3d8] sm:$0xff]
    %v177 = vld [vmem:[%s1 + $0x3e0] sm:$0xff]
    %v178 = vld [vmem:[%s1 + $0x3e8] sm:$0xff]
    %v179 = vld [vmem:[%s1 + $0x3f0] sm:$0xff]
    %v180 = vld [vmem:[%s1 + $0x3f8] sm:$0xff]
    %v181 = vld [vmem:[%s2] sm:$0xff]
    %v183 = vlaneseq
    %v184 = vshrl.u32 %v183, 7
    %v185 = vsub.s32 0, %v184
    %v186 = vrot.slane %v181, %v185
    %v187 = vlaneseq
    %v188 = vshrl.u32 %v187, 7
    %v189 = vsub.s32 1, %v188
    %v190 = vrot.slane %v181, %v189
    %v191 = vlaneseq
    %v192 = vshrl.u32 %v191, 7
    %v193 = vsub.s32 2, %v192
    %v194 = vrot.slane %v181, %v193
    %v195 = vlaneseq
    %v196 = vshrl.u32 %v195, 7
    %v197 = vsub.s32 3, %v196
    %v198 = vrot.slane %v181, %v197
    %v199 = vlaneseq
    %v200 = vshrl.u32 %v199, 7
    %v201 = vsub.s32 4, %v200
    %v202 = vrot.slane %v181, %v201
    %v203 = vlaneseq
    %v204 = vshrl.u32 %v203, 7
    %v205 = vsub.s32 5, %v204
    %v206 = vrot.slane %v181, %v205
    %v207 = vlaneseq
    %v208 = vshrl.u32 %v207, 7
    %v209 = vsub.s32 6, %v208
    %v210 = vrot.slane %v181, %v209
    %v211 = vlaneseq
    %v212 = vshrl.u32 %v211, 7
    %v213 = vsub.s32 7, %v212
    %v214 = vrot.slane %v181, %v213
    %v351 = vunpack.c.l.b16 %v53
    %v352 = vunpack.c.h.b16 %v53
    %v353 = vunpack.c.l.b16 %v54
    %v354 = vunpack.c.h.b16 %v54
    %v355 = vunpack.c.l.b16 %v55
    %v356 = vunpack.c.h.b16 %v55
    %v357 = vunpack.c.l.b16 %v56
    %v358 = vunpack.c.h.b16 %v56
    %v359 = vunpack.c.l.b16 %v57
    %v360 = vunpack.c.h.b16 %v57
    %v361 = vunpack.c.l.b16 %v58
    %v362 = vunpack.c.h.b16 %v58
    %v363 = vunpack.c.l.b16 %v59
    %v364 = vunpack.c.h.b16 %v59
    %v365 = vunpack.c.l.b16 %v60
    %v366 = vunpack.c.h.b16 %v60
    %v367 = vunpack.c.l.b16 %v61
    %v368 = vunpack.c.h.b16 %v61
    %v369 = vunpack.c.l.b16 %v62
    %v370 = vunpack.c.h.b16 %v62
    %v371 = vunpack.c.l.b16 %v63
    %v372 = vunpack.c.h.b16 %v63
    %v373 = vunpack.c.l.b16 %v64
    %v374 = vunpack.c.h.b16 %v64
    %v375 = vunpack.c.l.b16 %v65
    %v376 = vunpack.c.h.b16 %v65
    %v377 = vunpack.c.l.b16 %v66
    %v378 = vunpack.c.h.b16 %v66
    %v379 = vunpack.c.l.b16 %v67
    %v380 = vunpack.c.h.b16 %v67
    %v381 = vunpack.c.l.b16 %v68
    %v382 = vunpack.c.h.b16 %v68
    %v383 = vunpack.c.l.b16 %v69
    %v384 = vunpack.c.h.b16 %v69
    %v385 = vunpack.c.l.b16 %v70
    %v386 = vunpack.c.h.b16 %v70
    %v387 = vunpack.c.l.b16 %v71
    %v388 = vunpack.c.h.b16 %v71
    %v389 = vunpack.c.l.b16 %v72
    %v390 = vunpack.c.h.b16 %v72
    %v391 = vunpack.c.l.b16 %v73
    %v392 = vunpack.c.h.b16 %v73
    %v393 = vunpack.c.l.b16 %v74
    %v394 = vunpack.c.h.b16 %v74
    %v395 = vunpack.c.l.b16 %v75
    %v396 = vunpack.c.h.b16 %v75
    %v397 = vunpack.c.l.b16 %v76
    %v398 = vunpack.c.h.b16 %v76
    %v399 = vunpack.c.l.b16 %v77
    %v400 = vunpack.c.h.b16 %v77
    %v401 = vunpack.c.l.b16 %v78
    %v402 = vunpack.c.h.b16 %v78
    %v403 = vunpack.c.l.b16 %v79
    %v404 = vunpack.c.h.b16 %v79
    %v405 = vunpack.c.l.b16 %v80
    %v406 = vunpack.c.h.b16 %v80
    %v407 = vunpack.c.l.b16 %v81
    %v408 = vunpack.c.h.b16 %v81
    %v409 = vunpack.c.l.b16 %v82
    %v410 = vunpack.c.h.b16 %v82
    %v411 = vunpack.c.l.b16 %v83
    %v412 = vunpack.c.h.b16 %v83
    %v413 = vunpack.c.l.b16 %v84
    %v414 = vunpack.c.h.b16 %v84
    %v415 = vunpack.c.l.b16 %v85
    %v416 = vunpack.c.h.b16 %v85
    %v417 = vunpack.c.l.b16 %v86
    %v418 = vunpack.c.h.b16 %v86
    %v419 = vunpack.c.l.b16 %v87
    %v420 = vunpack.c.h.b16 %v87
    %v421 = vunpack.c.l.b16 %v88
    %v422 = vunpack.c.h.b16 %v88
    %v423 = vunpack.c.l.b16 %v89
    %v424 = vunpack.c.h.b16 %v89
    %v425 = vunpack.c.l.b16 %v90
    %v426 = vunpack.c.h.b16 %v90
    %v427 = vunpack.c.l.b16 %v91
    %v428 = vunpack.c.h.b16 %v91
    %v429 = vunpack.c.l.b16 %v92
    %v430 = vunpack.c.h.b16 %v92
    %v431 = vunpack.c.l.b16 %v93
    %v432 = vunpack.c.h.b16 %v93
    %v433 = vunpack.c.l.b16 %v94
    %v434 = vunpack.c.h.b16 %v94
    %v435 = vunpack.c.l.b16 %v95
    %v436 = vunpack.c.h.b16 %v95
    %v437 = vunpack.c.l.b16 %v96
    %v438 = vunpack.c.h.b16 %v96
    %v439 = vunpack.c.l.b16 %v97
    %v440 = vunpack.c.h.b16 %v97
    %v441 = vunpack.c.l.b16 %v98
    %v442 = vunpack.c.h.b16 %v98
    %v443 = vunpack.c.l.b16 %v99
    %v444 = vunpack.c.h.b16 %v99
    %v445 = vunpack.c.l.b16 %v100
    %v446 = vunpack.c.h.b16 %v100
    %v447 = vunpack.c.l.b16 %v101
    %v448 = vunpack.c.h.b16 %v101
    %v449 = vunpack.c.l.b16 %v102
    %v450 = vunpack.c.h.b16 %v102
    %v451 = vunpack.c.l.b16 %v103
    %v452 = vunpack.c.h.b16 %v103
    %v453 = vunpack.c.l.b16 %v104
    %v454 = vunpack.c.h.b16 %v104
    %v455 = vunpack.c.l.b16 %v105
    %v456 = vunpack.c.h.b16 %v105
    %v457 = vunpack.c.l.b16 %v106
    %v458 = vunpack.c.h.b16 %v106
    %v459 = vunpack.c.l.b16 %v107
    %v460 = vunpack.c.h.b16 %v107
    %v461 = vunpack.c.l.b16 %v108
    %v462 = vunpack.c.h.b16 %v108
    %v463 = vunpack.c.l.b16 %v109
    %v464 = vunpack.c.h.b16 %v109
    %v465 = vunpack.c.l.b16 %v110
    %v466 = vunpack.c.h.b16 %v110
    %v467 = vunpack.c.l.b16 %v111
    %v468 = vunpack.c.h.b16 %v111
    %v469 = vunpack.c.l.b16 %v112
    %v470 = vunpack.c.h.b16 %v112
    %v471 = vunpack.c.l.b16 %v113
    %v472 = vunpack.c.h.b16 %v113
    %v473 = vunpack.c.l.b16 %v114
    %v474 = vunpack.c.h.b16 %v114
    %v475 = vunpack.c.l.b16 %v115
    %v476 = vunpack.c.h.b16 %v115
    %v477 = vunpack.c.l.b16 %v116
    %v478 = vunpack.c.h.b16 %v116
    %v479 = vunpack.c.l.b16 %v117
    %v480 = vunpack.c.h.b16 %v117
    %v481 = vunpack.c.l.b16 %v118
    %v482 = vunpack.c.h.b16 %v118
    %v483 = vunpack.c.l.b16 %v119
    %v484 = vunpack.c.h.b16 %v119
    %v485 = vunpack.c.l.b16 %v120
    %v486 = vunpack.c.h.b16 %v120
    %v487 = vunpack.c.l.b16 %v121
    %v488 = vunpack.c.h.b16 %v121
    %v489 = vunpack.c.l.b16 %v122
    %v490 = vunpack.c.h.b16 %v122
    %v491 = vunpack.c.l.b16 %v123
    %v492 = vunpack.c.h.b16 %v123
    %v493 = vunpack.c.l.b16 %v124
    %v494 = vunpack.c.h.b16 %v124
    %v495 = vunpack.c.l.b16 %v125
    %v496 = vunpack.c.h.b16 %v125
    %v497 = vunpack.c.l.b16 %v126
    %v498 = vunpack.c.h.b16 %v126
    %v499 = vunpack.c.l.b16 %v127
    %v500 = vunpack.c.h.b16 %v127
    %v501 = vunpack.c.l.b16 %v128
    %v502 = vunpack.c.h.b16 %v128
    %v503 = vunpack.c.l.b16 %v129
    %v504 = vunpack.c.h.b16 %v129
    %v505 = vunpack.c.l.b16 %v130
    %v506 = vunpack.c.h.b16 %v130
    %v507 = vunpack.c.l.b16 %v131
    %v508 = vunpack.c.h.b16 %v131
    %v509 = vunpack.c.l.b16 %v132
    %v510 = vunpack.c.h.b16 %v132
    %v511 = vunpack.c.l.b16 %v133
    %v512 = vunpack.c.h.b16 %v133
    %v513 = vunpack.c.l.b16 %v134
    %v514 = vunpack.c.h.b16 %v134
    %v515 = vunpack.c.l.b16 %v135
    %v516 = vunpack.c.h.b16 %v135
    %v517 = vunpack.c.l.b16 %v136
    %v518 = vunpack.c.h.b16 %v136
    %v519 = vunpack.c.l.b16 %v137
    %v520 = vunpack.c.h.b16 %v137
    %v521 = vunpack.c.l.b16 %v138
    %v522 = vunpack.c.h.b16 %v138
    %v523 = vunpack.c.l.b16 %v139
    %v524 = vunpack.c.h.b16 %v139
    %v525 = vunpack.c.l.b16 %v140
    %v526 = vunpack.c.h.b16 %v140
    %v527 = vunpack.c.l.b16 %v141
    %v528 = vunpack.c.h.b16 %v141
    %v529 = vunpack.c.l.b16 %v142
    %v530 = vunpack.c.h.b16 %v142
    %v531 = vunpack.c.l.b16 %v143
    %v532 = vunpack.c.h.b16 %v143
    %v533 = vunpack.c.l.b16 %v144
    %v534 = vunpack.c.h.b16 %v144
    %v535 = vunpack.c.l.b16 %v145
    %v536 = vunpack.c.h.b16 %v145
    %v537 = vunpack.c.l.b16 %v146
    %v538 = vunpack.c.h.b16 %v146
    %v539 = vunpack.c.l.b16 %v147
    %v540 = vunpack.c.h.b16 %v147
    %v541 = vunpack.c.l.b16 %v148
    %v542 = vunpack.c.h.b16 %v148
    %v543 = vunpack.c.l.b16 %v149
    %v544 = vunpack.c.h.b16 %v149
    %v545 = vunpack.c.l.b16 %v150
    %v546 = vunpack.c.h.b16 %v150
    %v547 = vunpack.c.l.b16 %v151
    %v548 = vunpack.c.h.b16 %v151
    %v549 = vunpack.c.l.b16 %v152
    %v550 = vunpack.c.h.b16 %v152
    %v551 = vunpack.c.l.b16 %v153
    %v552 = vunpack.c.h.b16 %v153
    %v553 = vunpack.c.l.b16 %v154
    %v554 = vunpack.c.h.b16 %v154
    %v555 = vunpack.c.l.b16 %v155
    %v556 = vunpack.c.h.b16 %v155
    %v557 = vunpack.c.l.b16 %v156
    %v558 = vunpack.c.h.b16 %v156
    %v559 = vunpack.c.l.b16 %v157
    %v560 = vunpack.c.h.b16 %v157
    %v561 = vunpack.c.l.b16 %v158
    %v562 = vunpack.c.h.b16 %v158
    %v563 = vunpack.c.l.b16 %v159
    %v564 = vunpack.c.h.b16 %v159
    %v565 = vunpack.c.l.b16 %v160
    %v566 = vunpack.c.h.b16 %v160
    %v567 = vunpack.c.l.b16 %v161
    %v568 = vunpack.c.h.b16 %v161
    %v569 = vunpack.c.l.b16 %v162
    %v570 = vunpack.c.h.b16 %v162
    %v571 = vunpack.c.l.b16 %v163
    %v572 = vunpack.c.h.b16 %v163
    %v573 = vunpack.c.l.b16 %v164
    %v574 = vunpack.c.h.b16 %v164
    %v575 = vunpack.c.l.b16 %v165
    %v576 = vunpack.c.h.b16 %v165
    %v577 = vunpack.c.l.b16 %v166
    %v578 = vunpack.c.h.b16 %v166
    %v579 = vunpack.c.l.b16 %v167
    %v580 = vunpack.c.h.b16 %v167
    %v581 = vunpack.c.l.b16 %v168
    %v582 = vunpack.c.h.b16 %v168
    %v583 = vunpack.c.l.b16 %v169
    %v584 = vunpack.c.h.b16 %v169
    %v585 = vunpack.c.l.b16 %v170
    %v586 = vunpack.c.h.b16 %v170
    %v587 = vunpack.c.l.b16 %v171
    %v588 = vunpack.c.h.b16 %v171
    %v589 = vunpack.c.l.b16 %v172
    %v590 = vunpack.c.h.b16 %v172
    %v591 = vunpack.c.l.b16 %v173
    %v592 = vunpack.c.h.b16 %v173
    %v593 = vunpack.c.l.b16 %v174
    %v594 = vunpack.c.h.b16 %v174
    %v595 = vunpack.c.l.b16 %v175
    %v596 = vunpack.c.h.b16 %v175
    %v597 = vunpack.c.l.b16 %v176
    %v598 = vunpack.c.h.b16 %v176
    %v599 = vunpack.c.l.b16 %v177
    %v600 = vunpack.c.h.b16 %v177
    %v601 = vunpack.c.l.b16 %v178
    %v602 = vunpack.c.h.b16 %v178
    %v603 = vunpack.c.l.b16 %v179
    %v604 = vunpack.c.h.b16 %v179
    %v605 = vunpack.c.l.b16 %v180
    %v606 = vunpack.c.h.b16 %v180
    %v607 = vpack.c.b16 %v359, %v351
    %v608 = vpack.c.b16 %v360, %v352
    %v609 = vpack.c.b16 %v361, %v353
    %v610 = vpack.c.b16 %v362, %v354
    %v611 = vpack.c.b16 %v363, %v355
    %v612 = vpack.c.b16 %v364, %v356
    %v613 = vpack.c.b16 %v365, %v357
    %v614 = vpack.c.b16 %v366, %v358
    %v615 = vpack.c.b16 %v375, %v367
    %v616 = vpack.c.b16 %v376, %v368
    %v617 = vpack.c.b16 %v377, %v369
    %v618 = vpack.c.b16 %v378, %v370
    %v619 = vpack.c.b16 %v379, %v371
    %v620 = vpack.c.b16 %v380, %v372
    %v621 = vpack.c.b16 %v381, %v373
    %v622 = vpack.c.b16 %v382, %v374
    %v623 = vpack.c.b16 %v391, %v383
    %v624 = vpack.c.b16 %v392, %v384
    %v625 = vpack.c.b16 %v393, %v385
    %v626 = vpack.c.b16 %v394, %v386
    %v627 = vpack.c.b16 %v395, %v387
    %v628 = vpack.c.b16 %v396, %v388
    %v629 = vpack.c.b16 %v397, %v389
    %v630 = vpack.c.b16 %v398, %v390
    %v631 = vpack.c.b16 %v407, %v399
    %v632 = vpack.c.b16 %v408, %v400
    %v633 = vpack.c.b16 %v409, %v401
    %v634 = vpack.c.b16 %v410, %v402
    %v635 = vpack.c.b16 %v411, %v403
    %v636 = vpack.c.b16 %v412, %v404
    %v637 = vpack.c.b16 %v413, %v405
    %v638 = vpack.c.b16 %v414, %v406
    %v639 = vpack.c.b16 %v423, %v415
    %v640 = vpack.c.b16 %v424, %v416
    %v641 = vpack.c.b16 %v425, %v417
    %v642 = vpack.c.b16 %v426, %v418
    %v643 = vpack.c.b16 %v427, %v419
    %v644 = vpack.c.b16 %v428, %v420
    %v645 = vpack.c.b16 %v429, %v421
    %v646 = vpack.c.b16 %v430, %v422
    %v647 = vpack.c.b16 %v439, %v431
    %v648 = vpack.c.b16 %v440, %v432
    %v649 = vpack.c.b16 %v441, %v433
    %v650 = vpack.c.b16 %v442, %v434
    %v651 = vpack.c.b16 %v443, %v435
    %v652 = vpack.c.b16 %v444, %v436
    %v653 = vpack.c.b16 %v445, %v437
    %v654 = vpack.c.b16 %v446, %v438
    %v655 = vpack.c.b16 %v455, %v447
    %v656 = vpack.c.b16 %v456, %v448
    %v657 = vpack.c.b16 %v457, %v449
    %v658 = vpack.c.b16 %v458, %v450
    %v659 = vpack.c.b16 %v459, %v451
    %v660 = vpack.c.b16 %v460, %v452
    %v661 = vpack.c.b16 %v461, %v453
    %v662 = vpack.c.b16 %v462, %v454
    %v663 = vpack.c.b16 %v471, %v463
    %v664 = vpack.c.b16 %v472, %v464
    %v665 = vpack.c.b16 %v473, %v465
    %v666 = vpack.c.b16 %v474, %v466
    %v667 = vpack.c.b16 %v475, %v467
    %v668 = vpack.c.b16 %v476, %v468
    %v669 = vpack.c.b16 %v477, %v469
    %v670 = vpack.c.b16 %v478, %v470
    %v671 = vpack.c.b16 %v487, %v479
    %v672 = vpack.c.b16 %v488, %v480
    %v673 = vpack.c.b16 %v489, %v481
    %v674 = vpack.c.b16 %v490, %v482
    %v675 = vpack.c.b16 %v491, %v483
    %v676 = vpack.c.b16 %v492, %v484
    %v677 = vpack.c.b16 %v493, %v485
    %v678 = vpack.c.b16 %v494, %v486
    %v679 = vpack.c.b16 %v503, %v495
    %v680 = vpack.c.b16 %v504, %v496
    %v681 = vpack.c.b16 %v505, %v497
    %v682 = vpack.c.b16 %v506, %v498
    %v683 = vpack.c.b16 %v507, %v499
    %v684 = vpack.c.b16 %v508, %v500
    %v685 = vpack.c.b16 %v509, %v501
    %v686 = vpack.c.b16 %v510, %v502
    %v687 = vpack.c.b16 %v519, %v511
    %v688 = vpack.c.b16 %v520, %v512
    %v689 = vpack.c.b16 %v521, %v513
    %v690 = vpack.c.b16 %v522, %v514
    %v691 = vpack.c.b16 %v523, %v515
    %v692 = vpack.c.b16 %v524, %v516
    %v693 = vpack.c.b16 %v525, %v517
    %v694 = vpack.c.b16 %v526, %v518
    %v695 = vpack.c.b16 %v535, %v527
    %v696 = vpack.c.b16 %v536, %v528
    %v697 = vpack.c.b16 %v537, %v529
    %v698 = vpack.c.b16 %v538, %v530
    %v699 = vpack.c.b16 %v539, %v531
    %v700 = vpack.c.b16 %v540, %v532
    %v701 = vpack.c.b16 %v541, %v533
    %v702 = vpack.c.b16 %v542, %v534
    %v703 = vpack.c.b16 %v551, %v543
    %v704 = vpack.c.b16 %v552, %v544
    %v705 = vpack.c.b16 %v553, %v545
    %v706 = vpack.c.b16 %v554, %v546
    %v707 = vpack.c.b16 %v555, %v547
    %v708 = vpack.c.b16 %v556, %v548
    %v709 = vpack.c.b16 %v557, %v549
    %v710 = vpack.c.b16 %v558, %v550
    %v711 = vpack.c.b16 %v567, %v559
    %v712 = vpack.c.b16 %v568, %v560
    %v713 = vpack.c.b16 %v569, %v561
    %v714 = vpack.c.b16 %v570, %v562
    %v715 = vpack.c.b16 %v571, %v563
    %v716 = vpack.c.b16 %v572, %v564
    %v717 = vpack.c.b16 %v573, %v565
    %v718 = vpack.c.b16 %v574, %v566
    %v719 = vpack.c.b16 %v583, %v575
    %v720 = vpack.c.b16 %v584, %v576
    %v721 = vpack.c.b16 %v585, %v577
    %v722 = vpack.c.b16 %v586, %v578
    %v723 = vpack.c.b16 %v587, %v579
    %v724 = vpack.c.b16 %v588, %v580
    %v725 = vpack.c.b16 %v589, %v581
    %v726 = vpack.c.b16 %v590, %v582
    %v727 = vpack.c.b16 %v599, %v591
    %v728 = vpack.c.b16 %v600, %v592
    %v729 = vpack.c.b16 %v601, %v593
    %v730 = vpack.c.b16 %v602, %v594
    %v731 = vpack.c.b16 %v603, %v595
    %v732 = vpack.c.b16 %v604, %v596
    %v733 = vpack.c.b16 %v605, %v597
    %v734 = vpack.c.b16 %v606, %v598
    %863 = vmatprep.subr.bf16.mxu0 %v608
    %864 = vmatpush1.bf16.msra.mxu0 %v607
    %865 = vmatprep.subr.bf16.mxu0 %v616
    %866 = vmatpush1.bf16.msra.mxu0 %v615
    %867 = vmatprep.subr.bf16.mxu0 %v624
    %868 = vmatpush1.bf16.msra.mxu0 %v623
    %869 = vmatprep.subr.bf16.mxu0 %v632
    %870 = vmatpush1.bf16.msra.mxu0 %v631
    %871 = vmatprep.subr.bf16.mxu0 %v640
    %872 = vmatpush1.bf16.msra.mxu0 %v639
    %873 = vmatprep.subr.bf16.mxu0 %v648
    %874 = vmatpush1.bf16.msra.mxu0 %v647
    %875 = vmatprep.subr.bf16.mxu0 %v656
    %876 = vmatpush1.bf16.msra.mxu0 %v655
    %877 = vmatprep.subr.bf16.mxu0 %v664
    %878 = vmatpush1.bf16.msra.mxu0 %v663
    %879 = vmatprep.subr.bf16.mxu0 %v672
    %880 = vmatpush1.bf16.msra.mxu0 %v671
    %881 = vmatprep.subr.bf16.mxu0 %v680
    %882 = vmatpush1.bf16.msra.mxu0 %v679
    %883 = vmatprep.subr.bf16.mxu0 %v688
    %884 = vmatpush1.bf16.msra.mxu0 %v687
    %885 = vmatprep.subr.bf16.mxu0 %v696
    %886 = vmatpush1.bf16.msra.mxu0 %v695
    %887 = vmatprep.subr.bf16.mxu0 %v704
    %888 = vmatpush1.bf16.msra.mxu0 %v703
    %889 = vmatprep.subr.bf16.mxu0 %v712
    %890 = vmatpush1.bf16.msra.mxu0 %v711
    %891 = vmatprep.subr.bf16.mxu0 %v720
    %892 = vmatpush1.bf16.msra.mxu0 %v719
    %893 = vmatprep.subr.bf16.mxu0 %v728
    %894 = vmatpush1.bf16.msra.mxu0 %v727
    %895 = vmatprep.mubr.bf16.mxu0 %v52
    %896 = vmatmul.mubr.bf16.gmra.mrb[0].mxu0 %v51
    %v897 = vpop.f32.mrb[0].mxu0
    %v898 = vadd.f32 %v186, %v897
    %v899 = vpop.f32.mrb[0].mxu0
    %v900 = vadd.f32 %v190, %v899
    %v901 = vpop.f32.mrb[0].mxu0
    %v902 = vpop.f32.mrb[0].mxu0
    %903 = vdwg.mxu0
    %904 = vmatprep.subr.bf16.mxu0 %v610
    %905 = vmatpush1.bf16.msra.mxu0 %v609
    %906 = vmatprep.subr.bf16.mxu0 %v618
    %907 = vmatpush1.bf16.msra.mxu0 %v617
    %908 = vmatprep.subr.bf16.mxu0 %v626
    %909 = vmatpush1.bf16.msra.mxu0 %v625
    %910 = vmatprep.subr.bf16.mxu0 %v634
    %911 = vmatpush1.bf16.msra.mxu0 %v633
    %912 = vmatprep.subr.bf16.mxu0 %v642
    %913 = vmatpush1.bf16.msra.mxu0 %v641
    %914 = vmatprep.subr.bf16.mxu0 %v650
    %915 = vmatpush1.bf16.msra.mxu0 %v649
    %916 = vmatprep.subr.bf16.mxu0 %v658
    %917 = vmatpush1.bf16.msra.mxu0 %v657
    %918 = vmatprep.subr.bf16.mxu0 %v666
    %919 = vmatpush1.bf16.msra.mxu0 %v665
    %920 = vmatprep.subr.bf16.mxu0 %v674
    %921 = vmatpush1.bf16.msra.mxu0 %v673
    %922 = vmatprep.subr.bf16.mxu0 %v682
    %923 = vmatpush1.bf16.msra.mxu0 %v681
    %924 = vmatprep.subr.bf16.mxu0 %v690
    %925 = vmatpush1.bf16.msra.mxu0 %v689
    %926 = vmatprep.subr.bf16.mxu0 %v698
    %927 = vmatpush1.bf16.msra.mxu0 %v697
    %928 = vmatprep.subr.bf16.mxu0 %v706
    %929 = vmatpush1.bf16.msra.mxu0 %v705
    %930 = vmatprep.subr.bf16.mxu0 %v714
    %931 = vmatpush1.bf16.msra.mxu0 %v713
    %932 = vmatprep.subr.bf16.mxu0 %v722
    %933 = vmatpush1.bf16.msra.mxu0 %v721
    %934 = vmatprep.subr.bf16.mxu0 %v730
    %935 = vmatpush1.bf16.msra.mxu0 %v729
    %936 = vmatprep.mubr.bf16.mxu0 %v52
    %937 = vmatmul.mubr.bf16.gmra.mrb[0].mxu0 %v51
    %v938 = vpop.f32.mrb[0].mxu0
    %v939 = vadd.f32 %v194, %v938
    %v940 = vpop.f32.mrb[0].mxu0
    %v941 = vadd.f32 %v198, %v940
    %v942 = vpop.f32.mrb[0].mxu0
    %v943 = vpop.f32.mrb[0].mxu0
    %944 = vdwg.mxu0
    %945 = vmatprep.subr.bf16.mxu0 %v612
    %946 = vmatpush1.bf16.msra.mxu0 %v611
    %947 = vmatprep.subr.bf16.mxu0 %v620
    %948 = vmatpush1.bf16.msra.mxu0 %v619
    %949 = vmatprep.subr.bf16.mxu0 %v628
    %950 = vmatpush1.bf16.msra.mxu0 %v627
    %951 = vmatprep.subr.bf16.mxu0 %v636
    %952 = vmatpush1.bf16.msra.mxu0 %v635
    %953 = vmatprep.subr.bf16.mxu0 %v644
    %954 = vmatpush1.bf16.msra.mxu0 %v643
    %955 = vmatprep.subr.bf16.mxu0 %v652
    %956 = vmatpush1.bf16.msra.mxu0 %v651
    %957 = vmatprep.subr.bf16.mxu0 %v660
    %958 = vmatpush1.bf16.msra.mxu0 %v659
    %959 = vmatprep.subr.bf16.mxu0 %v668
    %960 = vmatpush1.bf16.msra.mxu0 %v667
    %961 = vmatprep.subr.bf16.mxu0 %v676
    %962 = vmatpush1.bf16.msra.mxu0 %v675
    %963 = vmatprep.subr.bf16.mxu0 %v684
    %964 = vmatpush1.bf16.msra.mxu0 %v683
    %965 = vmatprep.subr.bf16.mxu0 %v692
    %966 = vmatpush1.bf16.msra.mxu0 %v691
    %967 = vmatprep.subr.bf16.mxu0 %v700
    %968 = vmatpush1.bf16.msra.mxu0 %v699
    %969 = vmatprep.subr.bf16.mxu0 %v708
    %970 = vmatpush1.bf16.msra.mxu0 %v707
    %971 = vmatprep.subr.bf16.mxu0 %v716
    %972 = vmatpush1.bf16.msra.mxu0 %v715
    %973 = vmatprep.subr.bf16.mxu0 %v724
    %974 = vmatpush1.bf16.msra.mxu0 %v723
    %975 = vmatprep.subr.bf16.mxu0 %v732
    %976 = vmatpush1.bf16.msra.mxu0 %v731
    %977 = vmatprep.mubr.bf16.mxu0 %v52
    %978 = vmatmul.mubr.bf16.gmra.mrb[0].mxu0 %v51
    %v979 = vpop.f32.mrb[0].mxu0
    %v980 = vadd.f32 %v202, %v979
    %v981 = vpop.f32.mrb[0].mxu0
    %v982 = vadd.f32 %v206, %v981
    %v983 = vpop.f32.mrb[0].mxu0
    %v984 = vpop.f32.mrb[0].mxu0
    %985 = vdwg.mxu0
    %986 = vmatprep.subr.bf16.mxu0 %v614
    %987 = vmatpush1.bf16.msra.mxu0 %v613
    %988 = vmatprep.subr.bf16.mxu0 %v622
    %989 = vmatpush1.bf16.msra.mxu0 %v621
    %990 = vmatprep.subr.bf16.mxu0 %v630
    %991 = vmatpush1.bf16.msra.mxu0 %v629
    %992 = vmatprep.subr.bf16.mxu0 %v638
    %993 = vmatpush1.bf16.msra.mxu0 %v637
    %994 = vmatprep.subr.bf16.mxu0 %v646
    %995 = vmatpush1.bf16.msra.mxu0 %v645
    %996 = vmatprep.subr.bf16.mxu0 %v654
    %997 = vmatpush1.bf16.msra.mxu0 %v653
    %998 = vmatprep.subr.bf16.mxu0 %v662
    %999 = vmatpush1.bf16.msra.mxu0 %v661
    %1000 = vmatprep.subr.bf16.mxu0 %v670
    %1001 = vmatpush1.bf16.msra.mxu0 %v669
    %1002 = vmatprep.subr.bf16.mxu0 %v678
    %1003 = vmatpush1.bf16.msra.mxu0 %v677
    %1004 = vmatprep.subr.bf16.mxu0 %v686
    %1005 = vmatpush1.bf16.msra.mxu0 %v685
    %1006 = vmatprep.subr.bf16.mxu0 %v694
    %1007 = vmatpush1.bf16.msra.mxu0 %v693
    %1008 = vmatprep.subr.bf16.mxu0 %v702
    %1009 = vmatpush1.bf16.msra.mxu0 %v701
    %1010 = vmatprep.subr.bf16.mxu0 %v710
    %1011 = vmatpush1.bf16.msra.mxu0 %v709
    %1012 = vmatprep.subr.bf16.mxu0 %v718
    %1013 = vmatpush1.bf16.msra.mxu0 %v717
    %1014 = vmatprep.subr.bf16.mxu0 %v726
    %1015 = vmatpush1.bf16.msra.mxu0 %v725
    %1016 = vmatprep.subr.bf16.mxu0 %v734
    %1017 = vmatpush1.bf16.msra.mxu0 %v733
    %1018 = vmatprep.mubr.bf16.mxu0 %v52
    %1019 = vmatmul.mubr.bf16.gmra.mrb[0].mxu0 %v51
    %v1020 = vpop.f32.mrb[0].mxu0
    %v1021 = vadd.f32 %v210, %v1020
    %v1022 = vpop.f32.mrb[0].mxu0
    %v1023 = vadd.f32 %v214, %v1022
    %v1024 = vpop.f32.mrb[0].mxu0
    %v1025 = vpop.f32.mrb[0].mxu0
    %1026 = vdwg.mxu0
    %v1027 = vtanh.pop %v898
    %v1028 = vtanh.pop %v900
    %v1029 = vtanh.pop %v939
    %v1030 = vtanh.pop %v941
    %v1031 = vtanh.pop %v980
    %v1032 = vtanh.pop %v982
    %v1033 = vtanh.pop %v1021
    %v1034 = vtanh.pop %v1023
    %v1035 = vpack.c.bf16 %v1027, %v1027
    %v1036 = vpack.c.bf16 %v1028, %v1028
    %v1037 = vpack.c.bf16 %v1029, %v1029
    %v1038 = vpack.c.bf16 %v1030, %v1030
    %v1039 = vpack.c.bf16 %v1031, %v1031
    %v1040 = vpack.c.bf16 %v1032, %v1032
    %v1041 = vpack.c.bf16 %v1033, %v1033
    %v1042 = vpack.c.bf16 %v1034, %v1034
    %v1043 = vld [vmem:[%s3] sm:$0xff]
    %v1044 = vld [vmem:[%s3 + $0x8] sm:$0xff]
    %v1045 = vld [vmem:[%s3 + $0x10] sm:$0xff]
    %v1046 = vld [vmem:[%s3 + $0x18] sm:$0xff]
    %v1047 = vld [vmem:[%s3 + $0x20] sm:$0xff]
    %v1048 = vld [vmem:[%s3 + $0x28] sm:$0xff]
    %v1049 = vld [vmem:[%s3 + $0x30] sm:$0xff]
    %v1050 = vld [vmem:[%s3 + $0x38] sm:$0xff]
    %v1051 = vld [vmem:[%s3 + $0x40] sm:$0xff]
    %v1052 = vld [vmem:[%s3 + $0x48] sm:$0xff]
    %v1053 = vld [vmem:[%s3 + $0x50] sm:$0xff]
    %v1054 = vld [vmem:[%s3 + $0x58] sm:$0xff]
    %v1055 = vld [vmem:[%s3 + $0x60] sm:$0xff]
    %v1056 = vld [vmem:[%s3 + $0x68] sm:$0xff]
    %v1057 = vld [vmem:[%s3 + $0x70] sm:$0xff]
    %v1058 = vld [vmem:[%s3 + $0x78] sm:$0xff]
    %v1059 = vld [vmem:[%s3 + $0x80] sm:$0xff]
    %v1060 = vld [vmem:[%s3 + $0x88] sm:$0xff]
    %v1061 = vld [vmem:[%s3 + $0x90] sm:$0xff]
    %v1062 = vld [vmem:[%s3 + $0x98] sm:$0xff]
    %v1063 = vld [vmem:[%s3 + $0xa0] sm:$0xff]
    %v1064 = vld [vmem:[%s3 + $0xa8] sm:$0xff]
    %v1065 = vld [vmem:[%s3 + $0xb0] sm:$0xff]
    %v1066 = vld [vmem:[%s3 + $0xb8] sm:$0xff]
    %v1067 = vld [vmem:[%s3 + $0xc0] sm:$0xff]
    %v1068 = vld [vmem:[%s3 + $0xc8] sm:$0xff]
    %v1069 = vld [vmem:[%s3 + $0xd0] sm:$0xff]
    %v1070 = vld [vmem:[%s3 + $0xd8] sm:$0xff]
    %v1071 = vld [vmem:[%s3 + $0xe0] sm:$0xff]
    %v1072 = vld [vmem:[%s3 + $0xe8] sm:$0xff]
    %v1073 = vld [vmem:[%s3 + $0xf0] sm:$0xff]
    %v1074 = vld [vmem:[%s3 + $0xf8] sm:$0xff]
    %v1075 = vld [vmem:[%s3 + $0x100] sm:$0xff]
    %v1076 = vld [vmem:[%s3 + $0x108] sm:$0xff]
    %v1077 = vld [vmem:[%s3 + $0x110] sm:$0xff]
    %v1078 = vld [vmem:[%s3 + $0x118] sm:$0xff]
    %v1079 = vld [vmem:[%s3 + $0x120] sm:$0xff]
    %v1080 = vld [vmem:[%s3 + $0x128] sm:$0xff]
    %v1081 = vld [vmem:[%s3 + $0x130] sm:$0xff]
    %v1082 = vld [vmem:[%s3 + $0x138] sm:$0xff]
    %v1083 = vld [vmem:[%s3 + $0x140] sm:$0xff]
    %v1084 = vld [vmem:[%s3 + $0x148] sm:$0xff]
    %v1085 = vld [vmem:[%s3 + $0x150] sm:$0xff]
    %v1086 = vld [vmem:[%s3 + $0x158] sm:$0xff]
    %v1087 = vld [vmem:[%s3 + $0x160] sm:$0xff]
    %v1088 = vld [vmem:[%s3 + $0x168] sm:$0xff]
    %v1089 = vld [vmem:[%s3 + $0x170] sm:$0xff]
    %v1090 = vld [vmem:[%s3 + $0x178] sm:$0xff]
    %v1091 = vld [vmem:[%s3 + $0x180] sm:$0xff]
    %v1092 = vld [vmem:[%s3 + $0x188] sm:$0xff]
    %v1093 = vld [vmem:[%s3 + $0x190] sm:$0xff]
    %v1094 = vld [vmem:[%s3 + $0x198] sm:$0xff]
    %v1095 = vld [vmem:[%s3 + $0x1a0] sm:$0xff]
    %v1096 = vld [vmem:[%s3 + $0x1a8] sm:$0xff]
    %v1097 = vld [vmem:[%s3 + $0x1b0] sm:$0xff]
    %v1098 = vld [vmem:[%s3 + $0x1b8] sm:$0xff]
    %v1099 = vld [vmem:[%s3 + $0x1c0] sm:$0xff]
    %v1100 = vld [vmem:[%s3 + $0x1c8] sm:$0xff]
    %v1101 = vld [vmem:[%s3 + $0x1d0] sm:$0xff]
    %v1102 = vld [vmem:[%s3 + $0x1d8] sm:$0xff]
    %v1103 = vld [vmem:[%s3 + $0x1e0] sm:$0xff]
    %v1104 = vld [vmem:[%s3 + $0x1e8] sm:$0xff]
    %v1105 = vld [vmem:[%s3 + $0x1f0] sm:$0xff]
    %v1106 = vld [vmem:[%s3 + $0x1f8] sm:$0xff]
    %v1107 = vld [vmem:[%s3 + $0x200] sm:$0xff]
    %v1108 = vld [vmem:[%s3 + $0x208] sm:$0xff]
    %v1109 = vld [vmem:[%s3 + $0x210] sm:$0xff]
    %v1110 = vld [vmem:[%s3 + $0x218] sm:$0xff]
    %v1111 = vld [vmem:[%s3 + $0x220] sm:$0xff]
    %v1112 = vld [vmem:[%s3 + $0x228] sm:$0xff]
    %v1113 = vld [vmem:[%s3 + $0x230] sm:$0xff]
    %v1114 = vld [vmem:[%s3 + $0x238] sm:$0xff]
    %v1115 = vld [vmem:[%s3 + $0x240] sm:$0xff]
    %v1116 = vld [vmem:[%s3 + $0x248] sm:$0xff]
    %v1117 = vld [vmem:[%s3 + $0x250] sm:$0xff]
    %v1118 = vld [vmem:[%s3 + $0x258] sm:$0xff]
    %v1119 = vld [vmem:[%s3 + $0x260] sm:$0xff]
    %v1120 = vld [vmem:[%s3 + $0x268] sm:$0xff]
    %v1121 = vld [vmem:[%s3 + $0x270] sm:$0xff]
    %v1122 = vld [vmem:[%s3 + $0x278] sm:$0xff]
    %v1123 = vld [vmem:[%s3 + $0x280] sm:$0xff]
    %v1124 = vld [vmem:[%s3 + $0x288] sm:$0xff]
    %v1125 = vld [vmem:[%s3 + $0x290] sm:$0xff]
    %v1126 = vld [vmem:[%s3 + $0x298] sm:$0xff]
    %v1127 = vld [vmem:[%s3 + $0x2a0] sm:$0xff]
    %v1128 = vld [vmem:[%s3 + $0x2a8] sm:$0xff]
    %v1129 = vld [vmem:[%s3 + $0x2b0] sm:$0xff]
    %v1130 = vld [vmem:[%s3 + $0x2b8] sm:$0xff]
    %v1131 = vld [vmem:[%s3 + $0x2c0] sm:$0xff]
    %v1132 = vld [vmem:[%s3 + $0x2c8] sm:$0xff]
    %v1133 = vld [vmem:[%s3 + $0x2d0] sm:$0xff]
    %v1134 = vld [vmem:[%s3 + $0x2d8] sm:$0xff]
    %v1135 = vld [vmem:[%s3 + $0x2e0] sm:$0xff]
    %v1136 = vld [vmem:[%s3 + $0x2e8] sm:$0xff]
    %v1137 = vld [vmem:[%s3 + $0x2f0] sm:$0xff]
    %v1138 = vld [vmem:[%s3 + $0x2f8] sm:$0xff]
    %v1139 = vld [vmem:[%s3 + $0x300] sm:$0xff]
    %v1140 = vld [vmem:[%s3 + $0x308] sm:$0xff]
    %v1141 = vld [vmem:[%s3 + $0x310] sm:$0xff]
    %v1142 = vld [vmem:[%s3 + $0x318] sm:$0xff]
    %v1143 = vld [vmem:[%s3 + $0x320] sm:$0xff]
    %v1144 = vld [vmem:[%s3 + $0x328] sm:$0xff]
    %v1145 = vld [vmem:[%s3 + $0x330] sm:$0xff]
    %v1146 = vld [vmem:[%s3 + $0x338] sm:$0xff]
    %v1147 = vld [vmem:[%s3 + $0x340] sm:$0xff]
    %v1148 = vld [vmem:[%s3 + $0x348] sm:$0xff]
    %v1149 = vld [vmem:[%s3 + $0x350] sm:$0xff]
    %v1150 = vld [vmem:[%s3 + $0x358] sm:$0xff]
    %v1151 = vld [vmem:[%s3 + $0x360] sm:$0xff]
    %v1152 = vld [vmem:[%s3 + $0x368] sm:$0xff]
    %v1153 = vld [vmem:[%s3 + $0x370] sm:$0xff]
    %v1154 = vld [vmem:[%s3 + $0x378] sm:$0xff]
    %v1155 = vld [vmem:[%s3 + $0x380] sm:$0xff]
    %v1156 = vld [vmem:[%s3 + $0x388] sm:$0xff]
    %v1157 = vld [vmem:[%s3 + $0x390] sm:$0xff]
    %v1158 = vld [vmem:[%s3 + $0x398] sm:$0xff]
    %v1159 = vld [vmem:[%s3 + $0x3a0] sm:$0xff]
    %v1160 = vld [vmem:[%s3 + $0x3a8] sm:$0xff]
    %v1161 = vld [vmem:[%s3 + $0x3b0] sm:$0xff]
    %v1162 = vld [vmem:[%s3 + $0x3b8] sm:$0xff]
    %v1163 = vld [vmem:[%s3 + $0x3c0] sm:$0xff]
    %v1164 = vld [vmem:[%s3 + $0x3c8] sm:$0xff]
    %v1165 = vld [vmem:[%s3 + $0x3d0] sm:$0xff]
    %v1166 = vld [vmem:[%s3 + $0x3d8] sm:$0xff]
    %v1167 = vld [vmem:[%s3 + $0x3e0] sm:$0xff]
    %v1168 = vld [vmem:[%s3 + $0x3e8] sm:$0xff]
    %v1169 = vld [vmem:[%s3 + $0x3f0] sm:$0xff]
    %v1170 = vld [vmem:[%s3 + $0x3f8] sm:$0xff]
    %v1171 = vld [vmem:[%s3 + $0x400] sm:$0xff]
    %v1172 = vld [vmem:[%s3 + $0x408] sm:$0xff]
    %v1173 = vld [vmem:[%s3 + $0x410] sm:$0xff]
    %v1174 = vld [vmem:[%s3 + $0x418] sm:$0xff]
    %v1175 = vld [vmem:[%s3 + $0x420] sm:$0xff]
    %v1176 = vld [vmem:[%s3 + $0x428] sm:$0xff]
    %v1177 = vld [vmem:[%s3 + $0x430] sm:$0xff]
    %v1178 = vld [vmem:[%s3 + $0x438] sm:$0xff]
    %v1179 = vld [vmem:[%s3 + $0x440] sm:$0xff]
    %v1180 = vld [vmem:[%s3 + $0x448] sm:$0xff]
    %v1181 = vld [vmem:[%s3 + $0x450] sm:$0xff]
    %v1182 = vld [vmem:[%s3 + $0x458] sm:$0xff]
    %v1183 = vld [vmem:[%s3 + $0x460] sm:$0xff]
    %v1184 = vld [vmem:[%s3 + $0x468] sm:$0xff]
    %v1185 = vld [vmem:[%s3 + $0x470] sm:$0xff]
    %v1186 = vld [vmem:[%s3 + $0x478] sm:$0xff]
    %v1187 = vld [vmem:[%s3 + $0x480] sm:$0xff]
    %v1188 = vld [vmem:[%s3 + $0x488] sm:$0xff]
    %v1189 = vld [vmem:[%s3 + $0x490] sm:$0xff]
    %v1190 = vld [vmem:[%s3 + $0x498] sm:$0xff]
    %v1191 = vld [vmem:[%s3 + $0x4a0] sm:$0xff]
    %v1192 = vld [vmem:[%s3 + $0x4a8] sm:$0xff]
    %v1193 = vld [vmem:[%s3 + $0x4b0] sm:$0xff]
    %v1194 = vld [vmem:[%s3 + $0x4b8] sm:$0xff]
    %v1195 = vld [vmem:[%s3 + $0x4c0] sm:$0xff]
    %v1196 = vld [vmem:[%s3 + $0x4c8] sm:$0xff]
    %v1197 = vld [vmem:[%s3 + $0x4d0] sm:$0xff]
    %v1198 = vld [vmem:[%s3 + $0x4d8] sm:$0xff]
    %v1199 = vld [vmem:[%s3 + $0x4e0] sm:$0xff]
    %v1200 = vld [vmem:[%s3 + $0x4e8] sm:$0xff]
    %v1201 = vld [vmem:[%s3 + $0x4f0] sm:$0xff]
    %v1202 = vld [vmem:[%s3 + $0x4f8] sm:$0xff]
    %v1203 = vld [vmem:[%s3 + $0x500] sm:$0xff]
    %v1204 = vld [vmem:[%s3 + $0x508] sm:$0xff]
    %v1205 = vld [vmem:[%s3 + $0x510] sm:$0xff]
    %v1206 = vld [vmem:[%s3 + $0x518] sm:$0xff]
    %v1207 = vld [vmem:[%s3 + $0x520] sm:$0xff]
    %v1208 = vld [vmem:[%s3 + $0x528] sm:$0xff]
    %v1209 = vld [vmem:[%s3 + $0x530] sm:$0xff]
    %v1210 = vld [vmem:[%s3 + $0x538] sm:$0xff]
    %v1211 = vld [vmem:[%s3 + $0x540] sm:$0xff]
    %v1212 = vld [vmem:[%s3 + $0x548] sm:$0xff]
    %v1213 = vld [vmem:[%s3 + $0x550] sm:$0xff]
    %v1214 = vld [vmem:[%s3 + $0x558] sm:$0xff]
    %v1215 = vld [vmem:[%s3 + $0x560] sm:$0xff]
    %v1216 = vld [vmem:[%s3 + $0x568] sm:$0xff]
    %v1217 = vld [vmem:[%s3 + $0x570] sm:$0xff]
    %v1218 = vld [vmem:[%s3 + $0x578] sm:$0xff]
    %v1219 = vld [vmem:[%s3 + $0x580] sm:$0xff]
    %v1220 = vld [vmem:[%s3 + $0x588] sm:$0xff]
    %v1221 = vld [vmem:[%s3 + $0x590] sm:$0xff]
    %v1222 = vld [vmem:[%s3 + $0x598] sm:$0xff]
    %v1223 = vld [vmem:[%s3 + $0x5a0] sm:$0xff]
    %v1224 = vld [vmem:[%s3 + $0x5a8] sm:$0xff]
    %v1225 = vld [vmem:[%s3 + $0x5b0] sm:$0xff]
    %v1226 = vld [vmem:[%s3 + $0x5b8] sm:$0xff]
    %v1227 = vld [vmem:[%s3 + $0x5c0] sm:$0xff]
    %v1228 = vld [vmem:[%s3 + $0x5c8] sm:$0xff]
    %v1229 = vld [vmem:[%s3 + $0x5d0] sm:$0xff]
    %v1230 = vld [vmem:[%s3 + $0x5d8] sm:$0xff]
    %v1231 = vld [vmem:[%s3 + $0x5e0] sm:$0xff]
    %v1232 = vld [vmem:[%s3 + $0x5e8] sm:$0xff]
    %v1233 = vld [vmem:[%s3 + $0x5f0] sm:$0xff]
    %v1234 = vld [vmem:[%s3 + $0x5f8] sm:$0xff]
    %v1235 = vld [vmem:[%s3 + $0x600] sm:$0xff]
    %v1236 = vld [vmem:[%s3 + $0x608] sm:$0xff]
    %v1237 = vld [vmem:[%s3 + $0x610] sm:$0xff]
    %v1238 = vld [vmem:[%s3 + $0x618] sm:$0xff]
    %v1239 = vld [vmem:[%s3 + $0x620] sm:$0xff]
    %v1240 = vld [vmem:[%s3 + $0x628] sm:$0xff]
    %v1241 = vld [vmem:[%s3 + $0x630] sm:$0xff]
    %v1242 = vld [vmem:[%s3 + $0x638] sm:$0xff]
    %v1243 = vld [vmem:[%s3 + $0x640] sm:$0xff]
    %v1244 = vld [vmem:[%s3 + $0x648] sm:$0xff]
    %v1245 = vld [vmem:[%s3 + $0x650] sm:$0xff]
    %v1246 = vld [vmem:[%s3 + $0x658] sm:$0xff]
    %v1247 = vld [vmem:[%s3 + $0x660] sm:$0xff]
    %v1248 = vld [vmem:[%s3 + $0x668] sm:$0xff]
    %v1249 = vld [vmem:[%s3 + $0x670] sm:$0xff]
    %v1250 = vld [vmem:[%s3 + $0x678] sm:$0xff]
    %v1251 = vld [vmem:[%s3 + $0x680] sm:$0xff]
    %v1252 = vld [vmem:[%s3 + $0x688] sm:$0xff]
    %v1253 = vld [vmem:[%s3 + $0x690] sm:$0xff]
    %v1254 = vld [vmem:[%s3 + $0x698] sm:$0xff]
    %v1255 = vld [vmem:[%s3 + $0x6a0] sm:$0xff]
    %v1256 = vld [vmem:[%s3 + $0x6a8] sm:$0xff]
    %v1257 = vld [vmem:[%s3 + $0x6b0] sm:$0xff]
    %v1258 = vld [vmem:[%s3 + $0x6b8] sm:$0xff]
    %v1259 = vld [vmem:[%s3 + $0x6c0] sm:$0xff]
    %v1260 = vld [vmem:[%s3 + $0x6c8] sm:$0xff]
    %v1261 = vld [vmem:[%s3 + $0x6d0] sm:$0xff]
    %v1262 = vld [vmem:[%s3 + $0x6d8] sm:$0xff]
    %v1263 = vld [vmem:[%s3 + $0x6e0] sm:$0xff]
    %v1264 = vld [vmem:[%s3 + $0x6e8] sm:$0xff]
    %v1265 = vld [vmem:[%s3 + $0x6f0] sm:$0xff]
    %v1266 = vld [vmem:[%s3 + $0x6f8] sm:$0xff]
    %v1267 = vld [vmem:[%s3 + $0x700] sm:$0xff]
    %v1268 = vld [vmem:[%s3 + $0x708] sm:$0xff]
    %v1269 = vld [vmem:[%s3 + $0x710] sm:$0xff]
    %v1270 = vld [vmem:[%s3 + $0x718] sm:$0xff]
    %v1271 = vld [vmem:[%s3 + $0x720] sm:$0xff]
    %v1272 = vld [vmem:[%s3 + $0x728] sm:$0xff]
    %v1273 = vld [vmem:[%s3 + $0x730] sm:$0xff]
    %v1274 = vld [vmem:[%s3 + $0x738] sm:$0xff]
    %v1275 = vld [vmem:[%s3 + $0x740] sm:$0xff]
    %v1276 = vld [vmem:[%s3 + $0x748] sm:$0xff]
    %v1277 = vld [vmem:[%s3 + $0x750] sm:$0xff]
    %v1278 = vld [vmem:[%s3 + $0x758] sm:$0xff]
    %v1279 = vld [vmem:[%s3 + $0x760] sm:$0xff]
    %v1280 = vld [vmem:[%s3 + $0x768] sm:$0xff]
    %v1281 = vld [vmem:[%s3 + $0x770] sm:$0xff]
    %v1282 = vld [vmem:[%s3 + $0x778] sm:$0xff]
    %v1283 = vld [vmem:[%s3 + $0x780] sm:$0xff]
    %v1284 = vld [vmem:[%s3 + $0x788] sm:$0xff]
    %v1285 = vld [vmem:[%s3 + $0x790] sm:$0xff]
    %v1286 = vld [vmem:[%s3 + $0x798] sm:$0xff]
    %v1287 = vld [vmem:[%s3 + $0x7a0] sm:$0xff]
    %v1288 = vld [vmem:[%s3 + $0x7a8] sm:$0xff]
    %v1289 = vld [vmem:[%s3 + $0x7b0] sm:$0xff]
    %v1290 = vld [vmem:[%s3 + $0x7b8] sm:$0xff]
    %v1291 = vld [vmem:[%s3 + $0x7c0] sm:$0xff]
    %v1292 = vld [vmem:[%s3 + $0x7c8] sm:$0xff]
    %v1293 = vld [vmem:[%s3 + $0x7d0] sm:$0xff]
    %v1294 = vld [vmem:[%s3 + $0x7d8] sm:$0xff]
    %v1295 = vld [vmem:[%s3 + $0x7e0] sm:$0xff]
    %v1296 = vld [vmem:[%s3 + $0x7e8] sm:$0xff]
    %v1297 = vld [vmem:[%s3 + $0x7f0] sm:$0xff]
    %v1298 = vld [vmem:[%s3 + $0x7f8] sm:$0xff]
    %v1299 = vld [vmem:[%s4] sm:$0xf]
    %v1301 = vlaneseq
    %v1302 = vshrl.u32 %v1301, 7
    %v1303 = vsub.s32 0, %v1302
    %v1304 = vrot.slane %v1299, %v1303
    %v1305 = vlaneseq
    %v1306 = vshrl.u32 %v1305, 7
    %v1307 = vsub.s32 1, %v1306
    %v1308 = vrot.slane %v1299, %v1307
    %v1309 = vlaneseq
    %v1310 = vshrl.u32 %v1309, 7
    %v1311 = vsub.s32 2, %v1310
    %v1312 = vrot.slane %v1299, %v1311
    %v1313 = vlaneseq
    %v1314 = vshrl.u32 %v1313, 7
    %v1315 = vsub.s32 3, %v1314
    %v1316 = vrot.slane %v1299, %v1315
    %v1577 = vunpack.c.l.b16 %v1043
    %v1578 = vunpack.c.h.b16 %v1043
    %v1579 = vunpack.c.l.b16 %v1044
    %v1580 = vunpack.c.h.b16 %v1044
    %v1581 = vunpack.c.l.b16 %v1045
    %v1582 = vunpack.c.h.b16 %v1045
    %v1583 = vunpack.c.l.b16 %v1046
    %v1584 = vunpack.c.h.b16 %v1046
    %v1585 = vunpack.c.l.b16 %v1047
    %v1586 = vunpack.c.h.b16 %v1047
    %v1587 = vunpack.c.l.b16 %v1048
    %v1588 = vunpack.c.h.b16 %v1048
    %v1589 = vunpack.c.l.b16 %v1049
    %v1590 = vunpack.c.h.b16 %v1049
    %v1591 = vunpack.c.l.b16 %v1050
    %v1592 = vunpack.c.h.b16 %v1050
    %v1593 = vunpack.c.l.b16 %v1051
    %v1594 = vunpack.c.h.b16 %v1051
    %v1595 = vunpack.c.l.b16 %v1052
    %v1596 = vunpack.c.h.b16 %v1052
    %v1597 = vunpack.c.l.b16 %v1053
    %v1598 = vunpack.c.h.b16 %v1053
    %v1599 = vunpack.c.l.b16 %v1054
    %v1600 = vunpack.c.h.b16 %v1054
    %v1601 = vunpack.c.l.b16 %v1055
    %v1602 = vunpack.c.h.b16 %v1055
    %v1603 = vunpack.c.l.b16 %v1056
    %v1604 = vunpack.c.h.b16 %v1056
    %v1605 = vunpack.c.l.b16 %v1057
    %v1606 = vunpack.c.h.b16 %v1057
    %v1607 = vunpack.c.l.b16 %v1058
    %v1608 = vunpack.c.h.b16 %v1058
    %v1609 = vunpack.c.l.b16 %v1059
    %v1610 = vunpack.c.h.b16 %v1059
    %v1611 = vunpack.c.l.b16 %v1060
    %v1612 = vunpack.c.h.b16 %v1060
    %v1613 = vunpack.c.l.b16 %v1061
    %v1614 = vunpack.c.h.b16 %v1061
    %v1615 = vunpack.c.l.b16 %v1062
    %v1616 = vunpack.c.h.b16 %v1062
    %v1617 = vunpack.c.l.b16 %v1063
    %v1618 = vunpack.c.h.b16 %v1063
    %v1619 = vunpack.c.l.b16 %v1064
    %v1620 = vunpack.c.h.b16 %v1064
    %v1621 = vunpack.c.l.b16 %v1065
    %v1622 = vunpack.c.h.b16 %v1065
    %v1623 = vunpack.c.l.b16 %v1066
    %v1624 = vunpack.c.h.b16 %v1066
    %v1625 = vunpack.c.l.b16 %v1067
    %v1626 = vunpack.c.h.b16 %v1067
    %v1627 = vunpack.c.l.b16 %v1068
    %v1628 = vunpack.c.h.b16 %v1068
    %v1629 = vunpack.c.l.b16 %v1069
    %v1630 = vunpack.c.h.b16 %v1069
    %v1631 = vunpack.c.l.b16 %v1070
    %v1632 = vunpack.c.h.b16 %v1070
    %v1633 = vunpack.c.l.b16 %v1071
    %v1634 = vunpack.c.h.b16 %v1071
    %v1635 = vunpack.c.l.b16 %v1072
    %v1636 = vunpack.c.h.b16 %v1072
    %v1637 = vunpack.c.l.b16 %v1073
    %v1638 = vunpack.c.h.b16 %v1073
    %v1639 = vunpack.c.l.b16 %v1074
    %v1640 = vunpack.c.h.b16 %v1074
    %v1641 = vunpack.c.l.b16 %v1075
    %v1642 = vunpack.c.h.b16 %v1075
    %v1643 = vunpack.c.l.b16 %v1076
    %v1644 = vunpack.c.h.b16 %v1076
    %v1645 = vunpack.c.l.b16 %v1077
    %v1646 = vunpack.c.h.b16 %v1077
    %v1647 = vunpack.c.l.b16 %v1078
    %v1648 = vunpack.c.h.b16 %v1078
    %v1649 = vunpack.c.l.b16 %v1079
    %v1650 = vunpack.c.h.b16 %v1079
    %v1651 = vunpack.c.l.b16 %v1080
    %v1652 = vunpack.c.h.b16 %v1080
    %v1653 = vunpack.c.l.b16 %v1081
    %v1654 = vunpack.c.h.b16 %v1081
    %v1655 = vunpack.c.l.b16 %v1082
    %v1656 = vunpack.c.h.b16 %v1082
    %v1657 = vunpack.c.l.b16 %v1083
    %v1658 = vunpack.c.h.b16 %v1083
    %v1659 = vunpack.c.l.b16 %v1084
    %v1660 = vunpack.c.h.b16 %v1084
    %v1661 = vunpack.c.l.b16 %v1085
    %v1662 = vunpack.c.h.b16 %v1085
    %v1663 = vunpack.c.l.b16 %v1086
    %v1664 = vunpack.c.h.b16 %v1086
    %v1665 = vunpack.c.l.b16 %v1087
    %v1666 = vunpack.c.h.b16 %v1087
    %v1667 = vunpack.c.l.b16 %v1088
    %v1668 = vunpack.c.h.b16 %v1088
    %v1669 = vunpack.c.l.b16 %v1089
    %v1670 = vunpack.c.h.b16 %v1089
    %v1671 = vunpack.c.l.b16 %v1090
    %v1672 = vunpack.c.h.b16 %v1090
    %v1673 = vunpack.c.l.b16 %v1091
    %v1674 = vunpack.c.h.b16 %v1091
    %v1675 = vunpack.c.l.b16 %v1092
    %v1676 = vunpack.c.h.b16 %v1092
    %v1677 = vunpack.c.l.b16 %v1093
    %v1678 = vunpack.c.h.b16 %v1093
    %v1679 = vunpack.c.l.b16 %v1094
    %v1680 = vunpack.c.h.b16 %v1094
    %v1681 = vunpack.c.l.b16 %v1095
    %v1682 = vunpack.c.h.b16 %v1095
    %v1683 = vunpack.c.l.b16 %v1096
    %v1684 = vunpack.c.h.b16 %v1096
    %v1685 = vunpack.c.l.b16 %v1097
    %v1686 = vunpack.c.h.b16 %v1097
    %v1687 = vunpack.c.l.b16 %v1098
    %v1688 = vunpack.c.h.b16 %v1098
    %v1689 = vunpack.c.l.b16 %v1099
    %v1690 = vunpack.c.h.b16 %v1099
    %v1691 = vunpack.c.l.b16 %v1100
    %v1692 = vunpack.c.h.b16 %v1100
    %v1693 = vunpack.c.l.b16 %v1101
    %v1694 = vunpack.c.h.b16 %v1101
    %v1695 = vunpack.c.l.b16 %v1102
    %v1696 = vunpack.c.h.b16 %v1102
    %v1697 = vunpack.c.l.b16 %v1103
    %v1698 = vunpack.c.h.b16 %v1103
    %v1699 = vunpack.c.l.b16 %v1104
    %v1700 = vunpack.c.h.b16 %v1104
    %v1701 = vunpack.c.l.b16 %v1105
    %v1702 = vunpack.c.h.b16 %v1105
    %v1703 = vunpack.c.l.b16 %v1106
    %v1704 = vunpack.c.h.b16 %v1106
    %v1705 = vunpack.c.l.b16 %v1107
    %v1706 = vunpack.c.h.b16 %v1107
    %v1707 = vunpack.c.l.b16 %v1108
    %v1708 = vunpack.c.h.b16 %v1108
    %v1709 = vunpack.c.l.b16 %v1109
    %v1710 = vunpack.c.h.b16 %v1109
    %v1711 = vunpack.c.l.b16 %v1110
    %v1712 = vunpack.c.h.b16 %v1110
    %v1713 = vunpack.c.l.b16 %v1111
    %v1714 = vunpack.c.h.b16 %v1111
    %v1715 = vunpack.c.l.b16 %v1112
    %v1716 = vunpack.c.h.b16 %v1112
    %v1717 = vunpack.c.l.b16 %v1113
    %v1718 = vunpack.c.h.b16 %v1113
    %v1719 = vunpack.c.l.b16 %v1114
    %v1720 = vunpack.c.h.b16 %v1114
    %v1721 = vunpack.c.l.b16 %v1115
    %v1722 = vunpack.c.h.b16 %v1115
    %v1723 = vunpack.c.l.b16 %v1116
    %v1724 = vunpack.c.h.b16 %v1116
    %v1725 = vunpack.c.l.b16 %v1117
    %v1726 = vunpack.c.h.b16 %v1117
    %v1727 = vunpack.c.l.b16 %v1118
    %v1728 = vunpack.c.h.b16 %v1118
    %v1729 = vunpack.c.l.b16 %v1119
    %v1730 = vunpack.c.h.b16 %v1119
    %v1731 = vunpack.c.l.b16 %v1120
    %v1732 = vunpack.c.h.b16 %v1120
    %v1733 = vunpack.c.l.b16 %v1121
    %v1734 = vunpack.c.h.b16 %v1121
    %v1735 = vunpack.c.l.b16 %v1122
    %v1736 = vunpack.c.h.b16 %v1122
    %v1737 = vunpack.c.l.b16 %v1123
    %v1738 = vunpack.c.h.b16 %v1123
    %v1739 = vunpack.c.l.b16 %v1124
    %v1740 = vunpack.c.h.b16 %v1124
    %v1741 = vunpack.c.l.b16 %v1125
    %v1742 = vunpack.c.h.b16 %v1125
    %v1743 = vunpack.c.l.b16 %v1126
    %v1744 = vunpack.c.h.b16 %v1126
    %v1745 = vunpack.c.l.b16 %v1127
    %v1746 = vunpack.c.h.b16 %v1127
    %v1747 = vunpack.c.l.b16 %v1128
    %v1748 = vunpack.c.h.b16 %v1128
    %v1749 = vunpack.c.l.b16 %v1129
    %v1750 = vunpack.c.h.b16 %v1129
    %v1751 = vunpack.c.l.b16 %v1130
    %v1752 = vunpack.c.h.b16 %v1130
    %v1753 = vunpack.c.l.b16 %v1131
    %v1754 = vunpack.c.h.b16 %v1131
    %v1755 = vunpack.c.l.b16 %v1132
    %v1756 = vunpack.c.h.b16 %v1132
    %v1757 = vunpack.c.l.b16 %v1133
    %v1758 = vunpack.c.h.b16 %v1133
    %v1759 = vunpack.c.l.b16 %v1134
    %v1760 = vunpack.c.h.b16 %v1134
    %v1761 = vunpack.c.l.b16 %v1135
    %v1762 = vunpack.c.h.b16 %v1135
    %v1763 = vunpack.c.l.b16 %v1136
    %v1764 = vunpack.c.h.b16 %v1136
    %v1765 = vunpack.c.l.b16 %v1137
    %v1766 = vunpack.c.h.b16 %v1137
    %v1767 = vunpack.c.l.b16 %v1138
    %v1768 = vunpack.c.h.b16 %v1138
    %v1769 = vunpack.c.l.b16 %v1139
    %v1770 = vunpack.c.h.b16 %v1139
    %v1771 = vunpack.c.l.b16 %v1140
    %v1772 = vunpack.c.h.b16 %v1140
    %v1773 = vunpack.c.l.b16 %v1141
    %v1774 = vunpack.c.h.b16 %v1141
    %v1775 = vunpack.c.l.b16 %v1142
    %v1776 = vunpack.c.h.b16 %v1142
    %v1777 = vunpack.c.l.b16 %v1143
    %v1778 = vunpack.c.h.b16 %v1143
    %v1779 = vunpack.c.l.b16 %v1144
    %v1780 = vunpack.c.h.b16 %v1144
    %v1781 = vunpack.c.l.b16 %v1145
    %v1782 = vunpack.c.h.b16 %v1145
    %v1783 = vunpack.c.l.b16 %v1146
    %v1784 = vunpack.c.h.b16 %v1146
    %v1785 = vunpack.c.l.b16 %v1147
    %v1786 = vunpack.c.h.b16 %v1147
    %v1787 = vunpack.c.l.b16 %v1148
    %v1788 = vunpack.c.h.b16 %v1148
    %v1789 = vunpack.c.l.b16 %v1149
    %v1790 = vunpack.c.h.b16 %v1149
    %v1791 = vunpack.c.l.b16 %v1150
    %v1792 = vunpack.c.h.b16 %v1150
    %v1793 = vunpack.c.l.b16 %v1151
    %v1794 = vunpack.c.h.b16 %v1151
    %v1795 = vunpack.c.l.b16 %v1152
    %v1796 = vunpack.c.h.b16 %v1152
    %v1797 = vunpack.c.l.b16 %v1153
    %v1798 = vunpack.c.h.b16 %v1153
    %v1799 = vunpack.c.l.b16 %v1154
    %v1800 = vunpack.c.h.b16 %v1154
    %v1801 = vunpack.c.l.b16 %v1155
    %v1802 = vunpack.c.h.b16 %v1155
    %v1803 = vunpack.c.l.b16 %v1156
    %v1804 = vunpack.c.h.b16 %v1156
    %v1805 = vunpack.c.l.b16 %v1157
    %v1806 = vunpack.c.h.b16 %v1157
    %v1807 = vunpack.c.l.b16 %v1158
    %v1808 = vunpack.c.h.b16 %v1158
    %v1809 = vunpack.c.l.b16 %v1159
    %v1810 = vunpack.c.h.b16 %v1159
    %v1811 = vunpack.c.l.b16 %v1160
    %v1812 = vunpack.c.h.b16 %v1160
    %v1813 = vunpack.c.l.b16 %v1161
    %v1814 = vunpack.c.h.b16 %v1161
    %v1815 = vunpack.c.l.b16 %v1162
    %v1816 = vunpack.c.h.b16 %v1162
    %v1817 = vunpack.c.l.b16 %v1163
    %v1818 = vunpack.c.h.b16 %v1163
    %v1819 = vunpack.c.l.b16 %v1164
    %v1820 = vunpack.c.h.b16 %v1164
    %v1821 = vunpack.c.l.b16 %v1165
    %v1822 = vunpack.c.h.b16 %v1165
    %v1823 = vunpack.c.l.b16 %v1166
    %v1824 = vunpack.c.h.b16 %v1166
    %v1825 = vunpack.c.l.b16 %v1167
    %v1826 = vunpack.c.h.b16 %v1167
    %v1827 = vunpack.c.l.b16 %v1168
    %v1828 = vunpack.c.h.b16 %v1168
    %v1829 = vunpack.c.l.b16 %v1169
    %v1830 = vunpack.c.h.b16 %v1169
    %v1831 = vunpack.c.l.b16 %v1170
    %v1832 = vunpack.c.h.b16 %v1170
    %v1833 = vunpack.c.l.b16 %v1171
    %v1834 = vunpack.c.h.b16 %v1171
    %v1835 = vunpack.c.l.b16 %v1172
    %v1836 = vunpack.c.h.b16 %v1172
    %v1837 = vunpack.c.l.b16 %v1173
    %v1838 = vunpack.c.h.b16 %v1173
    %v1839 = vunpack.c.l.b16 %v1174
    %v1840 = vunpack.c.h.b16 %v1174
    %v1841 = vunpack.c.l.b16 %v1175
    %v1842 = vunpack.c.h.b16 %v1175
    %v1843 = vunpack.c.l.b16 %v1176
    %v1844 = vunpack.c.h.b16 %v1176
    %v1845 = vunpack.c.l.b16 %v1177
    %v1846 = vunpack.c.h.b16 %v1177
    %v1847 = vunpack.c.l.b16 %v1178
    %v1848 = vunpack.c.h.b16 %v1178
    %v1849 = vunpack.c.l.b16 %v1179
    %v1850 = vunpack.c.h.b16 %v1179
    %v1851 = vunpack.c.l.b16 %v1180
    %v1852 = vunpack.c.h.b16 %v1180
    %v1853 = vunpack.c.l.b16 %v1181
    %v1854 = vunpack.c.h.b16 %v1181
    %v1855 = vunpack.c.l.b16 %v1182
    %v1856 = vunpack.c.h.b16 %v1182
    %v1857 = vunpack.c.l.b16 %v1183
    %v1858 = vunpack.c.h.b16 %v1183
    %v1859 = vunpack.c.l.b16 %v1184
    %v1860 = vunpack.c.h.b16 %v1184
    %v1861 = vunpack.c.l.b16 %v1185
    %v1862 = vunpack.c.h.b16 %v1185
    %v1863 = vunpack.c.l.b16 %v1186
    %v1864 = vunpack.c.h.b16 %v1186
    %v1865 = vunpack.c.l.b16 %v1187
    %v1866 = vunpack.c.h.b16 %v1187
    %v1867 = vunpack.c.l.b16 %v1188
    %v1868 = vunpack.c.h.b16 %v1188
    %v1869 = vunpack.c.l.b16 %v1189
    %v1870 = vunpack.c.h.b16 %v1189
    %v1871 = vunpack.c.l.b16 %v1190
    %v1872 = vunpack.c.h.b16 %v1190
    %v1873 = vunpack.c.l.b16 %v1191
    %v1874 = vunpack.c.h.b16 %v1191
    %v1875 = vunpack.c.l.b16 %v1192
    %v1876 = vunpack.c.h.b16 %v1192
    %v1877 = vunpack.c.l.b16 %v1193
    %v1878 = vunpack.c.h.b16 %v1193
    %v1879 = vunpack.c.l.b16 %v1194
    %v1880 = vunpack.c.h.b16 %v1194
    %v1881 = vunpack.c.l.b16 %v1195
    %v1882 = vunpack.c.h.b16 %v1195
    %v1883 = vunpack.c.l.b16 %v1196
    %v1884 = vunpack.c.h.b16 %v1196
    %v1885 = vunpack.c.l.b16 %v1197
    %v1886 = vunpack.c.h.b16 %v1197
    %v1887 = vunpack.c.l.b16 %v1198
    %v1888 = vunpack.c.h.b16 %v1198
    %v1889 = vunpack.c.l.b16 %v1199
    %v1890 = vunpack.c.h.b16 %v1199
    %v1891 = vunpack.c.l.b16 %v1200
    %v1892 = vunpack.c.h.b16 %v1200
    %v1893 = vunpack.c.l.b16 %v1201
    %v1894 = vunpack.c.h.b16 %v1201
    %v1895 = vunpack.c.l.b16 %v1202
    %v1896 = vunpack.c.h.b16 %v1202
    %v1897 = vunpack.c.l.b16 %v1203
    %v1898 = vunpack.c.h.b16 %v1203
    %v1899 = vunpack.c.l.b16 %v1204
    %v1900 = vunpack.c.h.b16 %v1204
    %v1901 = vunpack.c.l.b16 %v1205
    %v1902 = vunpack.c.h.b16 %v1205
    %v1903 = vunpack.c.l.b16 %v1206
    %v1904 = vunpack.c.h.b16 %v1206
    %v1905 = vunpack.c.l.b16 %v1207
    %v1906 = vunpack.c.h.b16 %v1207
    %v1907 = vunpack.c.l.b16 %v1208
    %v1908 = vunpack.c.h.b16 %v1208
    %v1909 = vunpack.c.l.b16 %v1209
    %v1910 = vunpack.c.h.b16 %v1209
    %v1911 = vunpack.c.l.b16 %v1210
    %v1912 = vunpack.c.h.b16 %v1210
    %v1913 = vunpack.c.l.b16 %v1211
    %v1914 = vunpack.c.h.b16 %v1211
    %v1915 = vunpack.c.l.b16 %v1212
    %v1916 = vunpack.c.h.b16 %v1212
    %v1917 = vunpack.c.l.b16 %v1213
    %v1918 = vunpack.c.h.b16 %v1213
    %v1919 = vunpack.c.l.b16 %v1214
    %v1920 = vunpack.c.h.b16 %v1214
    %v1921 = vunpack.c.l.b16 %v1215
    %v1922 = vunpack.c.h.b16 %v1215
    %v1923 = vunpack.c.l.b16 %v1216
    %v1924 = vunpack.c.h.b16 %v1216
    %v1925 = vunpack.c.l.b16 %v1217
    %v1926 = vunpack.c.h.b16 %v1217
    %v1927 = vunpack.c.l.b16 %v1218
    %v1928 = vunpack.c.h.b16 %v1218
    %v1929 = vunpack.c.l.b16 %v1219
    %v1930 = vunpack.c.h.b16 %v1219
    %v1931 = vunpack.c.l.b16 %v1220
    %v1932 = vunpack.c.h.b16 %v1220
    %v1933 = vunpack.c.l.b16 %v1221
    %v1934 = vunpack.c.h.b16 %v1221
    %v1935 = vunpack.c.l.b16 %v1222
    %v1936 = vunpack.c.h.b16 %v1222
    %v1937 = vunpack.c.l.b16 %v1223
    %v1938 = vunpack.c.h.b16 %v1223
    %v1939 = vunpack.c.l.b16 %v1224
    %v1940 = vunpack.c.h.b16 %v1224
    %v1941 = vunpack.c.l.b16 %v1225
    %v1942 = vunpack.c.h.b16 %v1225
    %v1943 = vunpack.c.l.b16 %v1226
    %v1944 = vunpack.c.h.b16 %v1226
    %v1945 = vunpack.c.l.b16 %v1227
    %v1946 = vunpack.c.h.b16 %v1227
    %v1947 = vunpack.c.l.b16 %v1228
    %v1948 = vunpack.c.h.b16 %v1228
    %v1949 = vunpack.c.l.b16 %v1229
    %v1950 = vunpack.c.h.b16 %v1229
    %v1951 = vunpack.c.l.b16 %v1230
    %v1952 = vunpack.c.h.b16 %v1230
    %v1953 = vunpack.c.l.b16 %v1231
    %v1954 = vunpack.c.h.b16 %v1231
    %v1955 = vunpack.c.l.b16 %v1232
    %v1956 = vunpack.c.h.b16 %v1232
    %v1957 = vunpack.c.l.b16 %v1233
    %v1958 = vunpack.c.h.b16 %v1233
    %v1959 = vunpack.c.l.b16 %v1234
    %v1960 = vunpack.c.h.b16 %v1234
    %v1961 = vunpack.c.l.b16 %v1235
    %v1962 = vunpack.c.h.b16 %v1235
    %v1963 = vunpack.c.l.b16 %v1236
    %v1964 = vunpack.c.h.b16 %v1236
    %v1965 = vunpack.c.l.b16 %v1237
    %v1966 = vunpack.c.h.b16 %v1237
    %v1967 = vunpack.c.l.b16 %v1238
    %v1968 = vunpack.c.h.b16 %v1238
    %v1969 = vunpack.c.l.b16 %v1239
    %v1970 = vunpack.c.h.b16 %v1239
    %v1971 = vunpack.c.l.b16 %v1240
    %v1972 = vunpack.c.h.b16 %v1240
    %v1973 = vunpack.c.l.b16 %v1241
    %v1974 = vunpack.c.h.b16 %v1241
    %v1975 = vunpack.c.l.b16 %v1242
    %v1976 = vunpack.c.h.b16 %v1242
    %v1977 = vunpack.c.l.b16 %v1243
    %v1978 = vunpack.c.h.b16 %v1243
    %v1979 = vunpack.c.l.b16 %v1244
    %v1980 = vunpack.c.h.b16 %v1244
    %v1981 = vunpack.c.l.b16 %v1245
    %v1982 = vunpack.c.h.b16 %v1245
    %v1983 = vunpack.c.l.b16 %v1246
    %v1984 = vunpack.c.h.b16 %v1246
    %v1985 = vunpack.c.l.b16 %v1247
    %v1986 = vunpack.c.h.b16 %v1247
    %v1987 = vunpack.c.l.b16 %v1248
    %v1988 = vunpack.c.h.b16 %v1248
    %v1989 = vunpack.c.l.b16 %v1249
    %v1990 = vunpack.c.h.b16 %v1249
    %v1991 = vunpack.c.l.b16 %v1250
    %v1992 = vunpack.c.h.b16 %v1250
    %v1993 = vunpack.c.l.b16 %v1251
    %v1994 = vunpack.c.h.b16 %v1251
    %v1995 = vunpack.c.l.b16 %v1252
    %v1996 = vunpack.c.h.b16 %v1252
    %v1997 = vunpack.c.l.b16 %v1253
    %v1998 = vunpack.c.h.b16 %v1253
    %v1999 = vunpack.c.l.b16 %v1254
    %v2000 = vunpack.c.h.b16 %v1254
    %v2001 = vunpack.c.l.b16 %v1255
    %v2002 = vunpack.c.h.b16 %v1255
    %v2003 = vunpack.c.l.b16 %v1256
    %v2004 = vunpack.c.h.b16 %v1256
    %v2005 = vunpack.c.l.b16 %v1257
    %v2006 = vunpack.c.h.b16 %v1257
    %v2007 = vunpack.c.l.b16 %v1258
    %v2008 = vunpack.c.h.b16 %v1258
    %v2009 = vunpack.c.l.b16 %v1259
    %v2010 = vunpack.c.h.b16 %v1259
    %v2011 = vunpack.c.l.b16 %v1260
    %v2012 = vunpack.c.h.b16 %v1260
    %v2013 = vunpack.c.l.b16 %v1261
    %v2014 = vunpack.c.h.b16 %v1261
    %v2015 = vunpack.c.l.b16 %v1262
    %v2016 = vunpack.c.h.b16 %v1262
    %v2017 = vunpack.c.l.b16 %v1263
    %v2018 = vunpack.c.h.b16 %v1263
    %v2019 = vunpack.c.l.b16 %v1264
    %v2020 = vunpack.c.h.b16 %v1264
    %v2021 = vunpack.c.l.b16 %v1265
    %v2022 = vunpack.c.h.b16 %v1265
    %v2023 = vunpack.c.l.b16 %v1266
    %v2024 = vunpack.c.h.b16 %v1266
    %v2025 = vunpack.c.l.b16 %v1267
    %v2026 = vunpack.c.h.b16 %v1267
    %v2027 = vunpack.c.l.b16 %v1268
    %v2028 = vunpack.c.h.b16 %v1268
    %v2029 = vunpack.c.l.b16 %v1269
    %v2030 = vunpack.c.h.b16 %v1269
    %v2031 = vunpack.c.l.b16 %v1270
    %v2032 = vunpack.c.h.b16 %v1270
    %v2033 = vunpack.c.l.b16 %v1271
    %v2034 = vunpack.c.h.b16 %v1271
    %v2035 = vunpack.c.l.b16 %v1272
    %v2036 = vunpack.c.h.b16 %v1272
    %v2037 = vunpack.c.l.b16 %v1273
    %v2038 = vunpack.c.h.b16 %v1273
    %v2039 = vunpack.c.l.b16 %v1274
    %v2040 = vunpack.c.h.b16 %v1274
    %v2041 = vunpack.c.l.b16 %v1275
    %v2042 = vunpack.c.h.b16 %v1275
    %v2043 = vunpack.c.l.b16 %v1276
    %v2044 = vunpack.c.h.b16 %v1276
    %v2045 = vunpack.c.l.b16 %v1277
    %v2046 = vunpack.c.h.b16 %v1277
    %v2047 = vunpack.c.l.b16 %v1278
    %v2048 = vunpack.c.h.b16 %v1278
    %v2049 = vunpack.c.l.b16 %v1279
    %v2050 = vunpack.c.h.b16 %v1279
    %v2051 = vunpack.c.l.b16 %v1280
    %v2052 = vunpack.c.h.b16 %v1280
    %v2053 = vunpack.c.l.b16 %v1281
    %v2054 = vunpack.c.h.b16 %v1281
    %v2055 = vunpack.c.l.b16 %v1282
    %v2056 = vunpack.c.h.b16 %v1282
    %v2057 = vunpack.c.l.b16 %v1283
    %v2058 = vunpack.c.h.b16 %v1283
    %v2059 = vunpack.c.l.b16 %v1284
    %v2060 = vunpack.c.h.b16 %v1284
    %v2061 = vunpack.c.l.b16 %v1285
    %v2062 = vunpack.c.h.b16 %v1285
    %v2063 = vunpack.c.l.b16 %v1286
    %v2064 = vunpack.c.h.b16 %v1286
    %v2065 = vunpack.c.l.b16 %v1287
    %v2066 = vunpack.c.h.b16 %v1287
    %v2067 = vunpack.c.l.b16 %v1288
    %v2068 = vunpack.c.h.b16 %v1288
    %v2069 = vunpack.c.l.b16 %v1289
    %v2070 = vunpack.c.h.b16 %v1289
    %v2071 = vunpack.c.l.b16 %v1290
    %v2072 = vunpack.c.h.b16 %v1290
    %v2073 = vunpack.c.l.b16 %v1291
    %v2074 = vunpack.c.h.b16 %v1291
    %v2075 = vunpack.c.l.b16 %v1292
    %v2076 = vunpack.c.h.b16 %v1292
    %v2077 = vunpack.c.l.b16 %v1293
    %v2078 = vunpack.c.h.b16 %v1293
    %v2079 = vunpack.c.l.b16 %v1294
    %v2080 = vunpack.c.h.b16 %v1294
    %v2081 = vunpack.c.l.b16 %v1295
    %v2082 = vunpack.c.h.b16 %v1295
    %v2083 = vunpack.c.l.b16 %v1296
    %v2084 = vunpack.c.h.b16 %v1296
    %v2085 = vunpack.c.l.b16 %v1297
    %v2086 = vunpack.c.h.b16 %v1297
    %v2087 = vunpack.c.l.b16 %v1298
    %v2088 = vunpack.c.h.b16 %v1298
    %v2089 = vpack.c.b16 %v1581, %v1577
    %v2090 = vpack.c.b16 %v1582, %v1578
    %v2091 = vpack.c.b16 %v1583, %v1579
    %v2092 = vpack.c.b16 %v1584, %v1580
    %v2093 = vpack.c.b16 %v1589, %v1585
    %v2094 = vpack.c.b16 %v1590, %v1586
    %v2095 = vpack.c.b16 %v1591, %v1587
    %v2096 = vpack.c.b16 %v1592, %v1588
    %v2097 = vpack.c.b16 %v1597, %v1593
    %v2098 = vpack.c.b16 %v1598, %v1594
    %v2099 = vpack.c.b16 %v1599, %v1595
    %v2100 = vpack.c.b16 %v1600, %v1596
    %v2101 = vpack.c.b16 %v1605, %v1601
    %v2102 = vpack.c.b16 %v1606, %v1602
    %v2103 = vpack.c.b16 %v1607, %v1603
    %v2104 = vpack.c.b16 %v1608, %v1604
    %v2105 = vpack.c.b16 %v1613, %v1609
    %v2106 = vpack.c.b16 %v1614, %v1610
    %v2107 = vpack.c.b16 %v1615, %v1611
    %v2108 = vpack.c.b16 %v1616, %v1612
    %v2109 = vpack.c.b16 %v1621, %v1617
    %v2110 = vpack.c.b16 %v1622, %v1618
    %v2111 = vpack.c.b16 %v1623, %v1619
    %v2112 = vpack.c.b16 %v1624, %v1620
    %v2113 = vpack.c.b16 %v1629, %v1625
    %v2114 = vpack.c.b16 %v1630, %v1626
    %v2115 = vpack.c.b16 %v1631, %v1627
    %v2116 = vpack.c.b16 %v1632, %v1628
    %v2117 = vpack.c.b16 %v1637, %v1633
    %v2118 = vpack.c.b16 %v1638, %v1634
    %v2119 = vpack.c.b16 %v1639, %v1635
    %v2120 = vpack.c.b16 %v1640, %v1636
    %v2121 = vpack.c.b16 %v1645, %v1641
    %v2122 = vpack.c.b16 %v1646, %v1642
    %v2123 = vpack.c.b16 %v1647, %v1643
    %v2124 = vpack.c.b16 %v1648, %v1644
    %v2125 = vpack.c.b16 %v1653, %v1649
    %v2126 = vpack.c.b16 %v1654, %v1650
    %v2127 = vpack.c.b16 %v1655, %v1651
    %v2128 = vpack.c.b16 %v1656, %v1652
    %v2129 = vpack.c.b16 %v1661, %v1657
    %v2130 = vpack.c.b16 %v1662, %v1658
    %v2131 = vpack.c.b16 %v1663, %v1659
    %v2132 = vpack.c.b16 %v1664, %v1660
    %v2133 = vpack.c.b16 %v1669, %v1665
    %v2134 = vpack.c.b16 %v1670, %v1666
    %v2135 = vpack.c.b16 %v1671, %v1667
    %v2136 = vpack.c.b16 %v1672, %v1668
    %v2137 = vpack.c.b16 %v1677, %v1673
    %v2138 = vpack.c.b16 %v1678, %v1674
    %v2139 = vpack.c.b16 %v1679, %v1675
    %v2140 = vpack.c.b16 %v1680, %v1676
    %v2141 = vpack.c.b16 %v1685, %v1681
    %v2142 = vpack.c.b16 %v1686, %v1682
    %v2143 = vpack.c.b16 %v1687, %v1683
    %v2144 = vpack.c.b16 %v1688, %v1684
    %v2145 = vpack.c.b16 %v1693, %v1689
    %v2146 = vpack.c.b16 %v1694, %v1690
    %v2147 = vpack.c.b16 %v1695, %v1691
    %v2148 = vpack.c.b16 %v1696, %v1692
    %v2149 = vpack.c.b16 %v1701, %v1697
    %v2150 = vpack.c.b16 %v1702, %v1698
    %v2151 = vpack.c.b16 %v1703, %v1699
    %v2152 = vpack.c.b16 %v1704, %v1700
    %v2153 = vpack.c.b16 %v1709, %v1705
    %v2154 = vpack.c.b16 %v1710, %v1706
    %v2155 = vpack.c.b16 %v1711, %v1707
    %v2156 = vpack.c.b16 %v1712, %v1708
    %v2157 = vpack.c.b16 %v1717, %v1713
    %v2158 = vpack.c.b16 %v1718, %v1714
    %v2159 = vpack.c.b16 %v1719, %v1715
    %v2160 = vpack.c.b16 %v1720, %v1716
    %v2161 = vpack.c.b16 %v1725, %v1721
    %v2162 = vpack.c.b16 %v1726, %v1722
    %v2163 = vpack.c.b16 %v1727, %v1723
    %v2164 = vpack.c.b16 %v1728, %v1724
    %v2165 = vpack.c.b16 %v1733, %v1729
    %v2166 = vpack.c.b16 %v1734, %v1730
    %v2167 = vpack.c.b16 %v1735, %v1731
    %v2168 = vpack.c.b16 %v1736, %v1732
    %v2169 = vpack.c.b16 %v1741, %v1737
    %v2170 = vpack.c.b16 %v1742, %v1738
    %v2171 = vpack.c.b16 %v1743, %v1739
    %v2172 = vpack.c.b16 %v1744, %v1740
    %v2173 = vpack.c.b16 %v1749, %v1745
    %v2174 = vpack.c.b16 %v1750, %v1746
    %v2175 = vpack.c.b16 %v1751, %v1747
    %v2176 = vpack.c.b16 %v1752, %v1748
    %v2177 = vpack.c.b16 %v1757, %v1753
    %v2178 = vpack.c.b16 %v1758, %v1754
    %v2179 = vpack.c.b16 %v1759, %v1755
    %v2180 = vpack.c.b16 %v1760, %v1756
    %v2181 = vpack.c.b16 %v1765, %v1761
    %v2182 = vpack.c.b16 %v1766, %v1762
    %v2183 = vpack.c.b16 %v1767, %v1763
    %v2184 = vpack.c.b16 %v1768, %v1764
    %v2185 = vpack.c.b16 %v1773, %v1769
    %v2186 = vpack.c.b16 %v1774, %v1770
    %v2187 = vpack.c.b16 %v1775, %v1771
    %v2188 = vpack.c.b16 %v1776, %v1772
    %v2189 = vpack.c.b16 %v1781, %v1777
    %v2190 = vpack.c.b16 %v1782, %v1778
    %v2191 = vpack.c.b16 %v1783, %v1779
    %v2192 = vpack.c.b16 %v1784, %v1780
    %v2193 = vpack.c.b16 %v1789, %v1785
    %v2194 = vpack.c.b16 %v1790, %v1786
    %v2195 = vpack.c.b16 %v1791, %v1787
    %v2196 = vpack.c.b16 %v1792, %v1788
    %v2197 = vpack.c.b16 %v1797, %v1793
    %v2198 = vpack.c.b16 %v1798, %v1794
    %v2199 = vpack.c.b16 %v1799, %v1795
    %v2200 = vpack.c.b16 %v1800, %v1796
    %v2201 = vpack.c.b16 %v1805, %v1801
    %v2202 = vpack.c.b16 %v1806, %v1802
    %v2203 = vpack.c.b16 %v1807, %v1803
    %v2204 = vpack.c.b16 %v1808, %v1804
    %v2205 = vpack.c.b16 %v1813, %v1809
    %v2206 = vpack.c.b16 %v1814, %v1810
    %v2207 = vpack.c.b16 %v1815, %v1811
    %v2208 = vpack.c.b16 %v1816, %v1812
    %v2209 = vpack.c.b16 %v1821, %v1817
    %v2210 = vpack.c.b16 %v1822, %v1818
    %v2211 = vpack.c.b16 %v1823, %v1819
    %v2212 = vpack.c.b16 %v1824, %v1820
    %v2213 = vpack.c.b16 %v1829, %v1825
    %v2214 = vpack.c.b16 %v1830, %v1826
    %v2215 = vpack.c.b16 %v1831, %v1827
    %v2216 = vpack.c.b16 %v1832, %v1828
    %v2217 = vpack.c.b16 %v1837, %v1833
    %v2218 = vpack.c.b16 %v1838, %v1834
    %v2219 = vpack.c.b16 %v1839, %v1835
    %v2220 = vpack.c.b16 %v1840, %v1836
    %v2221 = vpack.c.b16 %v1845, %v1841
    %v2222 = vpack.c.b16 %v1846, %v1842
    %v2223 = vpack.c.b16 %v1847, %v1843
    %v2224 = vpack.c.b16 %v1848, %v1844
    %v2225 = vpack.c.b16 %v1853, %v1849
    %v2226 = vpack.c.b16 %v1854, %v1850
    %v2227 = vpack.c.b16 %v1855, %v1851
    %v2228 = vpack.c.b16 %v1856, %v1852
    %v2229 = vpack.c.b16 %v1861, %v1857
    %v2230 = vpack.c.b16 %v1862, %v1858
    %v2231 = vpack.c.b16 %v1863, %v1859
    %v2232 = vpack.c.b16 %v1864, %v1860
    %v2233 = vpack.c.b16 %v1869, %v1865
    %v2234 = vpack.c.b16 %v1870, %v1866
    %v2235 = vpack.c.b16 %v1871, %v1867
    %v2236 = vpack.c.b16 %v1872, %v1868
    %v2237 = vpack.c.b16 %v1877, %v1873
    %v2238 = vpack.c.b16 %v1878, %v1874
    %v2239 = vpack.c.b16 %v1879, %v1875
    %v2240 = vpack.c.b16 %v1880, %v1876
    %v2241 = vpack.c.b16 %v1885, %v1881
    %v2242 = vpack.c.b16 %v1886, %v1882
    %v2243 = vpack.c.b16 %v1887, %v1883
    %v2244 = vpack.c.b16 %v1888, %v1884
    %v2245 = vpack.c.b16 %v1893, %v1889
    %v2246 = vpack.c.b16 %v1894, %v1890
    %v2247 = vpack.c.b16 %v1895, %v1891
    %v2248 = vpack.c.b16 %v1896, %v1892
    %v2249 = vpack.c.b16 %v1901, %v1897
    %v2250 = vpack.c.b16 %v1902, %v1898
    %v2251 = vpack.c.b16 %v1903, %v1899
    %v2252 = vpack.c.b16 %v1904, %v1900
    %v2253 = vpack.c.b16 %v1909, %v1905
    %v2254 = vpack.c.b16 %v1910, %v1906
    %v2255 = vpack.c.b16 %v1911, %v1907
    %v2256 = vpack.c.b16 %v1912, %v1908
    %v2257 = vpack.c.b16 %v1917, %v1913
    %v2258 = vpack.c.b16 %v1918, %v1914
    %v2259 = vpack.c.b16 %v1919, %v1915
    %v2260 = vpack.c.b16 %v1920, %v1916
    %v2261 = vpack.c.b16 %v1925, %v1921
    %v2262 = vpack.c.b16 %v1926, %v1922
    %v2263 = vpack.c.b16 %v1927, %v1923
    %v2264 = vpack.c.b16 %v1928, %v1924
    %v2265 = vpack.c.b16 %v1933, %v1929
    %v2266 = vpack.c.b16 %v1934, %v1930
    %v2267 = vpack.c.b16 %v1935, %v1931
    %v2268 = vpack.c.b16 %v1936, %v1932
    %v2269 = vpack.c.b16 %v1941, %v1937
    %v2270 = vpack.c.b16 %v1942, %v1938
    %v2271 = vpack.c.b16 %v1943, %v1939
    %v2272 = vpack.c.b16 %v1944, %v1940
    %v2273 = vpack.c.b16 %v1949, %v1945
    %v2274 = vpack.c.b16 %v1950, %v1946
    %v2275 = vpack.c.b16 %v1951, %v1947
    %v2276 = vpack.c.b16 %v1952, %v1948
    %v2277 = vpack.c.b16 %v1957, %v1953
    %v2278 = vpack.c.b16 %v1958, %v1954
    %v2279 = vpack.c.b16 %v1959, %v1955
    %v2280 = vpack.c.b16 %v1960, %v1956
    %v2281 = vpack.c.b16 %v1965, %v1961
    %v2282 = vpack.c.b16 %v1966, %v1962
    %v2283 = vpack.c.b16 %v1967, %v1963
    %v2284 = vpack.c.b16 %v1968, %v1964
    %v2285 = vpack.c.b16 %v1973, %v1969
    %v2286 = vpack.c.b16 %v1974, %v1970
    %v2287 = vpack.c.b16 %v1975, %v1971
    %v2288 = vpack.c.b16 %v1976, %v1972
    %v2289 = vpack.c.b16 %v1981, %v1977
    %v2290 = vpack.c.b16 %v1982, %v1978
    %v2291 = vpack.c.b16 %v1983, %v1979
    %v2292 = vpack.c.b16 %v1984, %v1980
    %v2293 = vpack.c.b16 %v1989, %v1985
    %v2294 = vpack.c.b16 %v1990, %v1986
    %v2295 = vpack.c.b16 %v1991, %v1987
    %v2296 = vpack.c.b16 %v1992, %v1988
    %v2297 = vpack.c.b16 %v1997, %v1993
    %v2298 = vpack.c.b16 %v1998, %v1994
    %v2299 = vpack.c.b16 %v1999, %v1995
    %v2300 = vpack.c.b16 %v2000, %v1996
    %v2301 = vpack.c.b16 %v2005, %v2001
    %v2302 = vpack.c.b16 %v2006, %v2002
    %v2303 = vpack.c.b16 %v2007, %v2003
    %v2304 = vpack.c.b16 %v2008, %v2004
    %v2305 = vpack.c.b16 %v2013, %v2009
    %v2306 = vpack.c.b16 %v2014, %v2010
    %v2307 = vpack.c.b16 %v2015, %v2011
    %v2308 = vpack.c.b16 %v2016, %v2012
    %v2309 = vpack.c.b16 %v2021, %v2017
    %v2310 = vpack.c.b16 %v2022, %v2018
    %v2311 = vpack.c.b16 %v2023, %v2019
    %v2312 = vpack.c.b16 %v2024, %v2020
    %v2313 = vpack.c.b16 %v2029, %v2025
    %v2314 = vpack.c.b16 %v2030, %v2026
    %v2315 = vpack.c.b16 %v2031, %v2027
    %v2316 = vpack.c.b16 %v2032, %v2028
    %v2317 = vpack.c.b16 %v2037, %v2033
    %v2318 = vpack.c.b16 %v2038, %v2034
    %v2319 = vpack.c.b16 %v2039, %v2035
    %v2320 = vpack.c.b16 %v2040, %v2036
    %v2321 = vpack.c.b16 %v2045, %v2041
    %v2322 = vpack.c.b16 %v2046, %v2042
    %v2323 = vpack.c.b16 %v2047, %v2043
    %v2324 = vpack.c.b16 %v2048, %v2044
    %v2325 = vpack.c.b16 %v2053, %v2049
    %v2326 = vpack.c.b16 %v2054, %v2050
    %v2327 = vpack.c.b16 %v2055, %v2051
    %v2328 = vpack.c.b16 %v2056, %v2052
    %v2329 = vpack.c.b16 %v2061, %v2057
    %v2330 = vpack.c.b16 %v2062, %v2058
    %v2331 = vpack.c.b16 %v2063, %v2059
    %v2332 = vpack.c.b16 %v2064, %v2060
    %v2333 = vpack.c.b16 %v2069, %v2065
    %v2334 = vpack.c.b16 %v2070, %v2066
    %v2335 = vpack.c.b16 %v2071, %v2067
    %v2336 = vpack.c.b16 %v2072, %v2068
    %v2337 = vpack.c.b16 %v2077, %v2073
    %v2338 = vpack.c.b16 %v2078, %v2074
    %v2339 = vpack.c.b16 %v2079, %v2075
    %v2340 = vpack.c.b16 %v2080, %v2076
    %v2341 = vpack.c.b16 %v2085, %v2081
    %v2342 = vpack.c.b16 %v2086, %v2082
    %v2343 = vpack.c.b16 %v2087, %v2083
    %v2344 = vpack.c.b16 %v2088, %v2084
    %2601 = vmatprep.subr.bf16.mxu0 %v2090
    %2602 = vmatpush1.bf16.msra.mxu0 %v2089
    %2603 = vmatprep.subr.bf16.mxu0 %v2094
    %2604 = vmatpush1.bf16.msra.mxu0 %v2093
    %2605 = vmatprep.subr.bf16.mxu0 %v2098
    %2606 = vmatpush1.bf16.msra.mxu0 %v2097
    %2607 = vmatprep.subr.bf16.mxu0 %v2102
    %2608 = vmatpush1.bf16.msra.mxu0 %v2101
    %2609 = vmatprep.subr.bf16.mxu0 %v2106
    %2610 = vmatpush1.bf16.msra.mxu0 %v2105
    %2611 = vmatprep.subr.bf16.mxu0 %v2110
    %2612 = vmatpush1.bf16.msra.mxu0 %v2109
    %2613 = vmatprep.subr.bf16.mxu0 %v2114
    %2614 = vmatpush1.bf16.msra.mxu0 %v2113
    %2615 = vmatprep.subr.bf16.mxu0 %v2118
    %2616 = vmatpush1.bf16.msra.mxu0 %v2117
    %2617 = vmatprep.subr.bf16.mxu0 %v2122
    %2618 = vmatpush1.bf16.msra.mxu0 %v2121
    %2619 = vmatprep.subr.bf16.mxu0 %v2126
    %2620 = vmatpush1.bf16.msra.mxu0 %v2125
    %2621 = vmatprep.subr.bf16.mxu0 %v2130
    %2622 = vmatpush1.bf16.msra.mxu0 %v2129
    %2623 = vmatprep.subr.bf16.mxu0 %v2134
    %2624 = vmatpush1.bf16.msra.mxu0 %v2133
    %2625 = vmatprep.subr.bf16.mxu0 %v2138
    %2626 = vmatpush1.bf16.msra.mxu0 %v2137
    %2627 = vmatprep.subr.bf16.mxu0 %v2142
    %2628 = vmatpush1.bf16.msra.mxu0 %v2141
    %2629 = vmatprep.subr.bf16.mxu0 %v2146
    %2630 = vmatpush1.bf16.msra.mxu0 %v2145
    %2631 = vmatprep.subr.bf16.mxu0 %v2150
    %2632 = vmatpush1.bf16.msra.mxu0 %v2149
    %2633 = vmatprep.mubr.bf16.mxu0 %v1036
    %2634 = vmatmul.mubr.bf16.gmra.mrb[0].mxu0 %v1035
    %v2635 = vpop.f32.mrb[0].mxu0
    %v2636 = vadd.f32 %v1304, %v2635
    %v2637 = vpop.f32.mrb[0].mxu0
    %v2638 = vadd.f32 %v1308, %v2637
    %v2639 = vpop.f32.mrb[0].mxu0
    %v2640 = vpop.f32.mrb[0].mxu0
    %2641 = vdwg.mxu0
    %2642 = vmatprep.subr.bf16.mxu0 %v2154
    %2643 = vmatpush1.bf16.msra.mxu0 %v2153
    %2644 = vmatprep.subr.bf16.mxu0 %v2158
    %2645 = vmatpush1.bf16.msra.mxu0 %v2157
    %2646 = vmatprep.subr.bf16.mxu0 %v2162
    %2647 = vmatpush1.bf16.msra.mxu0 %v2161
    %2648 = vmatprep.subr.bf16.mxu0 %v2166
    %2649 = vmatpush1.bf16.msra.mxu0 %v2165
    %2650 = vmatprep.subr.bf16.mxu0 %v2170
    %2651 = vmatpush1.bf16.msra.mxu0 %v2169
    %2652 = vmatprep.subr.bf16.mxu0 %v2174
    %2653 = vmatpush1.bf16.msra.mxu0 %v2173
    %2654 = vmatprep.subr.bf16.mxu0 %v2178
    %2655 = vmatpush1.bf16.msra.mxu0 %v2177
    %2656 = vmatprep.subr.bf16.mxu0 %v2182
    %2657 = vmatpush1.bf16.msra.mxu0 %v2181
    %2658 = vmatprep.subr.bf16.mxu0 %v2186
    %2659 = vmatpush1.bf16.msra.mxu0 %v2185
    %2660 = vmatprep.subr.bf16.mxu0 %v2190
    %2661 = vmatpush1.bf16.msra.mxu0 %v2189
    %2662 = vmatprep.subr.bf16.mxu0 %v2194
    %2663 = vmatpush1.bf16.msra.mxu0 %v2193
    %2664 = vmatprep.subr.bf16.mxu0 %v2198
    %2665 = vmatpush1.bf16.msra.mxu0 %v2197
    %2666 = vmatprep.subr.bf16.mxu0 %v2202
    %2667 = vmatpush1.bf16.msra.mxu0 %v2201
    %2668 = vmatprep.subr.bf16.mxu0 %v2206
    %2669 = vmatpush1.bf16.msra.mxu0 %v2205
    %2670 = vmatprep.subr.bf16.mxu0 %v2210
    %2671 = vmatpush1.bf16.msra.mxu0 %v2209
    %2672 = vmatprep.subr.bf16.mxu0 %v2214
    %2673 = vmatpush1.bf16.msra.mxu0 %v2213
    %2674 = vmatprep.mubr.bf16.mxu0 %v1038
    %2675 = vmatmul.mubr.bf16.gmra.mrb[0].mxu0 %v1037
    %v2676 = vpop.f32.mrb[0].mxu0
    %v2677 = vadd.f32 %v2636, %v2676
    %v2678 = vpop.f32.mrb[0].mxu0
    %v2679 = vadd.f32 %v2638, %v2678
    %v2680 = vpop.f32.mrb[0].mxu0
    %v2681 = vpop.f32.mrb[0].mxu0
    %2682 = vdwg.mxu0
    %2683 = vmatprep.subr.bf16.mxu0 %v2218
    %2684 = vmatpush1.bf16.msra.mxu0 %v2217
    %2685 = vmatprep.subr.bf16.mxu0 %v2222
    %2686 = vmatpush1.bf16.msra.mxu0 %v2221
    %2687 = vmatprep.subr.bf16.mxu0 %v2226
    %2688 = vmatpush1.bf16.msra.mxu0 %v2225
    %2689 = vmatprep.subr.bf16.mxu0 %v2230
    %2690 = vmatpush1.bf16.msra.mxu0 %v2229
    %2691 = vmatprep.subr.bf16.mxu0 %v2234
    %2692 = vmatpush1.bf16.msra.mxu0 %v2233
    %2693 = vmatprep.subr.bf16.mxu0 %v2238
    %2694 = vmatpush1.bf16.msra.mxu0 %v2237
    %2695 = vmatprep.subr.bf16.mxu0 %v2242
    %2696 = vmatpush1.bf16.msra.mxu0 %v2241
    %2697 = vmatprep.subr.bf16.mxu0 %v2246
    %2698 = vmatpush1.bf16.msra.mxu0 %v2245
    %2699 = vmatprep.subr.bf16.mxu0 %v2250
    %2700 = vmatpush1.bf16.msra.mxu0 %v2249
    %2701 = vmatprep.subr.bf16.mxu0 %v2254
    %2702 = vmatpush1.bf16.msra.mxu0 %v2253
    %2703 = vmatprep.subr.bf16.mxu0 %v2258
    %2704 = vmatpush1.bf16.msra.mxu0 %v2257
    %2705 = vmatprep.subr.bf16.mxu0 %v2262
    %2706 = vmatpush1.bf16.msra.mxu0 %v2261
    %2707 = vmatprep.subr.bf16.mxu0 %v2266
    %2708 = vmatpush1.bf16.msra.mxu0 %v2265
    %2709 = vmatprep.subr.bf16.mxu0 %v2270
    %2710 = vmatpush1.bf16.msra.mxu0 %v2269
    %2711 = vmatprep.subr.bf16.mxu0 %v2274
    %2712 = vmatpush1.bf16.msra.mxu0 %v2273
    %2713 = vmatprep.subr.bf16.mxu0 %v2278
    %2714 = vmatpush1.bf16.msra.mxu0 %v2277
    %2715 = vmatprep.mubr.bf16.mxu0 %v1040
    %2716 = vmatmul.mubr.bf16.gmra.mrb[0].mxu0 %v1039
    %v2717 = vpop.f32.mrb[0].mxu0
    %v2718 = vadd.f32 %v2677, %v2717
    %v2719 = vpop.f32.mrb[0].mxu0
    %v2720 = vadd.f32 %v2679, %v2719
    %v2721 = vpop.f32.mrb[0].mxu0
    %v2722 = vpop.f32.mrb[0].mxu0
    %2723 = vdwg.mxu0
    %2724 = vmatprep.subr.bf16.mxu0 %v2282
    %2725 = vmatpush1.bf16.msra.mxu0 %v2281
    %2726 = vmatprep.subr.bf16.mxu0 %v2286
    %2727 = vmatpush1.bf16.msra.mxu0 %v2285
    %2728 = vmatprep.subr.bf16.mxu0 %v2290
    %2729 = vmatpush1.bf16.msra.mxu0 %v2289
    %2730 = vmatprep.subr.bf16.mxu0 %v2294
    %2731 = vmatpush1.bf16.msra.mxu0 %v2293
    %2732 = vmatprep.subr.bf16.mxu0 %v2298
    %2733 = vmatpush1.bf16.msra.mxu0 %v2297
    %2734 = vmatprep.subr.bf16.mxu0 %v2302
    %2735 = vmatpush1.bf16.msra.mxu0 %v2301
    %2736 = vmatprep.subr.bf16.mxu0 %v2306
    %2737 = vmatpush1.bf16.msra.mxu0 %v2305
    %2738 = vmatprep.subr.bf16.mxu0 %v2310
    %2739 = vmatpush1.bf16.msra.mxu0 %v2309
    %2740 = vmatprep.subr.bf16.mxu0 %v2314
    %2741 = vmatpush1.bf16.msra.mxu0 %v2313
    %2742 = vmatprep.subr.bf16.mxu0 %v2318
    %2743 = vmatpush1.bf16.msra.mxu0 %v2317
    %2744 = vmatprep.subr.bf16.mxu0 %v2322
    %2745 = vmatpush1.bf16.msra.mxu0 %v2321
    %2746 = vmatprep.subr.bf16.mxu0 %v2326
    %2747 = vmatpush1.bf16.msra.mxu0 %v2325
    %2748 = vmatprep.subr.bf16.mxu0 %v2330
    %2749 = vmatpush1.bf16.msra.mxu0 %v2329
    %2750 = vmatprep.subr.bf16.mxu0 %v2334
    %2751 = vmatpush1.bf16.msra.mxu0 %v2333
    %2752 = vmatprep.subr.bf16.mxu0 %v2338
    %2753 = vmatpush1.bf16.msra.mxu0 %v2337
    %2754 = vmatprep.subr.bf16.mxu0 %v2342
    %2755 = vmatpush1.bf16.msra.mxu0 %v2341
    %2756 = vmatprep.mubr.bf16.mxu0 %v1042
    %2757 = vmatmul.mubr.bf16.gmra.mrb[0].mxu0 %v1041
    %v2758 = vpop.f32.mrb[0].mxu0
    %v2759 = vadd.f32 %v2718, %v2758
    %v2760 = vpop.f32.mrb[0].mxu0
    %v2761 = vadd.f32 %v2720, %v2760
    %v2762 = vpop.f32.mrb[0].mxu0
    %v2763 = vpop.f32.mrb[0].mxu0
    %2764 = vdwg.mxu0
    %2765 = vmatprep.subr.bf16.mxu0 %v2092
    %2766 = vmatpush1.bf16.msra.mxu0 %v2091
    %2767 = vmatprep.subr.bf16.mxu0 %v2096
    %2768 = vmatpush1.bf16.msra.mxu0 %v2095
    %2769 = vmatprep.subr.bf16.mxu0 %v2100
    %2770 = vmatpush1.bf16.msra.mxu0 %v2099
    %2771 = vmatprep.subr.bf16.mxu0 %v2104
    %2772 = vmatpush1.bf16.msra.mxu0 %v2103
    %2773 = vmatprep.subr.bf16.mxu0 %v2108
    %2774 = vmatpush1.bf16.msra.mxu0 %v2107
    %2775 = vmatprep.subr.bf16.mxu0 %v2112
    %2776 = vmatpush1.bf16.msra.mxu0 %v2111
    %2777 = vmatprep.subr.bf16.mxu0 %v2116
    %2778 = vmatpush1.bf16.msra.mxu0 %v2115
    %2779 = vmatprep.subr.bf16.mxu0 %v2120
    %2780 = vmatpush1.bf16.msra.mxu0 %v2119
    %2781 = vmatprep.subr.bf16.mxu0 %v2124
    %2782 = vmatpush1.bf16.msra.mxu0 %v2123
    %2783 = vmatprep.subr.bf16.mxu0 %v2128
    %2784 = vmatpush1.bf16.msra.mxu0 %v2127
    %2785 = vmatprep.subr.bf16.mxu0 %v2132
    %2786 = vmatpush1.bf16.msra.mxu0 %v2131
    %2787 = vmatprep.subr.bf16.mxu0 %v2136
    %2788 = vmatpush1.bf16.msra.mxu0 %v2135
    %2789 = vmatprep.subr.bf16.mxu0 %v2140
    %2790 = vmatpush1.bf16.msra.mxu0 %v2139
    %2791 = vmatprep.subr.bf16.mxu0 %v2144
    %2792 = vmatpush1.bf16.msra.mxu0 %v2143
    %2793 = vmatprep.subr.bf16.mxu0 %v2148
    %2794 = vmatpush1.bf16.msra.mxu0 %v2147
    %2795 = vmatprep.subr.bf16.mxu0 %v2152
    %2796 = vmatpush1.bf16.msra.mxu0 %v2151
    %2797 = vmatprep.mubr.bf16.mxu0 %v1036
    %2798 = vmatmul.mubr.bf16.gmra.mrb[0].mxu0 %v1035
    %v2799 = vpop.f32.mrb[0].mxu0
    %v2800 = vadd.f32 %v1312, %v2799
    %v2801 = vpop.f32.mrb[0].mxu0
    %v2802 = vadd.f32 %v1316, %v2801
    %v2803 = vpop.f32.mrb[0].mxu0
    %v2804 = vpop.f32.mrb[0].mxu0
    %2805 = vdwg.mxu0
    %2806 = vmatprep.subr.bf16.mxu0 %v2156
    %2807 = vmatpush1.bf16.msra.mxu0 %v2155
    %2808 = vmatprep.subr.bf16.mxu0 %v2160
    %2809 = vmatpush1.bf16.msra.mxu0 %v2159
    %2810 = vmatprep.subr.bf16.mxu0 %v2164
    %2811 = vmatpush1.bf16.msra.mxu0 %v2163
    %2812 = vmatprep.subr.bf16.mxu0 %v2168
    %2813 = vmatpush1.bf16.msra.mxu0 %v2167
    %2814 = vmatprep.subr.bf16.mxu0 %v2172
    %2815 = vmatpush1.bf16.msra.mxu0 %v2171
    %2816 = vmatprep.subr.bf16.mxu0 %v2176
    %2817 = vmatpush1.bf16.msra.mxu0 %v2175
    %2818 = vmatprep.subr.bf16.mxu0 %v2180
    %2819 = vmatpush1.bf16.msra.mxu0 %v2179
    %2820 = vmatprep.subr.bf16.mxu0 %v2184
    %2821 = vmatpush1.bf16.msra.mxu0 %v2183
    %2822 = vmatprep.subr.bf16.mxu0 %v2188
    %2823 = vmatpush1.bf16.msra.mxu0 %v2187
    %2824 = vmatprep.subr.bf16.mxu0 %v2192
    %2825 = vmatpush1.bf16.msra.mxu0 %v2191
    %2826 = vmatprep.subr.bf16.mxu0 %v2196
    %2827 = vmatpush1.bf16.msra.mxu0 %v2195
    %2828 = vmatprep.subr.bf16.mxu0 %v2200
    %2829 = vmatpush1.bf16.msra.mxu0 %v2199
    %2830 = vmatprep.subr.bf16.mxu0 %v2204
    %2831 = vmatpush1.bf16.msra.mxu0 %v2203
    %2832 = vmatprep.subr.bf16.mxu0 %v2208
    %2833 = vmatpush1.bf16.msra.mxu0 %v2207
    %2834 = vmatprep.subr.bf16.mxu0 %v2212
    %2835 = vmatpush1.bf16.msra.mxu0 %v2211
    %2836 = vmatprep.subr.bf16.mxu0 %v2216
    %2837 = vmatpush1.bf16.msra.mxu0 %v2215
    %2838 = vmatprep.mubr.bf16.mxu0 %v1038
    %2839 = vmatmul.mubr.bf16.gmra.mrb[0].mxu0 %v1037
    %v2840 = vpop.f32.mrb[0].mxu0
    %v2841 = vadd.f32 %v2800, %v2840
    %v2842 = vpop.f32.mrb[0].mxu0
    %v2843 = vadd.f32 %v2802, %v2842
    %v2844 = vpop.f32.mrb[0].mxu0
    %v2845 = vpop.f32.mrb[0].mxu0
    %2846 = vdwg.mxu0
    %2847 = vmatprep.subr.bf16.mxu0 %v2220
    %2848 = vmatpush1.bf16.msra.mxu0 %v2219
    %2849 = vmatprep.subr.bf16.mxu0 %v2224
    %2850 = vmatpush1.bf16.msra.mxu0 %v2223
    %2851 = vmatprep.subr.bf16.mxu0 %v2228
    %2852 = vmatpush1.bf16.msra.mxu0 %v2227
    %2853 = vmatprep.subr.bf16.mxu0 %v2232
    %2854 = vmatpush1.bf16.msra.mxu0 %v2231
    %2855 = vmatprep.subr.bf16.mxu0 %v2236
    %2856 = vmatpush1.bf16.msra.mxu0 %v2235
    %2857 = vmatprep.subr.bf16.mxu0 %v2240
    %2858 = vmatpush1.bf16.msra.mxu0 %v2239
    %2859 = vmatprep.subr.bf16.mxu0 %v2244
    %2860 = vmatpush1.bf16.msra.mxu0 %v2243
    %2861 = vmatprep.subr.bf16.mxu0 %v2248
    %2862 = vmatpush1.bf16.msra.mxu0 %v2247
    %2863 = vmatprep.subr.bf16.mxu0 %v2252
    %2864 = vmatpush1.bf16.msra.mxu0 %v2251
    %2865 = vmatprep.subr.bf16.mxu0 %v2256
    %2866 = vmatpush1.bf16.msra.mxu0 %v2255
    %2867 = vmatprep.subr.bf16.mxu0 %v2260
    %2868 = vmatpush1.bf16.msra.mxu0 %v2259
    %2869 = vmatprep.subr.bf16.mxu0 %v2264
    %2870 = vmatpush1.bf16.msra.mxu0 %v2263
    %2871 = vmatprep.subr.bf16.mxu0 %v2268
    %2872 = vmatpush1.bf16.msra.mxu0 %v2267
    %2873 = vmatprep.subr.bf16.mxu0 %v2272
    %2874 = vmatpush1.bf16.msra.mxu0 %v2271
    %2875 = vmatprep.subr.bf16.mxu0 %v2276
    %2876 = vmatpush1.bf16.msra.mxu0 %v2275
    %2877 = vmatprep.subr.bf16.mxu0 %v2280
    %2878 = vmatpush1.bf16.msra.mxu0 %v2279
    %2879 = vmatprep.mubr.bf16.mxu0 %v1040
    %2880 = vmatmul.mubr.bf16.gmra.mrb[0].mxu0 %v1039
    %v2881 = vpop.f32.mrb[0].mxu0
    %v2882 = vadd.f32 %v2841, %v2881
    %v2883 = vpop.f32.mrb[0].mxu0
    %v2884 = vadd.f32 %v2843, %v2883
    %v2885 = vpop.f32.mrb[0].mxu0
    %v2886 = vpop.f32.mrb[0].mxu0
    %2887 = vdwg.mxu0
    %2888 = vmatprep.subr.bf16.mxu0 %v2284
    %2889 = vmatpush1.bf16.msra.mxu0 %v2283
    %2890 = vmatprep.subr.bf16.mxu0 %v2288
    %2891 = vmatpush1.bf16.msra.mxu0 %v2287
    %2892 = vmatprep.subr.bf16.mxu0 %v2292
    %2893 = vmatpush1.bf16.msra.mxu0 %v2291
    %2894 = vmatprep.subr.bf16.mxu0 %v2296
    %2895 = vmatpush1.bf16.msra.mxu0 %v2295
    %2896 = vmatprep.subr.bf16.mxu0 %v2300
    %2897 = vmatpush1.bf16.msra.mxu0 %v2299
    %2898 = vmatprep.subr.bf16.mxu0 %v2304
    %2899 = vmatpush1.bf16.msra.mxu0 %v2303
    %2900 = vmatprep.subr.bf16.mxu0 %v2308
    %2901 = vmatpush1.bf16.msra.mxu0 %v2307
    %2902 = vmatprep.subr.bf16.mxu0 %v2312
    %2903 = vmatpush1.bf16.msra.mxu0 %v2311
    %2904 = vmatprep.subr.bf16.mxu0 %v2316
    %2905 = vmatpush1.bf16.msra.mxu0 %v2315
    %2906 = vmatprep.subr.bf16.mxu0 %v2320
    %2907 = vmatpush1.bf16.msra.mxu0 %v2319
    %2908 = vmatprep.subr.bf16.mxu0 %v2324
    %2909 = vmatpush1.bf16.msra.mxu0 %v2323
    %2910 = vmatprep.subr.bf16.mxu0 %v2328
    %2911 = vmatpush1.bf16.msra.mxu0 %v2327
    %2912 = vmatprep.subr.bf16.mxu0 %v2332
    %2913 = vmatpush1.bf16.msra.mxu0 %v2331
    %2914 = vmatprep.subr.bf16.mxu0 %v2336
    %2915 = vmatpush1.bf16.msra.mxu0 %v2335
    %2916 = vmatprep.subr.bf16.mxu0 %v2340
    %2917 = vmatpush1.bf16.msra.mxu0 %v2339
    %2918 = vmatprep.subr.bf16.mxu0 %v2344
    %2919 = vmatpush1.bf16.msra.mxu0 %v2343
    %2920 = vmatprep.mubr.bf16.mxu0 %v1042
    %2921 = vmatmul.mubr.bf16.gmra.mrb[0].mxu0 %v1041
    %v2922 = vpop.f32.mrb[0].mxu0
    %v2923 = vadd.f32 %v2882, %v2922
    %v2924 = vpop.f32.mrb[0].mxu0
    %v2925 = vadd.f32 %v2884, %v2924
    %v2926 = vpop.f32.mrb[0].mxu0
    %v2927 = vpop.f32.mrb[0].mxu0
    %2928 = vdwg.mxu0
    %v2929 = vtanh.pop %v2759
    %v2930 = vtanh.pop %v2761
    %v2931 = vtanh.pop %v2923
    %v2932 = vtanh.pop %v2925
    %v2933 = vpack.c.bf16 %v2929, %v2929
    %v2934 = vpack.c.bf16 %v2930, %v2930
    %v2935 = vpack.c.bf16 %v2931, %v2931
    %v2936 = vpack.c.bf16 %v2932, %v2932
    %v2937 = vld [vmem:[%s5] sm:$0xf]
    %v2938 = vld [vmem:[%s5 + $0x4] sm:$0xf]
    %v2939 = vld [vmem:[%s5 + $0x8] sm:$0xf]
    %v2940 = vld [vmem:[%s5 + $0xc] sm:$0xf]
    %v2941 = vld [vmem:[%s5 + $0x10] sm:$0xf]
    %v2942 = vld [vmem:[%s5 + $0x14] sm:$0xf]
    %v2943 = vld [vmem:[%s5 + $0x18] sm:$0xf]
    %v2944 = vld [vmem:[%s5 + $0x1c] sm:$0xf]
    %v2945 = vld [vmem:[%s5 + $0x20] sm:$0xf]
    %v2946 = vld [vmem:[%s5 + $0x24] sm:$0xf]
    %v2947 = vld [vmem:[%s5 + $0x28] sm:$0xf]
    %v2948 = vld [vmem:[%s5 + $0x2c] sm:$0xf]
    %v2949 = vld [vmem:[%s5 + $0x30] sm:$0xf]
    %v2950 = vld [vmem:[%s5 + $0x34] sm:$0xf]
    %v2951 = vld [vmem:[%s5 + $0x38] sm:$0xf]
    %v2952 = vld [vmem:[%s5 + $0x3c] sm:$0xf]
    %v2953 = vld [vmem:[%s5 + $0x40] sm:$0xf]
    %v2954 = vld [vmem:[%s5 + $0x44] sm:$0xf]
    %v2955 = vld [vmem:[%s5 + $0x48] sm:$0xf]
    %v2956 = vld [vmem:[%s5 + $0x4c] sm:$0xf]
    %v2957 = vld [vmem:[%s5 + $0x50] sm:$0xf]
    %v2958 = vld [vmem:[%s5 + $0x54] sm:$0xf]
    %v2959 = vld [vmem:[%s5 + $0x58] sm:$0xf]
    %v2960 = vld [vmem:[%s5 + $0x5c] sm:$0xf]
    %v2961 = vld [vmem:[%s5 + $0x60] sm:$0xf]
    %v2962 = vld [vmem:[%s5 + $0x64] sm:$0xf]
    %v2963 = vld [vmem:[%s5 + $0x68] sm:$0xf]
    %v2964 = vld [vmem:[%s5 + $0x6c] sm:$0xf]
    %v2965 = vld [vmem:[%s5 + $0x70] sm:$0xf]
    %v2966 = vld [vmem:[%s5 + $0x74] sm:$0xf]
    %v2967 = vld [vmem:[%s5 + $0x78] sm:$0xf]
    %v2968 = vld [vmem:[%s5 + $0x7c] sm:$0xf]
    %v2969 = vld [vmem:[%s5 + $0x80] sm:$0xf]
    %v2970 = vld [vmem:[%s5 + $0x84] sm:$0xf]
    %v2971 = vld [vmem:[%s5 + $0x88] sm:$0xf]
    %v2972 = vld [vmem:[%s5 + $0x8c] sm:$0xf]
    %v2973 = vld [vmem:[%s5 + $0x90] sm:$0xf]
    %v2974 = vld [vmem:[%s5 + $0x94] sm:$0xf]
    %v2975 = vld [vmem:[%s5 + $0x98] sm:$0xf]
    %v2976 = vld [vmem:[%s5 + $0x9c] sm:$0xf]
    %v2977 = vld [vmem:[%s5 + $0xa0] sm:$0xf]
    %v2978 = vld [vmem:[%s5 + $0xa4] sm:$0xf]
    %v2979 = vld [vmem:[%s5 + $0xa8] sm:$0xf]
    %v2980 = vld [vmem:[%s5 + $0xac] sm:$0xf]
    %v2981 = vld [vmem:[%s5 + $0xb0] sm:$0xf]
    %v2982 = vld [vmem:[%s5 + $0xb4] sm:$0xf]
    %v2983 = vld [vmem:[%s5 + $0xb8] sm:$0xf]
    %v2984 = vld [vmem:[%s5 + $0xbc] sm:$0xf]
    %v2985 = vld [vmem:[%s5 + $0xc0] sm:$0xf]
    %v2986 = vld [vmem:[%s5 + $0xc4] sm:$0xf]
    %v2987 = vld [vmem:[%s5 + $0xc8] sm:$0xf]
    %v2988 = vld [vmem:[%s5 + $0xcc] sm:$0xf]
    %v2989 = vld [vmem:[%s5 + $0xd0] sm:$0xf]
    %v2990 = vld [vmem:[%s5 + $0xd4] sm:$0xf]
    %v2991 = vld [vmem:[%s5 + $0xd8] sm:$0xf]
    %v2992 = vld [vmem:[%s5 + $0xdc] sm:$0xf]
    %v2993 = vld [vmem:[%s5 + $0xe0] sm:$0xf]
    %v2994 = vld [vmem:[%s5 + $0xe4] sm:$0xf]
    %v2995 = vld [vmem:[%s5 + $0xe8] sm:$0xf]
    %v2996 = vld [vmem:[%s5 + $0xec] sm:$0xf]
    %v2997 = vld [vmem:[%s5 + $0xf0] sm:$0xf]
    %v2998 = vld [vmem:[%s5 + $0xf4] sm:$0xf]
    %v2999 = vld [vmem:[%s5 + $0xf8] sm:$0xf]
    %v3000 = vld [vmem:[%s5 + $0xfc] sm:$0xf]
    %v3001 = vld [vmem:[%s6] sm:$0x1]
    %v3003 = vlaneseq
    %v3004 = vshrl.u32 %v3003, 7
    %v3005 = vsub.s32 0, %v3004
    %v3006 = vrot.slane %v3001, %v3005
    %v3072 = vunpack.c.l.b16 %v2937
    %v3073 = vunpack.c.l.b16 %v2938
    %v3074 = vunpack.c.l.b16 %v2939
    %v3075 = vunpack.c.l.b16 %v2940
    %v3076 = vunpack.c.l.b16 %v2941
    %v3077 = vunpack.c.l.b16 %v2942
    %v3078 = vunpack.c.l.b16 %v2943
    %v3079 = vunpack.c.l.b16 %v2944
    %v3080 = vunpack.c.l.b16 %v2945
    %v3081 = vunpack.c.l.b16 %v2946
    %v3082 = vunpack.c.l.b16 %v2947
    %v3083 = vunpack.c.l.b16 %v2948
    %v3084 = vunpack.c.l.b16 %v2949
    %v3085 = vunpack.c.l.b16 %v2950
    %v3086 = vunpack.c.l.b16 %v2951
    %v3087 = vunpack.c.l.b16 %v2952
    %v3088 = vunpack.c.l.b16 %v2953
    %v3089 = vunpack.c.l.b16 %v2954
    %v3090 = vunpack.c.l.b16 %v2955
    %v3091 = vunpack.c.l.b16 %v2956
    %v3092 = vunpack.c.l.b16 %v2957
    %v3093 = vunpack.c.l.b16 %v2958
    %v3094 = vunpack.c.l.b16 %v2959
    %v3095 = vunpack.c.l.b16 %v2960
    %v3096 = vunpack.c.l.b16 %v2961
    %v3097 = vunpack.c.l.b16 %v2962
    %v3098 = vunpack.c.l.b16 %v2963
    %v3099 = vunpack.c.l.b16 %v2964
    %v3100 = vunpack.c.l.b16 %v2965
    %v3101 = vunpack.c.l.b16 %v2966
    %v3102 = vunpack.c.l.b16 %v2967
    %v3103 = vunpack.c.l.b16 %v2968
    %v3104 = vunpack.c.l.b16 %v2969
    %v3105 = vunpack.c.l.b16 %v2970
    %v3106 = vunpack.c.l.b16 %v2971
    %v3107 = vunpack.c.l.b16 %v2972
    %v3108 = vunpack.c.l.b16 %v2973
    %v3109 = vunpack.c.l.b16 %v2974
    %v3110 = vunpack.c.l.b16 %v2975
    %v3111 = vunpack.c.l.b16 %v2976
    %v3112 = vunpack.c.l.b16 %v2977
    %v3113 = vunpack.c.l.b16 %v2978
    %v3114 = vunpack.c.l.b16 %v2979
    %v3115 = vunpack.c.l.b16 %v2980
    %v3116 = vunpack.c.l.b16 %v2981
    %v3117 = vunpack.c.l.b16 %v2982
    %v3118 = vunpack.c.l.b16 %v2983
    %v3119 = vunpack.c.l.b16 %v2984
    %v3120 = vunpack.c.l.b16 %v2985
    %v3121 = vunpack.c.l.b16 %v2986
    %v3122 = vunpack.c.l.b16 %v2987
    %v3123 = vunpack.c.l.b16 %v2988
    %v3124 = vunpack.c.l.b16 %v2989
    %v3125 = vunpack.c.l.b16 %v2990
    %v3126 = vunpack.c.l.b16 %v2991
    %v3127 = vunpack.c.l.b16 %v2992
    %v3128 = vunpack.c.l.b16 %v2993
    %v3129 = vunpack.c.l.b16 %v2994
    %v3130 = vunpack.c.l.b16 %v2995
    %v3131 = vunpack.c.l.b16 %v2996
    %v3132 = vunpack.c.l.b16 %v2997
    %v3133 = vunpack.c.l.b16 %v2998
    %v3134 = vunpack.c.l.b16 %v2999
    %v3135 = vunpack.c.l.b16 %v3000
    %v3136 = vpack.c.b16 %v3073, %v3072
    %v3137 = vpack.c.b16 %v3075, %v3074
    %v3138 = vpack.c.b16 %v3077, %v3076
    %v3139 = vpack.c.b16 %v3079, %v3078
    %v3140 = vpack.c.b16 %v3081, %v3080
    %v3141 = vpack.c.b16 %v3083, %v3082
    %v3142 = vpack.c.b16 %v3085, %v3084
    %v3143 = vpack.c.b16 %v3087, %v3086
    %v3144 = vpack.c.b16 %v3089, %v3088
    %v3145 = vpack.c.b16 %v3091, %v3090
    %v3146 = vpack.c.b16 %v3093, %v3092
    %v3147 = vpack.c.b16 %v3095, %v3094
    %v3148 = vpack.c.b16 %v3097, %v3096
    %v3149 = vpack.c.b16 %v3099, %v3098
    %v3150 = vpack.c.b16 %v3101, %v3100
    %v3151 = vpack.c.b16 %v3103, %v3102
    %v3152 = vpack.c.b16 %v3105, %v3104
    %v3153 = vpack.c.b16 %v3107, %v3106
    %v3154 = vpack.c.b16 %v3109, %v3108
    %v3155 = vpack.c.b16 %v3111, %v3110
    %v3156 = vpack.c.b16 %v3113, %v3112
    %v3157 = vpack.c.b16 %v3115, %v3114
    %v3158 = vpack.c.b16 %v3117, %v3116
    %v3159 = vpack.c.b16 %v3119, %v3118
    %v3160 = vpack.c.b16 %v3121, %v3120
    %v3161 = vpack.c.b16 %v3123, %v3122
    %v3162 = vpack.c.b16 %v3125, %v3124
    %v3163 = vpack.c.b16 %v3127, %v3126
    %v3164 = vpack.c.b16 %v3129, %v3128
    %v3165 = vpack.c.b16 %v3131, %v3130
    %v3166 = vpack.c.b16 %v3133, %v3132
    %v3167 = vpack.c.b16 %v3135, %v3134
    %3200 = vmatprep.subr.bf16.mxu0 0
    %3201 = vmatpush1.bf16.msra.mxu0 %v3136
    %3202 = vmatprep.subr.bf16.mxu0 0
    %3203 = vmatpush1.bf16.msra.mxu0 %v3137
    %3204 = vmatprep.subr.bf16.mxu0 0
    %3205 = vmatpush1.bf16.msra.mxu0 %v3138
    %3206 = vmatprep.subr.bf16.mxu0 0
    %3207 = vmatpush1.bf16.msra.mxu0 %v3139
    %3208 = vmatprep.subr.bf16.mxu0 0
    %3209 = vmatpush1.bf16.msra.mxu0 %v3140
    %3210 = vmatprep.subr.bf16.mxu0 0
    %3211 = vmatpush1.bf16.msra.mxu0 %v3141
    %3212 = vmatprep.subr.bf16.mxu0 0
    %3213 = vmatpush1.bf16.msra.mxu0 %v3142
    %3214 = vmatprep.subr.bf16.mxu0 0
    %3215 = vmatpush1.bf16.msra.mxu0 %v3143
    %3216 = vmatprep.subr.bf16.mxu0 0
    %3217 = vmatpush1.bf16.msra.mxu0 %v3144
    %3218 = vmatprep.subr.bf16.mxu0 0
    %3219 = vmatpush1.bf16.msra.mxu0 %v3145
    %3220 = vmatprep.subr.bf16.mxu0 0
    %3221 = vmatpush1.bf16.msra.mxu0 %v3146
    %3222 = vmatprep.subr.bf16.mxu0 0
    %3223 = vmatpush1.bf16.msra.mxu0 %v3147
    %3224 = vmatprep.subr.bf16.mxu0 0
    %3225 = vmatpush1.bf16.msra.mxu0 %v3148
    %3226 = vmatprep.subr.bf16.mxu0 0
    %3227 = vmatpush1.bf16.msra.mxu0 %v3149
    %3228 = vmatprep.subr.bf16.mxu0 0
    %3229 = vmatpush1.bf16.msra.mxu0 %v3150
    %3230 = vmatprep.subr.bf16.mxu0 0
    %3231 = vmatpush1.bf16.msra.mxu0 %v3151
    %3232 = vmatprep.mubr.bf16.mxu0 %v2934
    %3233 = vmatmul.mubr.bf16.gmra.mrb[0].mxu0 %v2933
    %v3234 = vpop.f32.mrb[0].mxu0
    %v3235 = vadd.f32 %v3006, %v3234
    %v3236 = vpop.f32.mrb[0].mxu0
    %v3237 = vpop.f32.mrb[0].mxu0
    %v3238 = vpop.f32.mrb[0].mxu0
    %3239 = vdwg.mxu0
    %3240 = vmatprep.subr.bf16.mxu0 0
    %3241 = vmatpush1.bf16.msra.mxu0 %v3152
    %3242 = vmatprep.subr.bf16.mxu0 0
    %3243 = vmatpush1.bf16.msra.mxu0 %v3153
    %3244 = vmatprep.subr.bf16.mxu0 0
    %3245 = vmatpush1.bf16.msra.mxu0 %v3154
    %3246 = vmatprep.subr.bf16.mxu0 0
    %3247 = vmatpush1.bf16.msra.mxu0 %v3155
    %3248 = vmatprep.subr.bf16.mxu0 0
    %3249 = vmatpush1.bf16.msra.mxu0 %v3156
    %3250 = vmatprep.subr.bf16.mxu0 0
    %3251 = vmatpush1.bf16.msra.mxu0 %v3157
    %3252 = vmatprep.subr.bf16.mxu0 0
    %3253 = vmatpush1.bf16.msra.mxu0 %v3158
    %3254 = vmatprep.subr.bf16.mxu0 0
    %3255 = vmatpush1.bf16.msra.mxu0 %v3159
    %3256 = vmatprep.subr.bf16.mxu0 0
    %3257 = vmatpush1.bf16.msra.mxu0 %v3160
    %3258 = vmatprep.subr.bf16.mxu0 0
    %3259 = vmatpush1.bf16.msra.mxu0 %v3161
    %3260 = vmatprep.subr.bf16.mxu0 0
    %3261 = vmatpush1.bf16.msra.mxu0 %v3162
    %3262 = vmatprep.subr.bf16.mxu0 0
    %3263 = vmatpush1.bf16.msra.mxu0 %v3163
    %3264 = vmatprep.subr.bf16.mxu0 0
    %3265 = vmatpush1.bf16.msra.mxu0 %v3164
    %3266 = vmatprep.subr.bf16.mxu0 0
    %3267 = vmatpush1.bf16.msra.mxu0 %v3165
    %3268 = vmatprep.subr.bf16.mxu0 0
    %3269 = vmatpush1.bf16.msra.mxu0 %v3166
    %3270 = vmatprep.subr.bf16.mxu0 0
    %3271 = vmatpush1.bf16.msra.mxu0 %v3167
    %3272 = vmatprep.mubr.bf16.mxu0 %v2936
    %3273 = vmatmul.mubr.bf16.gmra.mrb[0].mxu0 %v2935
    %v3274 = vpop.f32.mrb[0].mxu0
    %v3275 = vadd.f32 %v3235, %v3274
    %v3276 = vpop.f32.mrb[0].mxu0
    %v3277 = vpop.f32.mrb[0].mxu0
    %v3278 = vpop.f32.mrb[0].mxu0
    %3279 = vdwg.mxu0
    %v3280 = vtanh.pop %v3275
    %3281 = vst [vmem:[#allocation4] sm:$0xff] %v3280
    %v3282 = vpack.c.bf16 %v3280, %v3280
    %v3283 = vld [vmem:[%s7] sm:$0xff]
    %v3284 = vld [vmem:[%s7 + $0x8] sm:$0xff]
    %v3285 = vld [vmem:[%s7 + $0x10] sm:$0xff]
    %v3286 = vld [vmem:[%s7 + $0x18] sm:$0xff]
    %v3287 = vld [vmem:[%s7 + $0x20] sm:$0xff]
    %v3288 = vld [vmem:[%s7 + $0x28] sm:$0xff]
    %v3289 = vld [vmem:[%s7 + $0x30] sm:$0xff]
    %v3290 = vld [vmem:[%s7 + $0x38] sm:$0xff]
    %v3291 = vld [vmem:[%s7 + $0x40] sm:$0xff]
    %v3292 = vld [vmem:[%s7 + $0x48] sm:$0xff]
    %v3293 = vld [vmem:[%s7 + $0x50] sm:$0xff]
    %v3294 = vld [vmem:[%s7 + $0x58] sm:$0xff]
    %v3295 = vld [vmem:[%s7 + $0x60] sm:$0xff]
    %v3296 = vld [vmem:[%s7 + $0x68] sm:$0xff]
    %v3297 = vld [vmem:[%s7 + $0x70] sm:$0xff]
    %v3298 = vld [vmem:[%s7 + $0x78] sm:$0xff]
    %v3299 = vld [vmem:[%s7 + $0x80] sm:$0xff]
    %v3300 = vld [vmem:[%s7 + $0x88] sm:$0xff]
    %v3301 = vld [vmem:[%s7 + $0x90] sm:$0xff]
    %v3302 = vld [vmem:[%s7 + $0x98] sm:$0xff]
    %v3303 = vld [vmem:[%s7 + $0xa0] sm:$0xff]
    %v3304 = vld [vmem:[%s7 + $0xa8] sm:$0xff]
    %v3305 = vld [vmem:[%s7 + $0xb0] sm:$0xff]
    %v3306 = vld [vmem:[%s7 + $0xb8] sm:$0xff]
    %v3307 = vld [vmem:[%s7 + $0xc0] sm:$0xff]
    %v3308 = vld [vmem:[%s7 + $0xc8] sm:$0xff]
    %v3309 = vld [vmem:[%s7 + $0xd0] sm:$0xff]
    %v3310 = vld [vmem:[%s7 + $0xd8] sm:$0xff]
    %v3311 = vld [vmem:[%s7 + $0xe0] sm:$0xff]
    %v3312 = vld [vmem:[%s7 + $0xe8] sm:$0xff]
    %v3313 = vld [vmem:[%s7 + $0xf0] sm:$0xff]
    %v3314 = vld [vmem:[%s7 + $0xf8] sm:$0xff]
    %v3315 = vld [vmem:[%s8] sm:$0xf]
    %v3317 = vlaneseq
    %v3318 = vshrl.u32 %v3317, 7
    %v3319 = vsub.s32 0, %v3318
    %v3320 = vrot.slane %v3315, %v3319
    %v3321 = vlaneseq
    %v3322 = vshrl.u32 %v3321, 7
    %v3323 = vsub.s32 1, %v3322
    %v3324 = vrot.slane %v3315, %v3323
    %v3325 = vlaneseq
    %v3326 = vshrl.u32 %v3325, 7
    %v3327 = vsub.s32 2, %v3326
    %v3328 = vrot.slane %v3315, %v3327
    %v3329 = vlaneseq
    %v3330 = vshrl.u32 %v3329, 7
    %v3331 = vsub.s32 3, %v3330
    %v3332 = vrot.slane %v3315, %v3331
    %v3369 = vunpack.c.l.b16 %v3283
    %v3370 = vunpack.c.h.b16 %v3283
    %v3371 = vunpack.c.l.b16 %v3284
    %v3372 = vunpack.c.h.b16 %v3284
    %v3373 = vunpack.c.l.b16 %v3285
    %v3374 = vunpack.c.h.b16 %v3285
    %v3375 = vunpack.c.l.b16 %v3286
    %v3376 = vunpack.c.h.b16 %v3286
    %v3377 = vunpack.c.l.b16 %v3287
    %v3378 = vunpack.c.h.b16 %v3287
    %v3379 = vunpack.c.l.b16 %v3288
    %v3380 = vunpack.c.h.b16 %v3288
    %v3381 = vunpack.c.l.b16 %v3289
    %v3382 = vunpack.c.h.b16 %v3289
    %v3383 = vunpack.c.l.b16 %v3290
    %v3384 = vunpack.c.h.b16 %v3290
    %v3385 = vunpack.c.l.b16 %v3291
    %v3386 = vunpack.c.h.b16 %v3291
    %v3387 = vunpack.c.l.b16 %v3292
    %v3388 = vunpack.c.h.b16 %v3292
    %v3389 = vunpack.c.l.b16 %v3293
    %v3390 = vunpack.c.h.b16 %v3293
    %v3391 = vunpack.c.l.b16 %v3294
    %v3392 = vunpack.c.h.b16 %v3294
    %v3393 = vunpack.c.l.b16 %v3295
    %v3394 = vunpack.c.h.b16 %v3295
    %v3395 = vunpack.c.l.b16 %v3296
    %v3396 = vunpack.c.h.b16 %v3296
    %v3397 = vunpack.c.l.b16 %v3297
    %v3398 = vunpack.c.h.b16 %v3297
    %v3399 = vunpack.c.l.b16 %v3298
    %v3400 = vunpack.c.h.b16 %v3298
    %v3401 = vunpack.c.l.b16 %v3299
    %v3402 = vunpack.c.h.b16 %v3299
    %v3403 = vunpack.c.l.b16 %v3300
    %v3404 = vunpack.c.h.b16 %v3300
    %v3405 = vunpack.c.l.b16 %v3301
    %v3406 = vunpack.c.h.b16 %v3301
    %v3407 = vunpack.c.l.b16 %v3302
    %v3408 = vunpack.c.h.b16 %v3302
    %v3409 = vunpack.c.l.b16 %v3303
    %v3410 = vunpack.c.h.b16 %v3303
    %v3411 = vunpack.c.l.b16 %v3304
    %v3412 = vunpack.c.h.b16 %v3304
    %v3413 = vunpack.c.l.b16 %v3305
    %v3414 = vunpack.c.h.b16 %v3305
    %v3415 = vunpack.c.l.b16 %v3306
    %v3416 = vunpack.c.h.b16 %v3306
    %v3417 = vunpack.c.l.b16 %v3307
    %v3418 = vunpack.c.h.b16 %v3307
    %v3419 = vunpack.c.l.b16 %v3308
    %v3420 = vunpack.c.h.b16 %v3308
    %v3421 = vunpack.c.l.b16 %v3309
    %v3422 = vunpack.c.h.b16 %v3309
    %v3423 = vunpack.c.l.b16 %v3310
    %v3424 = vunpack.c.h.b16 %v3310
    %v3425 = vunpack.c.l.b16 %v3311
    %v3426 = vunpack.c.h.b16 %v3311
    %v3427 = vunpack.c.l.b16 %v3312
    %v3428 = vunpack.c.h.b16 %v3312
    %v3429 = vunpack.c.l.b16 %v3313
    %v3430 = vunpack.c.h.b16 %v3313
    %v3431 = vunpack.c.l.b16 %v3314
    %v3432 = vunpack.c.h.b16 %v3314
    %v3433 = vpack.c.b16 %v3373, %v3369
    %v3434 = vpack.c.b16 %v3374, %v3370
    %v3435 = vpack.c.b16 %v3375, %v3371
    %v3436 = vpack.c.b16 %v3376, %v3372
    %v3437 = vpack.c.b16 %v3381, %v3377
    %v3438 = vpack.c.b16 %v3382, %v3378
    %v3439 = vpack.c.b16 %v3383, %v3379
    %v3440 = vpack.c.b16 %v3384, %v3380
    %v3441 = vpack.c.b16 %v3389, %v3385
    %v3442 = vpack.c.b16 %v3390, %v3386
    %v3443 = vpack.c.b16 %v3391, %v3387
    %v3444 = vpack.c.b16 %v3392, %v3388
    %v3445 = vpack.c.b16 %v3397, %v3393
    %v3446 = vpack.c.b16 %v3398, %v3394
    %v3447 = vpack.c.b16 %v3399, %v3395
    %v3448 = vpack.c.b16 %v3400, %v3396
    %v3449 = vpack.c.b16 %v3405, %v3401
    %v3450 = vpack.c.b16 %v3406, %v3402
    %v3451 = vpack.c.b16 %v3407, %v3403
    %v3452 = vpack.c.b16 %v3408, %v3404
    %v3453 = vpack.c.b16 %v3413, %v3409
    %v3454 = vpack.c.b16 %v3414, %v3410
    %v3455 = vpack.c.b16 %v3415, %v3411
    %v3456 = vpack.c.b16 %v3416, %v3412
    %v3457 = vpack.c.b16 %v3421, %v3417
    %v3458 = vpack.c.b16 %v3422, %v3418
    %v3459 = vpack.c.b16 %v3423, %v3419
    %v3460 = vpack.c.b16 %v3424, %v3420
    %v3461 = vpack.c.b16 %v3429, %v3425
    %v3462 = vpack.c.b16 %v3430, %v3426
    %v3463 = vpack.c.b16 %v3431, %v3427
    %v3464 = vpack.c.b16 %v3432, %v3428
    %3497 = vmatprep.subr.bf16.mxu0 %v3434
    %3498 = vmatpush1.bf16.msra.mxu0 %v3433
    %3499 = vmatprep.subr.bf16.mxu0 %v3438
    %3500 = vmatpush1.bf16.msra.mxu0 %v3437
    %3501 = vmatprep.subr.bf16.mxu0 %v3442
    %3502 = vmatpush1.bf16.msra.mxu0 %v3441
    %3503 = vmatprep.subr.bf16.mxu0 %v3446
    %3504 = vmatpush1.bf16.msra.mxu0 %v3445
    %3505 = vmatprep.subr.bf16.mxu0 %v3450
    %3506 = vmatpush1.bf16.msra.mxu0 %v3449
    %3507 = vmatprep.subr.bf16.mxu0 %v3454
    %3508 = vmatpush1.bf16.msra.mxu0 %v3453
    %3509 = vmatprep.subr.bf16.mxu0 %v3458
    %3510 = vmatpush1.bf16.msra.mxu0 %v3457
    %3511 = vmatprep.subr.bf16.mxu0 %v3462
    %3512 = vmatpush1.bf16.msra.mxu0 %v3461
    %3513 = vmatprep.subr.bf16.mxu0 0
    %3514 = vmatpush1.bf16.msra.mxu0 0
    %3515 = vmatprep.subr.bf16.mxu0 0
    %3516 = vmatpush1.bf16.msra.mxu0 0
    %3517 = vmatprep.subr.bf16.mxu0 0
    %3518 = vmatpush1.bf16.msra.mxu0 0
    %3519 = vmatprep.subr.bf16.mxu0 0
    %3520 = vmatpush1.bf16.msra.mxu0 0
    %3521 = vmatprep.subr.bf16.mxu0 0
    %3522 = vmatpush1.bf16.msra.mxu0 0
    %3523 = vmatprep.subr.bf16.mxu0 0
    %3524 = vmatpush1.bf16.msra.mxu0 0
    %3525 = vmatprep.subr.bf16.mxu0 0
    %3526 = vmatpush1.bf16.msra.mxu0 0
    %3527 = vmatprep.subr.bf16.mxu0 0
    %3528 = vmatpush1.bf16.msra.mxu0 0
    %3529 = vmatprep.mubr.bf16.mxu0 0
    %3530 = vmatmul.mubr.bf16.gmra.mrb[0].mxu0 %v3282
    %v3531 = vpop.f32.mrb[0].mxu0
    %v3532 = vadd.f32 %v3320, %v3531
    %v3533 = vpop.f32.mrb[0].mxu0
    %v3534 = vadd.f32 %v3324, %v3533
    %v3535 = vpop.f32.mrb[0].mxu0
    %v3536 = vpop.f32.mrb[0].mxu0
    %3537 = vdwg.mxu0
    %3538 = vmatprep.subr.bf16.mxu0 %v3436
    %3539 = vmatpush1.bf16.msra.mxu0 %v3435
    %3540 = vmatprep.subr.bf16.mxu0 %v3440
    %3541 = vmatpush1.bf16.msra.mxu0 %v3439
    %3542 = vmatprep.subr.bf16.mxu0 %v3444
    %3543 = vmatpush1.bf16.msra.mxu0 %v3443
    %3544 = vmatprep.subr.bf16.mxu0 %v3448
    %3545 = vmatpush1.bf16.msra.mxu0 %v3447
    %3546 = vmatprep.subr.bf16.mxu0 %v3452
    %3547 = vmatpush1.bf16.msra.mxu0 %v3451
    %3548 = vmatprep.subr.bf16.mxu0 %v3456
    %3549 = vmatpush1.bf16.msra.mxu0 %v3455
    %3550 = vmatprep.subr.bf16.mxu0 %v3460
    %3551 = vmatpush1.bf16.msra.mxu0 %v3459
    %3552 = vmatprep.subr.bf16.mxu0 %v3464
    %3553 = vmatpush1.bf16.msra.mxu0 %v3463
    %3554 = vmatprep.subr.bf16.mxu0 0
    %3555 = vmatpush1.bf16.msra.mxu0 0
    %3556 = vmatprep.subr.bf16.mxu0 0
    %3557 = vmatpush1.bf16.msra.mxu0 0
    %3558 = vmatprep.subr.bf16.mxu0 0
    %3559 = vmatpush1.bf16.msra.mxu0 0
    %3560 = vmatprep.subr.bf16.mxu0 0
    %3561 = vmatpush1.bf16.msra.mxu0 0
    %3562 = vmatprep.subr.bf16.mxu0 0
    %3563 = vmatpush1.bf16.msra.mxu0 0
    %3564 = vmatprep.subr.bf16.mxu0 0
    %3565 = vmatpush1.bf16.msra.mxu0 0
    %3566 = vmatprep.subr.bf16.mxu0 0
    %3567 = vmatpush1.bf16.msra.mxu0 0
    %3568 = vmatprep.subr.bf16.mxu0 0
    %3569 = vmatpush1.bf16.msra.mxu0 0
    %3570 = vmatprep.mubr.bf16.mxu0 0
    %3571 = vmatmul.mubr.bf16.gmra.mrb[0].mxu0 %v3282
    %v3572 = vpop.f32.mrb[0].mxu0
    %v3573 = vadd.f32 %v3328, %v3572
    %v3574 = vpop.f32.mrb[0].mxu0
    %v3575 = vadd.f32 %v3332, %v3574
    %v3576 = vpop.f32.mrb[0].mxu0
    %v3577 = vpop.f32.mrb[0].mxu0
    %3578 = vdwg.mxu0
    %v3579 = vtanh.pop %v3532
    %v3580 = vtanh.pop %v3534
    %v3581 = vtanh.pop %v3573
    %v3582 = vtanh.pop %v3575
    %v3583 = vpack.c.bf16 %v3579, %v3579
    %v3584 = vpack.c.bf16 %v3580, %v3580
    %v3585 = vpack.c.bf16 %v3581, %v3581
    %v3586 = vpack.c.bf16 %v3582, %v3582
    %v3587 = vld [vmem:[%s9] sm:$0xff]
    %v3588 = vld [vmem:[%s9 + $0x8] sm:$0xff]
    %v3589 = vld [vmem:[%s9 + $0x10] sm:$0xff]
    %v3590 = vld [vmem:[%s9 + $0x18] sm:$0xff]
    %v3591 = vld [vmem:[%s9 + $0x20] sm:$0xff]
    %v3592 = vld [vmem:[%s9 + $0x28] sm:$0xff]
    %v3593 = vld [vmem:[%s9 + $0x30] sm:$0xff]
    %v3594 = vld [vmem:[%s9 + $0x38] sm:$0xff]
    %v3595 = vld [vmem:[%s9 + $0x40] sm:$0xff]
    %v3596 = vld [vmem:[%s9 + $0x48] sm:$0xff]
    %v3597 = vld [vmem:[%s9 + $0x50] sm:$0xff]
    %v3598 = vld [vmem:[%s9 + $0x58] sm:$0xff]
    %v3599 = vld [vmem:[%s9 + $0x60] sm:$0xff]
    %v3600 = vld [vmem:[%s9 + $0x68] sm:$0xff]
    %v3601 = vld [vmem:[%s9 + $0x70] sm:$0xff]
    %v3602 = vld [vmem:[%s9 + $0x78] sm:$0xff]
    %v3603 = vld [vmem:[%s9 + $0x80] sm:$0xff]
    %v3604 = vld [vmem:[%s9 + $0x88] sm:$0xff]
    %v3605 = vld [vmem:[%s9 + $0x90] sm:$0xff]
    %v3606 = vld [vmem:[%s9 + $0x98] sm:$0xff]
    %v3607 = vld [vmem:[%s9 + $0xa0] sm:$0xff]
    %v3608 = vld [vmem:[%s9 + $0xa8] sm:$0xff]
    %v3609 = vld [vmem:[%s9 + $0xb0] sm:$0xff]
    %v3610 = vld [vmem:[%s9 + $0xb8] sm:$0xff]
    %v3611 = vld [vmem:[%s9 + $0xc0] sm:$0xff]
    %v3612 = vld [vmem:[%s9 + $0xc8] sm:$0xff]
    %v3613 = vld [vmem:[%s9 + $0xd0] sm:$0xff]
    %v3614 = vld [vmem:[%s9 + $0xd8] sm:$0xff]
    %v3615 = vld [vmem:[%s9 + $0xe0] sm:$0xff]
    %v3616 = vld [vmem:[%s9 + $0xe8] sm:$0xff]
    %v3617 = vld [vmem:[%s9 + $0xf0] sm:$0xff]
    %v3618 = vld [vmem:[%s9 + $0xf8] sm:$0xff]
    %v3619 = vld [vmem:[%s9 + $0x100] sm:$0xff]
    %v3620 = vld [vmem:[%s9 + $0x108] sm:$0xff]
    %v3621 = vld [vmem:[%s9 + $0x110] sm:$0xff]
    %v3622 = vld [vmem:[%s9 + $0x118] sm:$0xff]
    %v3623 = vld [vmem:[%s9 + $0x120] sm:$0xff]
    %v3624 = vld [vmem:[%s9 + $0x128] sm:$0xff]
    %v3625 = vld [vmem:[%s9 + $0x130] sm:$0xff]
    %v3626 = vld [vmem:[%s9 + $0x138] sm:$0xff]
    %v3627 = vld [vmem:[%s9 + $0x140] sm:$0xff]
    %v3628 = vld [vmem:[%s9 + $0x148] sm:$0xff]
    %v3629 = vld [vmem:[%s9 + $0x150] sm:$0xff]
    %v3630 = vld [vmem:[%s9 + $0x158] sm:$0xff]
    %v3631 = vld [vmem:[%s9 + $0x160] sm:$0xff]
    %v3632 = vld [vmem:[%s9 + $0x168] sm:$0xff]
    %v3633 = vld [vmem:[%s9 + $0x170] sm:$0xff]
    %v3634 = vld [vmem:[%s9 + $0x178] sm:$0xff]
    %v3635 = vld [vmem:[%s9 + $0x180] sm:$0xff]
    %v3636 = vld [vmem:[%s9 + $0x188] sm:$0xff]
    %v3637 = vld [vmem:[%s9 + $0x190] sm:$0xff]
    %v3638 = vld [vmem:[%s9 + $0x198] sm:$0xff]
    %v3639 = vld [vmem:[%s9 + $0x1a0] sm:$0xff]
    %v3640 = vld [vmem:[%s9 + $0x1a8] sm:$0xff]
    %v3641 = vld [vmem:[%s9 + $0x1b0] sm:$0xff]
    %v3642 = vld [vmem:[%s9 + $0x1b8] sm:$0xff]
    %v3643 = vld [vmem:[%s9 + $0x1c0] sm:$0xff]
    %v3644 = vld [vmem:[%s9 + $0x1c8] sm:$0xff]
    %v3645 = vld [vmem:[%s9 + $0x1d0] sm:$0xff]
    %v3646 = vld [vmem:[%s9 + $0x1d8] sm:$0xff]
    %v3647 = vld [vmem:[%s9 + $0x1e0] sm:$0xff]
    %v3648 = vld [vmem:[%s9 + $0x1e8] sm:$0xff]
    %v3649 = vld [vmem:[%s9 + $0x1f0] sm:$0xff]
    %v3650 = vld [vmem:[%s9 + $0x1f8] sm:$0xff]
    %v3651 = vld [vmem:[%s9 + $0x200] sm:$0xff]
    %v3652 = vld [vmem:[%s9 + $0x208] sm:$0xff]
    %v3653 = vld [vmem:[%s9 + $0x210] sm:$0xff]
    %v3654 = vld [vmem:[%s9 + $0x218] sm:$0xff]
    %v3655 = vld [vmem:[%s9 + $0x220] sm:$0xff]
    %v3656 = vld [vmem:[%s9 + $0x228] sm:$0xff]
    %v3657 = vld [vmem:[%s9 + $0x230] sm:$0xff]
    %v3658 = vld [vmem:[%s9 + $0x238] sm:$0xff]
    %v3659 = vld [vmem:[%s9 + $0x240] sm:$0xff]
    %v3660 = vld [vmem:[%s9 + $0x248] sm:$0xff]
    %v3661 = vld [vmem:[%s9 + $0x250] sm:$0xff]
    %v3662 = vld [vmem:[%s9 + $0x258] sm:$0xff]
    %v3663 = vld [vmem:[%s9 + $0x260] sm:$0xff]
    %v3664 = vld [vmem:[%s9 + $0x268] sm:$0xff]
    %v3665 = vld [vmem:[%s9 + $0x270] sm:$0xff]
    %v3666 = vld [vmem:[%s9 + $0x278] sm:$0xff]
    %v3667 = vld [vmem:[%s9 + $0x280] sm:$0xff]
    %v3668 = vld [vmem:[%s9 + $0x288] sm:$0xff]
    %v3669 = vld [vmem:[%s9 + $0x290] sm:$0xff]
    %v3670 = vld [vmem:[%s9 + $0x298] sm:$0xff]
    %v3671 = vld [vmem:[%s9 + $0x2a0] sm:$0xff]
    %v3672 = vld [vmem:[%s9 + $0x2a8] sm:$0xff]
    %v3673 = vld [vmem:[%s9 + $0x2b0] sm:$0xff]
    %v3674 = vld [vmem:[%s9 + $0x2b8] sm:$0xff]
    %v3675 = vld [vmem:[%s9 + $0x2c0] sm:$0xff]
    %v3676 = vld [vmem:[%s9 + $0x2c8] sm:$0xff]
    %v3677 = vld [vmem:[%s9 + $0x2d0] sm:$0xff]
    %v3678 = vld [vmem:[%s9 + $0x2d8] sm:$0xff]
    %v3679 = vld [vmem:[%s9 + $0x2e0] sm:$0xff]
    %v3680 = vld [vmem:[%s9 + $0x2e8] sm:$0xff]
    %v3681 = vld [vmem:[%s9 + $0x2f0] sm:$0xff]
    %v3682 = vld [vmem:[%s9 + $0x2f8] sm:$0xff]
    %v3683 = vld [vmem:[%s9 + $0x300] sm:$0xff]
    %v3684 = vld [vmem:[%s9 + $0x308] sm:$0xff]
    %v3685 = vld [vmem:[%s9 + $0x310] sm:$0xff]
    %v3686 = vld [vmem:[%s9 + $0x318] sm:$0xff]
    %v3687 = vld [vmem:[%s9 + $0x320] sm:$0xff]
    %v3688 = vld [vmem:[%s9 + $0x328] sm:$0xff]
    %v3689 = vld [vmem:[%s9 + $0x330] sm:$0xff]
    %v3690 = vld [vmem:[%s9 + $0x338] sm:$0xff]
    %v3691 = vld [vmem:[%s9 + $0x340] sm:$0xff]
    %v3692 = vld [vmem:[%s9 + $0x348] sm:$0xff]
    %v3693 = vld [vmem:[%s9 + $0x350] sm:$0xff]
    %v3694 = vld [vmem:[%s9 + $0x358] sm:$0xff]
    %v3695 = vld [vmem:[%s9 + $0x360] sm:$0xff]
    %v3696 = vld [vmem:[%s9 + $0x368] sm:$0xff]
    %v3697 = vld [vmem:[%s9 + $0x370] sm:$0xff]
    %v3698 = vld [vmem:[%s9 + $0x378] sm:$0xff]
    %v3699 = vld [vmem:[%s9 + $0x380] sm:$0xff]
    %v3700 = vld [vmem:[%s9 + $0x388] sm:$0xff]
    %v3701 = vld [vmem:[%s9 + $0x390] sm:$0xff]
    %v3702 = vld [vmem:[%s9 + $0x398] sm:$0xff]
    %v3703 = vld [vmem:[%s9 + $0x3a0] sm:$0xff]
    %v3704 = vld [vmem:[%s9 + $0x3a8] sm:$0xff]
    %v3705 = vld [vmem:[%s9 + $0x3b0] sm:$0xff]
    %v3706 = vld [vmem:[%s9 + $0x3b8] sm:$0xff]
    %v3707 = vld [vmem:[%s9 + $0x3c0] sm:$0xff]
    %v3708 = vld [vmem:[%s9 + $0x3c8] sm:$0xff]
    %v3709 = vld [vmem:[%s9 + $0x3d0] sm:$0xff]
    %v3710 = vld [vmem:[%s9 + $0x3d8] sm:$0xff]
    %v3711 = vld [vmem:[%s9 + $0x3e0] sm:$0xff]
    %v3712 = vld [vmem:[%s9 + $0x3e8] sm:$0xff]
    %v3713 = vld [vmem:[%s9 + $0x3f0] sm:$0xff]
    %v3714 = vld [vmem:[%s9 + $0x3f8] sm:$0xff]
    %v3715 = vld [vmem:[%s9 + $0x400] sm:$0xff]
    %v3716 = vld [vmem:[%s9 + $0x408] sm:$0xff]
    %v3717 = vld [vmem:[%s9 + $0x410] sm:$0xff]
    %v3718 = vld [vmem:[%s9 + $0x418] sm:$0xff]
    %v3719 = vld [vmem:[%s9 + $0x420] sm:$0xff]
    %v3720 = vld [vmem:[%s9 + $0x428] sm:$0xff]
    %v3721 = vld [vmem:[%s9 + $0x430] sm:$0xff]
    %v3722 = vld [vmem:[%s9 + $0x438] sm:$0xff]
    %v3723 = vld [vmem:[%s9 + $0x440] sm:$0xff]
    %v3724 = vld [vmem:[%s9 + $0x448] sm:$0xff]
    %v3725 = vld [vmem:[%s9 + $0x450] sm:$0xff]
    %v3726 = vld [vmem:[%s9 + $0x458] sm:$0xff]
    %v3727 = vld [vmem:[%s9 + $0x460] sm:$0xff]
    %v3728 = vld [vmem:[%s9 + $0x468] sm:$0xff]
    %v3729 = vld [vmem:[%s9 + $0x470] sm:$0xff]
    %v3730 = vld [vmem:[%s9 + $0x478] sm:$0xff]
    %v3731 = vld [vmem:[%s9 + $0x480] sm:$0xff]
    %v3732 = vld [vmem:[%s9 + $0x488] sm:$0xff]
    %v3733 = vld [vmem:[%s9 + $0x490] sm:$0xff]
    %v3734 = vld [vmem:[%s9 + $0x498] sm:$0xff]
    %v3735 = vld [vmem:[%s9 + $0x4a0] sm:$0xff]
    %v3736 = vld [vmem:[%s9 + $0x4a8] sm:$0xff]
    %v3737 = vld [vmem:[%s9 + $0x4b0] sm:$0xff]
    %v3738 = vld [vmem:[%s9 + $0x4b8] sm:$0xff]
    %v3739 = vld [vmem:[%s9 + $0x4c0] sm:$0xff]
    %v3740 = vld [vmem:[%s9 + $0x4c8] sm:$0xff]
    %v3741 = vld [vmem:[%s9 + $0x4d0] sm:$0xff]
    %v3742 = vld [vmem:[%s9 + $0x4d8] sm:$0xff]
    %v3743 = vld [vmem:[%s9 + $0x4e0] sm:$0xff]
    %v3744 = vld [vmem:[%s9 + $0x4e8] sm:$0xff]
    %v3745 = vld [vmem:[%s9 + $0x4f0] sm:$0xff]
    %v3746 = vld [vmem:[%s9 + $0x4f8] sm:$0xff]
    %v3747 = vld [vmem:[%s9 + $0x500] sm:$0xff]
    %v3748 = vld [vmem:[%s9 + $0x508] sm:$0xff]
    %v3749 = vld [vmem:[%s9 + $0x510] sm:$0xff]
    %v3750 = vld [vmem:[%s9 + $0x518] sm:$0xff]
    %v3751 = vld [vmem:[%s9 + $0x520] sm:$0xff]
    %v3752 = vld [vmem:[%s9 + $0x528] sm:$0xff]
    %v3753 = vld [vmem:[%s9 + $0x530] sm:$0xff]
    %v3754 = vld [vmem:[%s9 + $0x538] sm:$0xff]
    %v3755 = vld [vmem:[%s9 + $0x540] sm:$0xff]
    %v3756 = vld [vmem:[%s9 + $0x548] sm:$0xff]
    %v3757 = vld [vmem:[%s9 + $0x550] sm:$0xff]
    %v3758 = vld [vmem:[%s9 + $0x558] sm:$0xff]
    %v3759 = vld [vmem:[%s9 + $0x560] sm:$0xff]
    %v3760 = vld [vmem:[%s9 + $0x568] sm:$0xff]
    %v3761 = vld [vmem:[%s9 + $0x570] sm:$0xff]
    %v3762 = vld [vmem:[%s9 + $0x578] sm:$0xff]
    %v3763 = vld [vmem:[%s9 + $0x580] sm:$0xff]
    %v3764 = vld [vmem:[%s9 + $0x588] sm:$0xff]
    %v3765 = vld [vmem:[%s9 + $0x590] sm:$0xff]
    %v3766 = vld [vmem:[%s9 + $0x598] sm:$0xff]
    %v3767 = vld [vmem:[%s9 + $0x5a0] sm:$0xff]
    %v3768 = vld [vmem:[%s9 + $0x5a8] sm:$0xff]
    %v3769 = vld [vmem:[%s9 + $0x5b0] sm:$0xff]
    %v3770 = vld [vmem:[%s9 + $0x5b8] sm:$0xff]
    %v3771 = vld [vmem:[%s9 + $0x5c0] sm:$0xff]
    %v3772 = vld [vmem:[%s9 + $0x5c8] sm:$0xff]
    %v3773 = vld [vmem:[%s9 + $0x5d0] sm:$0xff]
    %v3774 = vld [vmem:[%s9 + $0x5d8] sm:$0xff]
    %v3775 = vld [vmem:[%s9 + $0x5e0] sm:$0xff]
    %v3776 = vld [vmem:[%s9 + $0x5e8] sm:$0xff]
    %v3777 = vld [vmem:[%s9 + $0x5f0] sm:$0xff]
    %v3778 = vld [vmem:[%s9 + $0x5f8] sm:$0xff]
    %v3779 = vld [vmem:[%s9 + $0x600] sm:$0xff]
    %v3780 = vld [vmem:[%s9 + $0x608] sm:$0xff]
    %v3781 = vld [vmem:[%s9 + $0x610] sm:$0xff]
    %v3782 = vld [vmem:[%s9 + $0x618] sm:$0xff]
    %v3783 = vld [vmem:[%s9 + $0x620] sm:$0xff]
    %v3784 = vld [vmem:[%s9 + $0x628] sm:$0xff]
    %v3785 = vld [vmem:[%s9 + $0x630] sm:$0xff]
    %v3786 = vld [vmem:[%s9 + $0x638] sm:$0xff]
    %v3787 = vld [vmem:[%s9 + $0x640] sm:$0xff]
    %v3788 = vld [vmem:[%s9 + $0x648] sm:$0xff]
    %v3789 = vld [vmem:[%s9 + $0x650] sm:$0xff]
    %v3790 = vld [vmem:[%s9 + $0x658] sm:$0xff]
    %v3791 = vld [vmem:[%s9 + $0x660] sm:$0xff]
    %v3792 = vld [vmem:[%s9 + $0x668] sm:$0xff]
    %v3793 = vld [vmem:[%s9 + $0x670] sm:$0xff]
    %v3794 = vld [vmem:[%s9 + $0x678] sm:$0xff]
    %v3795 = vld [vmem:[%s9 + $0x680] sm:$0xff]
    %v3796 = vld [vmem:[%s9 + $0x688] sm:$0xff]
    %v3797 = vld [vmem:[%s9 + $0x690] sm:$0xff]
    %v3798 = vld [vmem:[%s9 + $0x698] sm:$0xff]
    %v3799 = vld [vmem:[%s9 + $0x6a0] sm:$0xff]
    %v3800 = vld [vmem:[%s9 + $0x6a8] sm:$0xff]
    %v3801 = vld [vmem:[%s9 + $0x6b0] sm:$0xff]
    %v3802 = vld [vmem:[%s9 + $0x6b8] sm:$0xff]
    %v3803 = vld [vmem:[%s9 + $0x6c0] sm:$0xff]
    %v3804 = vld [vmem:[%s9 + $0x6c8] sm:$0xff]
    %v3805 = vld [vmem:[%s9 + $0x6d0] sm:$0xff]
    %v3806 = vld [vmem:[%s9 + $0x6d8] sm:$0xff]
    %v3807 = vld [vmem:[%s9 + $0x6e0] sm:$0xff]
    %v3808 = vld [vmem:[%s9 + $0x6e8] sm:$0xff]
    %v3809 = vld [vmem:[%s9 + $0x6f0] sm:$0xff]
    %v3810 = vld [vmem:[%s9 + $0x6f8] sm:$0xff]
    %v3811 = vld [vmem:[%s9 + $0x700] sm:$0xff]
    %v3812 = vld [vmem:[%s9 + $0x708] sm:$0xff]
    %v3813 = vld [vmem:[%s9 + $0x710] sm:$0xff]
    %v3814 = vld [vmem:[%s9 + $0x718] sm:$0xff]
    %v3815 = vld [vmem:[%s9 + $0x720] sm:$0xff]
    %v3816 = vld [vmem:[%s9 + $0x728] sm:$0xff]
    %v3817 = vld [vmem:[%s9 + $0x730] sm:$0xff]
    %v3818 = vld [vmem:[%s9 + $0x738] sm:$0xff]
    %v3819 = vld [vmem:[%s9 + $0x740] sm:$0xff]
    %v3820 = vld [vmem:[%s9 + $0x748] sm:$0xff]
    %v3821 = vld [vmem:[%s9 + $0x750] sm:$0xff]
    %v3822 = vld [vmem:[%s9 + $0x758] sm:$0xff]
    %v3823 = vld [vmem:[%s9 + $0x760] sm:$0xff]
    %v3824 = vld [vmem:[%s9 + $0x768] sm:$0xff]
    %v3825 = vld [vmem:[%s9 + $0x770] sm:$0xff]
    %v3826 = vld [vmem:[%s9 + $0x778] sm:$0xff]
    %v3827 = vld [vmem:[%s9 + $0x780] sm:$0xff]
    %v3828 = vld [vmem:[%s9 + $0x788] sm:$0xff]
    %v3829 = vld [vmem:[%s9 + $0x790] sm:$0xff]
    %v3830 = vld [vmem:[%s9 + $0x798] sm:$0xff]
    %v3831 = vld [vmem:[%s9 + $0x7a0] sm:$0xff]
    %v3832 = vld [vmem:[%s9 + $0x7a8] sm:$0xff]
    %v3833 = vld [vmem:[%s9 + $0x7b0] sm:$0xff]
    %v3834 = vld [vmem:[%s9 + $0x7b8] sm:$0xff]
    %v3835 = vld [vmem:[%s9 + $0x7c0] sm:$0xff]
    %v3836 = vld [vmem:[%s9 + $0x7c8] sm:$0xff]
    %v3837 = vld [vmem:[%s9 + $0x7d0] sm:$0xff]
    %v3838 = vld [vmem:[%s9 + $0x7d8] sm:$0xff]
    %v3839 = vld [vmem:[%s9 + $0x7e0] sm:$0xff]
    %v3840 = vld [vmem:[%s9 + $0x7e8] sm:$0xff]
    %v3841 = vld [vmem:[%s9 + $0x7f0] sm:$0xff]
    %v3842 = vld [vmem:[%s9 + $0x7f8] sm:$0xff]
    %v3843 = vld [vmem:[%s10] sm:$0xff]
    %v3845 = vlaneseq
    %v3846 = vshrl.u32 %v3845, 7
    %v3847 = vsub.s32 0, %v3846
    %v3848 = vrot.slane %v3843, %v3847
    %v3849 = vlaneseq
    %v3850 = vshrl.u32 %v3849, 7
    %v3851 = vsub.s32 1, %v3850
    %v3852 = vrot.slane %v3843, %v3851
    %v3853 = vlaneseq
    %v3854 = vshrl.u32 %v3853, 7
    %v3855 = vsub.s32 2, %v3854
    %v3856 = vrot.slane %v3843, %v3855
    %v3857 = vlaneseq
    %v3858 = vshrl.u32 %v3857, 7
    %v3859 = vsub.s32 3, %v3858
    %v3860 = vrot.slane %v3843, %v3859
    %v3861 = vlaneseq
    %v3862 = vshrl.u32 %v3861, 7
    %v3863 = vsub.s32 4, %v3862
    %v3864 = vrot.slane %v3843, %v3863
    %v3865 = vlaneseq
    %v3866 = vshrl.u32 %v3865, 7
    %v3867 = vsub.s32 5, %v3866
    %v3868 = vrot.slane %v3843, %v3867
    %v3869 = vlaneseq
    %v3870 = vshrl.u32 %v3869, 7
    %v3871 = vsub.s32 6, %v3870
    %v3872 = vrot.slane %v3843, %v3871
    %v3873 = vlaneseq
    %v3874 = vshrl.u32 %v3873, 7
    %v3875 = vsub.s32 7, %v3874
    %v3876 = vrot.slane %v3843, %v3875
    %v4141 = vunpack.c.l.b16 %v3587
    %v4142 = vunpack.c.h.b16 %v3587
    %v4143 = vunpack.c.l.b16 %v3588
    %v4144 = vunpack.c.h.b16 %v3588
    %v4145 = vunpack.c.l.b16 %v3589
    %v4146 = vunpack.c.h.b16 %v3589
    %v4147 = vunpack.c.l.b16 %v3590
    %v4148 = vunpack.c.h.b16 %v3590
    %v4149 = vunpack.c.l.b16 %v3591
    %v4150 = vunpack.c.h.b16 %v3591
    %v4151 = vunpack.c.l.b16 %v3592
    %v4152 = vunpack.c.h.b16 %v3592
    %v4153 = vunpack.c.l.b16 %v3593
    %v4154 = vunpack.c.h.b16 %v3593
    %v4155 = vunpack.c.l.b16 %v3594
    %v4156 = vunpack.c.h.b16 %v3594
    %v4157 = vunpack.c.l.b16 %v3595
    %v4158 = vunpack.c.h.b16 %v3595
    %v4159 = vunpack.c.l.b16 %v3596
    %v4160 = vunpack.c.h.b16 %v3596
    %v4161 = vunpack.c.l.b16 %v3597
    %v4162 = vunpack.c.h.b16 %v3597
    %v4163 = vunpack.c.l.b16 %v3598
    %v4164 = vunpack.c.h.b16 %v3598
    %v4165 = vunpack.c.l.b16 %v3599
    %v4166 = vunpack.c.h.b16 %v3599
    %v4167 = vunpack.c.l.b16 %v3600
    %v4168 = vunpack.c.h.b16 %v3600
    %v4169 = vunpack.c.l.b16 %v3601
    %v4170 = vunpack.c.h.b16 %v3601
    %v4171 = vunpack.c.l.b16 %v3602
    %v4172 = vunpack.c.h.b16 %v3602
    %v4173 = vunpack.c.l.b16 %v3603
    %v4174 = vunpack.c.h.b16 %v3603
    %v4175 = vunpack.c.l.b16 %v3604
    %v4176 = vunpack.c.h.b16 %v3604
    %v4177 = vunpack.c.l.b16 %v3605
    %v4178 = vunpack.c.h.b16 %v3605
    %v4179 = vunpack.c.l.b16 %v3606
    %v4180 = vunpack.c.h.b16 %v3606
    %v4181 = vunpack.c.l.b16 %v3607
    %v4182 = vunpack.c.h.b16 %v3607
    %v4183 = vunpack.c.l.b16 %v3608
    %v4184 = vunpack.c.h.b16 %v3608
    %v4185 = vunpack.c.l.b16 %v3609
    %v4186 = vunpack.c.h.b16 %v3609
    %v4187 = vunpack.c.l.b16 %v3610
    %v4188 = vunpack.c.h.b16 %v3610
    %v4189 = vunpack.c.l.b16 %v3611
    %v4190 = vunpack.c.h.b16 %v3611
    %v4191 = vunpack.c.l.b16 %v3612
    %v4192 = vunpack.c.h.b16 %v3612
    %v4193 = vunpack.c.l.b16 %v3613
    %v4194 = vunpack.c.h.b16 %v3613
    %v4195 = vunpack.c.l.b16 %v3614
    %v4196 = vunpack.c.h.b16 %v3614
    %v4197 = vunpack.c.l.b16 %v3615
    %v4198 = vunpack.c.h.b16 %v3615
    %v4199 = vunpack.c.l.b16 %v3616
    %v4200 = vunpack.c.h.b16 %v3616
    %v4201 = vunpack.c.l.b16 %v3617
    %v4202 = vunpack.c.h.b16 %v3617
    %v4203 = vunpack.c.l.b16 %v3618
    %v4204 = vunpack.c.h.b16 %v3618
    %v4205 = vunpack.c.l.b16 %v3619
    %v4206 = vunpack.c.h.b16 %v3619
    %v4207 = vunpack.c.l.b16 %v3620
    %v4208 = vunpack.c.h.b16 %v3620
    %v4209 = vunpack.c.l.b16 %v3621
    %v4210 = vunpack.c.h.b16 %v3621
    %v4211 = vunpack.c.l.b16 %v3622
    %v4212 = vunpack.c.h.b16 %v3622
    %v4213 = vunpack.c.l.b16 %v3623
    %v4214 = vunpack.c.h.b16 %v3623
    %v4215 = vunpack.c.l.b16 %v3624
    %v4216 = vunpack.c.h.b16 %v3624
    %v4217 = vunpack.c.l.b16 %v3625
    %v4218 = vunpack.c.h.b16 %v3625
    %v4219 = vunpack.c.l.b16 %v3626
    %v4220 = vunpack.c.h.b16 %v3626
    %v4221 = vunpack.c.l.b16 %v3627
    %v4222 = vunpack.c.h.b16 %v3627
    %v4223 = vunpack.c.l.b16 %v3628
    %v4224 = vunpack.c.h.b16 %v3628
    %v4225 = vunpack.c.l.b16 %v3629
    %v4226 = vunpack.c.h.b16 %v3629
    %v4227 = vunpack.c.l.b16 %v3630
    %v4228 = vunpack.c.h.b16 %v3630
    %v4229 = vunpack.c.l.b16 %v3631
    %v4230 = vunpack.c.h.b16 %v3631
    %v4231 = vunpack.c.l.b16 %v3632
    %v4232 = vunpack.c.h.b16 %v3632
    %v4233 = vunpack.c.l.b16 %v3633
    %v4234 = vunpack.c.h.b16 %v3633
    %v4235 = vunpack.c.l.b16 %v3634
    %v4236 = vunpack.c.h.b16 %v3634
    %v4237 = vunpack.c.l.b16 %v3635
    %v4238 = vunpack.c.h.b16 %v3635
    %v4239 = vunpack.c.l.b16 %v3636
    %v4240 = vunpack.c.h.b16 %v3636
    %v4241 = vunpack.c.l.b16 %v3637
    %v4242 = vunpack.c.h.b16 %v3637
    %v4243 = vunpack.c.l.b16 %v3638
    %v4244 = vunpack.c.h.b16 %v3638
    %v4245 = vunpack.c.l.b16 %v3639
    %v4246 = vunpack.c.h.b16 %v3639
    %v4247 = vunpack.c.l.b16 %v3640
    %v4248 = vunpack.c.h.b16 %v3640
    %v4249 = vunpack.c.l.b16 %v3641
    %v4250 = vunpack.c.h.b16 %v3641
    %v4251 = vunpack.c.l.b16 %v3642
    %v4252 = vunpack.c.h.b16 %v3642
    %v4253 = vunpack.c.l.b16 %v3643
    %v4254 = vunpack.c.h.b16 %v3643
    %v4255 = vunpack.c.l.b16 %v3644
    %v4256 = vunpack.c.h.b16 %v3644
    %v4257 = vunpack.c.l.b16 %v3645
    %v4258 = vunpack.c.h.b16 %v3645
    %v4259 = vunpack.c.l.b16 %v3646
    %v4260 = vunpack.c.h.b16 %v3646
    %v4261 = vunpack.c.l.b16 %v3647
    %v4262 = vunpack.c.h.b16 %v3647
    %v4263 = vunpack.c.l.b16 %v3648
    %v4264 = vunpack.c.h.b16 %v3648
    %v4265 = vunpack.c.l.b16 %v3649
    %v4266 = vunpack.c.h.b16 %v3649
    %v4267 = vunpack.c.l.b16 %v3650
    %v4268 = vunpack.c.h.b16 %v3650
    %v4269 = vunpack.c.l.b16 %v3651
    %v4270 = vunpack.c.h.b16 %v3651
    %v4271 = vunpack.c.l.b16 %v3652
    %v4272 = vunpack.c.h.b16 %v3652
    %v4273 = vunpack.c.l.b16 %v3653
    %v4274 = vunpack.c.h.b16 %v3653
    %v4275 = vunpack.c.l.b16 %v3654
    %v4276 = vunpack.c.h.b16 %v3654
    %v4277 = vunpack.c.l.b16 %v3655
    %v4278 = vunpack.c.h.b16 %v3655
    %v4279 = vunpack.c.l.b16 %v3656
    %v4280 = vunpack.c.h.b16 %v3656
    %v4281 = vunpack.c.l.b16 %v3657
    %v4282 = vunpack.c.h.b16 %v3657
    %v4283 = vunpack.c.l.b16 %v3658
    %v4284 = vunpack.c.h.b16 %v3658
    %v4285 = vunpack.c.l.b16 %v3659
    %v4286 = vunpack.c.h.b16 %v3659
    %v4287 = vunpack.c.l.b16 %v3660
    %v4288 = vunpack.c.h.b16 %v3660
    %v4289 = vunpack.c.l.b16 %v3661
    %v4290 = vunpack.c.h.b16 %v3661
    %v4291 = vunpack.c.l.b16 %v3662
    %v4292 = vunpack.c.h.b16 %v3662
    %v4293 = vunpack.c.l.b16 %v3663
    %v4294 = vunpack.c.h.b16 %v3663
    %v4295 = vunpack.c.l.b16 %v3664
    %v4296 = vunpack.c.h.b16 %v3664
    %v4297 = vunpack.c.l.b16 %v3665
    %v4298 = vunpack.c.h.b16 %v3665
    %v4299 = vunpack.c.l.b16 %v3666
    %v4300 = vunpack.c.h.b16 %v3666
    %v4301 = vunpack.c.l.b16 %v3667
    %v4302 = vunpack.c.h.b16 %v3667
    %v4303 = vunpack.c.l.b16 %v3668
    %v4304 = vunpack.c.h.b16 %v3668
    %v4305 = vunpack.c.l.b16 %v3669
    %v4306 = vunpack.c.h.b16 %v3669
    %v4307 = vunpack.c.l.b16 %v3670
    %v4308 = vunpack.c.h.b16 %v3670
    %v4309 = vunpack.c.l.b16 %v3671
    %v4310 = vunpack.c.h.b16 %v3671
    %v4311 = vunpack.c.l.b16 %v3672
    %v4312 = vunpack.c.h.b16 %v3672
    %v4313 = vunpack.c.l.b16 %v3673
    %v4314 = vunpack.c.h.b16 %v3673
    %v4315 = vunpack.c.l.b16 %v3674
    %v4316 = vunpack.c.h.b16 %v3674
    %v4317 = vunpack.c.l.b16 %v3675
    %v4318 = vunpack.c.h.b16 %v3675
    %v4319 = vunpack.c.l.b16 %v3676
    %v4320 = vunpack.c.h.b16 %v3676
    %v4321 = vunpack.c.l.b16 %v3677
    %v4322 = vunpack.c.h.b16 %v3677
    %v4323 = vunpack.c.l.b16 %v3678
    %v4324 = vunpack.c.h.b16 %v3678
    %v4325 = vunpack.c.l.b16 %v3679
    %v4326 = vunpack.c.h.b16 %v3679
    %v4327 = vunpack.c.l.b16 %v3680
    %v4328 = vunpack.c.h.b16 %v3680
    %v4329 = vunpack.c.l.b16 %v3681
    %v4330 = vunpack.c.h.b16 %v3681
    %v4331 = vunpack.c.l.b16 %v3682
    %v4332 = vunpack.c.h.b16 %v3682
    %v4333 = vunpack.c.l.b16 %v3683
    %v4334 = vunpack.c.h.b16 %v3683
    %v4335 = vunpack.c.l.b16 %v3684
    %v4336 = vunpack.c.h.b16 %v3684
    %v4337 = vunpack.c.l.b16 %v3685
    %v4338 = vunpack.c.h.b16 %v3685
    %v4339 = vunpack.c.l.b16 %v3686
    %v4340 = vunpack.c.h.b16 %v3686
    %v4341 = vunpack.c.l.b16 %v3687
    %v4342 = vunpack.c.h.b16 %v3687
    %v4343 = vunpack.c.l.b16 %v3688
    %v4344 = vunpack.c.h.b16 %v3688
    %v4345 = vunpack.c.l.b16 %v3689
    %v4346 = vunpack.c.h.b16 %v3689
    %v4347 = vunpack.c.l.b16 %v3690
    %v4348 = vunpack.c.h.b16 %v3690
    %v4349 = vunpack.c.l.b16 %v3691
    %v4350 = vunpack.c.h.b16 %v3691
    %v4351 = vunpack.c.l.b16 %v3692
    %v4352 = vunpack.c.h.b16 %v3692
    %v4353 = vunpack.c.l.b16 %v3693
    %v4354 = vunpack.c.h.b16 %v3693
    %v4355 = vunpack.c.l.b16 %v3694
    %v4356 = vunpack.c.h.b16 %v3694
    %v4357 = vunpack.c.l.b16 %v3695
    %v4358 = vunpack.c.h.b16 %v3695
    %v4359 = vunpack.c.l.b16 %v3696
    %v4360 = vunpack.c.h.b16 %v3696
    %v4361 = vunpack.c.l.b16 %v3697
    %v4362 = vunpack.c.h.b16 %v3697
    %v4363 = vunpack.c.l.b16 %v3698
    %v4364 = vunpack.c.h.b16 %v3698
    %v4365 = vunpack.c.l.b16 %v3699
    %v4366 = vunpack.c.h.b16 %v3699
    %v4367 = vunpack.c.l.b16 %v3700
    %v4368 = vunpack.c.h.b16 %v3700
    %v4369 = vunpack.c.l.b16 %v3701
    %v4370 = vunpack.c.h.b16 %v3701
    %v4371 = vunpack.c.l.b16 %v3702
    %v4372 = vunpack.c.h.b16 %v3702
    %v4373 = vunpack.c.l.b16 %v3703
    %v4374 = vunpack.c.h.b16 %v3703
    %v4375 = vunpack.c.l.b16 %v3704
    %v4376 = vunpack.c.h.b16 %v3704
    %v4377 = vunpack.c.l.b16 %v3705
    %v4378 = vunpack.c.h.b16 %v3705
    %v4379 = vunpack.c.l.b16 %v3706
    %v4380 = vunpack.c.h.b16 %v3706
    %v4381 = vunpack.c.l.b16 %v3707
    %v4382 = vunpack.c.h.b16 %v3707
    %v4383 = vunpack.c.l.b16 %v3708
    %v4384 = vunpack.c.h.b16 %v3708
    %v4385 = vunpack.c.l.b16 %v3709
    %v4386 = vunpack.c.h.b16 %v3709
    %v4387 = vunpack.c.l.b16 %v3710
    %v4388 = vunpack.c.h.b16 %v3710
    %v4389 = vunpack.c.l.b16 %v3711
    %v4390 = vunpack.c.h.b16 %v3711
    %v4391 = vunpack.c.l.b16 %v3712
    %v4392 = vunpack.c.h.b16 %v3712
    %v4393 = vunpack.c.l.b16 %v3713
    %v4394 = vunpack.c.h.b16 %v3713
    %v4395 = vunpack.c.l.b16 %v3714
    %v4396 = vunpack.c.h.b16 %v3714
    %v4397 = vunpack.c.l.b16 %v3715
    %v4398 = vunpack.c.h.b16 %v3715
    %v4399 = vunpack.c.l.b16 %v3716
    %v4400 = vunpack.c.h.b16 %v3716
    %v4401 = vunpack.c.l.b16 %v3717
    %v4402 = vunpack.c.h.b16 %v3717
    %v4403 = vunpack.c.l.b16 %v3718
    %v4404 = vunpack.c.h.b16 %v3718
    %v4405 = vunpack.c.l.b16 %v3719
    %v4406 = vunpack.c.h.b16 %v3719
    %v4407 = vunpack.c.l.b16 %v3720
    %v4408 = vunpack.c.h.b16 %v3720
    %v4409 = vunpack.c.l.b16 %v3721
    %v4410 = vunpack.c.h.b16 %v3721
    %v4411 = vunpack.c.l.b16 %v3722
    %v4412 = vunpack.c.h.b16 %v3722
    %v4413 = vunpack.c.l.b16 %v3723
    %v4414 = vunpack.c.h.b16 %v3723
    %v4415 = vunpack.c.l.b16 %v3724
    %v4416 = vunpack.c.h.b16 %v3724
    %v4417 = vunpack.c.l.b16 %v3725
    %v4418 = vunpack.c.h.b16 %v3725
    %v4419 = vunpack.c.l.b16 %v3726
    %v4420 = vunpack.c.h.b16 %v3726
    %v4421 = vunpack.c.l.b16 %v3727
    %v4422 = vunpack.c.h.b16 %v3727
    %v4423 = vunpack.c.l.b16 %v3728
    %v4424 = vunpack.c.h.b16 %v3728
    %v4425 = vunpack.c.l.b16 %v3729
    %v4426 = vunpack.c.h.b16 %v3729
    %v4427 = vunpack.c.l.b16 %v3730
    %v4428 = vunpack.c.h.b16 %v3730
    %v4429 = vunpack.c.l.b16 %v3731
    %v4430 = vunpack.c.h.b16 %v3731
    %v4431 = vunpack.c.l.b16 %v3732
    %v4432 = vunpack.c.h.b16 %v3732
    %v4433 = vunpack.c.l.b16 %v3733
    %v4434 = vunpack.c.h.b16 %v3733
    %v4435 = vunpack.c.l.b16 %v3734
    %v4436 = vunpack.c.h.b16 %v3734
    %v4437 = vunpack.c.l.b16 %v3735
    %v4438 = vunpack.c.h.b16 %v3735
    %v4439 = vunpack.c.l.b16 %v3736
    %v4440 = vunpack.c.h.b16 %v3736
    %v4441 = vunpack.c.l.b16 %v3737
    %v4442 = vunpack.c.h.b16 %v3737
    %v4443 = vunpack.c.l.b16 %v3738
    %v4444 = vunpack.c.h.b16 %v3738
    %v4445 = vunpack.c.l.b16 %v3739
    %v4446 = vunpack.c.h.b16 %v3739
    %v4447 = vunpack.c.l.b16 %v3740
    %v4448 = vunpack.c.h.b16 %v3740
    %v4449 = vunpack.c.l.b16 %v3741
    %v4450 = vunpack.c.h.b16 %v3741
    %v4451 = vunpack.c.l.b16 %v3742
    %v4452 = vunpack.c.h.b16 %v3742
    %v4453 = vunpack.c.l.b16 %v3743
    %v4454 = vunpack.c.h.b16 %v3743
    %v4455 = vunpack.c.l.b16 %v3744
    %v4456 = vunpack.c.h.b16 %v3744
    %v4457 = vunpack.c.l.b16 %v3745
    %v4458 = vunpack.c.h.b16 %v3745
    %v4459 = vunpack.c.l.b16 %v3746
    %v4460 = vunpack.c.h.b16 %v3746
    %v4461 = vunpack.c.l.b16 %v3747
    %v4462 = vunpack.c.h.b16 %v3747
    %v4463 = vunpack.c.l.b16 %v3748
    %v4464 = vunpack.c.h.b16 %v3748
    %v4465 = vunpack.c.l.b16 %v3749
    %v4466 = vunpack.c.h.b16 %v3749
    %v4467 = vunpack.c.l.b16 %v3750
    %v4468 = vunpack.c.h.b16 %v3750
    %v4469 = vunpack.c.l.b16 %v3751
    %v4470 = vunpack.c.h.b16 %v3751
    %v4471 = vunpack.c.l.b16 %v3752
    %v4472 = vunpack.c.h.b16 %v3752
    %v4473 = vunpack.c.l.b16 %v3753
    %v4474 = vunpack.c.h.b16 %v3753
    %v4475 = vunpack.c.l.b16 %v3754
    %v4476 = vunpack.c.h.b16 %v3754
    %v4477 = vunpack.c.l.b16 %v3755
    %v4478 = vunpack.c.h.b16 %v3755
    %v4479 = vunpack.c.l.b16 %v3756
    %v4480 = vunpack.c.h.b16 %v3756
    %v4481 = vunpack.c.l.b16 %v3757
    %v4482 = vunpack.c.h.b16 %v3757
    %v4483 = vunpack.c.l.b16 %v3758
    %v4484 = vunpack.c.h.b16 %v3758
    %v4485 = vunpack.c.l.b16 %v3759
    %v4486 = vunpack.c.h.b16 %v3759
    %v4487 = vunpack.c.l.b16 %v3760
    %v4488 = vunpack.c.h.b16 %v3760
    %v4489 = vunpack.c.l.b16 %v3761
    %v4490 = vunpack.c.h.b16 %v3761
    %v4491 = vunpack.c.l.b16 %v3762
    %v4492 = vunpack.c.h.b16 %v3762
    %v4493 = vunpack.c.l.b16 %v3763
    %v4494 = vunpack.c.h.b16 %v3763
    %v4495 = vunpack.c.l.b16 %v3764
    %v4496 = vunpack.c.h.b16 %v3764
    %v4497 = vunpack.c.l.b16 %v3765
    %v4498 = vunpack.c.h.b16 %v3765
    %v4499 = vunpack.c.l.b16 %v3766
    %v4500 = vunpack.c.h.b16 %v3766
    %v4501 = vunpack.c.l.b16 %v3767
    %v4502 = vunpack.c.h.b16 %v3767
    %v4503 = vunpack.c.l.b16 %v3768
    %v4504 = vunpack.c.h.b16 %v3768
    %v4505 = vunpack.c.l.b16 %v3769
    %v4506 = vunpack.c.h.b16 %v3769
    %v4507 = vunpack.c.l.b16 %v3770
    %v4508 = vunpack.c.h.b16 %v3770
    %v4509 = vunpack.c.l.b16 %v3771
    %v4510 = vunpack.c.h.b16 %v3771
    %v4511 = vunpack.c.l.b16 %v3772
    %v4512 = vunpack.c.h.b16 %v3772
    %v4513 = vunpack.c.l.b16 %v3773
    %v4514 = vunpack.c.h.b16 %v3773
    %v4515 = vunpack.c.l.b16 %v3774
    %v4516 = vunpack.c.h.b16 %v3774
    %v4517 = vunpack.c.l.b16 %v3775
    %v4518 = vunpack.c.h.b16 %v3775
    %v4519 = vunpack.c.l.b16 %v3776
    %v4520 = vunpack.c.h.b16 %v3776
    %v4521 = vunpack.c.l.b16 %v3777
    %v4522 = vunpack.c.h.b16 %v3777
    %v4523 = vunpack.c.l.b16 %v3778
    %v4524 = vunpack.c.h.b16 %v3778
    %v4525 = vunpack.c.l.b16 %v3779
    %v4526 = vunpack.c.h.b16 %v3779
    %v4527 = vunpack.c.l.b16 %v3780
    %v4528 = vunpack.c.h.b16 %v3780
    %v4529 = vunpack.c.l.b16 %v3781
    %v4530 = vunpack.c.h.b16 %v3781
    %v4531 = vunpack.c.l.b16 %v3782
    %v4532 = vunpack.c.h.b16 %v3782
    %v4533 = vunpack.c.l.b16 %v3783
    %v4534 = vunpack.c.h.b16 %v3783
    %v4535 = vunpack.c.l.b16 %v3784
    %v4536 = vunpack.c.h.b16 %v3784
    %v4537 = vunpack.c.l.b16 %v3785
    %v4538 = vunpack.c.h.b16 %v3785
    %v4539 = vunpack.c.l.b16 %v3786
    %v4540 = vunpack.c.h.b16 %v3786
    %v4541 = vunpack.c.l.b16 %v3787
    %v4542 = vunpack.c.h.b16 %v3787
    %v4543 = vunpack.c.l.b16 %v3788
    %v4544 = vunpack.c.h.b16 %v3788
    %v4545 = vunpack.c.l.b16 %v3789
    %v4546 = vunpack.c.h.b16 %v3789
    %v4547 = vunpack.c.l.b16 %v3790
    %v4548 = vunpack.c.h.b16 %v3790
    %v4549 = vunpack.c.l.b16 %v3791
    %v4550 = vunpack.c.h.b16 %v3791
    %v4551 = vunpack.c.l.b16 %v3792
    %v4552 = vunpack.c.h.b16 %v3792
    %v4553 = vunpack.c.l.b16 %v3793
    %v4554 = vunpack.c.h.b16 %v3793
    %v4555 = vunpack.c.l.b16 %v3794
    %v4556 = vunpack.c.h.b16 %v3794
    %v4557 = vunpack.c.l.b16 %v3795
    %v4558 = vunpack.c.h.b16 %v3795
    %v4559 = vunpack.c.l.b16 %v3796
    %v4560 = vunpack.c.h.b16 %v3796
    %v4561 = vunpack.c.l.b16 %v3797
    %v4562 = vunpack.c.h.b16 %v3797
    %v4563 = vunpack.c.l.b16 %v3798
    %v4564 = vunpack.c.h.b16 %v3798
    %v4565 = vunpack.c.l.b16 %v3799
    %v4566 = vunpack.c.h.b16 %v3799
    %v4567 = vunpack.c.l.b16 %v3800
    %v4568 = vunpack.c.h.b16 %v3800
    %v4569 = vunpack.c.l.b16 %v3801
    %v4570 = vunpack.c.h.b16 %v3801
    %v4571 = vunpack.c.l.b16 %v3802
    %v4572 = vunpack.c.h.b16 %v3802
    %v4573 = vunpack.c.l.b16 %v3803
    %v4574 = vunpack.c.h.b16 %v3803
    %v4575 = vunpack.c.l.b16 %v3804
    %v4576 = vunpack.c.h.b16 %v3804
    %v4577 = vunpack.c.l.b16 %v3805
    %v4578 = vunpack.c.h.b16 %v3805
    %v4579 = vunpack.c.l.b16 %v3806
    %v4580 = vunpack.c.h.b16 %v3806
    %v4581 = vunpack.c.l.b16 %v3807
    %v4582 = vunpack.c.h.b16 %v3807
    %v4583 = vunpack.c.l.b16 %v3808
    %v4584 = vunpack.c.h.b16 %v3808
    %v4585 = vunpack.c.l.b16 %v3809
    %v4586 = vunpack.c.h.b16 %v3809
    %v4587 = vunpack.c.l.b16 %v3810
    %v4588 = vunpack.c.h.b16 %v3810
    %v4589 = vunpack.c.l.b16 %v3811
    %v4590 = vunpack.c.h.b16 %v3811
    %v4591 = vunpack.c.l.b16 %v3812
    %v4592 = vunpack.c.h.b16 %v3812
    %v4593 = vunpack.c.l.b16 %v3813
    %v4594 = vunpack.c.h.b16 %v3813
    %v4595 = vunpack.c.l.b16 %v3814
    %v4596 = vunpack.c.h.b16 %v3814
    %v4597 = vunpack.c.l.b16 %v3815
    %v4598 = vunpack.c.h.b16 %v3815
    %v4599 = vunpack.c.l.b16 %v3816
    %v4600 = vunpack.c.h.b16 %v3816
    %v4601 = vunpack.c.l.b16 %v3817
    %v4602 = vunpack.c.h.b16 %v3817
    %v4603 = vunpack.c.l.b16 %v3818
    %v4604 = vunpack.c.h.b16 %v3818
    %v4605 = vunpack.c.l.b16 %v3819
    %v4606 = vunpack.c.h.b16 %v3819
    %v4607 = vunpack.c.l.b16 %v3820
    %v4608 = vunpack.c.h.b16 %v3820
    %v4609 = vunpack.c.l.b16 %v3821
    %v4610 = vunpack.c.h.b16 %v3821
    %v4611 = vunpack.c.l.b16 %v3822
    %v4612 = vunpack.c.h.b16 %v3822
    %v4613 = vunpack.c.l.b16 %v3823
    %v4614 = vunpack.c.h.b16 %v3823
    %v4615 = vunpack.c.l.b16 %v3824
    %v4616 = vunpack.c.h.b16 %v3824
    %v4617 = vunpack.c.l.b16 %v3825
    %v4618 = vunpack.c.h.b16 %v3825
    %v4619 = vunpack.c.l.b16 %v3826
    %v4620 = vunpack.c.h.b16 %v3826
    %v4621 = vunpack.c.l.b16 %v3827
    %v4622 = vunpack.c.h.b16 %v3827
    %v4623 = vunpack.c.l.b16 %v3828
    %v4624 = vunpack.c.h.b16 %v3828
    %v4625 = vunpack.c.l.b16 %v3829
    %v4626 = vunpack.c.h.b16 %v3829
    %v4627 = vunpack.c.l.b16 %v3830
    %v4628 = vunpack.c.h.b16 %v3830
    %v4629 = vunpack.c.l.b16 %v3831
    %v4630 = vunpack.c.h.b16 %v3831
    %v4631 = vunpack.c.l.b16 %v3832
    %v4632 = vunpack.c.h.b16 %v3832
    %v4633 = vunpack.c.l.b16 %v3833
    %v4634 = vunpack.c.h.b16 %v3833
    %v4635 = vunpack.c.l.b16 %v3834
    %v4636 = vunpack.c.h.b16 %v3834
    %v4637 = vunpack.c.l.b16 %v3835
    %v4638 = vunpack.c.h.b16 %v3835
    %v4639 = vunpack.c.l.b16 %v3836
    %v4640 = vunpack.c.h.b16 %v3836
    %v4641 = vunpack.c.l.b16 %v3837
    %v4642 = vunpack.c.h.b16 %v3837
    %v4643 = vunpack.c.l.b16 %v3838
    %v4644 = vunpack.c.h.b16 %v3838
    %v4645 = vunpack.c.l.b16 %v3839
    %v4646 = vunpack.c.h.b16 %v3839
    %v4647 = vunpack.c.l.b16 %v3840
    %v4648 = vunpack.c.h.b16 %v3840
    %v4649 = vunpack.c.l.b16 %v3841
    %v4650 = vunpack.c.h.b16 %v3841
    %v4651 = vunpack.c.l.b16 %v3842
    %v4652 = vunpack.c.h.b16 %v3842
    %v4653 = vpack.c.b16 %v4149, %v4141
    %v4654 = vpack.c.b16 %v4150, %v4142
    %v4655 = vpack.c.b16 %v4151, %v4143
    %v4656 = vpack.c.b16 %v4152, %v4144
    %v4657 = vpack.c.b16 %v4153, %v4145
    %v4658 = vpack.c.b16 %v4154, %v4146
    %v4659 = vpack.c.b16 %v4155, %v4147
    %v4660 = vpack.c.b16 %v4156, %v4148
    %v4661 = vpack.c.b16 %v4165, %v4157
    %v4662 = vpack.c.b16 %v4166, %v4158
    %v4663 = vpack.c.b16 %v4167, %v4159
    %v4664 = vpack.c.b16 %v4168, %v4160
    %v4665 = vpack.c.b16 %v4169, %v4161
    %v4666 = vpack.c.b16 %v4170, %v4162
    %v4667 = vpack.c.b16 %v4171, %v4163
    %v4668 = vpack.c.b16 %v4172, %v4164
    %v4669 = vpack.c.b16 %v4181, %v4173
    %v4670 = vpack.c.b16 %v4182, %v4174
    %v4671 = vpack.c.b16 %v4183, %v4175
    %v4672 = vpack.c.b16 %v4184, %v4176
    %v4673 = vpack.c.b16 %v4185, %v4177
    %v4674 = vpack.c.b16 %v4186, %v4178
    %v4675 = vpack.c.b16 %v4187, %v4179
    %v4676 = vpack.c.b16 %v4188, %v4180
    %v4677 = vpack.c.b16 %v4197, %v4189
    %v4678 = vpack.c.b16 %v4198, %v4190
    %v4679 = vpack.c.b16 %v4199, %v4191
    %v4680 = vpack.c.b16 %v4200, %v4192
    %v4681 = vpack.c.b16 %v4201, %v4193
    %v4682 = vpack.c.b16 %v4202, %v4194
    %v4683 = vpack.c.b16 %v4203, %v4195
    %v4684 = vpack.c.b16 %v4204, %v4196
    %v4685 = vpack.c.b16 %v4213, %v4205
    %v4686 = vpack.c.b16 %v4214, %v4206
    %v4687 = vpack.c.b16 %v4215, %v4207
    %v4688 = vpack.c.b16 %v4216, %v4208
    %v4689 = vpack.c.b16 %v4217, %v4209
    %v4690 = vpack.c.b16 %v4218, %v4210
    %v4691 = vpack.c.b16 %v4219, %v4211
    %v4692 = vpack.c.b16 %v4220, %v4212
    %v4693 = vpack.c.b16 %v4229, %v4221
    %v4694 = vpack.c.b16 %v4230, %v4222
    %v4695 = vpack.c.b16 %v4231, %v4223
    %v4696 = vpack.c.b16 %v4232, %v4224
    %v4697 = vpack.c.b16 %v4233, %v4225
    %v4698 = vpack.c.b16 %v4234, %v4226
    %v4699 = vpack.c.b16 %v4235, %v4227
    %v4700 = vpack.c.b16 %v4236, %v4228
    %v4701 = vpack.c.b16 %v4245, %v4237
    %v4702 = vpack.c.b16 %v4246, %v4238
    %v4703 = vpack.c.b16 %v4247, %v4239
    %v4704 = vpack.c.b16 %v4248, %v4240
    %v4705 = vpack.c.b16 %v4249, %v4241
    %v4706 = vpack.c.b16 %v4250, %v4242
    %v4707 = vpack.c.b16 %v4251, %v4243
    %v4708 = vpack.c.b16 %v4252, %v4244
    %v4709 = vpack.c.b16 %v4261, %v4253
    %v4710 = vpack.c.b16 %v4262, %v4254
    %v4711 = vpack.c.b16 %v4263, %v4255
    %v4712 = vpack.c.b16 %v4264, %v4256
    %v4713 = vpack.c.b16 %v4265, %v4257
    %v4714 = vpack.c.b16 %v4266, %v4258
    %v4715 = vpack.c.b16 %v4267, %v4259
    %v4716 = vpack.c.b16 %v4268, %v4260
    %v4717 = vpack.c.b16 %v4277, %v4269
    %v4718 = vpack.c.b16 %v4278, %v4270
    %v4719 = vpack.c.b16 %v4279, %v4271
    %v4720 = vpack.c.b16 %v4280, %v4272
    %v4721 = vpack.c.b16 %v4281, %v4273
    %v4722 = vpack.c.b16 %v4282, %v4274
    %v4723 = vpack.c.b16 %v4283, %v4275
    %v4724 = vpack.c.b16 %v4284, %v4276
    %v4725 = vpack.c.b16 %v4293, %v4285
    %v4726 = vpack.c.b16 %v4294, %v4286
    %v4727 = vpack.c.b16 %v4295, %v4287
    %v4728 = vpack.c.b16 %v4296, %v4288
    %v4729 = vpack.c.b16 %v4297, %v4289
    %v4730 = vpack.c.b16 %v4298, %v4290
    %v4731 = vpack.c.b16 %v4299, %v4291
    %v4732 = vpack.c.b16 %v4300, %v4292
    %v4733 = vpack.c.b16 %v4309, %v4301
    %v4734 = vpack.c.b16 %v4310, %v4302
    %v4735 = vpack.c.b16 %v4311, %v4303
    %v4736 = vpack.c.b16 %v4312, %v4304
    %v4737 = vpack.c.b16 %v4313, %v4305
    %v4738 = vpack.c.b16 %v4314, %v4306
    %v4739 = vpack.c.b16 %v4315, %v4307
    %v4740 = vpack.c.b16 %v4316, %v4308
    %v4741 = vpack.c.b16 %v4325, %v4317
    %v4742 = vpack.c.b16 %v4326, %v4318
    %v4743 = vpack.c.b16 %v4327, %v4319
    %v4744 = vpack.c.b16 %v4328, %v4320
    %v4745 = vpack.c.b16 %v4329, %v4321
    %v4746 = vpack.c.b16 %v4330, %v4322
    %v4747 = vpack.c.b16 %v4331, %v4323
    %v4748 = vpack.c.b16 %v4332, %v4324
    %v4749 = vpack.c.b16 %v4341, %v4333
    %v4750 = vpack.c.b16 %v4342, %v4334
    %v4751 = vpack.c.b16 %v4343, %v4335
    %v4752 = vpack.c.b16 %v4344, %v4336
    %v4753 = vpack.c.b16 %v4345, %v4337
    %v4754 = vpack.c.b16 %v4346, %v4338
    %v4755 = vpack.c.b16 %v4347, %v4339
    %v4756 = vpack.c.b16 %v4348, %v4340
    %v4757 = vpack.c.b16 %v4357, %v4349
    %v4758 = vpack.c.b16 %v4358, %v4350
    %v4759 = vpack.c.b16 %v4359, %v4351
    %v4760 = vpack.c.b16 %v4360, %v4352
    %v4761 = vpack.c.b16 %v4361, %v4353
    %v4762 = vpack.c.b16 %v4362, %v4354
    %v4763 = vpack.c.b16 %v4363, %v4355
    %v4764 = vpack.c.b16 %v4364, %v4356
    %v4765 = vpack.c.b16 %v4373, %v4365
    %v4766 = vpack.c.b16 %v4374, %v4366
    %v4767 = vpack.c.b16 %v4375, %v4367
    %v4768 = vpack.c.b16 %v4376, %v4368
    %v4769 = vpack.c.b16 %v4377, %v4369
    %v4770 = vpack.c.b16 %v4378, %v4370
    %v4771 = vpack.c.b16 %v4379, %v4371
    %v4772 = vpack.c.b16 %v4380, %v4372
    %v4773 = vpack.c.b16 %v4389, %v4381
    %v4774 = vpack.c.b16 %v4390, %v4382
    %v4775 = vpack.c.b16 %v4391, %v4383
    %v4776 = vpack.c.b16 %v4392, %v4384
    %v4777 = vpack.c.b16 %v4393, %v4385
    %v4778 = vpack.c.b16 %v4394, %v4386
    %v4779 = vpack.c.b16 %v4395, %v4387
    %v4780 = vpack.c.b16 %v4396, %v4388
    %v4781 = vpack.c.b16 %v4405, %v4397
    %v4782 = vpack.c.b16 %v4406, %v4398
    %v4783 = vpack.c.b16 %v4407, %v4399
    %v4784 = vpack.c.b16 %v4408, %v4400
    %v4785 = vpack.c.b16 %v4409, %v4401
    %v4786 = vpack.c.b16 %v4410, %v4402
    %v4787 = vpack.c.b16 %v4411, %v4403
    %v4788 = vpack.c.b16 %v4412, %v4404
    %v4789 = vpack.c.b16 %v4421, %v4413
    %v4790 = vpack.c.b16 %v4422, %v4414
    %v4791 = vpack.c.b16 %v4423, %v4415
    %v4792 = vpack.c.b16 %v4424, %v4416
    %v4793 = vpack.c.b16 %v4425, %v4417
    %v4794 = vpack.c.b16 %v4426, %v4418
    %v4795 = vpack.c.b16 %v4427, %v4419
    %v4796 = vpack.c.b16 %v4428, %v4420
    %v4797 = vpack.c.b16 %v4437, %v4429
    %v4798 = vpack.c.b16 %v4438, %v4430
    %v4799 = vpack.c.b16 %v4439, %v4431
    %v4800 = vpack.c.b16 %v4440, %v4432
    %v4801 = vpack.c.b16 %v4441, %v4433
    %v4802 = vpack.c.b16 %v4442, %v4434
    %v4803 = vpack.c.b16 %v4443, %v4435
    %v4804 = vpack.c.b16 %v4444, %v4436
    %v4805 = vpack.c.b16 %v4453, %v4445
    %v4806 = vpack.c.b16 %v4454, %v4446
    %v4807 = vpack.c.b16 %v4455, %v4447
    %v4808 = vpack.c.b16 %v4456, %v4448
    %v4809 = vpack.c.b16 %v4457, %v4449
    %v4810 = vpack.c.b16 %v4458, %v4450
    %v4811 = vpack.c.b16 %v4459, %v4451
    %v4812 = vpack.c.b16 %v4460, %v4452
    %v4813 = vpack.c.b16 %v4469, %v4461
    %v4814 = vpack.c.b16 %v4470, %v4462
    %v4815 = vpack.c.b16 %v4471, %v4463
    %v4816 = vpack.c.b16 %v4472, %v4464
    %v4817 = vpack.c.b16 %v4473, %v4465
    %v4818 = vpack.c.b16 %v4474, %v4466
    %v4819 = vpack.c.b16 %v4475, %v4467
    %v4820 = vpack.c.b16 %v4476, %v4468
    %v4821 = vpack.c.b16 %v4485, %v4477
    %v4822 = vpack.c.b16 %v4486, %v4478
    %v4823 = vpack.c.b16 %v4487, %v4479
    %v4824 = vpack.c.b16 %v4488, %v4480
    %v4825 = vpack.c.b16 %v4489, %v4481
    %v4826 = vpack.c.b16 %v4490, %v4482
    %v4827 = vpack.c.b16 %v4491, %v4483
    %v4828 = vpack.c.b16 %v4492, %v4484
    %v4829 = vpack.c.b16 %v4501, %v4493
    %v4830 = vpack.c.b16 %v4502, %v4494
    %v4831 = vpack.c.b16 %v4503, %v4495
    %v4832 = vpack.c.b16 %v4504, %v4496
    %v4833 = vpack.c.b16 %v4505, %v4497
    %v4834 = vpack.c.b16 %v4506, %v4498
    %v4835 = vpack.c.b16 %v4507, %v4499
    %v4836 = vpack.c.b16 %v4508, %v4500
    %v4837 = vpack.c.b16 %v4517, %v4509
    %v4838 = vpack.c.b16 %v4518, %v4510
    %v4839 = vpack.c.b16 %v4519, %v4511
    %v4840 = vpack.c.b16 %v4520, %v4512
    %v4841 = vpack.c.b16 %v4521, %v4513
    %v4842 = vpack.c.b16 %v4522, %v4514
    %v4843 = vpack.c.b16 %v4523, %v4515
    %v4844 = vpack.c.b16 %v4524, %v4516
    %v4845 = vpack.c.b16 %v4533, %v4525
    %v4846 = vpack.c.b16 %v4534, %v4526
    %v4847 = vpack.c.b16 %v4535, %v4527
    %v4848 = vpack.c.b16 %v4536, %v4528
    %v4849 = vpack.c.b16 %v4537, %v4529
    %v4850 = vpack.c.b16 %v4538, %v4530
    %v4851 = vpack.c.b16 %v4539, %v4531
    %v4852 = vpack.c.b16 %v4540, %v4532
    %v4853 = vpack.c.b16 %v4549, %v4541
    %v4854 = vpack.c.b16 %v4550, %v4542
    %v4855 = vpack.c.b16 %v4551, %v4543
    %v4856 = vpack.c.b16 %v4552, %v4544
    %v4857 = vpack.c.b16 %v4553, %v4545
    %v4858 = vpack.c.b16 %v4554, %v4546
    %v4859 = vpack.c.b16 %v4555, %v4547
    %v4860 = vpack.c.b16 %v4556, %v4548
    %v4861 = vpack.c.b16 %v4565, %v4557
    %v4862 = vpack.c.b16 %v4566, %v4558
    %v4863 = vpack.c.b16 %v4567, %v4559
    %v4864 = vpack.c.b16 %v4568, %v4560
    %v4865 = vpack.c.b16 %v4569, %v4561
    %v4866 = vpack.c.b16 %v4570, %v4562
    %v4867 = vpack.c.b16 %v4571, %v4563
    %v4868 = vpack.c.b16 %v4572, %v4564
    %v4869 = vpack.c.b16 %v4581, %v4573
    %v4870 = vpack.c.b16 %v4582, %v4574
    %v4871 = vpack.c.b16 %v4583, %v4575
    %v4872 = vpack.c.b16 %v4584, %v4576
    %v4873 = vpack.c.b16 %v4585, %v4577
    %v4874 = vpack.c.b16 %v4586, %v4578
    %v4875 = vpack.c.b16 %v4587, %v4579
    %v4876 = vpack.c.b16 %v4588, %v4580
    %v4877 = vpack.c.b16 %v4597, %v4589
    %v4878 = vpack.c.b16 %v4598, %v4590
    %v4879 = vpack.c.b16 %v4599, %v4591
    %v4880 = vpack.c.b16 %v4600, %v4592
    %v4881 = vpack.c.b16 %v4601, %v4593
    %v4882 = vpack.c.b16 %v4602, %v4594
    %v4883 = vpack.c.b16 %v4603, %v4595
    %v4884 = vpack.c.b16 %v4604, %v4596
    %v4885 = vpack.c.b16 %v4613, %v4605
    %v4886 = vpack.c.b16 %v4614, %v4606
    %v4887 = vpack.c.b16 %v4615, %v4607
    %v4888 = vpack.c.b16 %v4616, %v4608
    %v4889 = vpack.c.b16 %v4617, %v4609
    %v4890 = vpack.c.b16 %v4618, %v4610
    %v4891 = vpack.c.b16 %v4619, %v4611
    %v4892 = vpack.c.b16 %v4620, %v4612
    %v4893 = vpack.c.b16 %v4629, %v4621
    %v4894 = vpack.c.b16 %v4630, %v4622
    %v4895 = vpack.c.b16 %v4631, %v4623
    %v4896 = vpack.c.b16 %v4632, %v4624
    %v4897 = vpack.c.b16 %v4633, %v4625
    %v4898 = vpack.c.b16 %v4634, %v4626
    %v4899 = vpack.c.b16 %v4635, %v4627
    %v4900 = vpack.c.b16 %v4636, %v4628
    %v4901 = vpack.c.b16 %v4645, %v4637
    %v4902 = vpack.c.b16 %v4646, %v4638
    %v4903 = vpack.c.b16 %v4647, %v4639
    %v4904 = vpack.c.b16 %v4648, %v4640
    %v4905 = vpack.c.b16 %v4649, %v4641
    %v4906 = vpack.c.b16 %v4650, %v4642
    %v4907 = vpack.c.b16 %v4651, %v4643
    %v4908 = vpack.c.b16 %v4652, %v4644
    %5165 = vmatprep.subr.bf16.mxu0 %v4654
    %5166 = vmatpush1.bf16.msra.mxu0 %v4653
    %5167 = vmatprep.subr.bf16.mxu0 %v4662
    %5168 = vmatpush1.bf16.msra.mxu0 %v4661
    %5169 = vmatprep.subr.bf16.mxu0 %v4670
    %5170 = vmatpush1.bf16.msra.mxu0 %v4669
    %5171 = vmatprep.subr.bf16.mxu0 %v4678
    %5172 = vmatpush1.bf16.msra.mxu0 %v4677
    %5173 = vmatprep.subr.bf16.mxu0 %v4686
    %5174 = vmatpush1.bf16.msra.mxu0 %v4685
    %5175 = vmatprep.subr.bf16.mxu0 %v4694
    %5176 = vmatpush1.bf16.msra.mxu0 %v4693
    %5177 = vmatprep.subr.bf16.mxu0 %v4702
    %5178 = vmatpush1.bf16.msra.mxu0 %v4701
    %5179 = vmatprep.subr.bf16.mxu0 %v4710
    %5180 = vmatpush1.bf16.msra.mxu0 %v4709
    %5181 = vmatprep.subr.bf16.mxu0 %v4718
    %5182 = vmatpush1.bf16.msra.mxu0 %v4717
    %5183 = vmatprep.subr.bf16.mxu0 %v4726
    %5184 = vmatpush1.bf16.msra.mxu0 %v4725
    %5185 = vmatprep.subr.bf16.mxu0 %v4734
    %5186 = vmatpush1.bf16.msra.mxu0 %v4733
    %5187 = vmatprep.subr.bf16.mxu0 %v4742
    %5188 = vmatpush1.bf16.msra.mxu0 %v4741
    %5189 = vmatprep.subr.bf16.mxu0 %v4750
    %5190 = vmatpush1.bf16.msra.mxu0 %v4749
    %5191 = vmatprep.subr.bf16.mxu0 %v4758
    %5192 = vmatpush1.bf16.msra.mxu0 %v4757
    %5193 = vmatprep.subr.bf16.mxu0 %v4766
    %5194 = vmatpush1.bf16.msra.mxu0 %v4765
    %5195 = vmatprep.subr.bf16.mxu0 %v4774
    %5196 = vmatpush1.bf16.msra.mxu0 %v4773
    %5197 = vmatprep.mubr.bf16.mxu0 %v3584
    %5198 = vmatmul.mubr.bf16.gmra.mrb[0].mxu0 %v3583
    %v5199 = vpop.f32.mrb[0].mxu0
    %v5200 = vadd.f32 %v3848, %v5199
    %v5201 = vpop.f32.mrb[0].mxu0
    %v5202 = vadd.f32 %v3852, %v5201
    %v5203 = vpop.f32.mrb[0].mxu0
    %v5204 = vpop.f32.mrb[0].mxu0
    %5205 = vdwg.mxu0
    %5206 = vmatprep.subr.bf16.mxu0 %v4782
    %5207 = vmatpush1.bf16.msra.mxu0 %v4781
    %5208 = vmatprep.subr.bf16.mxu0 %v4790
    %5209 = vmatpush1.bf16.msra.mxu0 %v4789
    %5210 = vmatprep.subr.bf16.mxu0 %v4798
    %5211 = vmatpush1.bf16.msra.mxu0 %v4797
    %5212 = vmatprep.subr.bf16.mxu0 %v4806
    %5213 = vmatpush1.bf16.msra.mxu0 %v4805
    %5214 = vmatprep.subr.bf16.mxu0 %v4814
    %5215 = vmatpush1.bf16.msra.mxu0 %v4813
    %5216 = vmatprep.subr.bf16.mxu0 %v4822
    %5217 = vmatpush1.bf16.msra.mxu0 %v4821
    %5218 = vmatprep.subr.bf16.mxu0 %v4830
    %5219 = vmatpush1.bf16.msra.mxu0 %v4829
    %5220 = vmatprep.subr.bf16.mxu0 %v4838
    %5221 = vmatpush1.bf16.msra.mxu0 %v4837
    %5222 = vmatprep.subr.bf16.mxu0 %v4846
    %5223 = vmatpush1.bf16.msra.mxu0 %v4845
    %5224 = vmatprep.subr.bf16.mxu0 %v4854
    %5225 = vmatpush1.bf16.msra.mxu0 %v4853
    %5226 = vmatprep.subr.bf16.mxu0 %v4862
    %5227 = vmatpush1.bf16.msra.mxu0 %v4861
    %5228 = vmatprep.subr.bf16.mxu0 %v4870
    %5229 = vmatpush1.bf16.msra.mxu0 %v4869
    %5230 = vmatprep.subr.bf16.mxu0 %v4878
    %5231 = vmatpush1.bf16.msra.mxu0 %v4877
    %5232 = vmatprep.subr.bf16.mxu0 %v4886
    %5233 = vmatpush1.bf16.msra.mxu0 %v4885
    %5234 = vmatprep.subr.bf16.mxu0 %v4894
    %5235 = vmatpush1.bf16.msra.mxu0 %v4893
    %5236 = vmatprep.subr.bf16.mxu0 %v4902
    %5237 = vmatpush1.bf16.msra.mxu0 %v4901
    %5238 = vmatprep.mubr.bf16.mxu0 %v3586
    %5239 = vmatmul.mubr.bf16.gmra.mrb[0].mxu0 %v3585
    %v5240 = vpop.f32.mrb[0].mxu0
    %v5241 = vadd.f32 %v5200, %v5240
    %v5242 = vpop.f32.mrb[0].mxu0
    %v5243 = vadd.f32 %v5202, %v5242
    %v5244 = vpop.f32.mrb[0].mxu0
    %v5245 = vpop.f32.mrb[0].mxu0
    %5246 = vdwg.mxu0
    %5247 = vmatprep.subr.bf16.mxu0 %v4656
    %5248 = vmatpush1.bf16.msra.mxu0 %v4655
    %5249 = vmatprep.subr.bf16.mxu0 %v4664
    %5250 = vmatpush1.bf16.msra.mxu0 %v4663
    %5251 = vmatprep.subr.bf16.mxu0 %v4672
    %5252 = vmatpush1.bf16.msra.mxu0 %v4671
    %5253 = vmatprep.subr.bf16.mxu0 %v4680
    %5254 = vmatpush1.bf16.msra.mxu0 %v4679
    %5255 = vmatprep.subr.bf16.mxu0 %v4688
    %5256 = vmatpush1.bf16.msra.mxu0 %v4687
    %5257 = vmatprep.subr.bf16.mxu0 %v4696
    %5258 = vmatpush1.bf16.msra.mxu0 %v4695
    %5259 = vmatprep.subr.bf16.mxu0 %v4704
    %5260 = vmatpush1.bf16.msra.mxu0 %v4703
    %5261 = vmatprep.subr.bf16.mxu0 %v4712
    %5262 = vmatpush1.bf16.msra.mxu0 %v4711
    %5263 = vmatprep.subr.bf16.mxu0 %v4720
    %5264 = vmatpush1.bf16.msra.mxu0 %v4719
    %5265 = vmatprep.subr.bf16.mxu0 %v4728
    %5266 = vmatpush1.bf16.msra.mxu0 %v4727
    %5267 = vmatprep.subr.bf16.mxu0 %v4736
    %5268 = vmatpush1.bf16.msra.mxu0 %v4735
    %5269 = vmatprep.subr.bf16.mxu0 %v4744
    %5270 = vmatpush1.bf16.msra.mxu0 %v4743
    %5271 = vmatprep.subr.bf16.mxu0 %v4752
    %5272 = vmatpush1.bf16.msra.mxu0 %v4751
    %5273 = vmatprep.subr.bf16.mxu0 %v4760
    %5274 = vmatpush1.bf16.msra.mxu0 %v4759
    %5275 = vmatprep.subr.bf16.mxu0 %v4768
    %5276 = vmatpush1.bf16.msra.mxu0 %v4767
    %5277 = vmatprep.subr.bf16.mxu0 %v4776
    %5278 = vmatpush1.bf16.msra.mxu0 %v4775
    %5279 = vmatprep.mubr.bf16.mxu0 %v3584
    %5280 = vmatmul.mubr.bf16.gmra.mrb[0].mxu0 %v3583
    %v5281 = vpop.f32.mrb[0].mxu0
    %v5282 = vadd.f32 %v3856, %v5281
    %v5283 = vpop.f32.mrb[0].mxu0
    %v5284 = vadd.f32 %v3860, %v5283
    %v5285 = vpop.f32.mrb[0].mxu0
    %v5286 = vpop.f32.mrb[0].mxu0
    %5287 = vdwg.mxu0
    %5288 = vmatprep.subr.bf16.mxu0 %v4784
    %5289 = vmatpush1.bf16.msra.mxu0 %v4783
    %5290 = vmatprep.subr.bf16.mxu0 %v4792
    %5291 = vmatpush1.bf16.msra.mxu0 %v4791
    %5292 = vmatprep.subr.bf16.mxu0 %v4800
    %5293 = vmatpush1.bf16.msra.mxu0 %v4799
    %5294 = vmatprep.subr.bf16.mxu0 %v4808
    %5295 = vmatpush1.bf16.msra.mxu0 %v4807
    %5296 = vmatprep.subr.bf16.mxu0 %v4816
    %5297 = vmatpush1.bf16.msra.mxu0 %v4815
    %5298 = vmatprep.subr.bf16.mxu0 %v4824
    %5299 = vmatpush1.bf16.msra.mxu0 %v4823
    %5300 = vmatprep.subr.bf16.mxu0 %v4832
    %5301 = vmatpush1.bf16.msra.mxu0 %v4831
    %5302 = vmatprep.subr.bf16.mxu0 %v4840
    %5303 = vmatpush1.bf16.msra.mxu0 %v4839
    %5304 = vmatprep.subr.bf16.mxu0 %v4848
    %5305 = vmatpush1.bf16.msra.mxu0 %v4847
    %5306 = vmatprep.subr.bf16.mxu0 %v4856
    %5307 = vmatpush1.bf16.msra.mxu0 %v4855
    %5308 = vmatprep.subr.bf16.mxu0 %v4864
    %5309 = vmatpush1.bf16.msra.mxu0 %v4863
    %5310 = vmatprep.subr.bf16.mxu0 %v4872
    %5311 = vmatpush1.bf16.msra.mxu0 %v4871
    %5312 = vmatprep.subr.bf16.mxu0 %v4880
    %5313 = vmatpush1.bf16.msra.mxu0 %v4879
    %5314 = vmatprep.subr.bf16.mxu0 %v4888
    %5315 = vmatpush1.bf16.msra.mxu0 %v4887
    %5316 = vmatprep.subr.bf16.mxu0 %v4896
    %5317 = vmatpush1.bf16.msra.mxu0 %v4895
    %5318 = vmatprep.subr.bf16.mxu0 %v4904
    %5319 = vmatpush1.bf16.msra.mxu0 %v4903
    %5320 = vmatprep.mubr.bf16.mxu0 %v3586
    %5321 = vmatmul.mubr.bf16.gmra.mrb[0].mxu0 %v3585
    %v5322 = vpop.f32.mrb[0].mxu0
    %v5323 = vadd.f32 %v5282, %v5322
    %v5324 = vpop.f32.mrb[0].mxu0
    %v5325 = vadd.f32 %v5284, %v5324
    %v5326 = vpop.f32.mrb[0].mxu0
    %v5327 = vpop.f32.mrb[0].mxu0
    %5328 = vdwg.mxu0
    %5329 = vmatprep.subr.bf16.mxu0 %v4658
    %5330 = vmatpush1.bf16.msra.mxu0 %v4657
    %5331 = vmatprep.subr.bf16.mxu0 %v4666
    %5332 = vmatpush1.bf16.msra.mxu0 %v4665
    %5333 = vmatprep.subr.bf16.mxu0 %v4674
    %5334 = vmatpush1.bf16.msra.mxu0 %v4673
    %5335 = vmatprep.subr.bf16.mxu0 %v4682
    %5336 = vmatpush1.bf16.msra.mxu0 %v4681
    %5337 = vmatprep.subr.bf16.mxu0 %v4690
    %5338 = vmatpush1.bf16.msra.mxu0 %v4689
    %5339 = vmatprep.subr.bf16.mxu0 %v4698
    %5340 = vmatpush1.bf16.msra.mxu0 %v4697
    %5341 = vmatprep.subr.bf16.mxu0 %v4706
    %5342 = vmatpush1.bf16.msra.mxu0 %v4705
    %5343 = vmatprep.subr.bf16.mxu0 %v4714
    %5344 = vmatpush1.bf16.msra.mxu0 %v4713
    %5345 = vmatprep.subr.bf16.mxu0 %v4722
    %5346 = vmatpush1.bf16.msra.mxu0 %v4721
    %5347 = vmatprep.subr.bf16.mxu0 %v4730
    %5348 = vmatpush1.bf16.msra.mxu0 %v4729
    %5349 = vmatprep.subr.bf16.mxu0 %v4738
    %5350 = vmatpush1.bf16.msra.mxu0 %v4737
    %5351 = vmatprep.subr.bf16.mxu0 %v4746
    %5352 = vmatpush1.bf16.msra.mxu0 %v4745
    %5353 = vmatprep.subr.bf16.mxu0 %v4754
    %5354 = vmatpush1.bf16.msra.mxu0 %v4753
    %5355 = vmatprep.subr.bf16.mxu0 %v4762
    %5356 = vmatpush1.bf16.msra.mxu0 %v4761
    %5357 = vmatprep.subr.bf16.mxu0 %v4770
    %5358 = vmatpush1.bf16.msra.mxu0 %v4769
    %5359 = vmatprep.subr.bf16.mxu0 %v4778
    %5360 = vmatpush1.bf16.msra.mxu0 %v4777
    %5361 = vmatprep.mubr.bf16.mxu0 %v3584
    %5362 = vmatmul.mubr.bf16.gmra.mrb[0].mxu0 %v3583
    %v5363 = vpop.f32.mrb[0].mxu0
    %v5364 = vadd.f32 %v3864, %v5363
    %v5365 = vpop.f32.mrb[0].mxu0
    %v5366 = vadd.f32 %v3868, %v5365
    %v5367 = vpop.f32.mrb[0].mxu0
    %v5368 = vpop.f32.mrb[0].mxu0
    %5369 = vdwg.mxu0
    %5370 = vmatprep.subr.bf16.mxu0 %v4786
    %5371 = vmatpush1.bf16.msra.mxu0 %v4785
    %5372 = vmatprep.subr.bf16.mxu0 %v4794
    %5373 = vmatpush1.bf16.msra.mxu0 %v4793
    %5374 = vmatprep.subr.bf16.mxu0 %v4802
    %5375 = vmatpush1.bf16.msra.mxu0 %v4801
    %5376 = vmatprep.subr.bf16.mxu0 %v4810
    %5377 = vmatpush1.bf16.msra.mxu0 %v4809
    %5378 = vmatprep.subr.bf16.mxu0 %v4818
    %5379 = vmatpush1.bf16.msra.mxu0 %v4817
    %5380 = vmatprep.subr.bf16.mxu0 %v4826
    %5381 = vmatpush1.bf16.msra.mxu0 %v4825
    %5382 = vmatprep.subr.bf16.mxu0 %v4834
    %5383 = vmatpush1.bf16.msra.mxu0 %v4833
    %5384 = vmatprep.subr.bf16.mxu0 %v4842
    %5385 = vmatpush1.bf16.msra.mxu0 %v4841
    %5386 = vmatprep.subr.bf16.mxu0 %v4850
    %5387 = vmatpush1.bf16.msra.mxu0 %v4849
    %5388 = vmatprep.subr.bf16.mxu0 %v4858
    %5389 = vmatpush1.bf16.msra.mxu0 %v4857
    %5390 = vmatprep.subr.bf16.mxu0 %v4866
    %5391 = vmatpush1.bf16.msra.mxu0 %v4865
    %5392 = vmatprep.subr.bf16.mxu0 %v4874
    %5393 = vmatpush1.bf16.msra.mxu0 %v4873
    %5394 = vmatprep.subr.bf16.mxu0 %v4882
    %5395 = vmatpush1.bf16.msra.mxu0 %v4881
    %5396 = vmatprep.subr.bf16.mxu0 %v4890
    %5397 = vmatpush1.bf16.msra.mxu0 %v4889
    %5398 = vmatprep.subr.bf16.mxu0 %v4898
    %5399 = vmatpush1.bf16.msra.mxu0 %v4897
    %5400 = vmatprep.subr.bf16.mxu0 %v4906
    %5401 = vmatpush1.bf16.msra.mxu0 %v4905
    %5402 = vmatprep.mubr.bf16.mxu0 %v3586
    %5403 = vmatmul.mubr.bf16.gmra.mrb[0].mxu0 %v3585
    %v5404 = vpop.f32.mrb[0].mxu0
    %v5405 = vadd.f32 %v5364, %v5404
    %v5406 = vpop.f32.mrb[0].mxu0
    %v5407 = vadd.f32 %v5366, %v5406
    %v5408 = vpop.f32.mrb[0].mxu0
    %v5409 = vpop.f32.mrb[0].mxu0
    %5410 = vdwg.mxu0
    %5411 = vmatprep.subr.bf16.mxu0 %v4660
    %5412 = vmatpush1.bf16.msra.mxu0 %v4659
    %5413 = vmatprep.subr.bf16.mxu0 %v4668
    %5414 = vmatpush1.bf16.msra.mxu0 %v4667
    %5415 = vmatprep.subr.bf16.mxu0 %v4676
    %5416 = vmatpush1.bf16.msra.mxu0 %v4675
    %5417 = vmatprep.subr.bf16.mxu0 %v4684
    %5418 = vmatpush1.bf16.msra.mxu0 %v4683
    %5419 = vmatprep.subr.bf16.mxu0 %v4692
    %5420 = vmatpush1.bf16.msra.mxu0 %v4691
    %5421 = vmatprep.subr.bf16.mxu0 %v4700
    %5422 = vmatpush1.bf16.msra.mxu0 %v4699
    %5423 = vmatprep.subr.bf16.mxu0 %v4708
    %5424 = vmatpush1.bf16.msra.mxu0 %v4707
    %5425 = vmatprep.subr.bf16.mxu0 %v4716
    %5426 = vmatpush1.bf16.msra.mxu0 %v4715
    %5427 = vmatprep.subr.bf16.mxu0 %v4724
    %5428 = vmatpush1.bf16.msra.mxu0 %v4723
    %5429 = vmatprep.subr.bf16.mxu0 %v4732
    %5430 = vmatpush1.bf16.msra.mxu0 %v4731
    %5431 = vmatprep.subr.bf16.mxu0 %v4740
    %5432 = vmatpush1.bf16.msra.mxu0 %v4739
    %5433 = vmatprep.subr.bf16.mxu0 %v4748
    %5434 = vmatpush1.bf16.msra.mxu0 %v4747
    %5435 = vmatprep.subr.bf16.mxu0 %v4756
    %5436 = vmatpush1.bf16.msra.mxu0 %v4755
    %5437 = vmatprep.subr.bf16.mxu0 %v4764
    %5438 = vmatpush1.bf16.msra.mxu0 %v4763
    %5439 = vmatprep.subr.bf16.mxu0 %v4772
    %5440 = vmatpush1.bf16.msra.mxu0 %v4771
    %5441 = vmatprep.subr.bf16.mxu0 %v4780
    %5442 = vmatpush1.bf16.msra.mxu0 %v4779
    %5443 = vmatprep.mubr.bf16.mxu0 %v3584
    %5444 = vmatmul.mubr.bf16.gmra.mrb[0].mxu0 %v3583
    %v5445 = vpop.f32.mrb[0].mxu0
    %v5446 = vadd.f32 %v3872, %v5445
    %v5447 = vpop.f32.mrb[0].mxu0
    %v5448 = vadd.f32 %v3876, %v5447
    %v5449 = vpop.f32.mrb[0].mxu0
    %v5450 = vpop.f32.mrb[0].mxu0
    %5451 = vdwg.mxu0
    %5452 = vmatprep.subr.bf16.mxu0 %v4788
    %5453 = vmatpush1.bf16.msra.mxu0 %v4787
    %5454 = vmatprep.subr.bf16.mxu0 %v4796
    %5455 = vmatpush1.bf16.msra.mxu0 %v4795
    %5456 = vmatprep.subr.bf16.mxu0 %v4804
    %5457 = vmatpush1.bf16.msra.mxu0 %v4803
    %5458 = vmatprep.subr.bf16.mxu0 %v4812
    %5459 = vmatpush1.bf16.msra.mxu0 %v4811
    %5460 = vmatprep.subr.bf16.mxu0 %v4820
    %5461 = vmatpush1.bf16.msra.mxu0 %v4819
    %5462 = vmatprep.subr.bf16.mxu0 %v4828
    %5463 = vmatpush1.bf16.msra.mxu0 %v4827
    %5464 = vmatprep.subr.bf16.mxu0 %v4836
    %5465 = vmatpush1.bf16.msra.mxu0 %v4835
    %5466 = vmatprep.subr.bf16.mxu0 %v4844
    %5467 = vmatpush1.bf16.msra.mxu0 %v4843
    %5468 = vmatprep.subr.bf16.mxu0 %v4852
    %5469 = vmatpush1.bf16.msra.mxu0 %v4851
    %5470 = vmatprep.subr.bf16.mxu0 %v4860
    %5471 = vmatpush1.bf16.msra.mxu0 %v4859
    %5472 = vmatprep.subr.bf16.mxu0 %v4868
    %5473 = vmatpush1.bf16.msra.mxu0 %v4867
    %5474 = vmatprep.subr.bf16.mxu0 %v4876
    %5475 = vmatpush1.bf16.msra.mxu0 %v4875
    %5476 = vmatprep.subr.bf16.mxu0 %v4884
    %5477 = vmatpush1.bf16.msra.mxu0 %v4883
    %5478 = vmatprep.subr.bf16.mxu0 %v4892
    %5479 = vmatpush1.bf16.msra.mxu0 %v4891
    %5480 = vmatprep.subr.bf16.mxu0 %v4900
    %5481 = vmatpush1.bf16.msra.mxu0 %v4899
    %5482 = vmatprep.subr.bf16.mxu0 %v4908
    %5483 = vmatpush1.bf16.msra.mxu0 %v4907
    %5484 = vmatprep.mubr.bf16.mxu0 %v3586
    %5485 = vmatmul.mubr.bf16.gmra.mrb[0].mxu0 %v3585
    %v5486 = vpop.f32.mrb[0].mxu0
    %v5487 = vadd.f32 %v5446, %v5486
    %v5488 = vpop.f32.mrb[0].mxu0
    %v5489 = vadd.f32 %v5448, %v5488
    %v5490 = vpop.f32.mrb[0].mxu0
    %v5491 = vpop.f32.mrb[0].mxu0
    %5492 = vdwg.mxu0
    %v5493 = vtanh.pop %v5241
    %v5494 = vtanh.pop %v5243
    %v5495 = vtanh.pop %v5323
    %v5496 = vtanh.pop %v5325
    %v5497 = vtanh.pop %v5405
    %v5498 = vtanh.pop %v5407
    %v5499 = vtanh.pop %v5487
    %v5500 = vtanh.pop %v5489
    %v5501 = vpack.c.bf16 %v5493, %v5493
    %v5502 = vpack.c.bf16 %v5494, %v5494
    %v5503 = vpack.c.bf16 %v5495, %v5495
    %v5504 = vpack.c.bf16 %v5496, %v5496
    %v5505 = vpack.c.bf16 %v5497, %v5497
    %v5506 = vpack.c.bf16 %v5498, %v5498
    %v5507 = vpack.c.bf16 %v5499, %v5499
    %v5508 = vpack.c.bf16 %v5500, %v5500
    %v5509 = vld [vmem:[%s11] sm:$0xff]
    %v5510 = vld [vmem:[%s11 + $0x8] sm:$0xff]
    %v5511 = vld [vmem:[%s11 + $0x10] sm:$0xff]
    %v5512 = vld [vmem:[%s11 + $0x18] sm:$0xff]
    %v5513 = vld [vmem:[%s11 + $0x20] sm:$0xff]
    %v5514 = vld [vmem:[%s11 + $0x28] sm:$0xff]
    %v5515 = vld [vmem:[%s11 + $0x30] sm:$0xff]
    %v5516 = vld [vmem:[%s11 + $0x38] sm:$0xff]
    %v5517 = vld [vmem:[%s11 + $0x40] sm:$0xff]
    %v5518 = vld [vmem:[%s11 + $0x48] sm:$0xff]
    %v5519 = vld [vmem:[%s11 + $0x50] sm:$0xff]
    %v5520 = vld [vmem:[%s11 + $0x58] sm:$0xff]
    %v5521 = vld [vmem:[%s11 + $0x60] sm:$0xff]
    %v5522 = vld [vmem:[%s11 + $0x68] sm:$0xff]
    %v5523 = vld [vmem:[%s11 + $0x70] sm:$0xff]
    %v5524 = vld [vmem:[%s11 + $0x78] sm:$0xff]
    %v5525 = vld [vmem:[%s11 + $0x80] sm:$0xff]
    %v5526 = vld [vmem:[%s11 + $0x88] sm:$0xff]
    %v5527 = vld [vmem:[%s11 + $0x90] sm:$0xff]
    %v5528 = vld [vmem:[%s11 + $0x98] sm:$0xff]
    %v5529 = vld [vmem:[%s11 + $0xa0] sm:$0xff]
    %v5530 = vld [vmem:[%s11 + $0xa8] sm:$0xff]
    %v5531 = vld [vmem:[%s11 + $0xb0] sm:$0xff]
    %v5532 = vld [vmem:[%s11 + $0xb8] sm:$0xff]
    %v5533 = vld [vmem:[%s11 + $0xc0] sm:$0xff]
    %v5534 = vld [vmem:[%s11 + $0xc8] sm:$0xff]
    %v5535 = vld [vmem:[%s11 + $0xd0] sm:$0xff]
    %v5536 = vld [vmem:[%s11 + $0xd8] sm:$0xff]
    %v5537 = vld [vmem:[%s11 + $0xe0] sm:$0xff]
    %v5538 = vld [vmem:[%s11 + $0xe8] sm:$0xff]
    %v5539 = vld [vmem:[%s11 + $0xf0] sm:$0xff]
    %v5540 = vld [vmem:[%s11 + $0xf8] sm:$0xff]
    %v5541 = vld [vmem:[%s11 + $0x100] sm:$0xff]
    %v5542 = vld [vmem:[%s11 + $0x108] sm:$0xff]
    %v5543 = vld [vmem:[%s11 + $0x110] sm:$0xff]
    %v5544 = vld [vmem:[%s11 + $0x118] sm:$0xff]
    %v5545 = vld [vmem:[%s11 + $0x120] sm:$0xff]
    %v5546 = vld [vmem:[%s11 + $0x128] sm:$0xff]
    %v5547 = vld [vmem:[%s11 + $0x130] sm:$0xff]
    %v5548 = vld [vmem:[%s11 + $0x138] sm:$0xff]
    %v5549 = vld [vmem:[%s11 + $0x140] sm:$0xff]
    %v5550 = vld [vmem:[%s11 + $0x148] sm:$0xff]
    %v5551 = vld [vmem:[%s11 + $0x150] sm:$0xff]
    %v5552 = vld [vmem:[%s11 + $0x158] sm:$0xff]
    %v5553 = vld [vmem:[%s11 + $0x160] sm:$0xff]
    %v5554 = vld [vmem:[%s11 + $0x168] sm:$0xff]
    %v5555 = vld [vmem:[%s11 + $0x170] sm:$0xff]
    %v5556 = vld [vmem:[%s11 + $0x178] sm:$0xff]
    %v5557 = vld [vmem:[%s11 + $0x180] sm:$0xff]
    %v5558 = vld [vmem:[%s11 + $0x188] sm:$0xff]
    %v5559 = vld [vmem:[%s11 + $0x190] sm:$0xff]
    %v5560 = vld [vmem:[%s11 + $0x198] sm:$0xff]
    %v5561 = vld [vmem:[%s11 + $0x1a0] sm:$0xff]
    %v5562 = vld [vmem:[%s11 + $0x1a8] sm:$0xff]
    %v5563 = vld [vmem:[%s11 + $0x1b0] sm:$0xff]
    %v5564 = vld [vmem:[%s11 + $0x1b8] sm:$0xff]
    %v5565 = vld [vmem:[%s11 + $0x1c0] sm:$0xff]
    %v5566 = vld [vmem:[%s11 + $0x1c8] sm:$0xff]
    %v5567 = vld [vmem:[%s11 + $0x1d0] sm:$0xff]
    %v5568 = vld [vmem:[%s11 + $0x1d8] sm:$0xff]
    %v5569 = vld [vmem:[%s11 + $0x1e0] sm:$0xff]
    %v5570 = vld [vmem:[%s11 + $0x1e8] sm:$0xff]
    %v5571 = vld [vmem:[%s11 + $0x1f0] sm:$0xff]
    %v5572 = vld [vmem:[%s11 + $0x1f8] sm:$0xff]
    %v5573 = vld [vmem:[%s11 + $0x200] sm:$0xff]
    %v5574 = vld [vmem:[%s11 + $0x208] sm:$0xff]
    %v5575 = vld [vmem:[%s11 + $0x210] sm:$0xff]
    %v5576 = vld [vmem:[%s11 + $0x218] sm:$0xff]
    %v5577 = vld [vmem:[%s11 + $0x220] sm:$0xff]
    %v5578 = vld [vmem:[%s11 + $0x228] sm:$0xff]
    %v5579 = vld [vmem:[%s11 + $0x230] sm:$0xff]
    %v5580 = vld [vmem:[%s11 + $0x238] sm:$0xff]
    %v5581 = vld [vmem:[%s11 + $0x240] sm:$0xff]
    %v5582 = vld [vmem:[%s11 + $0x248] sm:$0xff]
    %v5583 = vld [vmem:[%s11 + $0x250] sm:$0xff]
    %v5584 = vld [vmem:[%s11 + $0x258] sm:$0xff]
    %v5585 = vld [vmem:[%s11 + $0x260] sm:$0xff]
    %v5586 = vld [vmem:[%s11 + $0x268] sm:$0xff]
    %v5587 = vld [vmem:[%s11 + $0x270] sm:$0xff]
    %v5588 = vld [vmem:[%s11 + $0x278] sm:$0xff]
    %v5589 = vld [vmem:[%s11 + $0x280] sm:$0xff]
    %v5590 = vld [vmem:[%s11 + $0x288] sm:$0xff]
    %v5591 = vld [vmem:[%s11 + $0x290] sm:$0xff]
    %v5592 = vld [vmem:[%s11 + $0x298] sm:$0xff]
    %v5593 = vld [vmem:[%s11 + $0x2a0] sm:$0xff]
    %v5594 = vld [vmem:[%s11 + $0x2a8] sm:$0xff]
    %v5595 = vld [vmem:[%s11 + $0x2b0] sm:$0xff]
    %v5596 = vld [vmem:[%s11 + $0x2b8] sm:$0xff]
    %v5597 = vld [vmem:[%s11 + $0x2c0] sm:$0xff]
    %v5598 = vld [vmem:[%s11 + $0x2c8] sm:$0xff]
    %v5599 = vld [vmem:[%s11 + $0x2d0] sm:$0xff]
    %v5600 = vld [vmem:[%s11 + $0x2d8] sm:$0xff]
    %v5601 = vld [vmem:[%s11 + $0x2e0] sm:$0xff]
    %v5602 = vld [vmem:[%s11 + $0x2e8] sm:$0xff]
    %v5603 = vld [vmem:[%s11 + $0x2f0] sm:$0xff]
    %v5604 = vld [vmem:[%s11 + $0x2f8] sm:$0xff]
    %v5605 = vld [vmem:[%s11 + $0x300] sm:$0xff]
    %v5606 = vld [vmem:[%s11 + $0x308] sm:$0xff]
    %v5607 = vld [vmem:[%s11 + $0x310] sm:$0xff]
    %v5608 = vld [vmem:[%s11 + $0x318] sm:$0xff]
    %v5609 = vld [vmem:[%s11 + $0x320] sm:$0xff]
    %v5610 = vld [vmem:[%s11 + $0x328] sm:$0xff]
    %v5611 = vld [vmem:[%s11 + $0x330] sm:$0xff]
    %v5612 = vld [vmem:[%s11 + $0x338] sm:$0xff]
    %v5613 = vld [vmem:[%s11 + $0x340] sm:$0xff]
    %v5614 = vld [vmem:[%s11 + $0x348] sm:$0xff]
    %v5615 = vld [vmem:[%s11 + $0x350] sm:$0xff]
    %v5616 = vld [vmem:[%s11 + $0x358] sm:$0xff]
    %v5617 = vld [vmem:[%s11 + $0x360] sm:$0xff]
    %v5618 = vld [vmem:[%s11 + $0x368] sm:$0xff]
    %v5619 = vld [vmem:[%s11 + $0x370] sm:$0xff]
    %v5620 = vld [vmem:[%s11 + $0x378] sm:$0xff]
    %v5621 = vld [vmem:[%s11 + $0x380] sm:$0xff]
    %v5622 = vld [vmem:[%s11 + $0x388] sm:$0xff]
    %v5623 = vld [vmem:[%s11 + $0x390] sm:$0xff]
    %v5624 = vld [vmem:[%s11 + $0x398] sm:$0xff]
    %v5625 = vld [vmem:[%s11 + $0x3a0] sm:$0xff]
    %v5626 = vld [vmem:[%s11 + $0x3a8] sm:$0xff]
    %v5627 = vld [vmem:[%s11 + $0x3b0] sm:$0xff]
    %v5628 = vld [vmem:[%s11 + $0x3b8] sm:$0xff]
    %v5629 = vld [vmem:[%s11 + $0x3c0] sm:$0xff]
    %v5630 = vld [vmem:[%s11 + $0x3c8] sm:$0xff]
    %v5631 = vld [vmem:[%s11 + $0x3d0] sm:$0xff]
    %v5632 = vld [vmem:[%s11 + $0x3d8] sm:$0xff]
    %v5633 = vld [vmem:[%s11 + $0x3e0] sm:$0xff]
    %v5634 = vld [vmem:[%s11 + $0x3e8] sm:$0xff]
    %v5635 = vld [vmem:[%s11 + $0x3f0] sm:$0xff]
    %v5636 = vld [vmem:[%s11 + $0x3f8] sm:$0xff]
    %v5637 = vld [vmem:[%s12] sm:$0x3]
    %v5639 = vlaneseq
    %v5640 = vshrl.u32 %v5639, 7
    %v5641 = vsub.s32 0, %v5640
    %v5642 = vrot.slane %v5637, %v5641
    %v5643 = vlaneseq
    %v5644 = vshrl.u32 %v5643, 7
    %v5645 = vsub.s32 1, %v5644
    %v5646 = vrot.slane %v5637, %v5645
    %v5777 = vunpack.c.l.b16 %v5509
    %v5778 = vunpack.c.h.b16 %v5509
    %v5779 = vunpack.c.l.b16 %v5510
    %v5780 = vunpack.c.h.b16 %v5510
    %v5781 = vunpack.c.l.b16 %v5511
    %v5782 = vunpack.c.h.b16 %v5511
    %v5783 = vunpack.c.l.b16 %v5512
    %v5784 = vunpack.c.h.b16 %v5512
    %v5785 = vunpack.c.l.b16 %v5513
    %v5786 = vunpack.c.h.b16 %v5513
    %v5787 = vunpack.c.l.b16 %v5514
    %v5788 = vunpack.c.h.b16 %v5514
    %v5789 = vunpack.c.l.b16 %v5515
    %v5790 = vunpack.c.h.b16 %v5515
    %v5791 = vunpack.c.l.b16 %v5516
    %v5792 = vunpack.c.h.b16 %v5516
    %v5793 = vunpack.c.l.b16 %v5517
    %v5794 = vunpack.c.h.b16 %v5517
    %v5795 = vunpack.c.l.b16 %v5518
    %v5796 = vunpack.c.h.b16 %v5518
    %v5797 = vunpack.c.l.b16 %v5519
    %v5798 = vunpack.c.h.b16 %v5519
    %v5799 = vunpack.c.l.b16 %v5520
    %v5800 = vunpack.c.h.b16 %v5520
    %v5801 = vunpack.c.l.b16 %v5521
    %v5802 = vunpack.c.h.b16 %v5521
    %v5803 = vunpack.c.l.b16 %v5522
    %v5804 = vunpack.c.h.b16 %v5522
    %v5805 = vunpack.c.l.b16 %v5523
    %v5806 = vunpack.c.h.b16 %v5523
    %v5807 = vunpack.c.l.b16 %v5524
    %v5808 = vunpack.c.h.b16 %v5524
    %v5809 = vunpack.c.l.b16 %v5525
    %v5810 = vunpack.c.h.b16 %v5525
    %v5811 = vunpack.c.l.b16 %v5526
    %v5812 = vunpack.c.h.b16 %v5526
    %v5813 = vunpack.c.l.b16 %v5527
    %v5814 = vunpack.c.h.b16 %v5527
    %v5815 = vunpack.c.l.b16 %v5528
    %v5816 = vunpack.c.h.b16 %v5528
    %v5817 = vunpack.c.l.b16 %v5529
    %v5818 = vunpack.c.h.b16 %v5529
    %v5819 = vunpack.c.l.b16 %v5530
    %v5820 = vunpack.c.h.b16 %v5530
    %v5821 = vunpack.c.l.b16 %v5531
    %v5822 = vunpack.c.h.b16 %v5531
    %v5823 = vunpack.c.l.b16 %v5532
    %v5824 = vunpack.c.h.b16 %v5532
    %v5825 = vunpack.c.l.b16 %v5533
    %v5826 = vunpack.c.h.b16 %v5533
    %v5827 = vunpack.c.l.b16 %v5534
    %v5828 = vunpack.c.h.b16 %v5534
    %v5829 = vunpack.c.l.b16 %v5535
    %v5830 = vunpack.c.h.b16 %v5535
    %v5831 = vunpack.c.l.b16 %v5536
    %v5832 = vunpack.c.h.b16 %v5536
    %v5833 = vunpack.c.l.b16 %v5537
    %v5834 = vunpack.c.h.b16 %v5537
    %v5835 = vunpack.c.l.b16 %v5538
    %v5836 = vunpack.c.h.b16 %v5538
    %v5837 = vunpack.c.l.b16 %v5539
    %v5838 = vunpack.c.h.b16 %v5539
    %v5839 = vunpack.c.l.b16 %v5540
    %v5840 = vunpack.c.h.b16 %v5540
    %v5841 = vunpack.c.l.b16 %v5541
    %v5842 = vunpack.c.h.b16 %v5541
    %v5843 = vunpack.c.l.b16 %v5542
    %v5844 = vunpack.c.h.b16 %v5542
    %v5845 = vunpack.c.l.b16 %v5543
    %v5846 = vunpack.c.h.b16 %v5543
    %v5847 = vunpack.c.l.b16 %v5544
    %v5848 = vunpack.c.h.b16 %v5544
    %v5849 = vunpack.c.l.b16 %v5545
    %v5850 = vunpack.c.h.b16 %v5545
    %v5851 = vunpack.c.l.b16 %v5546
    %v5852 = vunpack.c.h.b16 %v5546
    %v5853 = vunpack.c.l.b16 %v5547
    %v5854 = vunpack.c.h.b16 %v5547
    %v5855 = vunpack.c.l.b16 %v5548
    %v5856 = vunpack.c.h.b16 %v5548
    %v5857 = vunpack.c.l.b16 %v5549
    %v5858 = vunpack.c.h.b16 %v5549
    %v5859 = vunpack.c.l.b16 %v5550
    %v5860 = vunpack.c.h.b16 %v5550
    %v5861 = vunpack.c.l.b16 %v5551
    %v5862 = vunpack.c.h.b16 %v5551
    %v5863 = vunpack.c.l.b16 %v5552
    %v5864 = vunpack.c.h.b16 %v5552
    %v5865 = vunpack.c.l.b16 %v5553
    %v5866 = vunpack.c.h.b16 %v5553
    %v5867 = vunpack.c.l.b16 %v5554
    %v5868 = vunpack.c.h.b16 %v5554
    %v5869 = vunpack.c.l.b16 %v5555
    %v5870 = vunpack.c.h.b16 %v5555
    %v5871 = vunpack.c.l.b16 %v5556
    %v5872 = vunpack.c.h.b16 %v5556
    %v5873 = vunpack.c.l.b16 %v5557
    %v5874 = vunpack.c.h.b16 %v5557
    %v5875 = vunpack.c.l.b16 %v5558
    %v5876 = vunpack.c.h.b16 %v5558
    %v5877 = vunpack.c.l.b16 %v5559
    %v5878 = vunpack.c.h.b16 %v5559
    %v5879 = vunpack.c.l.b16 %v5560
    %v5880 = vunpack.c.h.b16 %v5560
    %v5881 = vunpack.c.l.b16 %v5561
    %v5882 = vunpack.c.h.b16 %v5561
    %v5883 = vunpack.c.l.b16 %v5562
    %v5884 = vunpack.c.h.b16 %v5562
    %v5885 = vunpack.c.l.b16 %v5563
    %v5886 = vunpack.c.h.b16 %v5563
    %v5887 = vunpack.c.l.b16 %v5564
    %v5888 = vunpack.c.h.b16 %v5564
    %v5889 = vunpack.c.l.b16 %v5565
    %v5890 = vunpack.c.h.b16 %v5565
    %v5891 = vunpack.c.l.b16 %v5566
    %v5892 = vunpack.c.h.b16 %v5566
    %v5893 = vunpack.c.l.b16 %v5567
    %v5894 = vunpack.c.h.b16 %v5567
    %v5895 = vunpack.c.l.b16 %v5568
    %v5896 = vunpack.c.h.b16 %v5568
    %v5897 = vunpack.c.l.b16 %v5569
    %v5898 = vunpack.c.h.b16 %v5569
    %v5899 = vunpack.c.l.b16 %v5570
    %v5900 = vunpack.c.h.b16 %v5570
    %v5901 = vunpack.c.l.b16 %v5571
    %v5902 = vunpack.c.h.b16 %v5571
    %v5903 = vunpack.c.l.b16 %v5572
    %v5904 = vunpack.c.h.b16 %v5572
    %v5905 = vunpack.c.l.b16 %v5573
    %v5906 = vunpack.c.h.b16 %v5573
    %v5907 = vunpack.c.l.b16 %v5574
    %v5908 = vunpack.c.h.b16 %v5574
    %v5909 = vunpack.c.l.b16 %v5575
    %v5910 = vunpack.c.h.b16 %v5575
    %v5911 = vunpack.c.l.b16 %v5576
    %v5912 = vunpack.c.h.b16 %v5576
    %v5913 = vunpack.c.l.b16 %v5577
    %v5914 = vunpack.c.h.b16 %v5577
    %v5915 = vunpack.c.l.b16 %v5578
    %v5916 = vunpack.c.h.b16 %v5578
    %v5917 = vunpack.c.l.b16 %v5579
    %v5918 = vunpack.c.h.b16 %v5579
    %v5919 = vunpack.c.l.b16 %v5580
    %v5920 = vunpack.c.h.b16 %v5580
    %v5921 = vunpack.c.l.b16 %v5581
    %v5922 = vunpack.c.h.b16 %v5581
    %v5923 = vunpack.c.l.b16 %v5582
    %v5924 = vunpack.c.h.b16 %v5582
    %v5925 = vunpack.c.l.b16 %v5583
    %v5926 = vunpack.c.h.b16 %v5583
    %v5927 = vunpack.c.l.b16 %v5584
    %v5928 = vunpack.c.h.b16 %v5584
    %v5929 = vunpack.c.l.b16 %v5585
    %v5930 = vunpack.c.h.b16 %v5585
    %v5931 = vunpack.c.l.b16 %v5586
    %v5932 = vunpack.c.h.b16 %v5586
    %v5933 = vunpack.c.l.b16 %v5587
    %v5934 = vunpack.c.h.b16 %v5587
    %v5935 = vunpack.c.l.b16 %v5588
    %v5936 = vunpack.c.h.b16 %v5588
    %v5937 = vunpack.c.l.b16 %v5589
    %v5938 = vunpack.c.h.b16 %v5589
    %v5939 = vunpack.c.l.b16 %v5590
    %v5940 = vunpack.c.h.b16 %v5590
    %v5941 = vunpack.c.l.b16 %v5591
    %v5942 = vunpack.c.h.b16 %v5591
    %v5943 = vunpack.c.l.b16 %v5592
    %v5944 = vunpack.c.h.b16 %v5592
    %v5945 = vunpack.c.l.b16 %v5593
    %v5946 = vunpack.c.h.b16 %v5593
    %v5947 = vunpack.c.l.b16 %v5594
    %v5948 = vunpack.c.h.b16 %v5594
    %v5949 = vunpack.c.l.b16 %v5595
    %v5950 = vunpack.c.h.b16 %v5595
    %v5951 = vunpack.c.l.b16 %v5596
    %v5952 = vunpack.c.h.b16 %v5596
    %v5953 = vunpack.c.l.b16 %v5597
    %v5954 = vunpack.c.h.b16 %v5597
    %v5955 = vunpack.c.l.b16 %v5598
    %v5956 = vunpack.c.h.b16 %v5598
    %v5957 = vunpack.c.l.b16 %v5599
    %v5958 = vunpack.c.h.b16 %v5599
    %v5959 = vunpack.c.l.b16 %v5600
    %v5960 = vunpack.c.h.b16 %v5600
    %v5961 = vunpack.c.l.b16 %v5601
    %v5962 = vunpack.c.h.b16 %v5601
    %v5963 = vunpack.c.l.b16 %v5602
    %v5964 = vunpack.c.h.b16 %v5602
    %v5965 = vunpack.c.l.b16 %v5603
    %v5966 = vunpack.c.h.b16 %v5603
    %v5967 = vunpack.c.l.b16 %v5604
    %v5968 = vunpack.c.h.b16 %v5604
    %v5969 = vunpack.c.l.b16 %v5605
    %v5970 = vunpack.c.h.b16 %v5605
    %v5971 = vunpack.c.l.b16 %v5606
    %v5972 = vunpack.c.h.b16 %v5606
    %v5973 = vunpack.c.l.b16 %v5607
    %v5974 = vunpack.c.h.b16 %v5607
    %v5975 = vunpack.c.l.b16 %v5608
    %v5976 = vunpack.c.h.b16 %v5608
    %v5977 = vunpack.c.l.b16 %v5609
    %v5978 = vunpack.c.h.b16 %v5609
    %v5979 = vunpack.c.l.b16 %v5610
    %v5980 = vunpack.c.h.b16 %v5610
    %v5981 = vunpack.c.l.b16 %v5611
    %v5982 = vunpack.c.h.b16 %v5611
    %v5983 = vunpack.c.l.b16 %v5612
    %v5984 = vunpack.c.h.b16 %v5612
    %v5985 = vunpack.c.l.b16 %v5613
    %v5986 = vunpack.c.h.b16 %v5613
    %v5987 = vunpack.c.l.b16 %v5614
    %v5988 = vunpack.c.h.b16 %v5614
    %v5989 = vunpack.c.l.b16 %v5615
    %v5990 = vunpack.c.h.b16 %v5615
    %v5991 = vunpack.c.l.b16 %v5616
    %v5992 = vunpack.c.h.b16 %v5616
    %v5993 = vunpack.c.l.b16 %v5617
    %v5994 = vunpack.c.h.b16 %v5617
    %v5995 = vunpack.c.l.b16 %v5618
    %v5996 = vunpack.c.h.b16 %v5618
    %v5997 = vunpack.c.l.b16 %v5619
    %v5998 = vunpack.c.h.b16 %v5619
    %v5999 = vunpack.c.l.b16 %v5620
    %v6000 = vunpack.c.h.b16 %v5620
    %v6001 = vunpack.c.l.b16 %v5621
    %v6002 = vunpack.c.h.b16 %v5621
    %v6003 = vunpack.c.l.b16 %v5622
    %v6004 = vunpack.c.h.b16 %v5622
    %v6005 = vunpack.c.l.b16 %v5623
    %v6006 = vunpack.c.h.b16 %v5623
    %v6007 = vunpack.c.l.b16 %v5624
    %v6008 = vunpack.c.h.b16 %v5624
    %v6009 = vunpack.c.l.b16 %v5625
    %v6010 = vunpack.c.h.b16 %v5625
    %v6011 = vunpack.c.l.b16 %v5626
    %v6012 = vunpack.c.h.b16 %v5626
    %v6013 = vunpack.c.l.b16 %v5627
    %v6014 = vunpack.c.h.b16 %v5627
    %v6015 = vunpack.c.l.b16 %v5628
    %v6016 = vunpack.c.h.b16 %v5628
    %v6017 = vunpack.c.l.b16 %v5629
    %v6018 = vunpack.c.h.b16 %v5629
    %v6019 = vunpack.c.l.b16 %v5630
    %v6020 = vunpack.c.h.b16 %v5630
    %v6021 = vunpack.c.l.b16 %v5631
    %v6022 = vunpack.c.h.b16 %v5631
    %v6023 = vunpack.c.l.b16 %v5632
    %v6024 = vunpack.c.h.b16 %v5632
    %v6025 = vunpack.c.l.b16 %v5633
    %v6026 = vunpack.c.h.b16 %v5633
    %v6027 = vunpack.c.l.b16 %v5634
    %v6028 = vunpack.c.h.b16 %v5634
    %v6029 = vunpack.c.l.b16 %v5635
    %v6030 = vunpack.c.h.b16 %v5635
    %v6031 = vunpack.c.l.b16 %v5636
    %v6032 = vunpack.c.h.b16 %v5636
    %v6033 = vpack.c.b16 %v5779, %v5777
    %v6034 = vpack.c.b16 %v5780, %v5778
    %v6035 = vpack.c.b16 %v5783, %v5781
    %v6036 = vpack.c.b16 %v5784, %v5782
    %v6037 = vpack.c.b16 %v5787, %v5785
    %v6038 = vpack.c.b16 %v5788, %v5786
    %v6039 = vpack.c.b16 %v5791, %v5789
    %v6040 = vpack.c.b16 %v5792, %v5790
    %v6041 = vpack.c.b16 %v5795, %v5793
    %v6042 = vpack.c.b16 %v5796, %v5794
    %v6043 = vpack.c.b16 %v5799, %v5797
    %v6044 = vpack.c.b16 %v5800, %v5798
    %v6045 = vpack.c.b16 %v5803, %v5801
    %v6046 = vpack.c.b16 %v5804, %v5802
    %v6047 = vpack.c.b16 %v5807, %v5805
    %v6048 = vpack.c.b16 %v5808, %v5806
    %v6049 = vpack.c.b16 %v5811, %v5809
    %v6050 = vpack.c.b16 %v5812, %v5810
    %v6051 = vpack.c.b16 %v5815, %v5813
    %v6052 = vpack.c.b16 %v5816, %v5814
    %v6053 = vpack.c.b16 %v5819, %v5817
    %v6054 = vpack.c.b16 %v5820, %v5818
    %v6055 = vpack.c.b16 %v5823, %v5821
    %v6056 = vpack.c.b16 %v5824, %v5822
    %v6057 = vpack.c.b16 %v5827, %v5825
    %v6058 = vpack.c.b16 %v5828, %v5826
    %v6059 = vpack.c.b16 %v5831, %v5829
    %v6060 = vpack.c.b16 %v5832, %v5830
    %v6061 = vpack.c.b16 %v5835, %v5833
    %v6062 = vpack.c.b16 %v5836, %v5834
    %v6063 = vpack.c.b16 %v5839, %v5837
    %v6064 = vpack.c.b16 %v5840, %v5838
    %v6065 = vpack.c.b16 %v5843, %v5841
    %v6066 = vpack.c.b16 %v5844, %v5842
    %v6067 = vpack.c.b16 %v5847, %v5845
    %v6068 = vpack.c.b16 %v5848, %v5846
    %v6069 = vpack.c.b16 %v5851, %v5849
    %v6070 = vpack.c.b16 %v5852, %v5850
    %v6071 = vpack.c.b16 %v5855, %v5853
    %v6072 = vpack.c.b16 %v5856, %v5854
    %v6073 = vpack.c.b16 %v5859, %v5857
    %v6074 = vpack.c.b16 %v5860, %v5858
    %v6075 = vpack.c.b16 %v5863, %v5861
    %v6076 = vpack.c.b16 %v5864, %v5862
    %v6077 = vpack.c.b16 %v5867, %v5865
    %v6078 = vpack.c.b16 %v5868, %v5866
    %v6079 = vpack.c.b16 %v5871, %v5869
    %v6080 = vpack.c.b16 %v5872, %v5870
    %v6081 = vpack.c.b16 %v5875, %v5873
    %v6082 = vpack.c.b16 %v5876, %v5874
    %v6083 = vpack.c.b16 %v5879, %v5877
    %v6084 = vpack.c.b16 %v5880, %v5878
    %v6085 = vpack.c.b16 %v5883, %v5881
    %v6086 = vpack.c.b16 %v5884, %v5882
    %v6087 = vpack.c.b16 %v5887, %v5885
    %v6088 = vpack.c.b16 %v5888, %v5886
    %v6089 = vpack.c.b16 %v5891, %v5889
    %v6090 = vpack.c.b16 %v5892, %v5890
    %v6091 = vpack.c.b16 %v5895, %v5893
    %v6092 = vpack.c.b16 %v5896, %v5894
    %v6093 = vpack.c.b16 %v5899, %v5897
    %v6094 = vpack.c.b16 %v5900, %v5898
    %v6095 = vpack.c.b16 %v5903, %v5901
    %v6096 = vpack.c.b16 %v5904, %v5902
    %v6097 = vpack.c.b16 %v5907, %v5905
    %v6098 = vpack.c.b16 %v5908, %v5906
    %v6099 = vpack.c.b16 %v5911, %v5909
    %v6100 = vpack.c.b16 %v5912, %v5910
    %v6101 = vpack.c.b16 %v5915, %v5913
    %v6102 = vpack.c.b16 %v5916, %v5914
    %v6103 = vpack.c.b16 %v5919, %v5917
    %v6104 = vpack.c.b16 %v5920, %v5918
    %v6105 = vpack.c.b16 %v5923, %v5921
    %v6106 = vpack.c.b16 %v5924, %v5922
    %v6107 = vpack.c.b16 %v5927, %v5925
    %v6108 = vpack.c.b16 %v5928, %v5926
    %v6109 = vpack.c.b16 %v5931, %v5929
    %v6110 = vpack.c.b16 %v5932, %v5930
    %v6111 = vpack.c.b16 %v5935, %v5933
    %v6112 = vpack.c.b16 %v5936, %v5934
    %v6113 = vpack.c.b16 %v5939, %v5937
    %v6114 = vpack.c.b16 %v5940, %v5938
    %v6115 = vpack.c.b16 %v5943, %v5941
    %v6116 = vpack.c.b16 %v5944, %v5942
    %v6117 = vpack.c.b16 %v5947, %v5945
    %v6118 = vpack.c.b16 %v5948, %v5946
    %v6119 = vpack.c.b16 %v5951, %v5949
    %v6120 = vpack.c.b16 %v5952, %v5950
    %v6121 = vpack.c.b16 %v5955, %v5953
    %v6122 = vpack.c.b16 %v5956, %v5954
    %v6123 = vpack.c.b16 %v5959, %v5957
    %v6124 = vpack.c.b16 %v5960, %v5958
    %v6125 = vpack.c.b16 %v5963, %v5961
    %v6126 = vpack.c.b16 %v5964, %v5962
    %v6127 = vpack.c.b16 %v5967, %v5965
    %v6128 = vpack.c.b16 %v5968, %v5966
    %v6129 = vpack.c.b16 %v5971, %v5969
    %v6130 = vpack.c.b16 %v5972, %v5970
    %v6131 = vpack.c.b16 %v5975, %v5973
    %v6132 = vpack.c.b16 %v5976, %v5974
    %v6133 = vpack.c.b16 %v5979, %v5977
    %v6134 = vpack.c.b16 %v5980, %v5978
    %v6135 = vpack.c.b16 %v5983, %v5981
    %v6136 = vpack.c.b16 %v5984, %v5982
    %v6137 = vpack.c.b16 %v5987, %v5985
    %v6138 = vpack.c.b16 %v5988, %v5986
    %v6139 = vpack.c.b16 %v5991, %v5989
    %v6140 = vpack.c.b16 %v5992, %v5990
    %v6141 = vpack.c.b16 %v5995, %v5993
    %v6142 = vpack.c.b16 %v5996, %v5994
    %v6143 = vpack.c.b16 %v5999, %v5997
    %v6144 = vpack.c.b16 %v6000, %v5998
    %v6145 = vpack.c.b16 %v6003, %v6001
    %v6146 = vpack.c.b16 %v6004, %v6002
    %v6147 = vpack.c.b16 %v6007, %v6005
    %v6148 = vpack.c.b16 %v6008, %v6006
    %v6149 = vpack.c.b16 %v6011, %v6009
    %v6150 = vpack.c.b16 %v6012, %v6010
    %v6151 = vpack.c.b16 %v6015, %v6013
    %v6152 = vpack.c.b16 %v6016, %v6014
    %v6153 = vpack.c.b16 %v6019, %v6017
    %v6154 = vpack.c.b16 %v6020, %v6018
    %v6155 = vpack.c.b16 %v6023, %v6021
    %v6156 = vpack.c.b16 %v6024, %v6022
    %v6157 = vpack.c.b16 %v6027, %v6025
    %v6158 = vpack.c.b16 %v6028, %v6026
    %v6159 = vpack.c.b16 %v6031, %v6029
    %v6160 = vpack.c.b16 %v6032, %v6030
    %6289 = vmatprep.subr.bf16.mxu0 %v6034
    %6290 = vmatpush1.bf16.msra.mxu0 %v6033
    %6291 = vmatprep.subr.bf16.mxu0 %v6036
    %6292 = vmatpush1.bf16.msra.mxu0 %v6035
    %6293 = vmatprep.subr.bf16.mxu0 %v6038
    %6294 = vmatpush1.bf16.msra.mxu0 %v6037
    %6295 = vmatprep.subr.bf16.mxu0 %v6040
    %6296 = vmatpush1.bf16.msra.mxu0 %v6039
    %6297 = vmatprep.subr.bf16.mxu0 %v6042
    %6298 = vmatpush1.bf16.msra.mxu0 %v6041
    %6299 = vmatprep.subr.bf16.mxu0 %v6044
    %6300 = vmatpush1.bf16.msra.mxu0 %v6043
    %6301 = vmatprep.subr.bf16.mxu0 %v6046
    %6302 = vmatpush1.bf16.msra.mxu0 %v6045
    %6303 = vmatprep.subr.bf16.mxu0 %v6048
    %6304 = vmatpush1.bf16.msra.mxu0 %v6047
    %6305 = vmatprep.subr.bf16.mxu0 %v6050
    %6306 = vmatpush1.bf16.msra.mxu0 %v6049
    %6307 = vmatprep.subr.bf16.mxu0 %v6052
    %6308 = vmatpush1.bf16.msra.mxu0 %v6051
    %6309 = vmatprep.subr.bf16.mxu0 %v6054
    %6310 = vmatpush1.bf16.msra.mxu0 %v6053
    %6311 = vmatprep.subr.bf16.mxu0 %v6056
    %6312 = vmatpush1.bf16.msra.mxu0 %v6055
    %6313 = vmatprep.subr.bf16.mxu0 %v6058
    %6314 = vmatpush1.bf16.msra.mxu0 %v6057
    %6315 = vmatprep.subr.bf16.mxu0 %v6060
    %6316 = vmatpush1.bf16.msra.mxu0 %v6059
    %6317 = vmatprep.subr.bf16.mxu0 %v6062
    %6318 = vmatpush1.bf16.msra.mxu0 %v6061
    %6319 = vmatprep.subr.bf16.mxu0 %v6064
    %6320 = vmatpush1.bf16.msra.mxu0 %v6063
    %6321 = vmatprep.mubr.bf16.mxu0 %v5502
    %6322 = vmatmul.mubr.bf16.gmra.mrb[0].mxu0 %v5501
    %v6323 = vpop.f32.mrb[0].mxu0
    %v6324 = vadd.f32 %v5642, %v6323
    %v6325 = vpop.f32.mrb[0].mxu0
    %v6326 = vadd.f32 %v5646, %v6325
    %v6327 = vpop.f32.mrb[0].mxu0
    %v6328 = vpop.f32.mrb[0].mxu0
    %6329 = vdwg.mxu0
    %6330 = vmatprep.subr.bf16.mxu0 %v6066
    %6331 = vmatpush1.bf16.msra.mxu0 %v6065
    %6332 = vmatprep.subr.bf16.mxu0 %v6068
    %6333 = vmatpush1.bf16.msra.mxu0 %v6067
    %6334 = vmatprep.subr.bf16.mxu0 %v6070
    %6335 = vmatpush1.bf16.msra.mxu0 %v6069
    %6336 = vmatprep.subr.bf16.mxu0 %v6072
    %6337 = vmatpush1.bf16.msra.mxu0 %v6071
    %6338 = vmatprep.subr.bf16.mxu0 %v6074
    %6339 = vmatpush1.bf16.msra.mxu0 %v6073
    %6340 = vmatprep.subr.bf16.mxu0 %v6076
    %6341 = vmatpush1.bf16.msra.mxu0 %v6075
    %6342 = vmatprep.subr.bf16.mxu0 %v6078
    %6343 = vmatpush1.bf16.msra.mxu0 %v6077
    %6344 = vmatprep.subr.bf16.mxu0 %v6080
    %6345 = vmatpush1.bf16.msra.mxu0 %v6079
    %6346 = vmatprep.subr.bf16.mxu0 %v6082
    %6347 = vmatpush1.bf16.msra.mxu0 %v6081
    %6348 = vmatprep.subr.bf16.mxu0 %v6084
    %6349 = vmatpush1.bf16.msra.mxu0 %v6083
    %6350 = vmatprep.subr.bf16.mxu0 %v6086
    %6351 = vmatpush1.bf16.msra.mxu0 %v6085
    %6352 = vmatprep.subr.bf16.mxu0 %v6088
    %6353 = vmatpush1.bf16.msra.mxu0 %v6087
    %6354 = vmatprep.subr.bf16.mxu0 %v6090
    %6355 = vmatpush1.bf16.msra.mxu0 %v6089
    %6356 = vmatprep.subr.bf16.mxu0 %v6092
    %6357 = vmatpush1.bf16.msra.mxu0 %v6091
    %6358 = vmatprep.subr.bf16.mxu0 %v6094
    %6359 = vmatpush1.bf16.msra.mxu0 %v6093
    %6360 = vmatprep.subr.bf16.mxu0 %v6096
    %6361 = vmatpush1.bf16.msra.mxu0 %v6095
    %6362 = vmatprep.mubr.bf16.mxu0 %v5504
    %6363 = vmatmul.mubr.bf16.gmra.mrb[0].mxu0 %v5503
    %v6364 = vpop.f32.mrb[0].mxu0
    %v6365 = vadd.f32 %v6324, %v6364
    %v6366 = vpop.f32.mrb[0].mxu0
    %v6367 = vadd.f32 %v6326, %v6366
    %v6368 = vpop.f32.mrb[0].mxu0
    %v6369 = vpop.f32.mrb[0].mxu0
    %6370 = vdwg.mxu0
    %6371 = vmatprep.subr.bf16.mxu0 %v6098
    %6372 = vmatpush1.bf16.msra.mxu0 %v6097
    %6373 = vmatprep.subr.bf16.mxu0 %v6100
    %6374 = vmatpush1.bf16.msra.mxu0 %v6099
    %6375 = vmatprep.subr.bf16.mxu0 %v6102
    %6376 = vmatpush1.bf16.msra.mxu0 %v6101
    %6377 = vmatprep.subr.bf16.mxu0 %v6104
    %6378 = vmatpush1.bf16.msra.mxu0 %v6103
    %6379 = vmatprep.subr.bf16.mxu0 %v6106
    %6380 = vmatpush1.bf16.msra.mxu0 %v6105
    %6381 = vmatprep.subr.bf16.mxu0 %v6108
    %6382 = vmatpush1.bf16.msra.mxu0 %v6107
    %6383 = vmatprep.subr.bf16.mxu0 %v6110
    %6384 = vmatpush1.bf16.msra.mxu0 %v6109
    %6385 = vmatprep.subr.bf16.mxu0 %v6112
    %6386 = vmatpush1.bf16.msra.mxu0 %v6111
    %6387 = vmatprep.subr.bf16.mxu0 %v6114
    %6388 = vmatpush1.bf16.msra.mxu0 %v6113
    %6389 = vmatprep.subr.bf16.mxu0 %v6116
    %6390 = vmatpush1.bf16.msra.mxu0 %v6115
    %6391 = vmatprep.subr.bf16.mxu0 %v6118
    %6392 = vmatpush1.bf16.msra.mxu0 %v6117
    %6393 = vmatprep.subr.bf16.mxu0 %v6120
    %6394 = vmatpush1.bf16.msra.mxu0 %v6119
    %6395 = vmatprep.subr.bf16.mxu0 %v6122
    %6396 = vmatpush1.bf16.msra.mxu0 %v6121
    %6397 = vmatprep.subr.bf16.mxu0 %v6124
    %6398 = vmatpush1.bf16.msra.mxu0 %v6123
    %6399 = vmatprep.subr.bf16.mxu0 %v6126
    %6400 = vmatpush1.bf16.msra.mxu0 %v6125
    %6401 = vmatprep.subr.bf16.mxu0 %v6128
    %6402 = vmatpush1.bf16.msra.mxu0 %v6127
    %6403 = vmatprep.mubr.bf16.mxu0 %v5506
    %6404 = vmatmul.mubr.bf16.gmra.mrb[0].mxu0 %v5505
    %v6405 = vpop.f32.mrb[0].mxu0
    %v6406 = vadd.f32 %v6365, %v6405
    %v6407 = vpop.f32.mrb[0].mxu0
    %v6408 = vadd.f32 %v6367, %v6407
    %v6409 = vpop.f32.mrb[0].mxu0
    %v6410 = vpop.f32.mrb[0].mxu0
    %6411 = vdwg.mxu0
    %6412 = vmatprep.subr.bf16.mxu0 %v6130
    %6413 = vmatpush1.bf16.msra.mxu0 %v6129
    %6414 = vmatprep.subr.bf16.mxu0 %v6132
    %6415 = vmatpush1.bf16.msra.mxu0 %v6131
    %6416 = vmatprep.subr.bf16.mxu0 %v6134
    %6417 = vmatpush1.bf16.msra.mxu0 %v6133
    %6418 = vmatprep.subr.bf16.mxu0 %v6136
    %6419 = vmatpush1.bf16.msra.mxu0 %v6135
    %6420 = vmatprep.subr.bf16.mxu0 %v6138
    %6421 = vmatpush1.bf16.msra.mxu0 %v6137
    %6422 = vmatprep.subr.bf16.mxu0 %v6140
    %6423 = vmatpush1.bf16.msra.mxu0 %v6139
    %6424 = vmatprep.subr.bf16.mxu0 %v6142
    %6425 = vmatpush1.bf16.msra.mxu0 %v6141
    %6426 = vmatprep.subr.bf16.mxu0 %v6144
    %6427 = vmatpush1.bf16.msra.mxu0 %v6143
    %6428 = vmatprep.subr.bf16.mxu0 %v6146
    %6429 = vmatpush1.bf16.msra.mxu0 %v6145
    %6430 = vmatprep.subr.bf16.mxu0 %v6148
    %6431 = vmatpush1.bf16.msra.mxu0 %v6147
    %6432 = vmatprep.subr.bf16.mxu0 %v6150
    %6433 = vmatpush1.bf16.msra.mxu0 %v6149
    %6434 = vmatprep.subr.bf16.mxu0 %v6152
    %6435 = vmatpush1.bf16.msra.mxu0 %v6151
    %6436 = vmatprep.subr.bf16.mxu0 %v6154
    %6437 = vmatpush1.bf16.msra.mxu0 %v6153
    %6438 = vmatprep.subr.bf16.mxu0 %v6156
    %6439 = vmatpush1.bf16.msra.mxu0 %v6155
    %6440 = vmatprep.subr.bf16.mxu0 %v6158
    %6441 = vmatpush1.bf16.msra.mxu0 %v6157
    %6442 = vmatprep.subr.bf16.mxu0 %v6160
    %6443 = vmatpush1.bf16.msra.mxu0 %v6159
    %6444 = vmatprep.mubr.bf16.mxu0 %v5508
    %6445 = vmatmul.mubr.bf16.gmra.mrb[0].mxu0 %v5507
    %v6446 = vpop.f32.mrb[0].mxu0
    %v6447 = vadd.f32 %v6406, %v6446
    %v6448 = vpop.f32.mrb[0].mxu0
    %v6449 = vadd.f32 %v6408, %v6448
    %v6450 = vpop.f32.mrb[0].mxu0
    %v6451 = vpop.f32.mrb[0].mxu0
    %6452 = vdwg.mxu0
    %6453 = vst [vmem:[#allocation2] sm:$0xff] %v6447
    %6454 = vst [vmem:[#allocation2 + $0x8] sm:$0xff] %v6449
    // Predicated region
    $region54: #{autoencoder_forward.1} parent=1 // pred_check
      _
    $region55: #{autoencoder_forward.1} parent=1 // pred_check_branch
      %6456 = sbr.rel (0) target = $region57
    $region56: #{autoencoder_forward.1} parent=1 // pred_region
      %s6458 = ssub.s32 256, 256
      %6459 = vsyncadd [#allocation3], %s6458
      %s6461 = sshll.u32 [#allocation2], 4
      %s6462 = int_to_ptr.vmem [resolvable:$true] %s6461
      %6464 = dma.vmem_to_hbm [thread:$0]  %s6462, 256, %s13, [#allocation3]
    $region57: #{autoencoder_forward.1} parent=1 // pred_fallthru
      _
    // Predicated region
    $region58: #{autoencoder_forward.1} parent=1 // pred_check
      _
    $region59: #{autoencoder_forward.1} parent=1 // pred_check_branch
      %6466 = sbr.rel (0) target = $region61
    $region60: #{autoencoder_forward.1} parent=1 // pred_region
      %s6468 = ssub.s32 128, 128
      %6469 = vsyncadd [#allocation5], %s6468
      %s6471 = sshll.u32 [#allocation4], 4
      %s6472 = int_to_ptr.vmem [resolvable:$true] %s6471
      %6474 = dma.vmem_to_hbm [thread:$0]  %s6472, 128, %s14, [#allocation5]
    $region61: #{autoencoder_forward.1} parent=1 // pred_fallthru
      _
    // Predicated region
    $region62: #{autoencoder_forward.1} parent=1 // pred_check
      _
    $region63: #{autoencoder_forward.1} parent=1 // pred_check_branch
      %6476 = sbr.rel (0) target = $region65
    $region64: #{autoencoder_forward.1} parent=1 // pred_region
      %6477 = dma.done [#allocation3], 256
    $region65: #{autoencoder_forward.1} parent=1 // pred_fallthru
      _
    // Predicated region
    $region66: #{autoencoder_forward.1} parent=1 // pred_check
      _
    $region67: #{autoencoder_forward.1} parent=1 // pred_check_branch
      %6479 = sbr.rel (0) target = $region69
    $region68: #{autoencoder_forward.1} parent=1 // pred_region
      %6480 = dma.done [#allocation5], 128
    $region69: #{autoencoder_forward.1} parent=1 // pred_fallthru
      _
    %6481 = vsyncpa [#allocation3], 1
    %6482 = vsyncpa [#allocation5], 1

// kernel: autoencoder_forward.1
$region0: #{autoencoder_forward.1}
  #allocation0 [shape = 'u32[]', space=smem, size = 0x4, offset = 0x4, fixed_abs, tag = 'smem constant byte address 0x4 - core index']
  #allocation1 [shape = 'u32[144,128]{1,0:T(1,128)}', space=vmem, size = 0x12000, scoped, tag = 'internal scratch']
  %s0 = inlined_call_operand.vmem [shape: f32[8,256], index: 0, kind: input, shape index: {}]
  %s1 = inlined_call_operand.vmem [shape: bf16[256,1024], index: 1, kind: input, shape index: {}]
  %s2 = inlined_call_operand.vmem [shape: f32[1,1024], index: 2, kind: input, shape index: {}]
  %s3 = inlined_call_operand.vmem [shape: bf16[1024,512], index: 3, kind: input, shape index: {}]
  %s4 = inlined_call_operand.vmem [shape: f32[1,512], index: 4, kind: input, shape index: {}]
  %s5 = inlined_call_operand.vmem [shape: bf16[512,128], index: 5, kind: input, shape index: {}]
  %s6 = inlined_call_operand.vmem [shape: f32[1,128], index: 6, kind: input, shape index: {}]
  %s7 = inlined_call_operand.vmem [shape: bf16[128,512], index: 7, kind: input, shape index: {}]
  %s8 = inlined_call_operand.vmem [shape: f32[1,512], index: 8, kind: input, shape index: {}]
  %s9 = inlined_call_operand.vmem [shape: bf16[512,1024], index: 9, kind: input, shape index: {}]
  %s10 = inlined_call_operand.vmem [shape: f32[1,1024], index: 10, kind: input, shape index: {}]
  %s11 = inlined_call_operand.vmem [shape: bf16[1024,256], index: 11, kind: input, shape index: {}]
  %s12 = inlined_call_operand.vmem [shape: f32[1,256], index: 12, kind: input, shape index: {}]
  %s13 = inlined_call_operand.hbm [shape: f32[8,256], index: 13, kind: output, shape index: {0}]
  %s14 = inlined_call_operand.hbm [shape: f32[8,128], index: 14, kind: output, shape index: {1}]
  %15 = xla_tuple %s13, %s14
  %s16 = sld [smem:[#allocation0]]
  $region70: #{autoencoder_forward.1} parent=0
    _
  %s18 = ssub.s32 1, %s16
  %s19 = scalar_select 0, %s18, %s16
  $region1: #{autoencoder_forward.1} parent=0
    #allocation2 [shape = 'u8[8192]{0}', space=vmem, size = 0x2000, scoped, tag = 'output window, operand 0, single buffered']
    #allocation3 [shape = 's32[1]{0}', space=sflag, size = 0x4, scoped, tag = 'scoped memory for autoencoder_forward.1']
    #allocation4 [shape = 'u8[4096]{0}', space=vmem, size = 0x1000, scoped, tag = 'output window, operand 1, single buffered']
    #allocation5 [shape = 's32[1]{0}', space=sflag, size = 0x4, scoped, tag = 'scoped memory for autoencoder_forward.1']
    %20 = vsyncpa [#allocation3], 0
    %21 = vsyncpa [#allocation5], 0
    // Predicated region
    $region2: #{autoencoder_forward.1} parent=1 // pred_check
      _
    $region3: #{autoencoder_forward.1} parent=1 // pred_check_branch
      %23 = sbr.rel (0) target = $region5
    $region4: #{autoencoder_forward.1} parent=1 // pred_region
      _
    $region5: #{autoencoder_forward.1} parent=1 // pred_fallthru
      _
    // Predicated region
    $region6: #{autoencoder_forward.1} parent=1 // pred_check
      _
    $region7: #{autoencoder_forward.1} parent=1 // pred_check_branch
      %25 = sbr.rel (0) target = $region9
    $region8: #{autoencoder_forward.1} parent=1 // pred_region
      _
    $region9: #{autoencoder_forward.1} parent=1 // pred_fallthru
      _
    // Predicated region
    $region10: #{autoencoder_forward.1} parent=1 // pred_check
      _
    $region11: #{autoencoder_forward.1} parent=1 // pred_check_branch
      %27 = sbr.rel (0) target = $region13
    $region12: #{autoencoder_forward.1} parent=1 // pred_region
      _
    $region13: #{autoencoder_forward.1} parent=1 // pred_fallthru
      _
    // Predicated region
    $region14: #{autoencoder_forward.1} parent=1 // pred_check
      _
    $region15: #{autoencoder_forward.1} parent=1 // pred_check_branch
      %29 = sbr.rel (0) target = $region17
    $region16: #{autoencoder_forward.1} parent=1 // pred_region
      _
    $region17: #{autoencoder_forward.1} parent=1 // pred_fallthru
      _
    // Predicated region
    $region18: #{autoencoder_forward.1} parent=1 // pred_check
      _
    $region19: #{autoencoder_forward.1} parent=1 // pred_check_branch
      %31 = sbr.rel (0) target = $region21
    $region20: #{autoencoder_forward.1} parent=1 // pred_region
      _
    $region21: #{autoencoder_forward.1} parent=1 // pred_fallthru
      _
    // Predicated region
    $region22: #{autoencoder_forward.1} parent=1 // pred_check
      _
    $region23: #{autoencoder_forward.1} parent=1 // pred_check_branch
      %33 = sbr.rel (0) target = $region25
    $region24: #{autoencoder_forward.1} parent=1 // pred_region
      _
    $region25: #{autoencoder_forward.1} parent=1 // pred_fallthru
      _
    // Predicated region
    $region26: #{autoencoder_forward.1} parent=1 // pred_check
      _
    $region27: #{autoencoder_forward.1} parent=1 // pred_check_branch
      %35 = sbr.rel (0) target = $region29
    $region28: #{autoencoder_forward.1} parent=1 // pred_region
      _
    $region29: #{autoencoder_forward.1} parent=1 // pred_fallthru
      _
    // Predicated region
    $region30: #{autoencoder_forward.1} parent=1 // pred_check
      _
    $region31: #{autoencoder_forward.1} parent=1 // pred_check_branch
      %37 = sbr.rel (0) target = $region33
    $region32: #{autoencoder_forward.1} parent=1 // pred_region
      _
    $region33: #{autoencoder_forward.1} parent=1 // pred_fallthru
      _
    // Predicated region
    $region34: #{autoencoder_forward.1} parent=1 // pred_check
      _
    $region35: #{autoencoder_forward.1} parent=1 // pred_check_branch
      %39 = sbr.rel (0) target = $region37
    $region36: #{autoencoder_forward.1} parent=1 // pred_region
      _
    $region37: #{autoencoder_forward.1} parent=1 // pred_fallthru
      _
    // Predicated region
    $region38: #{autoencoder_forward.1} parent=1 // pred_check
      _
    $region39: #{autoencoder_forward.1} parent=1 // pred_check_branch
      %41 = sbr.rel (0) target = $region41
    $region40: #{autoencoder_forward.1} parent=1 // pred_region
      _
    $region41: #{autoencoder_forward.1} parent=1 // pred_fallthru
      _
    // Predicated region
    $region42: #{autoencoder_forward.1} parent=1 // pred_check
      _
    $region43: #{autoencoder_forward.1} parent=1 // pred_check_branch
      %43 = sbr.rel (0) target = $region45
    $region44: #{autoencoder_forward.1} parent=1 // pred_region
      _
    $region45: #{autoencoder_forward.1} parent=1 // pred_fallthru
      _
    // Predicated region
    $region46: #{autoencoder_forward.1} parent=1 // pred_check
      _
    $region47: #{autoencoder_forward.1} parent=1 // pred_check_branch
      %45 = sbr.rel (0) target = $region49
    $region48: #{autoencoder_forward.1} parent=1 // pred_region
      _
    $region49: #{autoencoder_forward.1} parent=1 // pred_fallthru
      _
    // Predicated region
    $region50: #{autoencoder_forward.1} parent=1 // pred_check
      _
    $region51: #{autoencoder_forward.1} parent=1 // pred_check_branch
      %47 = sbr.rel (0) target = $region53
    $region52: #{autoencoder_forward.1} parent=1 // pred_region
      _
    $region53: #{autoencoder_forward.1} parent=1 // pred_fallthru
      _
    %v49 = vld [vmem:[%s0] sm:$0xff]
    %v50 = vld [vmem:[%s0 + $0x8] sm:$0xff]
    %v51 = vpack.c.bf16 %v49, %v49
    %v52 = vpack.c.bf16 %v50, %v50
    %v53 = vld [vmem:[%s1] sm:$0xff]
    %v54 = vld [vmem:[%s1 + $0x8] sm:$0xff]
    %v55 = vld [vmem:[%s1 + $0x10] sm:$0xff]
    %v56 = vld [vmem:[%s1 + $0x18] sm:$0xff]
    %v57 = vld [vmem:[%s1 + $0x20] sm:$0xff]
    %v58 = vld [vmem:[%s1 + $0x28] sm:$0xff]
    %v59 = vld [vmem:[%s1 + $0x30] sm:$0xff]
    %v60 = vld [vmem:[%s1 + $0x38] sm:$0xff]
    %v61 = vld [vmem:[%s1 + $0x40] sm:$0xff]
    %v62 = vld [vmem:[%s1 + $0x48] sm:$0xff]
    %v63 = vld [vmem:[%s1 + $0x50] sm:$0xff]
    %v64 = vld [vmem:[%s1 + $0x58] sm:$0xff]
    %v65 = vld [vmem:[%s1 + $0x60] sm:$0xff]
    %v66 = vld [vmem:[%s1 + $0x68] sm:$0xff]
    %v67 = vld [vmem:[%s1 + $0x70] sm:$0xff]
    %v68 = vld [vmem:[%s1 + $0x78] sm:$0xff]
    %v69 = vld [vmem:[%s1 + $0x80] sm:$0xff]
    %v70 = vld [vmem:[%s1 + $0x88] sm:$0xff]
    %v71 = vld [vmem:[%s1 + $0x90] sm:$0xff]
    %v72 = vld [vmem:[%s1 + $0x98] sm:$0xff]
    %v73 = vld [vmem:[%s1 + $0xa0] sm:$0xff]
    %v74 = vld [vmem:[%s1 + $0xa8] sm:$0xff]
    %v75 = vld [vmem:[%s1 + $0xb0] sm:$0xff]
    %v76 = vld [vmem:[%s1 + $0xb8] sm:$0xff]
    %v77 = vld [vmem:[%s1 + $0xc0] sm:$0xff]
    %v78 = vld [vmem:[%s1 + $0xc8] sm:$0xff]
    %v79 = vld [vmem:[%s1 + $0xd0] sm:$0xff]
    %v80 = vld [vmem:[%s1 + $0xd8] sm:$0xff]
    %v81 = vld [vmem:[%s1 + $0xe0] sm:$0xff]
    %v82 = vld [vmem:[%s1 + $0xe8] sm:$0xff]
    %v83 = vld [vmem:[%s1 + $0xf0] sm:$0xff]
    %v84 = vld [vmem:[%s1 + $0xf8] sm:$0xff]
    %v85 = vld [vmem:[%s1 + $0x100] sm:$0xff]
    %v86 = vld [vmem:[%s1 + $0x108] sm:$0xff]
    %v87 = vld [vmem:[%s1 + $0x110] sm:$0xff]
    %v88 = vld [vmem:[%s1 + $0x118] sm:$0xff]
    %v89 = vld [vmem:[%s1 + $0x120] sm:$0xff]
    %v90 = vld [vmem:[%s1 + $0x128] sm:$0xff]
    %v91 = vld [vmem:[%s1 + $0x130] sm:$0xff]
    %v92 = vld [vmem:[%s1 + $0x138] sm:$0xff]
    %v93 = vld [vmem:[%s1 + $0x140] sm:$0xff]
    %v94 = vld [vmem:[%s1 + $0x148] sm:$0xff]
    %v95 = vld [vmem:[%s1 + $0x150] sm:$0xff]
    %v96 = vld [vmem:[%s1 + $0x158] sm:$0xff]
    %v97 = vld [vmem:[%s1 + $0x160] sm:$0xff]
    %v98 = vld [vmem:[%s1 + $0x168] sm:$0xff]
    %v99 = vld [vmem:[%s1 + $0x170] sm:$0xff]
    %v100 = vld [vmem:[%s1 + $0x178] sm:$0xff]
    %v101 = vld [vmem:[%s1 + $0x180] sm:$0xff]
    %v102 = vld [vmem:[%s1 + $0x188] sm:$0xff]
    %v103 = vld [vmem:[%s1 + $0x190] sm:$0xff]
    %v104 = vld [vmem:[%s1 + $0x198] sm:$0xff]
    %v105 = vld [vmem:[%s1 + $0x1a0] sm:$0xff]
    %v106 = vld [vmem:[%s1 + $0x1a8] sm:$0xff]
    %v107 = vld [vmem:[%s1 + $0x1b0] sm:$0xff]
    %v108 = vld [vmem:[%s1 + $0x1b8] sm:$0xff]
    %v109 = vld [vmem:[%s1 + $0x1c0] sm:$0xff]
    %v110 = vld [vmem:[%s1 + $0x1c8] sm:$0xff]
    %v111 = vld [vmem:[%s1 + $0x1d0] sm:$0xff]
    %v112 = vld [vmem:[%s1 + $0x1d8] sm:$0xff]
    %v113 = vld [vmem:[%s1 + $0x1e0] sm:$0xff]
    %v114 = vld [vmem:[%s1 + $0x1e8] sm:$0xff]
    %v115 = vld [vmem:[%s1 + $0x1f0] sm:$0xff]
    %v116 = vld [vmem:[%s1 + $0x1f8] sm:$0xff]
    %v117 = vld [vmem:[%s1 + $0x200] sm:$0xff]
    %v118 = vld [vmem:[%s1 + $0x208] sm:$0xff]
    %v119 = vld [vmem:[%s1 + $0x210] sm:$0xff]
    %v120 = vld [vmem:[%s1 + $0x218] sm:$0xff]
    %v121 = vld [vmem:[%s1 + $0x220] sm:$0xff]
    %v122 = vld [vmem:[%s1 + $0x228] sm:$0xff]
    %v123 = vld [vmem:[%s1 + $0x230] sm:$0xff]
    %v124 = vld [vmem:[%s1 + $0x238] sm:$0xff]
    %v125 = vld [vmem:[%s1 + $0x240] sm:$0xff]
    %v126 = vld [vmem:[%s1 + $0x248] sm:$0xff]
    %v127 = vld [vmem:[%s1 + $0x250] sm:$0xff]
    %v128 = vld [vmem:[%s1 + $0x258] sm:$0xff]
    %v129 = vld [vmem:[%s1 + $0x260] sm:$0xff]
    %v130 = vld [vmem:[%s1 + $0x268] sm:$0xff]
    %v131 = vld [vmem:[%s1 + $0x270] sm:$0xff]
    %v132 = vld [vmem:[%s1 + $0x278] sm:$0xff]
    %v133 = vld [vmem:[%s1 + $0x280] sm:$0xff]
    %v134 = vld [vmem:[%s1 + $0x288] sm:$0xff]
    %v135 = vld [vmem:[%s1 + $0x290] sm:$0xff]
    %v136 = vld [vmem:[%s1 + $0x298] sm:$0xff]
    %v137 = vld [vmem:[%s1 + $0x2a0] sm:$0xff]
    %v138 = vld [vmem:[%s1 + $0x2a8] sm:$0xff]
    %v139 = vld [vmem:[%s1 + $0x2b0] sm:$0xff]
    %v140 = vld [vmem:[%s1 + $0x2b8] sm:$0xff]
    %v141 = vld [vmem:[%s1 + $0x2c0] sm:$0xff]
    %v142 = vld [vmem:[%s1 + $0x2c8] sm:$0xff]
    %v143 = vld [vmem:[%s1 + $0x2d0] sm:$0xff]
    %v144 = vld [vmem:[%s1 + $0x2d8] sm:$0xff]
    %v145 = vld [vmem:[%s1 + $0x2e0] sm:$0xff]
    %v146 = vld [vmem:[%s1 + $0x2e8] sm:$0xff]
    %v147 = vld [vmem:[%s1 + $0x2f0] sm:$0xff]
    %v148 = vld [vmem:[%s1 + $0x2f8] sm:$0xff]
    %v149 = vld [vmem:[%s1 + $0x300] sm:$0xff]
    %v150 = vld [vmem:[%s1 + $0x308] sm:$0xff]
    %v151 = vld [vmem:[%s1 + $0x310] sm:$0xff]
    %v152 = vld [vmem:[%s1 + $0x318] sm:$0xff]
    %v153 = vld [vmem:[%s1 + $0x320] sm:$0xff]
    %v154 = vld [vmem:[%s1 + $0x328] sm:$0xff]
    %v155 = vld [vmem:[%s1 + $0x330] sm:$0xff]
    %v156 = vld [vmem:[%s1 + $0x338] sm:$0xff]
    %v157 = vld [vmem:[%s1 + $0x340] sm:$0xff]
    %v158 = vld [vmem:[%s1 + $0x348] sm:$0xff]
    %v159 = vld [vmem:[%s1 + $0x350] sm:$0xff]
    %v160 = vld [vmem:[%s1 + $0x358] sm:$0xff]
    %v161 = vld [vmem:[%s1 + $0x360] sm:$0xff]
    %v162 = vld [vmem:[%s1 + $0x368] sm:$0xff]
    %v163 = vld [vmem:[%s1 + $0x370] sm:$0xff]
    %v164 = vld [vmem:[%s1 + $0x378] sm:$0xff]
    %v165 = vld [vmem:[%s1 + $0x380] sm:$0xff]
    %v166 = vld [vmem:[%s1 + $0x388] sm:$0xff]
    %v167 = vld [vmem:[%s1 + $0x390] sm:$0xff]
    %v168 = vld [vmem:[%s1 + $0x398] sm:$0xff]
    %v169 = vld [vmem:[%s1 + $0x3a0] sm:$0xff]
    %v170 = vld [vmem:[%s1 + $0x3a8] sm:$0xff]
    %v171 = vld [vmem:[%s1 + $0x3b0] sm:$0xff]
    %v172 = vld [vmem:[%s1 + $0x3b8] sm:$0xff]
    %v173 = vld [vmem:[%s1 + $0x3c0] sm:$0xff]
    %v174 = vld [vmem:[%s1 + $0x3c8] sm:$0xff]
    %v175 = vld [vmem:[%s1 + $0x3d0] sm:$0xff]
    %v176 = vld [vmem:[%s1 + $0x3d8] sm:$0xff]
    %v177 = vld [vmem:[%s1 + $0x3e0] sm:$0xff]
    %v178 = vld [vmem:[%s1 + $0x3e8] sm:$0xff]
    %v179 = vld [vmem:[%s1 + $0x3f0] sm:$0xff]
    %v180 = vld [vmem:[%s1 + $0x3f8] sm:$0xff]
    %v181 = vld [vmem:[%s2] sm:$0xff]
    %v183 = vlaneseq
    %v184 = vshrl.u32 %v183, 7
    %v185 = vsub.s32 0, %v184
    %v186 = vrot.slane %v181, %v185
    %v187 = vlaneseq
    %v188 = vshrl.u32 %v187, 7
    %v189 = vsub.s32 1, %v188
    %v190 = vrot.slane %v181, %v189
    %v191 = vlaneseq
    %v192 = vshrl.u32 %v191, 7
    %v193 = vsub.s32 2, %v192
    %v194 = vrot.slane %v181, %v193
    %v195 = vlaneseq
    %v196 = vshrl.u32 %v195, 7
    %v197 = vsub.s32 3, %v196
    %v198 = vrot.slane %v181, %v197
    %v199 = vlaneseq
    %v200 = vshrl.u32 %v199, 7
    %v201 = vsub.s32 4, %v200
    %v202 = vrot.slane %v181, %v201
    %v203 = vlaneseq
    %v204 = vshrl.u32 %v203, 7
    %v205 = vsub.s32 5, %v204
    %v206 = vrot.slane %v181, %v205
    %v207 = vlaneseq
    %v208 = vshrl.u32 %v207, 7
    %v209 = vsub.s32 6, %v208
    %v210 = vrot.slane %v181, %v209
    %v211 = vlaneseq
    %v212 = vshrl.u32 %v211, 7
    %v213 = vsub.s32 7, %v212
    %v214 = vrot.slane %v181, %v213
    %v351 = vunpack.c.l.b16 %v53
    %v352 = vunpack.c.h.b16 %v53
    %v353 = vunpack.c.l.b16 %v54
    %v354 = vunpack.c.h.b16 %v54
    %v355 = vunpack.c.l.b16 %v55
    %v356 = vunpack.c.h.b16 %v55
    %v357 = vunpack.c.l.b16 %v56
    %v358 = vunpack.c.h.b16 %v56
    %v359 = vunpack.c.l.b16 %v57
    %v360 = vunpack.c.h.b16 %v57
    %v361 = vunpack.c.l.b16 %v58
    %v362 = vunpack.c.h.b16 %v58
    %v363 = vunpack.c.l.b16 %v59
    %v364 = vunpack.c.h.b16 %v59
    %v365 = vunpack.c.l.b16 %v60
    %v366 = vunpack.c.h.b16 %v60
    %v367 = vunpack.c.l.b16 %v61
    %v368 = vunpack.c.h.b16 %v61
    %v369 = vunpack.c.l.b16 %v62
    %v370 = vunpack.c.h.b16 %v62
    %v371 = vunpack.c.l.b16 %v63
    %v372 = vunpack.c.h.b16 %v63
    %v373 = vunpack.c.l.b16 %v64
    %v374 = vunpack.c.h.b16 %v64
    %v375 = vunpack.c.l.b16 %v65
    %v376 = vunpack.c.h.b16 %v65
    %v377 = vunpack.c.l.b16 %v66
    %v378 = vunpack.c.h.b16 %v66
    %v379 = vunpack.c.l.b16 %v67
    %v380 = vunpack.c.h.b16 %v67
    %v381 = vunpack.c.l.b16 %v68
    %v382 = vunpack.c.h.b16 %v68
    %v383 = vunpack.c.l.b16 %v69
    %v384 = vunpack.c.h.b16 %v69
    %v385 = vunpack.c.l.b16 %v70
    %v386 = vunpack.c.h.b16 %v70
    %v387 = vunpack.c.l.b16 %v71
    %v388 = vunpack.c.h.b16 %v71
    %v389 = vunpack.c.l.b16 %v72
    %v390 = vunpack.c.h.b16 %v72
    %v391 = vunpack.c.l.b16 %v73
    %v392 = vunpack.c.h.b16 %v73
    %v393 = vunpack.c.l.b16 %v74
    %v394 = vunpack.c.h.b16 %v74
    %v395 = vunpack.c.l.b16 %v75
    %v396 = vunpack.c.h.b16 %v75
    %v397 = vunpack.c.l.b16 %v76
    %v398 = vunpack.c.h.b16 %v76
    %v399 = vunpack.c.l.b16 %v77
    %v400 = vunpack.c.h.b16 %v77
    %v401 = vunpack.c.l.b16 %v78
    %v402 = vunpack.c.h.b16 %v78
    %v403 = vunpack.c.l.b16 %v79
    %v404 = vunpack.c.h.b16 %v79
    %v405 = vunpack.c.l.b16 %v80
    %v406 = vunpack.c.h.b16 %v80
    %v407 = vunpack.c.l.b16 %v81
    %v408 = vunpack.c.h.b16 %v81
    %v409 = vunpack.c.l.b16 %v82
    %v410 = vunpack.c.h.b16 %v82
    %v411 = vunpack.c.l.b16 %v83
    %v412 = vunpack.c.h.b16 %v83
    %v413 = vunpack.c.l.b16 %v84
    %v414 = vunpack.c.h.b16 %v84
    %v415 = vunpack.c.l.b16 %v85
    %v416 = vunpack.c.h.b16 %v85
    %v417 = vunpack.c.l.b16 %v86
    %v418 = vunpack.c.h.b16 %v86
    %v419 = vunpack.c.l.b16 %v87
    %v420 = vunpack.c.h.b16 %v87
    %v421 = vunpack.c.l.b16 %v88
    %v422 = vunpack.c.h.b16 %v88
    %v423 = vunpack.c.l.b16 %v89
    %v424 = vunpack.c.h.b16 %v89
    %v425 = vunpack.c.l.b16 %v90
    %v426 = vunpack.c.h.b16 %v90
    %v427 = vunpack.c.l.b16 %v91
    %v428 = vunpack.c.h.b16 %v91
    %v429 = vunpack.c.l.b16 %v92
    %v430 = vunpack.c.h.b16 %v92
    %v431 = vunpack.c.l.b16 %v93
    %v432 = vunpack.c.h.b16 %v93
    %v433 = vunpack.c.l.b16 %v94
    %v434 = vunpack.c.h.b16 %v94
    %v435 = vunpack.c.l.b16 %v95
    %v436 = vunpack.c.h.b16 %v95
    %v437 = vunpack.c.l.b16 %v96
    %v438 = vunpack.c.h.b16 %v96
    %v439 = vunpack.c.l.b16 %v97
    %v440 = vunpack.c.h.b16 %v97
    %v441 = vunpack.c.l.b16 %v98
    %v442 = vunpack.c.h.b16 %v98
    %v443 = vunpack.c.l.b16 %v99
    %v444 = vunpack.c.h.b16 %v99
    %v445 = vunpack.c.l.b16 %v100
    %v446 = vunpack.c.h.b16 %v100
    %v447 = vunpack.c.l.b16 %v101
    %v448 = vunpack.c.h.b16 %v101
    %v449 = vunpack.c.l.b16 %v102
    %v450 = vunpack.c.h.b16 %v102
    %v451 = vunpack.c.l.b16 %v103
    %v452 = vunpack.c.h.b16 %v103
    %v453 = vunpack.c.l.b16 %v104
    %v454 = vunpack.c.h.b16 %v104
    %v455 = vunpack.c.l.b16 %v105
    %v456 = vunpack.c.h.b16 %v105
    %v457 = vunpack.c.l.b16 %v106
    %v458 = vunpack.c.h.b16 %v106
    %v459 = vunpack.c.l.b16 %v107
    %v460 = vunpack.c.h.b16 %v107
    %v461 = vunpack.c.l.b16 %v108
    %v462 = vunpack.c.h.b16 %v108
    %v463 = vunpack.c.l.b16 %v109
    %v464 = vunpack.c.h.b16 %v109
    %v465 = vunpack.c.l.b16 %v110
    %v466 = vunpack.c.h.b16 %v110
    %v467 = vunpack.c.l.b16 %v111
    %v468 = vunpack.c.h.b16 %v111
    %v469 = vunpack.c.l.b16 %v112
    %v470 = vunpack.c.h.b16 %v112
    %v471 = vunpack.c.l.b16 %v113
    %v472 = vunpack.c.h.b16 %v113
    %v473 = vunpack.c.l.b16 %v114
    %v474 = vunpack.c.h.b16 %v114
    %v475 = vunpack.c.l.b16 %v115
    %v476 = vunpack.c.h.b16 %v115
    %v477 = vunpack.c.l.b16 %v116
    %v478 = vunpack.c.h.b16 %v116
    %v479 = vunpack.c.l.b16 %v117
    %v480 = vunpack.c.h.b16 %v117
    %v481 = vunpack.c.l.b16 %v118
    %v482 = vunpack.c.h.b16 %v118
    %v483 = vunpack.c.l.b16 %v119
    %v484 = vunpack.c.h.b16 %v119
    %v485 = vunpack.c.l.b16 %v120
    %v486 = vunpack.c.h.b16 %v120
    %v487 = vunpack.c.l.b16 %v121
    %v488 = vunpack.c.h.b16 %v121
    %v489 = vunpack.c.l.b16 %v122
    %v490 = vunpack.c.h.b16 %v122
    %v491 = vunpack.c.l.b16 %v123
    %v492 = vunpack.c.h.b16 %v123
    %v493 = vunpack.c.l.b16 %v124
    %v494 = vunpack.c.h.b16 %v124
    %v495 = vunpack.c.l.b16 %v125
    %v496 = vunpack.c.h.b16 %v125
    %v497 = vunpack.c.l.b16 %v126
    %v498 = vunpack.c.h.b16 %v126
    %v499 = vunpack.c.l.b16 %v127
    %v500 = vunpack.c.h.b16 %v127
    %v501 = vunpack.c.l.b16 %v128
    %v502 = vunpack.c.h.b16 %v128
    %v503 = vunpack.c.l.b16 %v129
    %v504 = vunpack.c.h.b16 %v129
    %v505 = vunpack.c.l.b16 %v130
    %v506 = vunpack.c.h.b16 %v130
    %v507 = vunpack.c.l.b16 %v131
    %v508 = vunpack.c.h.b16 %v131
    %v509 = vunpack.c.l.b16 %v132
    %v510 = vunpack.c.h.b16 %v132
    %v511 = vunpack.c.l.b16 %v133
    %v512 = vunpack.c.h.b16 %v133
    %v513 = vunpack.c.l.b16 %v134
    %v514 = vunpack.c.h.b16 %v134
    %v515 = vunpack.c.l.b16 %v135
    %v516 = vunpack.c.h.b16 %v135
    %v517 = vunpack.c.l.b16 %v136
    %v518 = vunpack.c.h.b16 %v136
    %v519 = vunpack.c.l.b16 %v137
    %v520 = vunpack.c.h.b16 %v137
    %v521 = vunpack.c.l.b16 %v138
    %v522 = vunpack.c.h.b16 %v138
    %v523 = vunpack.c.l.b16 %v139
    %v524 = vunpack.c.h.b16 %v139
    %v525 = vunpack.c.l.b16 %v140
    %v526 = vunpack.c.h.b16 %v140
    %v527 = vunpack.c.l.b16 %v141
    %v528 = vunpack.c.h.b16 %v141
    %v529 = vunpack.c.l.b16 %v142
    %v530 = vunpack.c.h.b16 %v142
    %v531 = vunpack.c.l.b16 %v143
    %v532 = vunpack.c.h.b16 %v143
    %v533 = vunpack.c.l.b16 %v144
    %v534 = vunpack.c.h.b16 %v144
    %v535 = vunpack.c.l.b16 %v145
    %v536 = vunpack.c.h.b16 %v145
    %v537 = vunpack.c.l.b16 %v146
    %v538 = vunpack.c.h.b16 %v146
    %v539 = vunpack.c.l.b16 %v147
    %v540 = vunpack.c.h.b16 %v147
    %v541 = vunpack.c.l.b16 %v148
    %v542 = vunpack.c.h.b16 %v148
    %v543 = vunpack.c.l.b16 %v149
    %v544 = vunpack.c.h.b16 %v149
    %v545 = vunpack.c.l.b16 %v150
    %v546 = vunpack.c.h.b16 %v150
    %v547 = vunpack.c.l.b16 %v151
    %v548 = vunpack.c.h.b16 %v151
    %v549 = vunpack.c.l.b16 %v152
    %v550 = vunpack.c.h.b16 %v152
    %v551 = vunpack.c.l.b16 %v153
    %v552 = vunpack.c.h.b16 %v153
    %v553 = vunpack.c.l.b16 %v154
    %v554 = vunpack.c.h.b16 %v154
    %v555 = vunpack.c.l.b16 %v155
    %v556 = vunpack.c.h.b16 %v155
    %v557 = vunpack.c.l.b16 %v156
    %v558 = vunpack.c.h.b16 %v156
    %v559 = vunpack.c.l.b16 %v157
    %v560 = vunpack.c.h.b16 %v157
    %v561 = vunpack.c.l.b16 %v158
    %v562 = vunpack.c.h.b16 %v158
    %v563 = vunpack.c.l.b16 %v159
    %v564 = vunpack.c.h.b16 %v159
    %v565 = vunpack.c.l.b16 %v160
    %v566 = vunpack.c.h.b16 %v160
    %v567 = vunpack.c.l.b16 %v161
    %v568 = vunpack.c.h.b16 %v161
    %v569 = vunpack.c.l.b16 %v162
    %v570 = vunpack.c.h.b16 %v162
    %v571 = vunpack.c.l.b16 %v163
    %v572 = vunpack.c.h.b16 %v163
    %v573 = vunpack.c.l.b16 %v164
    %v574 = vunpack.c.h.b16 %v164
    %v575 = vunpack.c.l.b16 %v165
    %v576 = vunpack.c.h.b16 %v165
    %v577 = vunpack.c.l.b16 %v166
    %v578 = vunpack.c.h.b16 %v166
    %v579 = vunpack.c.l.b16 %v167
    %v580 = vunpack.c.h.b16 %v167
    %v581 = vunpack.c.l.b16 %v168
    %v582 = vunpack.c.h.b16 %v168
    %v583 = vunpack.c.l.b16 %v169
    %v584 = vunpack.c.h.b16 %v169
    %v585 = vunpack.c.l.b16 %v170
    %v586 = vunpack.c.h.b16 %v170
    %v587 = vunpack.c.l.b16 %v171
    %v588 = vunpack.c.h.b16 %v171
    %v589 = vunpack.c.l.b16 %v172
    %v590 = vunpack.c.h.b16 %v172
    %v591 = vunpack.c.l.b16 %v173
    %v592 = vunpack.c.h.b16 %v173
    %v593 = vunpack.c.l.b16 %v174
    %v594 = vunpack.c.h.b16 %v174
    %v595 = vunpack.c.l.b16 %v175
    %v596 = vunpack.c.h.b16 %v175
    %v597 = vunpack.c.l.b16 %v176
    %v598 = vunpack.c.h.b16 %v176
    %v599 = vunpack.c.l.b16 %v177
    %v600 = vunpack.c.h.b16 %v177
    %v601 = vunpack.c.l.b16 %v178
    %v602 = vunpack.c.h.b16 %v178
    %v603 = vunpack.c.l.b16 %v179
    %v604 = vunpack.c.h.b16 %v179
    %v605 = vunpack.c.l.b16 %v180
    %v606 = vunpack.c.h.b16 %v180
    %v607 = vpack.c.b16 %v359, %v351
    %v608 = vpack.c.b16 %v360, %v352
    %v609 = vpack.c.b16 %v361, %v353
    %v610 = vpack.c.b16 %v362, %v354
    %v611 = vpack.c.b16 %v363, %v355
    %v612 = vpack.c.b16 %v364, %v356
    %v613 = vpack.c.b16 %v365, %v357
    %v614 = vpack.c.b16 %v366, %v358
    %v615 = vpack.c.b16 %v375, %v367
    %v616 = vpack.c.b16 %v376, %v368
    %v617 = vpack.c.b16 %v377, %v369
    %v618 = vpack.c.b16 %v378, %v370
    %v619 = vpack.c.b16 %v379, %v371
    %v620 = vpack.c.b16 %v380, %v372
    %v621 = vpack.c.b16 %v381, %v373
    %v622 = vpack.c.b16 %v382, %v374
    %v623 = vpack.c.b16 %v391, %v383
    %v624 = vpack.c.b16 %v392, %v384
    %v625 = vpack.c.b16 %v393, %v385
    %v626 = vpack.c.b16 %v394, %v386
    %v627 = vpack.c.b16 %v395, %v387
    %v628 = vpack.c.b16 %v396, %v388
    %v629 = vpack.c.b16 %v397, %v389
    %v630 = vpack.c.b16 %v398, %v390
    %v631 = vpack.c.b16 %v407, %v399
    %v632 = vpack.c.b16 %v408, %v400
    %v633 = vpack.c.b16 %v409, %v401
    %v634 = vpack.c.b16 %v410, %v402
    %v635 = vpack.c.b16 %v411, %v403
    %v636 = vpack.c.b16 %v412, %v404
    %v637 = vpack.c.b16 %v413, %v405
    %v638 = vpack.c.b16 %v414, %v406
    %v639 = vpack.c.b16 %v423, %v415
    %v640 = vpack.c.b16 %v424, %v416
    %v641 = vpack.c.b16 %v425, %v417
    %v642 = vpack.c.b16 %v426, %v418
    %v643 = vpack.c.b16 %v427, %v419
    %v644 = vpack.c.b16 %v428, %v420
    %v645 = vpack.c.b16 %v429, %v421
    %v646 = vpack.c.b16 %v430, %v422
    %v647 = vpack.c.b16 %v439, %v431
    %v648 = vpack.c.b16 %v440, %v432
    %v649 = vpack.c.b16 %v441, %v433
    %v650 = vpack.c.b16 %v442, %v434
    %v651 = vpack.c.b16 %v443, %v435
    %v652 = vpack.c.b16 %v444, %v436
    %v653 = vpack.c.b16 %v445, %v437
    %v654 = vpack.c.b16 %v446, %v438
    %v655 = vpack.c.b16 %v455, %v447
    %v656 = vpack.c.b16 %v456, %v448
    %v657 = vpack.c.b16 %v457, %v449
    %v658 = vpack.c.b16 %v458, %v450
    %v659 = vpack.c.b16 %v459, %v451
    %v660 = vpack.c.b16 %v460, %v452
    %v661 = vpack.c.b16 %v461, %v453
    %v662 = vpack.c.b16 %v462, %v454
    %v663 = vpack.c.b16 %v471, %v463
    %v664 = vpack.c.b16 %v472, %v464
    %v665 = vpack.c.b16 %v473, %v465
    %v666 = vpack.c.b16 %v474, %v466
    %v667 = vpack.c.b16 %v475, %v467
    %v668 = vpack.c.b16 %v476, %v468
    %v669 = vpack.c.b16 %v477, %v469
    %v670 = vpack.c.b16 %v478, %v470
    %v671 = vpack.c.b16 %v487, %v479
    %v672 = vpack.c.b16 %v488, %v480
    %v673 = vpack.c.b16 %v489, %v481
    %v674 = vpack.c.b16 %v490, %v482
    %v675 = vpack.c.b16 %v491, %v483
    %v676 = vpack.c.b16 %v492, %v484
    %v677 = vpack.c.b16 %v493, %v485
    %v678 = vpack.c.b16 %v494, %v486
    %v679 = vpack.c.b16 %v503, %v495
    %v680 = vpack.c.b16 %v504, %v496
    %v681 = vpack.c.b16 %v505, %v497
    %v682 = vpack.c.b16 %v506, %v498
    %v683 = vpack.c.b16 %v507, %v499
    %v684 = vpack.c.b16 %v508, %v500
    %v685 = vpack.c.b16 %v509, %v501
    %v686 = vpack.c.b16 %v510, %v502
    %v687 = vpack.c.b16 %v519, %v511
    %v688 = vpack.c.b16 %v520, %v512
    %v689 = vpack.c.b16 %v521, %v513
    %v690 = vpack.c.b16 %v522, %v514
    %v691 = vpack.c.b16 %v523, %v515
    %v692 = vpack.c.b16 %v524, %v516
    %v693 = vpack.c.b16 %v525, %v517
    %v694 = vpack.c.b16 %v526, %v518
    %v695 = vpack.c.b16 %v535, %v527
    %v696 = vpack.c.b16 %v536, %v528
    %v697 = vpack.c.b16 %v537, %v529
    %v698 = vpack.c.b16 %v538, %v530
    %v699 = vpack.c.b16 %v539, %v531
    %v700 = vpack.c.b16 %v540, %v532
    %v701 = vpack.c.b16 %v541, %v533
    %v702 = vpack.c.b16 %v542, %v534
    %v703 = vpack.c.b16 %v551, %v543
    %v704 = vpack.c.b16 %v552, %v544
    %v705 = vpack.c.b16 %v553, %v545
    %v706 = vpack.c.b16 %v554, %v546
    %v707 = vpack.c.b16 %v555, %v547
    %v708 = vpack.c.b16 %v556, %v548
    %v709 = vpack.c.b16 %v557, %v549
    %v710 = vpack.c.b16 %v558, %v550
    %v711 = vpack.c.b16 %v567, %v559
    %v712 = vpack.c.b16 %v568, %v560
    %v713 = vpack.c.b16 %v569, %v561
    %v714 = vpack.c.b16 %v570, %v562
    %v715 = vpack.c.b16 %v571, %v563
    %v716 = vpack.c.b16 %v572, %v564
    %v717 = vpack.c.b16 %v573, %v565
    %v718 = vpack.c.b16 %v574, %v566
    %v719 = vpack.c.b16 %v583, %v575
    %v720 = vpack.c.b16 %v584, %v576
    %v721 = vpack.c.b16 %v585, %v577
    %v722 = vpack.c.b16 %v586, %v578
    %v723 = vpack.c.b16 %v587, %v579
    %v724 = vpack.c.b16 %v588, %v580
    %v725 = vpack.c.b16 %v589, %v581
    %v726 = vpack.c.b16 %v590, %v582
    %v727 = vpack.c.b16 %v599, %v591
    %v728 = vpack.c.b16 %v600, %v592
    %v729 = vpack.c.b16 %v601, %v593
    %v730 = vpack.c.b16 %v602, %v594
    %v731 = vpack.c.b16 %v603, %v595
    %v732 = vpack.c.b16 %v604, %v596
    %v733 = vpack.c.b16 %v605, %v597
    %v734 = vpack.c.b16 %v606, %v598
    %863 = vmatprep.subr.bf16.mxu0 %v608
    %864 = vmatpush1.bf16.msra.mxu0 %v607
    %865 = vmatprep.subr.bf16.mxu0 %v616
    %866 = vmatpush1.bf16.msra.mxu0 %v615
    %867 = vmatprep.subr.bf16.mxu0 %v624
    %868 = vmatpush1.bf16.msra.mxu0 %v623
    %869 = vmatprep.subr.bf16.mxu0 %v632
    %870 = vmatpush1.bf16.msra.mxu0 %v631
    %871 = vmatprep.subr.bf16.mxu0 %v640
    %872 = vmatpush1.bf16.msra.mxu0 %v639
    %873 = vmatprep.subr.bf16.mxu0 %v648
    %874 = vmatpush1.bf16.msra.mxu0 %v647
    %875 = vmatprep.subr.bf16.mxu0 %v656
    %876 = vmatpush1.bf16.msra.mxu0 %v655
    %877 = vmatprep.subr.bf16.mxu0 %v664
    %878 = vmatpush1.bf16.msra.mxu0 %v663
    %879 = vmatprep.subr.bf16.mxu0 %v672
    %880 = vmatpush1.bf16.msra.mxu0 %v671
    %881 = vmatprep.subr.bf16.mxu0 %v680
    %882 = vmatpush1.bf16.msra.mxu0 %v679
    %883 = vmatprep.subr.bf16.mxu0 %v688
    %884 = vmatpush1.bf16.msra.mxu0 %v687
    %885 = vmatprep.subr.bf16.mxu0 %v696
    %886 = vmatpush1.bf16.msra.mxu0 %v695
    %887 = vmatprep.subr.bf16.mxu0 %v704
    %888 = vmatpush1.bf16.msra.mxu0 %v703
    %889 = vmatprep.subr.bf16.mxu0 %v712
    %890 = vmatpush1.bf16.msra.mxu0 %v711
    %891 = vmatprep.subr.bf16.mxu0 %v720
    %892 = vmatpush1.bf16.msra.mxu0 %v719
    %893 = vmatprep.subr.bf16.mxu0 %v728
    %894 = vmatpush1.bf16.msra.mxu0 %v727
    %895 = vmatprep.mubr.bf16.mxu0 %v52
    %896 = vmatmul.mubr.bf16.gmra.mrb[0].mxu0 %v51
    %v897 = vpop.f32.mrb[0].mxu0
    %v898 = vadd.f32 %v186, %v897
    %v899 = vpop.f32.mrb[0].mxu0
    %v900 = vadd.f32 %v190, %v899
    %v901 = vpop.f32.mrb[0].mxu0
    %v902 = vpop.f32.mrb[0].mxu0
    %903 = vdwg.mxu0
    %904 = vmatprep.subr.bf16.mxu0 %v610
    %905 = vmatpush1.bf16.msra.mxu0 %v609
    %906 = vmatprep.subr.bf16.mxu0 %v618
    %907 = vmatpush1.bf16.msra.mxu0 %v617
    %908 = vmatprep.subr.bf16.mxu0 %v626
    %909 = vmatpush1.bf16.msra.mxu0 %v625
    %910 = vmatprep.subr.bf16.mxu0 %v634
    %911 = vmatpush1.bf16.msra.mxu0 %v633
    %912 = vmatprep.subr.bf16.mxu0 %v642
    %913 = vmatpush1.bf16.msra.mxu0 %v641
    %914 = vmatprep.subr.bf16.mxu0 %v650
    %915 = vmatpush1.bf16.msra.mxu0 %v649
    %916 = vmatprep.subr.bf16.mxu0 %v658
    %917 = vmatpush1.bf16.msra.mxu0 %v657
    %918 = vmatprep.subr.bf16.mxu0 %v666
    %919 = vmatpush1.bf16.msra.mxu0 %v665
    %920 = vmatprep.subr.bf16.mxu0 %v674
    %921 = vmatpush1.bf16.msra.mxu0 %v673
    %922 = vmatprep.subr.bf16.mxu0 %v682
    %923 = vmatpush1.bf16.msra.mxu0 %v681
    %924 = vmatprep.subr.bf16.mxu0 %v690
    %925 = vmatpush1.bf16.msra.mxu0 %v689
    %926 = vmatprep.subr.bf16.mxu0 %v698
    %927 = vmatpush1.bf16.msra.mxu0 %v697
    %928 = vmatprep.subr.bf16.mxu0 %v706
    %929 = vmatpush1.bf16.msra.mxu0 %v705
    %930 = vmatprep.subr.bf16.mxu0 %v714
    %931 = vmatpush1.bf16.msra.mxu0 %v713
    %932 = vmatprep.subr.bf16.mxu0 %v722
    %933 = vmatpush1.bf16.msra.mxu0 %v721
    %934 = vmatprep.subr.bf16.mxu0 %v730
    %935 = vmatpush1.bf16.msra.mxu0 %v729
    %936 = vmatprep.mubr.bf16.mxu0 %v52
    %937 = vmatmul.mubr.bf16.gmra.mrb[0].mxu0 %v51
    %v938 = vpop.f32.mrb[0].mxu0
    %v939 = vadd.f32 %v194, %v938
    %v940 = vpop.f32.mrb[0].mxu0
    %v941 = vadd.f32 %v198, %v940
    %v942 = vpop.f32.mrb[0].mxu0
    %v943 = vpop.f32.mrb[0].mxu0
    %944 = vdwg.mxu0
    %945 = vmatprep.subr.bf16.mxu0 %v612
    %946 = vmatpush1.bf16.msra.mxu0 %v611
    %947 = vmatprep.subr.bf16.mxu0 %v620
    %948 = vmatpush1.bf16.msra.mxu0 %v619
    %949 = vmatprep.subr.bf16.mxu0 %v628
    %950 = vmatpush1.bf16.msra.mxu0 %v627
    %951 = vmatprep.subr.bf16.mxu0 %v636
    %952 = vmatpush1.bf16.msra.mxu0 %v635
    %953 = vmatprep.subr.bf16.mxu0 %v644
    %954 = vmatpush1.bf16.msra.mxu0 %v643
    %955 = vmatprep.subr.bf16.mxu0 %v652
    %956 = vmatpush1.bf16.msra.mxu0 %v651
    %957 = vmatprep.subr.bf16.mxu0 %v660
    %958 = vmatpush1.bf16.msra.mxu0 %v659
    %959 = vmatprep.subr.bf16.mxu0 %v668
    %960 = vmatpush1.bf16.msra.mxu0 %v667
    %961 = vmatprep.subr.bf16.mxu0 %v676
    %962 = vmatpush1.bf16.msra.mxu0 %v675
    %963 = vmatprep.subr.bf16.mxu0 %v684
    %964 = vmatpush1.bf16.msra.mxu0 %v683
    %965 = vmatprep.subr.bf16.mxu0 %v692
    %966 = vmatpush1.bf16.msra.mxu0 %v691
    %967 = vmatprep.subr.bf16.mxu0 %v700
    %968 = vmatpush1.bf16.msra.mxu0 %v699
    %969 = vmatprep.subr.bf16.mxu0 %v708
    %970 = vmatpush1.bf16.msra.mxu0 %v707
    %971 = vmatprep.subr.bf16.mxu0 %v716
    %972 = vmatpush1.bf16.msra.mxu0 %v715
    %973 = vmatprep.subr.bf16.mxu0 %v724
    %974 = vmatpush1.bf16.msra.mxu0 %v723
    %975 = vmatprep.subr.bf16.mxu0 %v732
    %976 = vmatpush1.bf16.msra.mxu0 %v731
    %977 = vmatprep.mubr.bf16.mxu0 %v52
    %978 = vmatmul.mubr.bf16.gmra.mrb[0].mxu0 %v51
    %v979 = vpop.f32.mrb[0].mxu0
    %v980 = vadd.f32 %v202, %v979
    %v981 = vpop.f32.mrb[0].mxu0
    %v982 = vadd.f32 %v206, %v981
    %v983 = vpop.f32.mrb[0].mxu0
    %v984 = vpop.f32.mrb[0].mxu0
    %985 = vdwg.mxu0
    %986 = vmatprep.subr.bf16.mxu0 %v614
    %987 = vmatpush1.bf16.msra.mxu0 %v613
    %988 = vmatprep.subr.bf16.mxu0 %v622
    %989 = vmatpush1.bf16.msra.mxu0 %v621
    %990 = vmatprep.subr.bf16.mxu0 %v630
    %991 = vmatpush1.bf16.msra.mxu0 %v629
    %992 = vmatprep.subr.bf16.mxu0 %v638
    %993 = vmatpush1.bf16.msra.mxu0 %v637
    %994 = vmatprep.subr.bf16.mxu0 %v646
    %995 = vmatpush1.bf16.msra.mxu0 %v645
    %996 = vmatprep.subr.bf16.mxu0 %v654
    %997 = vmatpush1.bf16.msra.mxu0 %v653
    %998 = vmatprep.subr.bf16.mxu0 %v662
    %999 = vmatpush1.bf16.msra.mxu0 %v661
    %1000 = vmatprep.subr.bf16.mxu0 %v670
    %1001 = vmatpush1.bf16.msra.mxu0 %v669
    %1002 = vmatprep.subr.bf16.mxu0 %v678
    %1003 = vmatpush1.bf16.msra.mxu0 %v677
    %1004 = vmatprep.subr.bf16.mxu0 %v686
    %1005 = vmatpush1.bf16.msra.mxu0 %v685
    %1006 = vmatprep.subr.bf16.mxu0 %v694
    %1007 = vmatpush1.bf16.msra.mxu0 %v693
    %1008 = vmatprep.subr.bf16.mxu0 %v702
    %1009 = vmatpush1.bf16.msra.mxu0 %v701
    %1010 = vmatprep.subr.bf16.mxu0 %v710
    %1011 = vmatpush1.bf16.msra.mxu0 %v709
    %1012 = vmatprep.subr.bf16.mxu0 %v718
    %1013 = vmatpush1.bf16.msra.mxu0 %v717
    %1014 = vmatprep.subr.bf16.mxu0 %v726
    %1015 = vmatpush1.bf16.msra.mxu0 %v725
    %1016 = vmatprep.subr.bf16.mxu0 %v734
    %1017 = vmatpush1.bf16.msra.mxu0 %v733
    %1018 = vmatprep.mubr.bf16.mxu0 %v52
    %1019 = vmatmul.mubr.bf16.gmra.mrb[0].mxu0 %v51
    %v1020 = vpop.f32.mrb[0].mxu0
    %v1021 = vadd.f32 %v210, %v1020
    %v1022 = vpop.f32.mrb[0].mxu0
    %v1023 = vadd.f32 %v214, %v1022
    %v1024 = vpop.f32.mrb[0].mxu0
    %v1025 = vpop.f32.mrb[0].mxu0
    %1026 = vdwg.mxu0
    %v1027 = vtanh.pop %v898
    %v1028 = vtanh.pop %v900
    %v1029 = vtanh.pop %v939
    %v1030 = vtanh.pop %v941
    %v1031 = vtanh.pop %v980
    %v1032 = vtanh.pop %v982
    %v1033 = vtanh.pop %v1021
    %v1034 = vtanh.pop %v1023
    %v1035 = vpack.c.bf16 %v1027, %v1027
    %v1036 = vpack.c.bf16 %v1028, %v1028
    %v1037 = vpack.c.bf16 %v1029, %v1029
    %v1038 = vpack.c.bf16 %v1030, %v1030
    %v1039 = vpack.c.bf16 %v1031, %v1031
    %v1040 = vpack.c.bf16 %v1032, %v1032
    %v1041 = vpack.c.bf16 %v1033, %v1033
    %v1042 = vpack.c.bf16 %v1034, %v1034
    %v1043 = vld [vmem:[%s3] sm:$0xff]
    %v1044 = vld [vmem:[%s3 + $0x8] sm:$0xff]
    %v1045 = vld [vmem:[%s3 + $0x10] sm:$0xff]
    %v1046 = vld [vmem:[%s3 + $0x18] sm:$0xff]
    %v1047 = vld [vmem:[%s3 + $0x20] sm:$0xff]
    %v1048 = vld [vmem:[%s3 + $0x28] sm:$0xff]
    %v1049 = vld [vmem:[%s3 + $0x30] sm:$0xff]
    %v1050 = vld [vmem:[%s3 + $0x38] sm:$0xff]
    %v1051 = vld [vmem:[%s3 + $0x40] sm:$0xff]
    %v1052 = vld [vmem:[%s3 + $0x48] sm:$0xff]
    %v1053 = vld [vmem:[%s3 + $0x50] sm:$0xff]
    %v1054 = vld [vmem:[%s3 + $0x58] sm:$0xff]
    %v1055 = vld [vmem:[%s3 + $0x60] sm:$0xff]
    %v1056 = vld [vmem:[%s3 + $0x68] sm:$0xff]
    %v1057 = vld [vmem:[%s3 + $0x70] sm:$0xff]
    %v1058 = vld [vmem:[%s3 + $0x78] sm:$0xff]
    %v1059 = vld [vmem:[%s3 + $0x80] sm:$0xff]
    %v1060 = vld [vmem:[%s3 + $0x88] sm:$0xff]
    %v1061 = vld [vmem:[%s3 + $0x90] sm:$0xff]
    %v1062 = vld [vmem:[%s3 + $0x98] sm:$0xff]
    %v1063 = vld [vmem:[%s3 + $0xa0] sm:$0xff]
    %v1064 = vld [vmem:[%s3 + $0xa8] sm:$0xff]
    %v1065 = vld [vmem:[%s3 + $0xb0] sm:$0xff]
    %v1066 = vld [vmem:[%s3 + $0xb8] sm:$0xff]
    %v1067 = vld [vmem:[%s3 + $0xc0] sm:$0xff]
    %v1068 = vld [vmem:[%s3 + $0xc8] sm:$0xff]
    %v1069 = vld [vmem:[%s3 + $0xd0] sm:$0xff]
    %v1070 = vld [vmem:[%s3 + $0xd8] sm:$0xff]
    %v1071 = vld [vmem:[%s3 + $0xe0] sm:$0xff]
    %v1072 = vld [vmem:[%s3 + $0xe8] sm:$0xff]
    %v1073 = vld [vmem:[%s3 + $0xf0] sm:$0xff]
    %v1074 = vld [vmem:[%s3 + $0xf8] sm:$0xff]
    %v1075 = vld [vmem:[%s3 + $0x100] sm:$0xff]
    %v1076 = vld [vmem:[%s3 + $0x108] sm:$0xff]
    %v1077 = vld [vmem:[%s3 + $0x110] sm:$0xff]
    %v1078 = vld [vmem:[%s3 + $0x118] sm:$0xff]
    %v1079 = vld [vmem:[%s3 + $0x120] sm:$0xff]
    %v1080 = vld [vmem:[%s3 + $0x128] sm:$0xff]
    %v1081 = vld [vmem:[%s3 + $0x130] sm:$0xff]
    %v1082 = vld [vmem:[%s3 + $0x138] sm:$0xff]
    %v1083 = vld [vmem:[%s3 + $0x140] sm:$0xff]
    %v1084 = vld [vmem:[%s3 + $0x148] sm:$0xff]
    %v1085 = vld [vmem:[%s3 + $0x150] sm:$0xff]
    %v1086 = vld [vmem:[%s3 + $0x158] sm:$0xff]
    %v1087 = vld [vmem:[%s3 + $0x160] sm:$0xff]
    %v1088 = vld [vmem:[%s3 + $0x168] sm:$0xff]
    %v1089 = vld [vmem:[%s3 + $0x170] sm:$0xff]
    %v1090 = vld [vmem:[%s3 + $0x178] sm:$0xff]
    %v1091 = vld [vmem:[%s3 + $0x180] sm:$0xff]
    %v1092 = vld [vmem:[%s3 + $0x188] sm:$0xff]
    %v1093 = vld [vmem:[%s3 + $0x190] sm:$0xff]
    %v1094 = vld [vmem:[%s3 + $0x198] sm:$0xff]
    %v1095 = vld [vmem:[%s3 + $0x1a0] sm:$0xff]
    %v1096 = vld [vmem:[%s3 + $0x1a8] sm:$0xff]
    %v1097 = vld [vmem:[%s3 + $0x1b0] sm:$0xff]
    %v1098 = vld [vmem:[%s3 + $0x1b8] sm:$0xff]
    %v1099 = vld [vmem:[%s3 + $0x1c0] sm:$0xff]
    %v1100 = vld [vmem:[%s3 + $0x1c8] sm:$0xff]
    %v1101 = vld [vmem:[%s3 + $0x1d0] sm:$0xff]
    %v1102 = vld [vmem:[%s3 + $0x1d8] sm:$0xff]
    %v1103 = vld [vmem:[%s3 + $0x1e0] sm:$0xff]
    %v1104 = vld [vmem:[%s3 + $0x1e8] sm:$0xff]
    %v1105 = vld [vmem:[%s3 + $0x1f0] sm:$0xff]
    %v1106 = vld [vmem:[%s3 + $0x1f8] sm:$0xff]
    %v1107 = vld [vmem:[%s3 + $0x200] sm:$0xff]
    %v1108 = vld [vmem:[%s3 + $0x208] sm:$0xff]
    %v1109 = vld [vmem:[%s3 + $0x210] sm:$0xff]
    %v1110 = vld [vmem:[%s3 + $0x218] sm:$0xff]
    %v1111 = vld [vmem:[%s3 + $0x220] sm:$0xff]
    %v1112 = vld [vmem:[%s3 + $0x228] sm:$0xff]
    %v1113 = vld [vmem:[%s3 + $0x230] sm:$0xff]
    %v1114 = vld [vmem:[%s3 + $0x238] sm:$0xff]
    %v1115 = vld [vmem:[%s3 + $0x240] sm:$0xff]
    %v1116 = vld [vmem:[%s3 + $0x248] sm:$0xff]
    %v1117 = vld [vmem:[%s3 + $0x250] sm:$0xff]
    %v1118 = vld [vmem:[%s3 + $0x258] sm:$0xff]
    %v1119 = vld [vmem:[%s3 + $0x260] sm:$0xff]
    %v1120 = vld [vmem:[%s3 + $0x268] sm:$0xff]
    %v1121 = vld [vmem:[%s3 + $0x270] sm:$0xff]
    %v1122 = vld [vmem:[%s3 + $0x278] sm:$0xff]
    %v1123 = vld [vmem:[%s3 + $0x280] sm:$0xff]
    %v1124 = vld [vmem:[%s3 + $0x288] sm:$0xff]
    %v1125 = vld [vmem:[%s3 + $0x290] sm:$0xff]
    %v1126 = vld [vmem:[%s3 + $0x298] sm:$0xff]
    %v1127 = vld [vmem:[%s3 + $0x2a0] sm:$0xff]
    %v1128 = vld [vmem:[%s3 + $0x2a8] sm:$0xff]
    %v1129 = vld [vmem:[%s3 + $0x2b0] sm:$0xff]
    %v1130 = vld [vmem:[%s3 + $0x2b8] sm:$0xff]
    %v1131 = vld [vmem:[%s3 + $0x2c0] sm:$0xff]
    %v1132 = vld [vmem:[%s3 + $0x2c8] sm:$0xff]
    %v1133 = vld [vmem:[%s3 + $0x2d0] sm:$0xff]
    %v1134 = vld [vmem:[%s3 + $0x2d8] sm:$0xff]
    %v1135 = vld [vmem:[%s3 + $0x2e0] sm:$0xff]
    %v1136 = vld [vmem:[%s3 + $0x2e8] sm:$0xff]
    %v1137 = vld [vmem:[%s3 + $0x2f0] sm:$0xff]
    %v1138 = vld [vmem:[%s3 + $0x2f8] sm:$0xff]
    %v1139 = vld [vmem:[%s3 + $0x300] sm:$0xff]
    %v1140 = vld [vmem:[%s3 + $0x308] sm:$0xff]
    %v1141 = vld [vmem:[%s3 + $0x310] sm:$0xff]
    %v1142 = vld [vmem:[%s3 + $0x318] sm:$0xff]
    %v1143 = vld [vmem:[%s3 + $0x320] sm:$0xff]
    %v1144 = vld [vmem:[%s3 + $0x328] sm:$0xff]
    %v1145 = vld [vmem:[%s3 + $0x330] sm:$0xff]
    %v1146 = vld [vmem:[%s3 + $0x338] sm:$0xff]
    %v1147 = vld [vmem:[%s3 + $0x340] sm:$0xff]
    %v1148 = vld [vmem:[%s3 + $0x348] sm:$0xff]
    %v1149 = vld [vmem:[%s3 + $0x350] sm:$0xff]
    %v1150 = vld [vmem:[%s3 + $0x358] sm:$0xff]
    %v1151 = vld [vmem:[%s3 + $0x360] sm:$0xff]
    %v1152 = vld [vmem:[%s3 + $0x368] sm:$0xff]
    %v1153 = vld [vmem:[%s3 + $0x370] sm:$0xff]
    %v1154 = vld [vmem:[%s3 + $0x378] sm:$0xff]
    %v1155 = vld [vmem:[%s3 + $0x380] sm:$0xff]
    %v1156 = vld [vmem:[%s3 + $0x388] sm:$0xff]
    %v1157 = vld [vmem:[%s3 + $0x390] sm:$0xff]
    %v1158 = vld [vmem:[%s3 + $0x398] sm:$0xff]
    %v1159 = vld [vmem:[%s3 + $0x3a0] sm:$0xff]
    %v1160 = vld [vmem:[%s3 + $0x3a8] sm:$0xff]
    %v1161 = vld [vmem:[%s3 + $0x3b0] sm:$0xff]
    %v1162 = vld [vmem:[%s3 + $0x3b8] sm:$0xff]
    %v1163 = vld [vmem:[%s3 + $0x3c0] sm:$0xff]
    %v1164 = vld [vmem:[%s3 + $0x3c8] sm:$0xff]
    %v1165 = vld [vmem:[%s3 + $0x3d0] sm:$0xff]
    %v1166 = vld [vmem:[%s3 + $0x3d8] sm:$0xff]
    %v1167 = vld [vmem:[%s3 + $0x3e0] sm:$0xff]
    %v1168 = vld [vmem:[%s3 + $0x3e8] sm:$0xff]
    %v1169 = vld [vmem:[%s3 + $0x3f0] sm:$0xff]
    %v1170 = vld [vmem:[%s3 + $0x3f8] sm:$0xff]
    %v1171 = vld [vmem:[%s3 + $0x400] sm:$0xff]
    %v1172 = vld [vmem:[%s3 + $0x408] sm:$0xff]
    %v1173 = vld [vmem:[%s3 + $0x410] sm:$0xff]
    %v1174 = vld [vmem:[%s3 + $0x418] sm:$0xff]
    %v1175 = vld [vmem:[%s3 + $0x420] sm:$0xff]
    %v1176 = vld [vmem:[%s3 + $0x428] sm:$0xff]
    %v1177 = vld [vmem:[%s3 + $0x430] sm:$0xff]
    %v1178 = vld [vmem:[%s3 + $0x438] sm:$0xff]
    %v1179 = vld [vmem:[%s3 + $0x440] sm:$0xff]
    %v1180 = vld [vmem:[%s3 + $0x448] sm:$0xff]
    %v1181 = vld [vmem:[%s3 + $0x450] sm:$0xff]
    %v1182 = vld [vmem:[%s3 + $0x458] sm:$0xff]
    %v1183 = vld [vmem:[%s3 + $0x460] sm:$0xff]
    %v1184 = vld [vmem:[%s3 + $0x468] sm:$0xff]
    %v1185 = vld [vmem:[%s3 + $0x470] sm:$0xff]
    %v1186 = vld [vmem:[%s3 + $0x478] sm:$0xff]
    %v1187 = vld [vmem:[%s3 + $0x480] sm:$0xff]
    %v1188 = vld [vmem:[%s3 + $0x488] sm:$0xff]
    %v1189 = vld [vmem:[%s3 + $0x490] sm:$0xff]
    %v1190 = vld [vmem:[%s3 + $0x498] sm:$0xff]
    %v1191 = vld [vmem:[%s3 + $0x4a0] sm:$0xff]
    %v1192 = vld [vmem:[%s3 + $0x4a8] sm:$0xff]
    %v1193 = vld [vmem:[%s3 + $0x4b0] sm:$0xff]
    %v1194 = vld [vmem:[%s3 + $0x4b8] sm:$0xff]
    %v1195 = vld [vmem:[%s3 + $0x4c0] sm:$0xff]
    %v1196 = vld [vmem:[%s3 + $0x4c8] sm:$0xff]
    %v1197 = vld [vmem:[%s3 + $0x4d0] sm:$0xff]
    %v1198 = vld [vmem:[%s3 + $0x4d8] sm:$0xff]
    %v1199 = vld [vmem:[%s3 + $0x4e0] sm:$0xff]
    %v1200 = vld [vmem:[%s3 + $0x4e8] sm:$0xff]
    %v1201 = vld [vmem:[%s3 + $0x4f0] sm:$0xff]
    %v1202 = vld [vmem:[%s3 + $0x4f8] sm:$0xff]
    %v1203 = vld [vmem:[%s3 + $0x500] sm:$0xff]
    %v1204 = vld [vmem:[%s3 + $0x508] sm:$0xff]
    %v1205 = vld [vmem:[%s3 + $0x510] sm:$0xff]
    %v1206 = vld [vmem:[%s3 + $0x518] sm:$0xff]
    %v1207 = vld [vmem:[%s3 + $0x520] sm:$0xff]
    %v1208 = vld [vmem:[%s3 + $0x528] sm:$0xff]
    %v1209 = vld [vmem:[%s3 + $0x530] sm:$0xff]
    %v1210 = vld [vmem:[%s3 + $0x538] sm:$0xff]
    %v1211 = vld [vmem:[%s3 + $0x540] sm:$0xff]
    %v1212 = vld [vmem:[%s3 + $0x548] sm:$0xff]
    %v1213 = vld [vmem:[%s3 + $0x550] sm:$0xff]
    %v1214 = vld [vmem:[%s3 + $0x558] sm:$0xff]
    %v1215 = vld [vmem:[%s3 + $0x560] sm:$0xff]
    %v1216 = vld [vmem:[%s3 + $0x568] sm:$0xff]
    %v1217 = vld [vmem:[%s3 + $0x570] sm:$0xff]
    %v1218 = vld [vmem:[%s3 + $0x578] sm:$0xff]
    %v1219 = vld [vmem:[%s3 + $0x580] sm:$0xff]
    %v1220 = vld [vmem:[%s3 + $0x588] sm:$0xff]
    %v1221 = vld [vmem:[%s3 + $0x590] sm:$0xff]
    %v1222 = vld [vmem:[%s3 + $0x598] sm:$0xff]
    %v1223 = vld [vmem:[%s3 + $0x5a0] sm:$0xff]
    %v1224 = vld [vmem:[%s3 + $0x5a8] sm:$0xff]
    %v1225 = vld [vmem:[%s3 + $0x5b0] sm:$0xff]
    %v1226 = vld [vmem:[%s3 + $0x5b8] sm:$0xff]
    %v1227 = vld [vmem:[%s3 + $0x5c0] sm:$0xff]
    %v1228 = vld [vmem:[%s3 + $0x5c8] sm:$0xff]
    %v1229 = vld [vmem:[%s3 + $0x5d0] sm:$0xff]
    %v1230 = vld [vmem:[%s3 + $0x5d8] sm:$0xff]
    %v1231 = vld [vmem:[%s3 + $0x5e0] sm:$0xff]
    %v1232 = vld [vmem:[%s3 + $0x5e8] sm:$0xff]
    %v1233 = vld [vmem:[%s3 + $0x5f0] sm:$0xff]
    %v1234 = vld [vmem:[%s3 + $0x5f8] sm:$0xff]
    %v1235 = vld [vmem:[%s3 + $0x600] sm:$0xff]
    %v1236 = vld [vmem:[%s3 + $0x608] sm:$0xff]
    %v1237 = vld [vmem:[%s3 + $0x610] sm:$0xff]
    %v1238 = vld [vmem:[%s3 + $0x618] sm:$0xff]
    %v1239 = vld [vmem:[%s3 + $0x620] sm:$0xff]
    %v1240 = vld [vmem:[%s3 + $0x628] sm:$0xff]
    %v1241 = vld [vmem:[%s3 + $0x630] sm:$0xff]
    %v1242 = vld [vmem:[%s3 + $0x638] sm:$0xff]
    %v1243 = vld [vmem:[%s3 + $0x640] sm:$0xff]
    %v1244 = vld [vmem:[%s3 + $0x648] sm:$0xff]
    %v1245 = vld [vmem:[%s3 + $0x650] sm:$0xff]
    %v1246 = vld [vmem:[%s3 + $0x658] sm:$0xff]
    %v1247 = vld [vmem:[%s3 + $0x660] sm:$0xff]
    %v1248 = vld [vmem:[%s3 + $0x668] sm:$0xff]
    %v1249 = vld [vmem:[%s3 + $0x670] sm:$0xff]
    %v1250 = vld [vmem:[%s3 + $0x678] sm:$0xff]
    %v1251 = vld [vmem:[%s3 + $0x680] sm:$0xff]
    %v1252 = vld [vmem:[%s3 + $0x688] sm:$0xff]
    %v1253 = vld [vmem:[%s3 + $0x690] sm:$0xff]
    %v1254 = vld [vmem:[%s3 + $0x698] sm:$0xff]
    %v1255 = vld [vmem:[%s3 + $0x6a0] sm:$0xff]
    %v1256 = vld [vmem:[%s3 + $0x6a8] sm:$0xff]
    %v1257 = vld [vmem:[%s3 + $0x6b0] sm:$0xff]
    %v1258 = vld [vmem:[%s3 + $0x6b8] sm:$0xff]
    %v1259 = vld [vmem:[%s3 + $0x6c0] sm:$0xff]
    %v1260 = vld [vmem:[%s3 + $0x6c8] sm:$0xff]
    %v1261 = vld [vmem:[%s3 + $0x6d0] sm:$0xff]
    %v1262 = vld [vmem:[%s3 + $0x6d8] sm:$0xff]
    %v1263 = vld [vmem:[%s3 + $0x6e0] sm:$0xff]
    %v1264 = vld [vmem:[%s3 + $0x6e8] sm:$0xff]
    %v1265 = vld [vmem:[%s3 + $0x6f0] sm:$0xff]
    %v1266 = vld [vmem:[%s3 + $0x6f8] sm:$0xff]
    %v1267 = vld [vmem:[%s3 + $0x700] sm:$0xff]
    %v1268 = vld [vmem:[%s3 + $0x708] sm:$0xff]
    %v1269 = vld [vmem:[%s3 + $0x710] sm:$0xff]
    %v1270 = vld [vmem:[%s3 + $0x718] sm:$0xff]
    %v1271 = vld [vmem:[%s3 + $0x720] sm:$0xff]
    %v1272 = vld [vmem:[%s3 + $0x728] sm:$0xff]
    %v1273 = vld [vmem:[%s3 + $0x730] sm:$0xff]
    %v1274 = vld [vmem:[%s3 + $0x738] sm:$0xff]
    %v1275 = vld [vmem:[%s3 + $0x740] sm:$0xff]
    %v1276 = vld [vmem:[%s3 + $0x748] sm:$0xff]
    %v1277 = vld [vmem:[%s3 + $0x750] sm:$0xff]
    %v1278 = vld [vmem:[%s3 + $0x758] sm:$0xff]
    %v1279 = vld [vmem:[%s3 + $0x760] sm:$0xff]
    %v1280 = vld [vmem:[%s3 + $0x768] sm:$0xff]
    %v1281 = vld [vmem:[%s3 + $0x770] sm:$0xff]
    %v1282 = vld [vmem:[%s3 + $0x778] sm:$0xff]
    %v1283 = vld [vmem:[%s3 + $0x780] sm:$0xff]
    %v1284 = vld [vmem:[%s3 + $0x788] sm:$0xff]
    %v1285 = vld [vmem:[%s3 + $0x790] sm:$0xff]
    %v1286 = vld [vmem:[%s3 + $0x798] sm:$0xff]
    %v1287 = vld [vmem:[%s3 + $0x7a0] sm:$0xff]
    %v1288 = vld [vmem:[%s3 + $0x7a8] sm:$0xff]
    %v1289 = vld [vmem:[%s3 + $0x7b0] sm:$0xff]
    %v1290 = vld [vmem:[%s3 + $0x7b8] sm:$0xff]
    %v1291 = vld [vmem:[%s3 + $0x7c0] sm:$0xff]
    %v1292 = vld [vmem:[%s3 + $0x7c8] sm:$0xff]
    %v1293 = vld [vmem:[%s3 + $0x7d0] sm:$0xff]
    %v1294 = vld [vmem:[%s3 + $0x7d8] sm:$0xff]
    %v1295 = vld [vmem:[%s3 + $0x7e0] sm:$0xff]
    %v1296 = vld [vmem:[%s3 + $0x7e8] sm:$0xff]
    %v1297 = vld [vmem:[%s3 + $0x7f0] sm:$0xff]
    %v1298 = vld [vmem:[%s3 + $0x7f8] sm:$0xff]
    %v1299 = vld [vmem:[%s4] sm:$0xf]
    %v1301 = vlaneseq
    %v1302 = vshrl.u32 %v1301, 7
    %v1303 = vsub.s32 0, %v1302
    %v1304 = vrot.slane %v1299, %v1303
    %v1305 = vlaneseq
    %v1306 = vshrl.u32 %v1305, 7
    %v1307 = vsub.s32 1, %v1306
    %v1308 = vrot.slane %v1299, %v1307
    %v1309 = vlaneseq
    %v1310 = vshrl.u32 %v1309, 7
    %v1311 = vsub.s32 2, %v1310
    %v1312 = vrot.slane %v1299, %v1311
    %v1313 = vlaneseq
    %v1314 = vshrl.u32 %v1313, 7
    %v1315 = vsub.s32 3, %v1314
    %v1316 = vrot.slane %v1299, %v1315
    %v1577 = vunpack.c.l.b16 %v1043
    %v1578 = vunpack.c.h.b16 %v1043
    %v1579 = vunpack.c.l.b16 %v1044
    %v1580 = vunpack.c.h.b16 %v1044
    %v1581 = vunpack.c.l.b16 %v1045
    %v1582 = vunpack.c.h.b16 %v1045
    %v1583 = vunpack.c.l.b16 %v1046
    %v1584 = vunpack.c.h.b16 %v1046
    %v1585 = vunpack.c.l.b16 %v1047
    %v1586 = vunpack.c.h.b16 %v1047
    %v1587 = vunpack.c.l.b16 %v1048
    %v1588 = vunpack.c.h.b16 %v1048
    %v1589 = vunpack.c.l.b16 %v1049
    %v1590 = vunpack.c.h.b16 %v1049
    %v1591 = vunpack.c.l.b16 %v1050
    %v1592 = vunpack.c.h.b16 %v1050
    %v1593 = vunpack.c.l.b16 %v1051
    %v1594 = vunpack.c.h.b16 %v1051
    %v1595 = vunpack.c.l.b16 %v1052
    %v1596 = vunpack.c.h.b16 %v1052
    %v1597 = vunpack.c.l.b16 %v1053
    %v1598 = vunpack.c.h.b16 %v1053
    %v1599 = vunpack.c.l.b16 %v1054
    %v1600 = vunpack.c.h.b16 %v1054
    %v1601 = vunpack.c.l.b16 %v1055
    %v1602 = vunpack.c.h.b16 %v1055
    %v1603 = vunpack.c.l.b16 %v1056
    %v1604 = vunpack.c.h.b16 %v1056
    %v1605 = vunpack.c.l.b16 %v1057
    %v1606 = vunpack.c.h.b16 %v1057
    %v1607 = vunpack.c.l.b16 %v1058
    %v1608 = vunpack.c.h.b16 %v1058
    %v1609 = vunpack.c.l.b16 %v1059
    %v1610 = vunpack.c.h.b16 %v1059
    %v1611 = vunpack.c.l.b16 %v1060
    %v1612 = vunpack.c.h.b16 %v1060
    %v1613 = vunpack.c.l.b16 %v1061
    %v1614 = vunpack.c.h.b16 %v1061
    %v1615 = vunpack.c.l.b16 %v1062
    %v1616 = vunpack.c.h.b16 %v1062
    %v1617 = vunpack.c.l.b16 %v1063
    %v1618 = vunpack.c.h.b16 %v1063
    %v1619 = vunpack.c.l.b16 %v1064
    %v1620 = vunpack.c.h.b16 %v1064
    %v1621 = vunpack.c.l.b16 %v1065
    %v1622 = vunpack.c.h.b16 %v1065
    %v1623 = vunpack.c.l.b16 %v1066
    %v1624 = vunpack.c.h.b16 %v1066
    %v1625 = vunpack.c.l.b16 %v1067
    %v1626 = vunpack.c.h.b16 %v1067
    %v1627 = vunpack.c.l.b16 %v1068
    %v1628 = vunpack.c.h.b16 %v1068
    %v1629 = vunpack.c.l.b16 %v1069
    %v1630 = vunpack.c.h.b16 %v1069
    %v1631 = vunpack.c.l.b16 %v1070
    %v1632 = vunpack.c.h.b16 %v1070
    %v1633 = vunpack.c.l.b16 %v1071
    %v1634 = vunpack.c.h.b16 %v1071
    %v1635 = vunpack.c.l.b16 %v1072
    %v1636 = vunpack.c.h.b16 %v1072
    %v1637 = vunpack.c.l.b16 %v1073
    %v1638 = vunpack.c.h.b16 %v1073
    %v1639 = vunpack.c.l.b16 %v1074
    %v1640 = vunpack.c.h.b16 %v1074
    %v1641 = vunpack.c.l.b16 %v1075
    %v1642 = vunpack.c.h.b16 %v1075
    %v1643 = vunpack.c.l.b16 %v1076
    %v1644 = vunpack.c.h.b16 %v1076
    %v1645 = vunpack.c.l.b16 %v1077
    %v1646 = vunpack.c.h.b16 %v1077
    %v1647 = vunpack.c.l.b16 %v1078
    %v1648 = vunpack.c.h.b16 %v1078
    %v1649 = vunpack.c.l.b16 %v1079
    %v1650 = vunpack.c.h.b16 %v1079
    %v1651 = vunpack.c.l.b16 %v1080
    %v1652 = vunpack.c.h.b16 %v1080
    %v1653 = vunpack.c.l.b16 %v1081
    %v1654 = vunpack.c.h.b16 %v1081
    %v1655 = vunpack.c.l.b16 %v1082
    %v1656 = vunpack.c.h.b16 %v1082
    %v1657 = vunpack.c.l.b16 %v1083
    %v1658 = vunpack.c.h.b16 %v1083
    %v1659 = vunpack.c.l.b16 %v1084
    %v1660 = vunpack.c.h.b16 %v1084
    %v1661 = vunpack.c.l.b16 %v1085
    %v1662 = vunpack.c.h.b16 %v1085
    %v1663 = vunpack.c.l.b16 %v1086
    %v1664 = vunpack.c.h.b16 %v1086
    %v1665 = vunpack.c.l.b16 %v1087
    %v1666 = vunpack.c.h.b16 %v1087
    %v1667 = vunpack.c.l.b16 %v1088
    %v1668 = vunpack.c.h.b16 %v1088
    %v1669 = vunpack.c.l.b16 %v1089
    %v1670 = vunpack.c.h.b16 %v1089
    %v1671 = vunpack.c.l.b16 %v1090
    %v1672 = vunpack.c.h.b16 %v1090
    %v1673 = vunpack.c.l.b16 %v1091
    %v1674 = vunpack.c.h.b16 %v1091
    %v1675 = vunpack.c.l.b16 %v1092
    %v1676 = vunpack.c.h.b16 %v1092
    %v1677 = vunpack.c.l.b16 %v1093
    %v1678 = vunpack.c.h.b16 %v1093
    %v1679 = vunpack.c.l.b16 %v1094
    %v1680 = vunpack.c.h.b16 %v1094
    %v1681 = vunpack.c.l.b16 %v1095
    %v1682 = vunpack.c.h.b16 %v1095
    %v1683 = vunpack.c.l.b16 %v1096
    %v1684 = vunpack.c.h.b16 %v1096
    %v1685 = vunpack.c.l.b16 %v1097
    %v1686 = vunpack.c.h.b16 %v1097
    %v1687 = vunpack.c.l.b16 %v1098
    %v1688 = vunpack.c.h.b16 %v1098
    %v1689 = vunpack.c.l.b16 %v1099
    %v1690 = vunpack.c.h.b16 %v1099
    %v1691 = vunpack.c.l.b16 %v1100
    %v1692 = vunpack.c.h.b16 %v1100
    %v1693 = vunpack.c.l.b16 %v1101
    %v1694 = vunpack.c.h.b16 %v1101
    %v1695 = vunpack.c.l.b16 %v1102
    %v1696 = vunpack.c.h.b16 %v1102
    %v1697 = vunpack.c.l.b16 %v1103
    %v1698 = vunpack.c.h.b16 %v1103
    %v1699 = vunpack.c.l.b16 %v1104
    %v1700 = vunpack.c.h.b16 %v1104
    %v1701 = vunpack.c.l.b16 %v1105
    %v1702 = vunpack.c.h.b16 %v1105
    %v1703 = vunpack.c.l.b16 %v1106
    %v1704 = vunpack.c.h.b16 %v1106
    %v1705 = vunpack.c.l.b16 %v1107
    %v1706 = vunpack.c.h.b16 %v1107
    %v1707 = vunpack.c.l.b16 %v1108
    %v1708 = vunpack.c.h.b16 %v1108
    %v1709 = vunpack.c.l.b16 %v1109
    %v1710 = vunpack.c.h.b16 %v1109
    %v1711 = vunpack.c.l.b16 %v1110
    %v1712 = vunpack.c.h.b16 %v1110
    %v1713 = vunpack.c.l.b16 %v1111
    %v1714 = vunpack.c.h.b16 %v1111
    %v1715 = vunpack.c.l.b16 %v1112
    %v1716 = vunpack.c.h.b16 %v1112
    %v1717 = vunpack.c.l.b16 %v1113
    %v1718 = vunpack.c.h.b16 %v1113
    %v1719 = vunpack.c.l.b16 %v1114
    %v1720 = vunpack.c.h.b16 %v1114
    %v1721 = vunpack.c.l.b16 %v1115
    %v1722 = vunpack.c.h.b16 %v1115
    %v1723 = vunpack.c.l.b16 %v1116
    %v1724 = vunpack.c.h.b16 %v1116
    %v1725 = vunpack.c.l.b16 %v1117
    %v1726 = vunpack.c.h.b16 %v1117
    %v1727 = vunpack.c.l.b16 %v1118
    %v1728 = vunpack.c.h.b16 %v1118
    %v1729 = vunpack.c.l.b16 %v1119
    %v1730 = vunpack.c.h.b16 %v1119
    %v1731 = vunpack.c.l.b16 %v1120
    %v1732 = vunpack.c.h.b16 %v1120
    %v1733 = vunpack.c.l.b16 %v1121
    %v1734 = vunpack.c.h.b16 %v1121
    %v1735 = vunpack.c.l.b16 %v1122
    %v1736 = vunpack.c.h.b16 %v1122
    %v1737 = vunpack.c.l.b16 %v1123
    %v1738 = vunpack.c.h.b16 %v1123
    %v1739 = vunpack.c.l.b16 %v1124
    %v1740 = vunpack.c.h.b16 %v1124
    %v1741 = vunpack.c.l.b16 %v1125
    %v1742 = vunpack.c.h.b16 %v1125
    %v1743 = vunpack.c.l.b16 %v1126
    %v1744 = vunpack.c.h.b16 %v1126
    %v1745 = vunpack.c.l.b16 %v1127
    %v1746 = vunpack.c.h.b16 %v1127
    %v1747 = vunpack.c.l.b16 %v1128
    %v1748 = vunpack.c.h.b16 %v1128
    %v1749 = vunpack.c.l.b16 %v1129
    %v1750 = vunpack.c.h.b16 %v1129
    %v1751 = vunpack.c.l.b16 %v1130
    %v1752 = vunpack.c.h.b16 %v1130
    %v1753 = vunpack.c.l.b16 %v1131
    %v1754 = vunpack.c.h.b16 %v1131
    %v1755 = vunpack.c.l.b16 %v1132
    %v1756 = vunpack.c.h.b16 %v1132
    %v1757 = vunpack.c.l.b16 %v1133
    %v1758 = vunpack.c.h.b16 %v1133
    %v1759 = vunpack.c.l.b16 %v1134
    %v1760 = vunpack.c.h.b16 %v1134
    %v1761 = vunpack.c.l.b16 %v1135
    %v1762 = vunpack.c.h.b16 %v1135
    %v1763 = vunpack.c.l.b16 %v1136
    %v1764 = vunpack.c.h.b16 %v1136
    %v1765 = vunpack.c.l.b16 %v1137
    %v1766 = vunpack.c.h.b16 %v1137
    %v1767 = vunpack.c.l.b16 %v1138
    %v1768 = vunpack.c.h.b16 %v1138
    %v1769 = vunpack.c.l.b16 %v1139
    %v1770 = vunpack.c.h.b16 %v1139
    %v1771 = vunpack.c.l.b16 %v1140
    %v1772 = vunpack.c.h.b16 %v1140
    %v1773 = vunpack.c.l.b16 %v1141
    %v1774 = vunpack.c.h.b16 %v1141
    %v1775 = vunpack.c.l.b16 %v1142
    %v1776 = vunpack.c.h.b16 %v1142
    %v1777 = vunpack.c.l.b16 %v1143
    %v1778 = vunpack.c.h.b16 %v1143
    %v1779 = vunpack.c.l.b16 %v1144
    %v1780 = vunpack.c.h.b16 %v1144
    %v1781 = vunpack.c.l.b16 %v1145
    %v1782 = vunpack.c.h.b16 %v1145
    %v1783 = vunpack.c.l.b16 %v1146
    %v1784 = vunpack.c.h.b16 %v1146
    %v1785 = vunpack.c.l.b16 %v1147
    %v1786 = vunpack.c.h.b16 %v1147
    %v1787 = vunpack.c.l.b16 %v1148
    %v1788 = vunpack.c.h.b16 %v1148
    %v1789 = vunpack.c.l.b16 %v1149
    %v1790 = vunpack.c.h.b16 %v1149
    %v1791 = vunpack.c.l.b16 %v1150
    %v1792 = vunpack.c.h.b16 %v1150
    %v1793 = vunpack.c.l.b16 %v1151
    %v1794 = vunpack.c.h.b16 %v1151
    %v1795 = vunpack.c.l.b16 %v1152
    %v1796 = vunpack.c.h.b16 %v1152
    %v1797 = vunpack.c.l.b16 %v1153
    %v1798 = vunpack.c.h.b16 %v1153
    %v1799 = vunpack.c.l.b16 %v1154
    %v1800 = vunpack.c.h.b16 %v1154
    %v1801 = vunpack.c.l.b16 %v1155
    %v1802 = vunpack.c.h.b16 %v1155
    %v1803 = vunpack.c.l.b16 %v1156
    %v1804 = vunpack.c.h.b16 %v1156
    %v1805 = vunpack.c.l.b16 %v1157
    %v1806 = vunpack.c.h.b16 %v1157
    %v1807 = vunpack.c.l.b16 %v1158
    %v1808 = vunpack.c.h.b16 %v1158
    %v1809 = vunpack.c.l.b16 %v1159
    %v1810 = vunpack.c.h.b16 %v1159
    %v1811 = vunpack.c.l.b16 %v1160
    %v1812 = vunpack.c.h.b16 %v1160
    %v1813 = vunpack.c.l.b16 %v1161
    %v1814 = vunpack.c.h.b16 %v1161
    %v1815 = vunpack.c.l.b16 %v1162
    %v1816 = vunpack.c.h.b16 %v1162
    %v1817 = vunpack.c.l.b16 %v1163
    %v1818 = vunpack.c.h.b16 %v1163
    %v1819 = vunpack.c.l.b16 %v1164
    %v1820 = vunpack.c.h.b16 %v1164
    %v1821 = vunpack.c.l.b16 %v1165
    %v1822 = vunpack.c.h.b16 %v1165
    %v1823 = vunpack.c.l.b16 %v1166
    %v1824 = vunpack.c.h.b16 %v1166
    %v1825 = vunpack.c.l.b16 %v1167
    %v1826 = vunpack.c.h.b16 %v1167
    %v1827 = vunpack.c.l.b16 %v1168
    %v1828 = vunpack.c.h.b16 %v1168
    %v1829 = vunpack.c.l.b16 %v1169
    %v1830 = vunpack.c.h.b16 %v1169
    %v1831 = vunpack.c.l.b16 %v1170
    %v1832 = vunpack.c.h.b16 %v1170
    %v1833 = vunpack.c.l.b16 %v1171
    %v1834 = vunpack.c.h.b16 %v1171
    %v1835 = vunpack.c.l.b16 %v1172
    %v1836 = vunpack.c.h.b16 %v1172
    %v1837 = vunpack.c.l.b16 %v1173
    %v1838 = vunpack.c.h.b16 %v1173
    %v1839 = vunpack.c.l.b16 %v1174
    %v1840 = vunpack.c.h.b16 %v1174
    %v1841 = vunpack.c.l.b16 %v1175
    %v1842 = vunpack.c.h.b16 %v1175
    %v1843 = vunpack.c.l.b16 %v1176
    %v1844 = vunpack.c.h.b16 %v1176
    %v1845 = vunpack.c.l.b16 %v1177
    %v1846 = vunpack.c.h.b16 %v1177
    %v1847 = vunpack.c.l.b16 %v1178
    %v1848 = vunpack.c.h.b16 %v1178
    %v1849 = vunpack.c.l.b16 %v1179
    %v1850 = vunpack.c.h.b16 %v1179
    %v1851 = vunpack.c.l.b16 %v1180
    %v1852 = vunpack.c.h.b16 %v1180
    %v1853 = vunpack.c.l.b16 %v1181
    %v1854 = vunpack.c.h.b16 %v1181
    %v1855 = vunpack.c.l.b16 %v1182
    %v1856 = vunpack.c.h.b16 %v1182
    %v1857 = vunpack.c.l.b16 %v1183
    %v1858 = vunpack.c.h.b16 %v1183
    %v1859 = vunpack.c.l.b16 %v1184
    %v1860 = vunpack.c.h.b16 %v1184
    %v1861 = vunpack.c.l.b16 %v1185
    %v1862 = vunpack.c.h.b16 %v1185
    %v1863 = vunpack.c.l.b16 %v1186
    %v1864 = vunpack.c.h.b16 %v1186
    %v1865 = vunpack.c.l.b16 %v1187
    %v1866 = vunpack.c.h.b16 %v1187
    %v1867 = vunpack.c.l.b16 %v1188
    %v1868 = vunpack.c.h.b16 %v1188
    %v1869 = vunpack.c.l.b16 %v1189
    %v1870 = vunpack.c.h.b16 %v1189
    %v1871 = vunpack.c.l.b16 %v1190
    %v1872 = vunpack.c.h.b16 %v1190
    %v1873 = vunpack.c.l.b16 %v1191
    %v1874 = vunpack.c.h.b16 %v1191
    %v1875 = vunpack.c.l.b16 %v1192
    %v1876 = vunpack.c.h.b16 %v1192
    %v1877 = vunpack.c.l.b16 %v1193
    %v1878 = vunpack.c.h.b16 %v1193
    %v1879 = vunpack.c.l.b16 %v1194
    %v1880 = vunpack.c.h.b16 %v1194
    %v1881 = vunpack.c.l.b16 %v1195
    %v1882 = vunpack.c.h.b16 %v1195
    %v1883 = vunpack.c.l.b16 %v1196
    %v1884 = vunpack.c.h.b16 %v1196
    %v1885 = vunpack.c.l.b16 %v1197
    %v1886 = vunpack.c.h.b16 %v1197
    %v1887 = vunpack.c.l.b16 %v1198
    %v1888 = vunpack.c.h.b16 %v1198
    %v1889 = vunpack.c.l.b16 %v1199
    %v1890 = vunpack.c.h.b16 %v1199
    %v1891 = vunpack.c.l.b16 %v1200
    %v1892 = vunpack.c.h.b16 %v1200
    %v1893 = vunpack.c.l.b16 %v1201
    %v1894 = vunpack.c.h.b16 %v1201
    %v1895 = vunpack.c.l.b16 %v1202
    %v1896 = vunpack.c.h.b16 %v1202
    %v1897 = vunpack.c.l.b16 %v1203
    %v1898 = vunpack.c.h.b16 %v1203
    %v1899 = vunpack.c.l.b16 %v1204
    %v1900 = vunpack.c.h.b16 %v1204
    %v1901 = vunpack.c.l.b16 %v1205
    %v1902 = vunpack.c.h.b16 %v1205
    %v1903 = vunpack.c.l.b16 %v1206
    %v1904 = vunpack.c.h.b16 %v1206
    %v1905 = vunpack.c.l.b16 %v1207
    %v1906 = vunpack.c.h.b16 %v1207
    %v1907 = vunpack.c.l.b16 %v1208
    %v1908 = vunpack.c.h.b16 %v1208
    %v1909 = vunpack.c.l.b16 %v1209
    %v1910 = vunpack.c.h.b16 %v1209
    %v1911 = vunpack.c.l.b16 %v1210
    %v1912 = vunpack.c.h.b16 %v1210
    %v1913 = vunpack.c.l.b16 %v1211
    %v1914 = vunpack.c.h.b16 %v1211
    %v1915 = vunpack.c.l.b16 %v1212
    %v1916 = vunpack.c.h.b16 %v1212
    %v1917 = vunpack.c.l.b16 %v1213
    %v1918 = vunpack.c.h.b16 %v1213
    %v1919 = vunpack.c.l.b16 %v1214
    %v1920 = vunpack.c.h.b16 %v1214
    %v1921 = vunpack.c.l.b16 %v1215
    %v1922 = vunpack.c.h.b16 %v1215
    %v1923 = vunpack.c.l.b16 %v1216
    %v1924 = vunpack.c.h.b16 %v1216
    %v1925 = vunpack.c.l.b16 %v1217
    %v1926 = vunpack.c.h.b16 %v1217
    %v1927 = vunpack.c.l.b16 %v1218
    %v1928 = vunpack.c.h.b16 %v1218
    %v1929 = vunpack.c.l.b16 %v1219
    %v1930 = vunpack.c.h.b16 %v1219
    %v1931 = vunpack.c.l.b16 %v1220
    %v1932 = vunpack.c.h.b16 %v1220
    %v1933 = vunpack.c.l.b16 %v1221
    %v1934 = vunpack.c.h.b16 %v1221
    %v1935 = vunpack.c.l.b16 %v1222
    %v1936 = vunpack.c.h.b16 %v1222
    %v1937 = vunpack.c.l.b16 %v1223
    %v1938 = vunpack.c.h.b16 %v1223
    %v1939 = vunpack.c.l.b16 %v1224
    %v1940 = vunpack.c.h.b16 %v1224
    %v1941 = vunpack.c.l.b16 %v1225
    %v1942 = vunpack.c.h.b16 %v1225
    %v1943 = vunpack.c.l.b16 %v1226
    %v1944 = vunpack.c.h.b16 %v1226
    %v1945 = vunpack.c.l.b16 %v1227
    %v1946 = vunpack.c.h.b16 %v1227
    %v1947 = vunpack.c.l.b16 %v1228
    %v1948 = vunpack.c.h.b16 %v1228
    %v1949 = vunpack.c.l.b16 %v1229
    %v1950 = vunpack.c.h.b16 %v1229
    %v1951 = vunpack.c.l.b16 %v1230
    %v1952 = vunpack.c.h.b16 %v1230
    %v1953 = vunpack.c.l.b16 %v1231
    %v1954 = vunpack.c.h.b16 %v1231
    %v1955 = vunpack.c.l.b16 %v1232
    %v1956 = vunpack.c.h.b16 %v1232
    %v1957 = vunpack.c.l.b16 %v1233
    %v1958 = vunpack.c.h.b16 %v1233
    %v1959 = vunpack.c.l.b16 %v1234
    %v1960 = vunpack.c.h.b16 %v1234
    %v1961 = vunpack.c.l.b16 %v1235
    %v1962 = vunpack.c.h.b16 %v1235
    %v1963 = vunpack.c.l.b16 %v1236
    %v1964 = vunpack.c.h.b16 %v1236
    %v1965 = vunpack.c.l.b16 %v1237
    %v1966 = vunpack.c.h.b16 %v1237
    %v1967 = vunpack.c.l.b16 %v1238
    %v1968 = vunpack.c.h.b16 %v1238
    %v1969 = vunpack.c.l.b16 %v1239
    %v1970 = vunpack.c.h.b16 %v1239
    %v1971 = vunpack.c.l.b16 %v1240
    %v1972 = vunpack.c.h.b16 %v1240
    %v1973 = vunpack.c.l.b16 %v1241
    %v1974 = vunpack.c.h.b16 %v1241
    %v1975 = vunpack.c.l.b16 %v1242
    %v1976 = vunpack.c.h.b16 %v1242
    %v1977 = vunpack.c.l.b16 %v1243
    %v1978 = vunpack.c.h.b16 %v1243
    %v1979 = vunpack.c.l.b16 %v1244
    %v1980 = vunpack.c.h.b16 %v1244
    %v1981 = vunpack.c.l.b16 %v1245
    %v1982 = vunpack.c.h.b16 %v1245
    %v1983 = vunpack.c.l.b16 %v1246
    %v1984 = vunpack.c.h.b16 %v1246
    %v1985 = vunpack.c.l.b16 %v1247
    %v1986 = vunpack.c.h.b16 %v1247
    %v1987 = vunpack.c.l.b16 %v1248
    %v1988 = vunpack.c.h.b16 %v1248
    %v1989 = vunpack.c.l.b16 %v1249
    %v1990 = vunpack.c.h.b16 %v1249
    %v1991 = vunpack.c.l.b16 %v1250
    %v1992 = vunpack.c.h.b16 %v1250
    %v1993 = vunpack.c.l.b16 %v1251
    %v1994 = vunpack.c.h.b16 %v1251
    %v1995 = vunpack.c.l.b16 %v1252
    %v1996 = vunpack.c.h.b16 %v1252
    %v1997 = vunpack.c.l.b16 %v1253
    %v1998 = vunpack.c.h.b16 %v1253
    %v1999 = vunpack.c.l.b16 %v1254
    %v2000 = vunpack.c.h.b16 %v1254
    %v2001 = vunpack.c.l.b16 %v1255
    %v2002 = vunpack.c.h.b16 %v1255
    %v2003 = vunpack.c.l.b16 %v1256
    %v2004 = vunpack.c.h.b16 %v1256
    %v2005 = vunpack.c.l.b16 %v1257
    %v2006 = vunpack.c.h.b16 %v1257
    %v2007 = vunpack.c.l.b16 %v1258
    %v2008 = vunpack.c.h.b16 %v1258
    %v2009 = vunpack.c.l.b16 %v1259
    %v2010 = vunpack.c.h.b16 %v1259
    %v2011 = vunpack.c.l.b16 %v1260
    %v2012 = vunpack.c.h.b16 %v1260
    %v2013 = vunpack.c.l.b16 %v1261
    %v2014 = vunpack.c.h.b16 %v1261
    %v2015 = vunpack.c.l.b16 %v1262
    %v2016 = vunpack.c.h.b16 %v1262
    %v2017 = vunpack.c.l.b16 %v1263
    %v2018 = vunpack.c.h.b16 %v1263
    %v2019 = vunpack.c.l.b16 %v1264
    %v2020 = vunpack.c.h.b16 %v1264
    %v2021 = vunpack.c.l.b16 %v1265
    %v2022 = vunpack.c.h.b16 %v1265
    %v2023 = vunpack.c.l.b16 %v1266
    %v2024 = vunpack.c.h.b16 %v1266
    %v2025 = vunpack.c.l.b16 %v1267
    %v2026 = vunpack.c.h.b16 %v1267
    %v2027 = vunpack.c.l.b16 %v1268
    %v2028 = vunpack.c.h.b16 %v1268
    %v2029 = vunpack.c.l.b16 %v1269
    %v2030 = vunpack.c.h.b16 %v1269
    %v2031 = vunpack.c.l.b16 %v1270
    %v2032 = vunpack.c.h.b16 %v1270
    %v2033 = vunpack.c.l.b16 %v1271
    %v2034 = vunpack.c.h.b16 %v1271
    %v2035 = vunpack.c.l.b16 %v1272
    %v2036 = vunpack.c.h.b16 %v1272
    %v2037 = vunpack.c.l.b16 %v1273
    %v2038 = vunpack.c.h.b16 %v1273
    %v2039 = vunpack.c.l.b16 %v1274
    %v2040 = vunpack.c.h.b16 %v1274
    %v2041 = vunpack.c.l.b16 %v1275
    %v2042 = vunpack.c.h.b16 %v1275
    %v2043 = vunpack.c.l.b16 %v1276
    %v2044 = vunpack.c.h.b16 %v1276
    %v2045 = vunpack.c.l.b16 %v1277
    %v2046 = vunpack.c.h.b16 %v1277
    %v2047 = vunpack.c.l.b16 %v1278
    %v2048 = vunpack.c.h.b16 %v1278
    %v2049 = vunpack.c.l.b16 %v1279
    %v2050 = vunpack.c.h.b16 %v1279
    %v2051 = vunpack.c.l.b16 %v1280
    %v2052 = vunpack.c.h.b16 %v1280
    %v2053 = vunpack.c.l.b16 %v1281
    %v2054 = vunpack.c.h.b16 %v1281
    %v2055 = vunpack.c.l.b16 %v1282
    %v2056 = vunpack.c.h.b16 %v1282
    %v2057 = vunpack.c.l.b16 %v1283
    %v2058 = vunpack.c.h.b16 %v1283
    %v2059 = vunpack.c.l.b16 %v1284
    %v2060 = vunpack.c.h.b16 %v1284
    %v2061 = vunpack.c.l.b16 %v1285
    %v2062 = vunpack.c.h.b16 %v1285
    %v2063 = vunpack.c.l.b16 %v1286
    %v2064 = vunpack.c.h.b16 %v1286
    %v2065 = vunpack.c.l.b16 %v1287
    %v2066 = vunpack.c.h.b16 %v1287
    %v2067 = vunpack.c.l.b16 %v1288
    %v2068 = vunpack.c.h.b16 %v1288
    %v2069 = vunpack.c.l.b16 %v1289
    %v2070 = vunpack.c.h.b16 %v1289
    %v2071 = vunpack.c.l.b16 %v1290
    %v2072 = vunpack.c.h.b16 %v1290
    %v2073 = vunpack.c.l.b16 %v1291
    %v2074 = vunpack.c.h.b16 %v1291
    %v2075 = vunpack.c.l.b16 %v1292
    %v2076 = vunpack.c.h.b16 %v1292
    %v2077 = vunpack.c.l.b16 %v1293
    %v2078 = vunpack.c.h.b16 %v1293
    %v2079 = vunpack.c.l.b16 %v1294
    %v2080 = vunpack.c.h.b16 %v1294
    %v2081 = vunpack.c.l.b16 %v1295
    %v2082 = vunpack.c.h.b16 %v1295
    %v2083 = vunpack.c.l.b16 %v1296
    %v2084 = vunpack.c.h.b16 %v1296
    %v2085 = vunpack.c.l.b16 %v1297
    %v2086 = vunpack.c.h.b16 %v1297
    %v2087 = vunpack.c.l.b16 %v1298
    %v2088 = vunpack.c.h.b16 %v1298
    %v2089 = vpack.c.b16 %v1581, %v1577
    %v2090 = vpack.c.b16 %v1582, %v1578
    %v2091 = vpack.c.b16 %v1583, %v1579
    %v2092 = vpack.c.b16 %v1584, %v1580
    %v2093 = vpack.c.b16 %v1589, %v1585
    %v2094 = vpack.c.b16 %v1590, %v1586
    %v2095 = vpack.c.b16 %v1591, %v1587
    %v2096 = vpack.c.b16 %v1592, %v1588
    %v2097 = vpack.c.b16 %v1597, %v1593
    %v2098 = vpack.c.b16 %v1598, %v1594
    %v2099 = vpack.c.b16 %v1599, %v1595
    %v2100 = vpack.c.b16 %v1600, %v1596
    %v2101 = vpack.c.b16 %v1605, %v1601
    %v2102 = vpack.c.b16 %v1606, %v1602
    %v2103 = vpack.c.b16 %v1607, %v1603
    %v2104 = vpack.c.b16 %v1608, %v1604
    %v2105 = vpack.c.b16 %v1613, %v1609
    %v2106 = vpack.c.b16 %v1614, %v1610
    %v2107 = vpack.c.b16 %v1615, %v1611
    %v2108 = vpack.c.b16 %v1616, %v1612
    %v2109 = vpack.c.b16 %v1621, %v1617
    %v2110 = vpack.c.b16 %v1622, %v1618
    %v2111 = vpack.c.b16 %v1623, %v1619
    %v2112 = vpack.c.b16 %v1624, %v1620
    %v2113 = vpack.c.b16 %v1629, %v1625
    %v2114 = vpack.c.b16 %v1630, %v1626
    %v2115 = vpack.c.b16 %v1631, %v1627
    %v2116 = vpack.c.b16 %v1632, %v1628
    %v2117 = vpack.c.b16 %v1637, %v1633
    %v2118 = vpack.c.b16 %v1638, %v1634
    %v2119 = vpack.c.b16 %v1639, %v1635
    %v2120 = vpack.c.b16 %v1640, %v1636
    %v2121 = vpack.c.b16 %v1645, %v1641
    %v2122 = vpack.c.b16 %v1646, %v1642
    %v2123 = vpack.c.b16 %v1647, %v1643
    %v2124 = vpack.c.b16 %v1648, %v1644
    %v2125 = vpack.c.b16 %v1653, %v1649
    %v2126 = vpack.c.b16 %v1654, %v1650
    %v2127 = vpack.c.b16 %v1655, %v1651
    %v2128 = vpack.c.b16 %v1656, %v1652
    %v2129 = vpack.c.b16 %v1661, %v1657
    %v2130 = vpack.c.b16 %v1662, %v1658
    %v2131 = vpack.c.b16 %v1663, %v1659
    %v2132 = vpack.c.b16 %v1664, %v1660
    %v2133 = vpack.c.b16 %v1669, %v1665
    %v2134 = vpack.c.b16 %v1670, %v1666
    %v2135 = vpack.c.b16 %v1671, %v1667
    %v2136 = vpack.c.b16 %v1672, %v1668
    %v2137 = vpack.c.b16 %v1677, %v1673
    %v2138 = vpack.c.b16 %v1678, %v1674
    %v2139 = vpack.c.b16 %v1679, %v1675
    %v2140 = vpack.c.b16 %v1680, %v1676
    %v2141 = vpack.c.b16 %v1685, %v1681
    %v2142 = vpack.c.b16 %v1686, %v1682
    %v2143 = vpack.c.b16 %v1687, %v1683
    %v2144 = vpack.c.b16 %v1688, %v1684
    %v2145 = vpack.c.b16 %v1693, %v1689
    %v2146 = vpack.c.b16 %v1694, %v1690
    %v2147 = vpack.c.b16 %v1695, %v1691
    %v2148 = vpack.c.b16 %v1696, %v1692
    %v2149 = vpack.c.b16 %v1701, %v1697
    %v2150 = vpack.c.b16 %v1702, %v1698
    %v2151 = vpack.c.b16 %v1703, %v1699
    %v2152 = vpack.c.b16 %v1704, %v1700
    %v2153 = vpack.c.b16 %v1709, %v1705
    %v2154 = vpack.c.b16 %v1710, %v1706
    %v2155 = vpack.c.b16 %v1711, %v1707
    %v2156 = vpack.c.b16 %v1712, %v1708
    %v2157 = vpack.c.b16 %v1717, %v1713
    %v2158 = vpack.c.b16 %v1718, %v1714
    %v2159 = vpack.c.b16 %v1719, %v1715
    %v2160 = vpack.c.b16 %v1720, %v1716
    %v2161 = vpack.c.b16 %v1725, %v1721
    %v2162 = vpack.c.b16 %v1726, %v1722
    %v2163 = vpack.c.b16 %v1727, %v1723
    %v2164 = vpack.c.b16 %v1728, %v1724
    %v2165 = vpack.c.b16 %v1733, %v1729
    %v2166 = vpack.c.b16 %v1734, %v1730
    %v2167 = vpack.c.b16 %v1735, %v1731
    %v2168 = vpack.c.b16 %v1736, %v1732
    %v2169 = vpack.c.b16 %v1741, %v1737
    %v2170 = vpack.c.b16 %v1742, %v1738
    %v2171 = vpack.c.b16 %v1743, %v1739
    %v2172 = vpack.c.b16 %v1744, %v1740
    %v2173 = vpack.c.b16 %v1749, %v1745
    %v2174 = vpack.c.b16 %v1750, %v1746
    %v2175 = vpack.c.b16 %v1751, %v1747
    %v2176 = vpack.c.b16 %v1752, %v1748
    %v2177 = vpack.c.b16 %v1757, %v1753
    %v2178 = vpack.c.b16 %v1758, %v1754
    %v2179 = vpack.c.b16 %v1759, %v1755
    %v2180 = vpack.c.b16 %v1760, %v1756
    %v2181 = vpack.c.b16 %v1765, %v1761
    %v2182 = vpack.c.b16 %v1766, %v1762
    %v2183 = vpack.c.b16 %v1767, %v1763
    %v2184 = vpack.c.b16 %v1768, %v1764
    %v2185 = vpack.c.b16 %v1773, %v1769
    %v2186 = vpack.c.b16 %v1774, %v1770
    %v2187 = vpack.c.b16 %v1775, %v1771
    %v2188 = vpack.c.b16 %v1776, %v1772
    %v2189 = vpack.c.b16 %v1781, %v1777
    %v2190 = vpack.c.b16 %v1782, %v1778
    %v2191 = vpack.c.b16 %v1783, %v1779
    %v2192 = vpack.c.b16 %v1784, %v1780
    %v2193 = vpack.c.b16 %v1789, %v1785
    %v2194 = vpack.c.b16 %v1790, %v1786
    %v2195 = vpack.c.b16 %v1791, %v1787
    %v2196 = vpack.c.b16 %v1792, %v1788
    %v2197 = vpack.c.b16 %v1797, %v1793
    %v2198 = vpack.c.b16 %v1798, %v1794
    %v2199 = vpack.c.b16 %v1799, %v1795
    %v2200 = vpack.c.b16 %v1800, %v1796
    %v2201 = vpack.c.b16 %v1805, %v1801
    %v2202 = vpack.c.b16 %v1806, %v1802
    %v2203 = vpack.c.b16 %v1807, %v1803
    %v2204 = vpack.c.b16 %v1808, %v1804
    %v2205 = vpack.c.b16 %v1813, %v1809
    %v2206 = vpack.c.b16 %v1814, %v1810
    %v2207 = vpack.c.b16 %v1815, %v1811
    %v2208 = vpack.c.b16 %v1816, %v1812
    %v2209 = vpack.c.b16 %v1821, %v1817
    %v2210 = vpack.c.b16 %v1822, %v1818
    %v2211 = vpack.c.b16 %v1823, %v1819
    %v2212 = vpack.c.b16 %v1824, %v1820
    %v2213 = vpack.c.b16 %v1829, %v1825
    %v2214 = vpack.c.b16 %v1830, %v1826
    %v2215 = vpack.c.b16 %v1831, %v1827
    %v2216 = vpack.c.b16 %v1832, %v1828
    %v2217 = vpack.c.b16 %v1837, %v1833
    %v2218 = vpack.c.b16 %v1838, %v1834
    %v2219 = vpack.c.b16 %v1839, %v1835
    %v2220 = vpack.c.b16 %v1840, %v1836
    %v2221 = vpack.c.b16 %v1845, %v1841
    %v2222 = vpack.c.b16 %v1846, %v1842
    %v2223 = vpack.c.b16 %v1847, %v1843
    %v2224 = vpack.c.b16 %v1848, %v1844
    %v2225 = vpack.c.b16 %v1853, %v1849
    %v2226 = vpack.c.b16 %v1854, %v1850
    %v2227 = vpack.c.b16 %v1855, %v1851
    %v2228 = vpack.c.b16 %v1856, %v1852
    %v2229 = vpack.c.b16 %v1861, %v1857
    %v2230 = vpack.c.b16 %v1862, %v1858
    %v2231 = vpack.c.b16 %v1863, %v1859
    %v2232 = vpack.c.b16 %v1864, %v1860
    %v2233 = vpack.c.b16 %v1869, %v1865
    %v2234 = vpack.c.b16 %v1870, %v1866
    %v2235 = vpack.c.b16 %v1871, %v1867
    %v2236 = vpack.c.b16 %v1872, %v1868
    %v2237 = vpack.c.b16 %v1877, %v1873
    %v2238 = vpack.c.b16 %v1878, %v1874
    %v2239 = vpack.c.b16 %v1879, %v1875
    %v2240 = vpack.c.b16 %v1880, %v1876
    %v2241 = vpack.c.b16 %v1885, %v1881
    %v2242 = vpack.c.b16 %v1886, %v1882
    %v2243 = vpack.c.b16 %v1887, %v1883
    %v2244 = vpack.c.b16 %v1888, %v1884
    %v2245 = vpack.c.b16 %v1893, %v1889
    %v2246 = vpack.c.b16 %v1894, %v1890
    %v2247 = vpack.c.b16 %v1895, %v1891
    %v2248 = vpack.c.b16 %v1896, %v1892
    %v2249 = vpack.c.b16 %v1901, %v1897
    %v2250 = vpack.c.b16 %v1902, %v1898
    %v2251 = vpack.c.b16 %v1903, %v1899
    %v2252 = vpack.c.b16 %v1904, %v1900
    %v2253 = vpack.c.b16 %v1909, %v1905
    %v2254 = vpack.c.b16 %v1910, %v1906
    %v2255 = vpack.c.b16 %v1911, %v1907
    %v2256 = vpack.c.b16 %v1912, %v1908
    %v2257 = vpack.c.b16 %v1917, %v1913
    %v2258 = vpack.c.b16 %v1918, %v1914
    %v2259 = vpack.c.b16 %v1919, %v1915
    %v2260 = vpack.c.b16 %v1920, %v1916
    %v2261 = vpack.c.b16 %v1925, %v1921
    %v2262 = vpack.c.b16 %v1926, %v1922
    %v2263 = vpack.c.b16 %v1927, %v1923
    %v2264 = vpack.c.b16 %v1928, %v1924
    %v2265 = vpack.c.b16 %v1933, %v1929
    %v2266 = vpack.c.b16 %v1934, %v1930
    %v2267 = vpack.c.b16 %v1935, %v1931
    %v2268 = vpack.c.b16 %v1936, %v1932
    %v2269 = vpack.c.b16 %v1941, %v1937
    %v2270 = vpack.c.b16 %v1942, %v1938
    %v2271 = vpack.c.b16 %v1943, %v1939
    %v2272 = vpack.c.b16 %v1944, %v1940
    %v2273 = vpack.c.b16 %v1949, %v1945
    %v2274 = vpack.c.b16 %v1950, %v1946
    %v2275 = vpack.c.b16 %v1951, %v1947
    %v2276 = vpack.c.b16 %v1952, %v1948
    %v2277 = vpack.c.b16 %v1957, %v1953
    %v2278 = vpack.c.b16 %v1958, %v1954
    %v2279 = vpack.c.b16 %v1959, %v1955
    %v2280 = vpack.c.b16 %v1960, %v1956
    %v2281 = vpack.c.b16 %v1965, %v1961
    %v2282 = vpack.c.b16 %v1966, %v1962
    %v2283 = vpack.c.b16 %v1967, %v1963
    %v2284 = vpack.c.b16 %v1968, %v1964
    %v2285 = vpack.c.b16 %v1973, %v1969
    %v2286 = vpack.c.b16 %v1974, %v1970
    %v2287 = vpack.c.b16 %v1975, %v1971
    %v2288 = vpack.c.b16 %v1976, %v1972
    %v2289 = vpack.c.b16 %v1981, %v1977
    %v2290 = vpack.c.b16 %v1982, %v1978
    %v2291 = vpack.c.b16 %v1983, %v1979
    %v2292 = vpack.c.b16 %v1984, %v1980
    %v2293 = vpack.c.b16 %v1989, %v1985
    %v2294 = vpack.c.b16 %v1990, %v1986
    %v2295 = vpack.c.b16 %v1991, %v1987
    %v2296 = vpack.c.b16 %v1992, %v1988
    %v2297 = vpack.c.b16 %v1997, %v1993
    %v2298 = vpack.c.b16 %v1998, %v1994
    %v2299 = vpack.c.b16 %v1999, %v1995
    %v2300 = vpack.c.b16 %v2000, %v1996
    %v2301 = vpack.c.b16 %v2005, %v2001
    %v2302 = vpack.c.b16 %v2006, %v2002
    %v2303 = vpack.c.b16 %v2007, %v2003
    %v2304 = vpack.c.b16 %v2008, %v2004
    %v2305 = vpack.c.b16 %v2013, %v2009
    %v2306 = vpack.c.b16 %v2014, %v2010
    %v2307 = vpack.c.b16 %v2015, %v2011
    %v2308 = vpack.c.b16 %v2016, %v2012
    %v2309 = vpack.c.b16 %v2021, %v2017
    %v2310 = vpack.c.b16 %v2022, %v2018
    %v2311 = vpack.c.b16 %v2023, %v2019
    %v2312 = vpack.c.b16 %v2024, %v2020
    %v2313 = vpack.c.b16 %v2029, %v2025
    %v2314 = vpack.c.b16 %v2030, %v2026
    %v2315 = vpack.c.b16 %v2031, %v2027
    %v2316 = vpack.c.b16 %v2032, %v2028
    %v2317 = vpack.c.b16 %v2037, %v2033
    %v2318 = vpack.c.b16 %v2038, %v2034
    %v2319 = vpack.c.b16 %v2039, %v2035
    %v2320 = vpack.c.b16 %v2040, %v2036
    %v2321 = vpack.c.b16 %v2045, %v2041
    %v2322 = vpack.c.b16 %v2046, %v2042
    %v2323 = vpack.c.b16 %v2047, %v2043
    %v2324 = vpack.c.b16 %v2048, %v2044
    %v2325 = vpack.c.b16 %v2053, %v2049
    %v2326 = vpack.c.b16 %v2054, %v2050
    %v2327 = vpack.c.b16 %v2055, %v2051
    %v2328 = vpack.c.b16 %v2056, %v2052
    %v2329 = vpack.c.b16 %v2061, %v2057
    %v2330 = vpack.c.b16 %v2062, %v2058
    %v2331 = vpack.c.b16 %v2063, %v2059
    %v2332 = vpack.c.b16 %v2064, %v2060
    %v2333 = vpack.c.b16 %v2069, %v2065
    %v2334 = vpack.c.b16 %v2070, %v2066
    %v2335 = vpack.c.b16 %v2071, %v2067
    %v2336 = vpack.c.b16 %v2072, %v2068
    %v2337 = vpack.c.b16 %v2077, %v2073
    %v2338 = vpack.c.b16 %v2078, %v2074
    %v2339 = vpack.c.b16 %v2079, %v2075
    %v2340 = vpack.c.b16 %v2080, %v2076
    %v2341 = vpack.c.b16 %v2085, %v2081
    %v2342 = vpack.c.b16 %v2086, %v2082
    %v2343 = vpack.c.b16 %v2087, %v2083
    %v2344 = vpack.c.b16 %v2088, %v2084
    %2601 = vmatprep.subr.bf16.mxu0 %v2090
    %2602 = vmatpush1.bf16.msra.mxu0 %v2089
    %2603 = vmatprep.subr.bf16.mxu0 %v2094
    %2604 = vmatpush1.bf16.msra.mxu0 %v2093
    %2605 = vmatprep.subr.bf16.mxu0 %v2098
    %2606 = vmatpush1.bf16.msra.mxu0 %v2097
    %2607 = vmatprep.subr.bf16.mxu0 %v2102
    %2608 = vmatpush1.bf16.msra.mxu0 %v2101
    %2609 = vmatprep.subr.bf16.mxu0 %v2106
    %2610 = vmatpush1.bf16.msra.mxu0 %v2105
    %2611 = vmatprep.subr.bf16.mxu0 %v2110
    %2612 = vmatpush1.bf16.msra.mxu0 %v2109
    %2613 = vmatprep.subr.bf16.mxu0 %v2114
    %2614 = vmatpush1.bf16.msra.mxu0 %v2113
    %2615 = vmatprep.subr.bf16.mxu0 %v2118
    %2616 = vmatpush1.bf16.msra.mxu0 %v2117
    %2617 = vmatprep.subr.bf16.mxu0 %v2122
    %2618 = vmatpush1.bf16.msra.mxu0 %v2121
    %2619 = vmatprep.subr.bf16.mxu0 %v2126
    %2620 = vmatpush1.bf16.msra.mxu0 %v2125
    %2621 = vmatprep.subr.bf16.mxu0 %v2130
    %2622 = vmatpush1.bf16.msra.mxu0 %v2129
    %2623 = vmatprep.subr.bf16.mxu0 %v2134
    %2624 = vmatpush1.bf16.msra.mxu0 %v2133
    %2625 = vmatprep.subr.bf16.mxu0 %v2138
    %2626 = vmatpush1.bf16.msra.mxu0 %v2137
    %2627 = vmatprep.subr.bf16.mxu0 %v2142
    %2628 = vmatpush1.bf16.msra.mxu0 %v2141
    %2629 = vmatprep.subr.bf16.mxu0 %v2146
    %2630 = vmatpush1.bf16.msra.mxu0 %v2145
    %2631 = vmatprep.subr.bf16.mxu0 %v2150
    %2632 = vmatpush1.bf16.msra.mxu0 %v2149
    %2633 = vmatprep.mubr.bf16.mxu0 %v1036
    %2634 = vmatmul.mubr.bf16.gmra.mrb[0].mxu0 %v1035
    %v2635 = vpop.f32.mrb[0].mxu0
    %v2636 = vadd.f32 %v1304, %v2635
    %v2637 = vpop.f32.mrb[0].mxu0
    %v2638 = vadd.f32 %v1308, %v2637
    %v2639 = vpop.f32.mrb[0].mxu0
    %v2640 = vpop.f32.mrb[0].mxu0
    %2641 = vdwg.mxu0
    %2642 = vmatprep.subr.bf16.mxu0 %v2154
    %2643 = vmatpush1.bf16.msra.mxu0 %v2153
    %2644 = vmatprep.subr.bf16.mxu0 %v2158
    %2645 = vmatpush1.bf16.msra.mxu0 %v2157
    %2646 = vmatprep.subr.bf16.mxu0 %v2162
    %2647 = vmatpush1.bf16.msra.mxu0 %v2161
    %2648 = vmatprep.subr.bf16.mxu0 %v2166
    %2649 = vmatpush1.bf16.msra.mxu0 %v2165
    %2650 = vmatprep.subr.bf16.mxu0 %v2170
    %2651 = vmatpush1.bf16.msra.mxu0 %v2169
    %2652 = vmatprep.subr.bf16.mxu0 %v2174
    %2653 = vmatpush1.bf16.msra.mxu0 %v2173
    %2654 = vmatprep.subr.bf16.mxu0 %v2178
    %2655 = vmatpush1.bf16.msra.mxu0 %v2177
    %2656 = vmatprep.subr.bf16.mxu0 %v2182
    %2657 = vmatpush1.bf16.msra.mxu0 %v2181
    %2658 = vmatprep.subr.bf16.mxu0 %v2186
    %2659 = vmatpush1.bf16.msra.mxu0 %v2185
    %2660 = vmatprep.subr.bf16.mxu0 %v2190
    %2661 = vmatpush1.bf16.msra.mxu0 %v2189
    %2662 = vmatprep.subr.bf16.mxu0 %v2194
    %2663 = vmatpush1.bf16.msra.mxu0 %v2193
    %2664 = vmatprep.subr.bf16.mxu0 %v2198
    %2665 = vmatpush1.bf16.msra.mxu0 %v2197
    %2666 = vmatprep.subr.bf16.mxu0 %v2202
    %2667 = vmatpush1.bf16.msra.mxu0 %v2201
    %2668 = vmatprep.subr.bf16.mxu0 %v2206
    %2669 = vmatpush1.bf16.msra.mxu0 %v2205
    %2670 = vmatprep.subr.bf16.mxu0 %v2210
    %2671 = vmatpush1.bf16.msra.mxu0 %v2209
    %2672 = vmatprep.subr.bf16.mxu0 %v2214
    %2673 = vmatpush1.bf16.msra.mxu0 %v2213
    %2674 = vmatprep.mubr.bf16.mxu0 %v1038
    %2675 = vmatmul.mubr.bf16.gmra.mrb[0].mxu0 %v1037
    %v2676 = vpop.f32.mrb[0].mxu0
    %v2677 = vadd.f32 %v2636, %v2676
    %v2678 = vpop.f32.mrb[0].mxu0
    %v2679 = vadd.f32 %v2638, %v2678
    %v2680 = vpop.f32.mrb[0].mxu0
    %v2681 = vpop.f32.mrb[0].mxu0
    %2682 = vdwg.mxu0
    %2683 = vmatprep.subr.bf16.mxu0 %v2218
    %2684 = vmatpush1.bf16.msra.mxu0 %v2217
    %2685 = vmatprep.subr.bf16.mxu0 %v2222
    %2686 = vmatpush1.bf16.msra.mxu0 %v2221
    %2687 = vmatprep.subr.bf16.mxu0 %v2226
    %2688 = vmatpush1.bf16.msra.mxu0 %v2225
    %2689 = vmatprep.subr.bf16.mxu0 %v2230
    %2690 = vmatpush1.bf16.msra.mxu0 %v2229
    %2691 = vmatprep.subr.bf16.mxu0 %v2234
    %2692 = vmatpush1.bf16.msra.mxu0 %v2233
    %2693 = vmatprep.subr.bf16.mxu0 %v2238
    %2694 = vmatpush1.bf16.msra.mxu0 %v2237
    %2695 = vmatprep.subr.bf16.mxu0 %v2242
    %2696 = vmatpush1.bf16.msra.mxu0 %v2241
    %2697 = vmatprep.subr.bf16.mxu0 %v2246
    %2698 = vmatpush1.bf16.msra.mxu0 %v2245
    %2699 = vmatprep.subr.bf16.mxu0 %v2250
    %2700 = vmatpush1.bf16.msra.mxu0 %v2249
    %2701 = vmatprep.subr.bf16.mxu0 %v2254
    %2702 = vmatpush1.bf16.msra.mxu0 %v2253
    %2703 = vmatprep.subr.bf16.mxu0 %v2258
    %2704 = vmatpush1.bf16.msra.mxu0 %v2257
    %2705 = vmatprep.subr.bf16.mxu0 %v2262
    %2706 = vmatpush1.bf16.msra.mxu0 %v2261
    %2707 = vmatprep.subr.bf16.mxu0 %v2266
    %2708 = vmatpush1.bf16.msra.mxu0 %v2265
    %2709 = vmatprep.subr.bf16.mxu0 %v2270
    %2710 = vmatpush1.bf16.msra.mxu0 %v2269
    %2711 = vmatprep.subr.bf16.mxu0 %v2274
    %2712 = vmatpush1.bf16.msra.mxu0 %v2273
    %2713 = vmatprep.subr.bf16.mxu0 %v2278
    %2714 = vmatpush1.bf16.msra.mxu0 %v2277
    %2715 = vmatprep.mubr.bf16.mxu0 %v1040
    %2716 = vmatmul.mubr.bf16.gmra.mrb[0].mxu0 %v1039
    %v2717 = vpop.f32.mrb[0].mxu0
    %v2718 = vadd.f32 %v2677, %v2717
    %v2719 = vpop.f32.mrb[0].mxu0
    %v2720 = vadd.f32 %v2679, %v2719
    %v2721 = vpop.f32.mrb[0].mxu0
    %v2722 = vpop.f32.mrb[0].mxu0
    %2723 = vdwg.mxu0
    %2724 = vmatprep.subr.bf16.mxu0 %v2282
    %2725 = vmatpush1.bf16.msra.mxu0 %v2281
    %2726 = vmatprep.subr.bf16.mxu0 %v2286
    %2727 = vmatpush1.bf16.msra.mxu0 %v2285
    %2728 = vmatprep.subr.bf16.mxu0 %v2290
    %2729 = vmatpush1.bf16.msra.mxu0 %v2289
    %2730 = vmatprep.subr.bf16.mxu0 %v2294
    %2731 = vmatpush1.bf16.msra.mxu0 %v2293
    %2732 = vmatprep.subr.bf16.mxu0 %v2298
    %2733 = vmatpush1.bf16.msra.mxu0 %v2297
    %2734 = vmatprep.subr.bf16.mxu0 %v2302
    %2735 = vmatpush1.bf16.msra.mxu0 %v2301
    %2736 = vmatprep.subr.bf16.mxu0 %v2306
    %2737 = vmatpush1.bf16.msra.mxu0 %v2305
    %2738 = vmatprep.subr.bf16.mxu0 %v2310
    %2739 = vmatpush1.bf16.msra.mxu0 %v2309
    %2740 = vmatprep.subr.bf16.mxu0 %v2314
    %2741 = vmatpush1.bf16.msra.mxu0 %v2313
    %2742 = vmatprep.subr.bf16.mxu0 %v2318
    %2743 = vmatpush1.bf16.msra.mxu0 %v2317
    %2744 = vmatprep.subr.bf16.mxu0 %v2322
    %2745 = vmatpush1.bf16.msra.mxu0 %v2321
    %2746 = vmatprep.subr.bf16.mxu0 %v2326
    %2747 = vmatpush1.bf16.msra.mxu0 %v2325
    %2748 = vmatprep.subr.bf16.mxu0 %v2330
    %2749 = vmatpush1.bf16.msra.mxu0 %v2329
    %2750 = vmatprep.subr.bf16.mxu0 %v2334
    %2751 = vmatpush1.bf16.msra.mxu0 %v2333
    %2752 = vmatprep.subr.bf16.mxu0 %v2338
    %2753 = vmatpush1.bf16.msra.mxu0 %v2337
    %2754 = vmatprep.subr.bf16.mxu0 %v2342
    %2755 = vmatpush1.bf16.msra.mxu0 %v2341
    %2756 = vmatprep.mubr.bf16.mxu0 %v1042
    %2757 = vmatmul.mubr.bf16.gmra.mrb[0].mxu0 %v1041
    %v2758 = vpop.f32.mrb[0].mxu0
    %v2759 = vadd.f32 %v2718, %v2758
    %v2760 = vpop.f32.mrb[0].mxu0
    %v2761 = vadd.f32 %v2720, %v2760
    %v2762 = vpop.f32.mrb[0].mxu0
    %v2763 = vpop.f32.mrb[0].mxu0
    %2764 = vdwg.mxu0
    %2765 = vmatprep.subr.bf16.mxu0 %v2092
    %2766 = vmatpush1.bf16.msra.mxu0 %v2091
    %2767 = vmatprep.subr.bf16.mxu0 %v2096
    %2768 = vmatpush1.bf16.msra.mxu0 %v2095
    %2769 = vmatprep.subr.bf16.mxu0 %v2100
    %2770 = vmatpush1.bf16.msra.mxu0 %v2099
    %2771 = vmatprep.subr.bf16.mxu0 %v2104
    %2772 = vmatpush1.bf16.msra.mxu0 %v2103
    %2773 = vmatprep.subr.bf16.mxu0 %v2108
    %2774 = vmatpush1.bf16.msra.mxu0 %v2107
    %2775 = vmatprep.subr.bf16.mxu0 %v2112
    %2776 = vmatpush1.bf16.msra.mxu0 %v2111
    %2777 = vmatprep.subr.bf16.mxu0 %v2116
    %2778 = vmatpush1.bf16.msra.mxu0 %v2115
    %2779 = vmatprep.subr.bf16.mxu0 %v2120
    %2780 = vmatpush1.bf16.msra.mxu0 %v2119
    %2781 = vmatprep.subr.bf16.mxu0 %v2124
    %2782 = vmatpush1.bf16.msra.mxu0 %v2123
    %2783 = vmatprep.subr.bf16.mxu0 %v2128
    %2784 = vmatpush1.bf16.msra.mxu0 %v2127
    %2785 = vmatprep.subr.bf16.mxu0 %v2132
    %2786 = vmatpush1.bf16.msra.mxu0 %v2131
    %2787 = vmatprep.subr.bf16.mxu0 %v2136
    %2788 = vmatpush1.bf16.msra.mxu0 %v2135
    %2789 = vmatprep.subr.bf16.mxu0 %v2140
    %2790 = vmatpush1.bf16.msra.mxu0 %v2139
    %2791 = vmatprep.subr.bf16.mxu0 %v2144
    %2792 = vmatpush1.bf16.msra.mxu0 %v2143
    %2793 = vmatprep.subr.bf16.mxu0 %v2148
    %2794 = vmatpush1.bf16.msra.mxu0 %v2147
    %2795 = vmatprep.subr.bf16.mxu0 %v2152
    %2796 = vmatpush1.bf16.msra.mxu0 %v2151
    %2797 = vmatprep.mubr.bf16.mxu0 %v1036
    %2798 = vmatmul.mubr.bf16.gmra.mrb[0].mxu0 %v1035
    %v2799 = vpop.f32.mrb[0].mxu0
    %v2800 = vadd.f32 %v1312, %v2799
    %v2801 = vpop.f32.mrb[0].mxu0
    %v2802 = vadd.f32 %v1316, %v2801
    %v2803 = vpop.f32.mrb[0].mxu0
    %v2804 = vpop.f32.mrb[0].mxu0
    %2805 = vdwg.mxu0
    %2806 = vmatprep.subr.bf16.mxu0 %v2156
    %2807 = vmatpush1.bf16.msra.mxu0 %v2155
    %2808 = vmatprep.subr.bf16.mxu0 %v2160
    %2809 = vmatpush1.bf16.msra.mxu0 %v2159
    %2810 = vmatprep.subr.bf16.mxu0 %v2164
    %2811 = vmatpush1.bf16.msra.mxu0 %v2163
    %2812 = vmatprep.subr.bf16.mxu0 %v2168
    %2813 = vmatpush1.bf16.msra.mxu0 %v2167
    %2814 = vmatprep.subr.bf16.mxu0 %v2172
    %2815 = vmatpush1.bf16.msra.mxu0 %v2171
    %2816 = vmatprep.subr.bf16.mxu0 %v2176
    %2817 = vmatpush1.bf16.msra.mxu0 %v2175
    %2818 = vmatprep.subr.bf16.mxu0 %v2180
    %2819 = vmatpush1.bf16.msra.mxu0 %v2179
    %2820 = vmatprep.subr.bf16.mxu0 %v2184
    %2821 = vmatpush1.bf16.msra.mxu0 %v2183
    %2822 = vmatprep.subr.bf16.mxu0 %v2188
    %2823 = vmatpush1.bf16.msra.mxu0 %v2187
    %2824 = vmatprep.subr.bf16.mxu0 %v2192
    %2825 = vmatpush1.bf16.msra.mxu0 %v2191
    %2826 = vmatprep.subr.bf16.mxu0 %v2196
    %2827 = vmatpush1.bf16.msra.mxu0 %v2195
    %2828 = vmatprep.subr.bf16.mxu0 %v2200
    %2829 = vmatpush1.bf16.msra.mxu0 %v2199
    %2830 = vmatprep.subr.bf16.mxu0 %v2204
    %2831 = vmatpush1.bf16.msra.mxu0 %v2203
    %2832 = vmatprep.subr.bf16.mxu0 %v2208
    %2833 = vmatpush1.bf16.msra.mxu0 %v2207
    %2834 = vmatprep.subr.bf16.mxu0 %v2212
    %2835 = vmatpush1.bf16.msra.mxu0 %v2211
    %2836 = vmatprep.subr.bf16.mxu0 %v2216
    %2837 = vmatpush1.bf16.msra.mxu0 %v2215
    %2838 = vmatprep.mubr.bf16.mxu0 %v1038
    %2839 = vmatmul.mubr.bf16.gmra.mrb[0].mxu0 %v1037
    %v2840 = vpop.f32.mrb[0].mxu0
    %v2841 = vadd.f32 %v2800, %v2840
    %v2842 = vpop.f32.mrb[0].mxu0
    %v2843 = vadd.f32 %v2802, %v2842
    %v2844 = vpop.f32.mrb[0].mxu0
    %v2845 = vpop.f32.mrb[0].mxu0
    %2846 = vdwg.mxu0
    %2847 = vmatprep.subr.bf16.mxu0 %v2220
    %2848 = vmatpush1.bf16.msra.mxu0 %v2219
    %2849 = vmatprep.subr.bf16.mxu0 %v2224
    %2850 = vmatpush1.bf16.msra.mxu0 %v2223
    %2851 = vmatprep.subr.bf16.mxu0 %v2228
    %2852 = vmatpush1.bf16.msra.mxu0 %v2227
    %2853 = vmatprep.subr.bf16.mxu0 %v2232
    %2854 = vmatpush1.bf16.msra.mxu0 %v2231
    %2855 = vmatprep.subr.bf16.mxu0 %v2236
    %2856 = vmatpush1.bf16.msra.mxu0 %v2235
    %2857 = vmatprep.subr.bf16.mxu0 %v2240
    %2858 = vmatpush1.bf16.msra.mxu0 %v2239
    %2859 = vmatprep.subr.bf16.mxu0 %v2244
    %2860 = vmatpush1.bf16.msra.mxu0 %v2243
    %2861 = vmatprep.subr.bf16.mxu0 %v2248
    %2862 = vmatpush1.bf16.msra.mxu0 %v2247
    %2863 = vmatprep.subr.bf16.mxu0 %v2252
    %2864 = vmatpush1.bf16.msra.mxu0 %v2251
    %2865 = vmatprep.subr.bf16.mxu0 %v2256
    %2866 = vmatpush1.bf16.msra.mxu0 %v2255
    %2867 = vmatprep.subr.bf16.mxu0 %v2260
    %2868 = vmatpush1.bf16.msra.mxu0 %v2259
    %2869 = vmatprep.subr.bf16.mxu0 %v2264
    %2870 = vmatpush1.bf16.msra.mxu0 %v2263
    %2871 = vmatprep.subr.bf16.mxu0 %v2268
    %2872 = vmatpush1.bf16.msra.mxu0 %v2267
    %2873 = vmatprep.subr.bf16.mxu0 %v2272
    %2874 = vmatpush1.bf16.msra.mxu0 %v2271
    %2875 = vmatprep.subr.bf16.mxu0 %v2276
    %2876 = vmatpush1.bf16.msra.mxu0 %v2275
    %2877 = vmatprep.subr.bf16.mxu0 %v2280
    %2878 = vmatpush1.bf16.msra.mxu0 %v2279
    %2879 = vmatprep.mubr.bf16.mxu0 %v1040
    %2880 = vmatmul.mubr.bf16.gmra.mrb[0].mxu0 %v1039
    %v2881 = vpop.f32.mrb[0].mxu0
    %v2882 = vadd.f32 %v2841, %v2881
    %v2883 = vpop.f32.mrb[0].mxu0
    %v2884 = vadd.f32 %v2843, %v2883
    %v2885 = vpop.f32.mrb[0].mxu0
    %v2886 = vpop.f32.mrb[0].mxu0
    %2887 = vdwg.mxu0
    %2888 = vmatprep.subr.bf16.mxu0 %v2284
    %2889 = vmatpush1.bf16.msra.mxu0 %v2283
    %2890 = vmatprep.subr.bf16.mxu0 %v2288
    %2891 = vmatpush1.bf16.msra.mxu0 %v2287
    %2892 = vmatprep.subr.bf16.mxu0 %v2292
    %2893 = vmatpush1.bf16.msra.mxu0 %v2291
    %2894 = vmatprep.subr.bf16.mxu0 %v2296
    %2895 = vmatpush1.bf16.msra.mxu0 %v2295
    %2896 = vmatprep.subr.bf16.mxu0 %v2300
    %2897 = vmatpush1.bf16.msra.mxu0 %v2299
    %2898 = vmatprep.subr.bf16.mxu0 %v2304
    %2899 = vmatpush1.bf16.msra.mxu0 %v2303
    %2900 = vmatprep.subr.bf16.mxu0 %v2308
    %2901 = vmatpush1.bf16.msra.mxu0 %v2307
    %2902 = vmatprep.subr.bf16.mxu0 %v2312
    %2903 = vmatpush1.bf16.msra.mxu0 %v2311
    %2904 = vmatprep.subr.bf16.mxu0 %v2316
    %2905 = vmatpush1.bf16.msra.mxu0 %v2315
    %2906 = vmatprep.subr.bf16.mxu0 %v2320
    %2907 = vmatpush1.bf16.msra.mxu0 %v2319
    %2908 = vmatprep.subr.bf16.mxu0 %v2324
    %2909 = vmatpush1.bf16.msra.mxu0 %v2323
    %2910 = vmatprep.subr.bf16.mxu0 %v2328
    %2911 = vmatpush1.bf16.msra.mxu0 %v2327
    %2912 = vmatprep.subr.bf16.mxu0 %v2332
    %2913 = vmatpush1.bf16.msra.mxu0 %v2331
    %2914 = vmatprep.subr.bf16.mxu0 %v2336
    %2915 = vmatpush1.bf16.msra.mxu0 %v2335
    %2916 = vmatprep.subr.bf16.mxu0 %v2340
    %2917 = vmatpush1.bf16.msra.mxu0 %v2339
    %2918 = vmatprep.subr.bf16.mxu0 %v2344
    %2919 = vmatpush1.bf16.msra.mxu0 %v2343
    %2920 = vmatprep.mubr.bf16.mxu0 %v1042
    %2921 = vmatmul.mubr.bf16.gmra.mrb[0].mxu0 %v1041
    %v2922 = vpop.f32.mrb[0].mxu0
    %v2923 = vadd.f32 %v2882, %v2922
    %v2924 = vpop.f32.mrb[0].mxu0
    %v2925 = vadd.f32 %v2884, %v2924
    %v2926 = vpop.f32.mrb[0].mxu0
    %v2927 = vpop.f32.mrb[0].mxu0
    %2928 = vdwg.mxu0
    %v2929 = vtanh.pop %v2759
    %v2930 = vtanh.pop %v2761
    %v2931 = vtanh.pop %v2923
    %v2932 = vtanh.pop %v2925
    %v2933 = vpack.c.bf16 %v2929, %v2929
    %v2934 = vpack.c.bf16 %v2930, %v2930
    %v2935 = vpack.c.bf16 %v2931, %v2931
    %v2936 = vpack.c.bf16 %v2932, %v2932
    %v2937 = vld [vmem:[%s5] sm:$0xf]
    %v2938 = vld [vmem:[%s5 + $0x4] sm:$0xf]
    %v2939 = vld [vmem:[%s5 + $0x8] sm:$0xf]
    %v2940 = vld [vmem:[%s5 + $0xc] sm:$0xf]
    %v2941 = vld [vmem:[%s5 + $0x10] sm:$0xf]
    %v2942 = vld [vmem:[%s5 + $0x14] sm:$0xf]
    %v2943 = vld [vmem:[%s5 + $0x18] sm:$0xf]
    %v2944 = vld [vmem:[%s5 + $0x1c] sm:$0xf]
    %v2945 = vld [vmem:[%s5 + $0x20] sm:$0xf]
    %v2946 = vld [vmem:[%s5 + $0x24] sm:$0xf]
    %v2947 = vld [vmem:[%s5 + $0x28] sm:$0xf]
    %v2948 = vld [vmem:[%s5 + $0x2c] sm:$0xf]
    %v2949 = vld [vmem:[%s5 + $0x30] sm:$0xf]
    %v2950 = vld [vmem:[%s5 + $0x34] sm:$0xf]
    %v2951 = vld [vmem:[%s5 + $0x38] sm:$0xf]
    %v2952 = vld [vmem:[%s5 + $0x3c] sm:$0xf]
    %v2953 = vld [vmem:[%s5 + $0x40] sm:$0xf]
    %v2954 = vld [vmem:[%s5 + $0x44] sm:$0xf]
    %v2955 = vld [vmem:[%s5 + $0x48] sm:$0xf]
    %v2956 = vld [vmem:[%s5 + $0x4c] sm:$0xf]
    %v2957 = vld [vmem:[%s5 + $0x50] sm:$0xf]
    %v2958 = vld [vmem:[%s5 + $0x54] sm:$0xf]
    %v2959 = vld [vmem:[%s5 + $0x58] sm:$0xf]
    %v2960 = vld [vmem:[%s5 + $0x5c] sm:$0xf]
    %v2961 = vld [vmem:[%s5 + $0x60] sm:$0xf]
    %v2962 = vld [vmem:[%s5 + $0x64] sm:$0xf]
    %v2963 = vld [vmem:[%s5 + $0x68] sm:$0xf]
    %v2964 = vld [vmem:[%s5 + $0x6c] sm:$0xf]
    %v2965 = vld [vmem:[%s5 + $0x70] sm:$0xf]
    %v2966 = vld [vmem:[%s5 + $0x74] sm:$0xf]
    %v2967 = vld [vmem:[%s5 + $0x78] sm:$0xf]
    %v2968 = vld [vmem:[%s5 + $0x7c] sm:$0xf]
    %v2969 = vld [vmem:[%s5 + $0x80] sm:$0xf]
    %v2970 = vld [vmem:[%s5 + $0x84] sm:$0xf]
    %v2971 = vld [vmem:[%s5 + $0x88] sm:$0xf]
    %v2972 = vld [vmem:[%s5 + $0x8c] sm:$0xf]
    %v2973 = vld [vmem:[%s5 + $0x90] sm:$0xf]
    %v2974 = vld [vmem:[%s5 + $0x94] sm:$0xf]
    %v2975 = vld [vmem:[%s5 + $0x98] sm:$0xf]
    %v2976 = vld [vmem:[%s5 + $0x9c] sm:$0xf]
    %v2977 = vld [vmem:[%s5 + $0xa0] sm:$0xf]
    %v2978 = vld [vmem:[%s5 + $0xa4] sm:$0xf]
    %v2979 = vld [vmem:[%s5 + $0xa8] sm:$0xf]
    %v2980 = vld [vmem:[%s5 + $0xac] sm:$0xf]
    %v2981 = vld [vmem:[%s5 + $0xb0] sm:$0xf]
    %v2982 = vld [vmem:[%s5 + $0xb4] sm:$0xf]
    %v2983 = vld [vmem:[%s5 + $0xb8] sm:$0xf]
    %v2984 = vld [vmem:[%s5 + $0xbc] sm:$0xf]
    %v2985 = vld [vmem:[%s5 + $0xc0] sm:$0xf]
    %v2986 = vld [vmem:[%s5 + $0xc4] sm:$0xf]
    %v2987 = vld [vmem:[%s5 + $0xc8] sm:$0xf]
    %v2988 = vld [vmem:[%s5 + $0xcc] sm:$0xf]
    %v2989 = vld [vmem:[%s5 + $0xd0] sm:$0xf]
    %v2990 = vld [vmem:[%s5 + $0xd4] sm:$0xf]
    %v2991 = vld [vmem:[%s5 + $0xd8] sm:$0xf]
    %v2992 = vld [vmem:[%s5 + $0xdc] sm:$0xf]
    %v2993 = vld [vmem:[%s5 + $0xe0] sm:$0xf]
    %v2994 = vld [vmem:[%s5 + $0xe4] sm:$0xf]
    %v2995 = vld [vmem:[%s5 + $0xe8] sm:$0xf]
    %v2996 = vld [vmem:[%s5 + $0xec] sm:$0xf]
    %v2997 = vld [vmem:[%s5 + $0xf0] sm:$0xf]
    %v2998 = vld [vmem:[%s5 + $0xf4] sm:$0xf]
    %v2999 = vld [vmem:[%s5 + $0xf8] sm:$0xf]
    %v3000 = vld [vmem:[%s5 + $0xfc] sm:$0xf]
    %v3001 = vld [vmem:[%s6] sm:$0x1]
    %v3003 = vlaneseq
    %v3004 = vshrl.u32 %v3003, 7
    %v3005 = vsub.s32 0, %v3004
    %v3006 = vrot.slane %v3001, %v3005
    %v3072 = vunpack.c.l.b16 %v2937
    %v3073 = vunpack.c.l.b16 %v2938
    %v3074 = vunpack.c.l.b16 %v2939
    %v3075 = vunpack.c.l.b16 %v2940
    %v3076 = vunpack.c.l.b16 %v2941
    %v3077 = vunpack.c.l.b16 %v2942
    %v3078 = vunpack.c.l.b16 %v2943
    %v3079 = vunpack.c.l.b16 %v2944
    %v3080 = vunpack.c.l.b16 %v2945
    %v3081 = vunpack.c.l.b16 %v2946
    %v3082 = vunpack.c.l.b16 %v2947
    %v3083 = vunpack.c.l.b16 %v2948
    %v3084 = vunpack.c.l.b16 %v2949
    %v3085 = vunpack.c.l.b16 %v2950
    %v3086 = vunpack.c.l.b16 %v2951
    %v3087 = vunpack.c.l.b16 %v2952
    %v3088 = vunpack.c.l.b16 %v2953
    %v3089 = vunpack.c.l.b16 %v2954
    %v3090 = vunpack.c.l.b16 %v2955
    %v3091 = vunpack.c.l.b16 %v2956
    %v3092 = vunpack.c.l.b16 %v2957
    %v3093 = vunpack.c.l.b16 %v2958
    %v3094 = vunpack.c.l.b16 %v2959
    %v3095 = vunpack.c.l.b16 %v2960
    %v3096 = vunpack.c.l.b16 %v2961
    %v3097 = vunpack.c.l.b16 %v2962
    %v3098 = vunpack.c.l.b16 %v2963
    %v3099 = vunpack.c.l.b16 %v2964
    %v3100 = vunpack.c.l.b16 %v2965
    %v3101 = vunpack.c.l.b16 %v2966
    %v3102 = vunpack.c.l.b16 %v2967
    %v3103 = vunpack.c.l.b16 %v2968
    %v3104 = vunpack.c.l.b16 %v2969
    %v3105 = vunpack.c.l.b16 %v2970
    %v3106 = vunpack.c.l.b16 %v2971
    %v3107 = vunpack.c.l.b16 %v2972
    %v3108 = vunpack.c.l.b16 %v2973
    %v3109 = vunpack.c.l.b16 %v2974
    %v3110 = vunpack.c.l.b16 %v2975
    %v3111 = vunpack.c.l.b16 %v2976
    %v3112 = vunpack.c.l.b16 %v2977
    %v3113 = vunpack.c.l.b16 %v2978
    %v3114 = vunpack.c.l.b16 %v2979
    %v3115 = vunpack.c.l.b16 %v2980
    %v3116 = vunpack.c.l.b16 %v2981
    %v3117 = vunpack.c.l.b16 %v2982
    %v3118 = vunpack.c.l.b16 %v2983
    %v3119 = vunpack.c.l.b16 %v2984
    %v3120 = vunpack.c.l.b16 %v2985
    %v3121 = vunpack.c.l.b16 %v2986
    %v3122 = vunpack.c.l.b16 %v2987
    %v3123 = vunpack.c.l.b16 %v2988
    %v3124 = vunpack.c.l.b16 %v2989
    %v3125 = vunpack.c.l.b16 %v2990
    %v3126 = vunpack.c.l.b16 %v2991
    %v3127 = vunpack.c.l.b16 %v2992
    %v3128 = vunpack.c.l.b16 %v2993
    %v3129 = vunpack.c.l.b16 %v2994
    %v3130 = vunpack.c.l.b16 %v2995
    %v3131 = vunpack.c.l.b16 %v2996
    %v3132 = vunpack.c.l.b16 %v2997
    %v3133 = vunpack.c.l.b16 %v2998
    %v3134 = vunpack.c.l.b16 %v2999
    %v3135 = vunpack.c.l.b16 %v3000
    %v3136 = vpack.c.b16 %v3073, %v3072
    %v3137 = vpack.c.b16 %v3075, %v3074
    %v3138 = vpack.c.b16 %v3077, %v3076
    %v3139 = vpack.c.b16 %v3079, %v3078
    %v3140 = vpack.c.b16 %v3081, %v3080
    %v3141 = vpack.c.b16 %v3083, %v3082
    %v3142 = vpack.c.b16 %v3085, %v3084
    %v3143 = vpack.c.b16 %v3087, %v3086
    %v3144 = vpack.c.b16 %v3089, %v3088
    %v3145 = vpack.c.b16 %v3091, %v3090
    %v3146 = vpack.c.b16 %v3093, %v3092
    %v3147 = vpack.c.b16 %v3095, %v3094
    %v3148 = vpack.c.b16 %v3097, %v3096
    %v3149 = vpack.c.b16 %v3099, %v3098
    %v3150 = vpack.c.b16 %v3101, %v3100
    %v3151 = vpack.c.b16 %v3103, %v3102
    %v3152 = vpack.c.b16 %v3105, %v3104
    %v3153 = vpack.c.b16 %v3107, %v3106
    %v3154 = vpack.c.b16 %v3109, %v3108
    %v3155 = vpack.c.b16 %v3111, %v3110
    %v3156 = vpack.c.b16 %v3113, %v3112
    %v3157 = vpack.c.b16 %v3115, %v3114
    %v3158 = vpack.c.b16 %v3117, %v3116
    %v3159 = vpack.c.b16 %v3119, %v3118
    %v3160 = vpack.c.b16 %v3121, %v3120
    %v3161 = vpack.c.b16 %v3123, %v3122
    %v3162 = vpack.c.b16 %v3125, %v3124
    %v3163 = vpack.c.b16 %v3127, %v3126
    %v3164 = vpack.c.b16 %v3129, %v3128
    %v3165 = vpack.c.b16 %v3131, %v3130
    %v3166 = vpack.c.b16 %v3133, %v3132
    %v3167 = vpack.c.b16 %v3135, %v3134
    %3200 = vmatprep.subr.bf16.mxu0 0
    %3201 = vmatpush1.bf16.msra.mxu0 %v3136
    %3202 = vmatprep.subr.bf16.mxu0 0
    %3203 = vmatpush1.bf16.msra.mxu0 %v3137
    %3204 = vmatprep.subr.bf16.mxu0 0
    %3205 = vmatpush1.bf16.msra.mxu0 %v3138
    %3206 = vmatprep.subr.bf16.mxu0 0
    %3207 = vmatpush1.bf16.msra.mxu0 %v3139
    %3208 = vmatprep.subr.bf16.mxu0 0
    %3209 = vmatpush1.bf16.msra.mxu0 %v3140
    %3210 = vmatprep.subr.bf16.mxu0 0
    %3211 = vmatpush1.bf16.msra.mxu0 %v3141
    %3212 = vmatprep.subr.bf16.mxu0 0
    %3213 = vmatpush1.bf16.msra.mxu0 %v3142
    %3214 = vmatprep.subr.bf16.mxu0 0
    %3215 = vmatpush1.bf16.msra.mxu0 %v3143
    %3216 = vmatprep.subr.bf16.mxu0 0
    %3217 = vmatpush1.bf16.msra.mxu0 %v3144
    %3218 = vmatprep.subr.bf16.mxu0 0
    %3219 = vmatpush1.bf16.msra.mxu0 %v3145
    %3220 = vmatprep.subr.bf16.mxu0 0
    %3221 = vmatpush1.bf16.msra.mxu0 %v3146
    %3222 = vmatprep.subr.bf16.mxu0 0
    %3223 = vmatpush1.bf16.msra.mxu0 %v3147
    %3224 = vmatprep.subr.bf16.mxu0 0
    %3225 = vmatpush1.bf16.msra.mxu0 %v3148
    %3226 = vmatprep.subr.bf16.mxu0 0
    %3227 = vmatpush1.bf16.msra.mxu0 %v3149
    %3228 = vmatprep.subr.bf16.mxu0 0
    %3229 = vmatpush1.bf16.msra.mxu0 %v3150
    %3230 = vmatprep.subr.bf16.mxu0 0
    %3231 = vmatpush1.bf16.msra.mxu0 %v3151
    %3232 = vmatprep.mubr.bf16.mxu0 %v2934
    %3233 = vmatmul.mubr.bf16.gmra.mrb[0].mxu0 %v2933
    %v3234 = vpop.f32.mrb[0].mxu0
    %v3235 = vadd.f32 %v3006, %v3234
    %v3236 = vpop.f32.mrb[0].mxu0
    %v3237 = vpop.f32.mrb[0].mxu0
    %v3238 = vpop.f32.mrb[0].mxu0
    %3239 = vdwg.mxu0
    %3240 = vmatprep.subr.bf16.mxu0 0
    %3241 = vmatpush1.bf16.msra.mxu0 %v3152
    %3242 = vmatprep.subr.bf16.mxu0 0
    %3243 = vmatpush1.bf16.msra.mxu0 %v3153
    %3244 = vmatprep.subr.bf16.mxu0 0
    %3245 = vmatpush1.bf16.msra.mxu0 %v3154
    %3246 = vmatprep.subr.bf16.mxu0 0
    %3247 = vmatpush1.bf16.msra.mxu0 %v3155
    %3248 = vmatprep.subr.bf16.mxu0 0
    %3249 = vmatpush1.bf16.msra.mxu0 %v3156
    %3250 = vmatprep.subr.bf16.mxu0 0
    %3251 = vmatpush1.bf16.msra.mxu0 %v3157
    %3252 = vmatprep.subr.bf16.mxu0 0
    %3253 = vmatpush1.bf16.msra.mxu0 %v3158
    %3254 = vmatprep.subr.bf16.mxu0 0
    %3255 = vmatpush1.bf16.msra.mxu0 %v3159
    %3256 = vmatprep.subr.bf16.mxu0 0
    %3257 = vmatpush1.bf16.msra.mxu0 %v3160
    %3258 = vmatprep.subr.bf16.mxu0 0
    %3259 = vmatpush1.bf16.msra.mxu0 %v3161
    %3260 = vmatprep.subr.bf16.mxu0 0
    %3261 = vmatpush1.bf16.msra.mxu0 %v3162
    %3262 = vmatprep.subr.bf16.mxu0 0
    %3263 = vmatpush1.bf16.msra.mxu0 %v3163
    %3264 = vmatprep.subr.bf16.mxu0 0
    %3265 = vmatpush1.bf16.msra.mxu0 %v3164
    %3266 = vmatprep.subr.bf16.mxu0 0
    %3267 = vmatpush1.bf16.msra.mxu0 %v3165
    %3268 = vmatprep.subr.bf16.mxu0 0
    %3269 = vmatpush1.bf16.msra.mxu0 %v3166
    %3270 = vmatprep.subr.bf16.mxu0 0
    %3271 = vmatpush1.bf16.msra.mxu0 %v3167
    %3272 = vmatprep.mubr.bf16.mxu0 %v2936
    %3273 = vmatmul.mubr.bf16.gmra.mrb[0].mxu0 %v2935
    %v3274 = vpop.f32.mrb[0].mxu0
    %v3275 = vadd.f32 %v3235, %v3274
    %v3276 = vpop.f32.mrb[0].mxu0
    %v3277 = vpop.f32.mrb[0].mxu0
    %v3278 = vpop.f32.mrb[0].mxu0
    %3279 = vdwg.mxu0
    %v3280 = vtanh.pop %v3275
    %3281 = vst [vmem:[#allocation4] sm:$0xff] %v3280
    %v3282 = vpack.c.bf16 %v3280, %v3280
    %v3283 = vld [vmem:[%s7] sm:$0xff]
    %v3284 = vld [vmem:[%s7 + $0x8] sm:$0xff]
    %v3285 = vld [vmem:[%s7 + $0x10] sm:$0xff]
    %v3286 = vld [vmem:[%s7 + $0x18] sm:$0xff]
    %v3287 = vld [vmem:[%s7 + $0x20] sm:$0xff]
    %v3288 = vld [vmem:[%s7 + $0x28] sm:$0xff]
    %v3289 = vld [vmem:[%s7 + $0x30] sm:$0xff]
    %v3290 = vld [vmem:[%s7 + $0x38] sm:$0xff]
    %v3291 = vld [vmem:[%s7 + $0x40] sm:$0xff]
    %v3292 = vld [vmem:[%s7 + $0x48] sm:$0xff]
    %v3293 = vld [vmem:[%s7 + $0x50] sm:$0xff]
    %v3294 = vld [vmem:[%s7 + $0x58] sm:$0xff]
    %v3295 = vld [vmem:[%s7 + $0x60] sm:$0xff]
    %v3296 = vld [vmem:[%s7 + $0x68] sm:$0xff]
    %v3297 = vld [vmem:[%s7 + $0x70] sm:$0xff]
    %v3298 = vld [vmem:[%s7 + $0x78] sm:$0xff]
    %v3299 = vld [vmem:[%s7 + $0x80] sm:$0xff]
    %v3300 = vld [vmem:[%s7 + $0x88] sm:$0xff]
    %v3301 = vld [vmem:[%s7 + $0x90] sm:$0xff]
    %v3302 = vld [vmem:[%s7 + $0x98] sm:$0xff]
    %v3303 = vld [vmem:[%s7 + $0xa0] sm:$0xff]
    %v3304 = vld [vmem:[%s7 + $0xa8] sm:$0xff]
    %v3305 = vld [vmem:[%s7 + $0xb0] sm:$0xff]
    %v3306 = vld [vmem:[%s7 + $0xb8] sm:$0xff]
    %v3307 = vld [vmem:[%s7 + $0xc0] sm:$0xff]
    %v3308 = vld [vmem:[%s7 + $0xc8] sm:$0xff]
    %v3309 = vld [vmem:[%s7 + $0xd0] sm:$0xff]
    %v3310 = vld [vmem:[%s7 + $0xd8] sm:$0xff]
    %v3311 = vld [vmem:[%s7 + $0xe0] sm:$0xff]
    %v3312 = vld [vmem:[%s7 + $0xe8] sm:$0xff]
    %v3313 = vld [vmem:[%s7 + $0xf0] sm:$0xff]
    %v3314 = vld [vmem:[%s7 + $0xf8] sm:$0xff]
    %v3315 = vld [vmem:[%s8] sm:$0xf]
    %v3317 = vlaneseq
    %v3318 = vshrl.u32 %v3317, 7
    %v3319 = vsub.s32 0, %v3318
    %v3320 = vrot.slane %v3315, %v3319
    %v3321 = vlaneseq
    %v3322 = vshrl.u32 %v3321, 7
    %v3323 = vsub.s32 1, %v3322
    %v3324 = vrot.slane %v3315, %v3323
    %v3325 = vlaneseq
    %v3326 = vshrl.u32 %v3325, 7
    %v3327 = vsub.s32 2, %v3326
    %v3328 = vrot.slane %v3315, %v3327
    %v3329 = vlaneseq
    %v3330 = vshrl.u32 %v3329, 7
    %v3331 = vsub.s32 3, %v3330
    %v3332 = vrot.slane %v3315, %v3331
    %v3369 = vunpack.c.l.b16 %v3283
    %v3370 = vunpack.c.h.b16 %v3283
    %v3371 = vunpack.c.l.b16 %v3284
    %v3372 = vunpack.c.h.b16 %v3284
    %v3373 = vunpack.c.l.b16 %v3285
    %v3374 = vunpack.c.h.b16 %v3285
    %v3375 = vunpack.c.l.b16 %v3286
    %v3376 = vunpack.c.h.b16 %v3286
    %v3377 = vunpack.c.l.b16 %v3287
    %v3378 = vunpack.c.h.b16 %v3287
    %v3379 = vunpack.c.l.b16 %v3288
    %v3380 = vunpack.c.h.b16 %v3288
    %v3381 = vunpack.c.l.b16 %v3289
    %v3382 = vunpack.c.h.b16 %v3289
    %v3383 = vunpack.c.l.b16 %v3290
    %v3384 = vunpack.c.h.b16 %v3290
    %v3385 = vunpack.c.l.b16 %v3291
    %v3386 = vunpack.c.h.b16 %v3291
    %v3387 = vunpack.c.l.b16 %v3292
    %v3388 = vunpack.c.h.b16 %v3292
    %v3389 = vunpack.c.l.b16 %v3293
    %v3390 = vunpack.c.h.b16 %v3293
    %v3391 = vunpack.c.l.b16 %v3294
    %v3392 = vunpack.c.h.b16 %v3294
    %v3393 = vunpack.c.l.b16 %v3295
    %v3394 = vunpack.c.h.b16 %v3295
    %v3395 = vunpack.c.l.b16 %v3296
    %v3396 = vunpack.c.h.b16 %v3296
    %v3397 = vunpack.c.l.b16 %v3297
    %v3398 = vunpack.c.h.b16 %v3297
    %v3399 = vunpack.c.l.b16 %v3298
    %v3400 = vunpack.c.h.b16 %v3298
    %v3401 = vunpack.c.l.b16 %v3299
    %v3402 = vunpack.c.h.b16 %v3299
    %v3403 = vunpack.c.l.b16 %v3300
    %v3404 = vunpack.c.h.b16 %v3300
    %v3405 = vunpack.c.l.b16 %v3301
    %v3406 = vunpack.c.h.b16 %v3301
    %v3407 = vunpack.c.l.b16 %v3302
    %v3408 = vunpack.c.h.b16 %v3302
    %v3409 = vunpack.c.l.b16 %v3303
    %v3410 = vunpack.c.h.b16 %v3303
    %v3411 = vunpack.c.l.b16 %v3304
    %v3412 = vunpack.c.h.b16 %v3304
    %v3413 = vunpack.c.l.b16 %v3305
    %v3414 = vunpack.c.h.b16 %v3305
    %v3415 = vunpack.c.l.b16 %v3306
    %v3416 = vunpack.c.h.b16 %v3306
    %v3417 = vunpack.c.l.b16 %v3307
    %v3418 = vunpack.c.h.b16 %v3307
    %v3419 = vunpack.c.l.b16 %v3308
    %v3420 = vunpack.c.h.b16 %v3308
    %v3421 = vunpack.c.l.b16 %v3309
    %v3422 = vunpack.c.h.b16 %v3309
    %v3423 = vunpack.c.l.b16 %v3310
    %v3424 = vunpack.c.h.b16 %v3310
    %v3425 = vunpack.c.l.b16 %v3311
    %v3426 = vunpack.c.h.b16 %v3311
    %v3427 = vunpack.c.l.b16 %v3312
    %v3428 = vunpack.c.h.b16 %v3312
    %v3429 = vunpack.c.l.b16 %v3313
    %v3430 = vunpack.c.h.b16 %v3313
    %v3431 = vunpack.c.l.b16 %v3314
    %v3432 = vunpack.c.h.b16 %v3314
    %v3433 = vpack.c.b16 %v3373, %v3369
    %v3434 = vpack.c.b16 %v3374, %v3370
    %v3435 = vpack.c.b16 %v3375, %v3371
    %v3436 = vpack.c.b16 %v3376, %v3372
    %v3437 = vpack.c.b16 %v3381, %v3377
    %v3438 = vpack.c.b16 %v3382, %v3378
    %v3439 = vpack.c.b16 %v3383, %v3379
    %v3440 = vpack.c.b16 %v3384, %v3380
    %v3441 = vpack.c.b16 %v3389, %v3385
    %v3442 = vpack.c.b16 %v3390, %v3386
    %v3443 = vpack.c.b16 %v3391, %v3387
    %v3444 = vpack.c.b16 %v3392, %v3388
    %v3445 = vpack.c.b16 %v3397, %v3393
    %v3446 = vpack.c.b16 %v3398, %v3394
    %v3447 = vpack.c.b16 %v3399, %v3395
    %v3448 = vpack.c.b16 %v3400, %v3396
    %v3449 = vpack.c.b16 %v3405, %v3401
    %v3450 = vpack.c.b16 %v3406, %v3402
    %v3451 = vpack.c.b16 %v3407, %v3403
    %v3452 = vpack.c.b16 %v3408, %v3404
    %v3453 = vpack.c.b16 %v3413, %v3409
    %v3454 = vpack.c.b16 %v3414, %v3410
    %v3455 = vpack.c.b16 %v3415, %v3411
    %v3456 = vpack.c.b16 %v3416, %v3412
    %v3457 = vpack.c.b16 %v3421, %v3417
    %v3458 = vpack.c.b16 %v3422, %v3418
    %v3459 = vpack.c.b16 %v3423, %v3419
    %v3460 = vpack.c.b16 %v3424, %v3420
    %v3461 = vpack.c.b16 %v3429, %v3425
    %v3462 = vpack.c.b16 %v3430, %v3426
    %v3463 = vpack.c.b16 %v3431, %v3427
    %v3464 = vpack.c.b16 %v3432, %v3428
    %3497 = vmatprep.subr.bf16.mxu0 %v3434
    %3498 = vmatpush1.bf16.msra.mxu0 %v3433
    %3499 = vmatprep.subr.bf16.mxu0 %v3438
    %3500 = vmatpush1.bf16.msra.mxu0 %v3437
    %3501 = vmatprep.subr.bf16.mxu0 %v3442
    %3502 = vmatpush1.bf16.msra.mxu0 %v3441
    %3503 = vmatprep.subr.bf16.mxu0 %v3446
    %3504 = vmatpush1.bf16.msra.mxu0 %v3445
    %3505 = vmatprep.subr.bf16.mxu0 %v3450
    %3506 = vmatpush1.bf16.msra.mxu0 %v3449
    %3507 = vmatprep.subr.bf16.mxu0 %v3454
    %3508 = vmatpush1.bf16.msra.mxu0 %v3453
    %3509 = vmatprep.subr.bf16.mxu0 %v3458
    %3510 = vmatpush1.bf16.msra.mxu0 %v3457
    %3511 = vmatprep.subr.bf16.mxu0 %v3462
    %3512 = vmatpush1.bf16.msra.mxu0 %v3461
    %3513 = vmatprep.subr.bf16.mxu0 0
    %3514 = vmatpush1.bf16.msra.mxu0 0
    %3515 = vmatprep.subr.bf16.mxu0 0
    %3516 = vmatpush1.bf16.msra.mxu0 0
    %3517 = vmatprep.subr.bf16.mxu0 0
    %3518 = vmatpush1.bf16.msra.mxu0 0
    %3519 = vmatprep.subr.bf16.mxu0 0
    %3520 = vmatpush1.bf16.msra.mxu0 0
    %3521 = vmatprep.subr.bf16.mxu0 0
    %3522 = vmatpush1.bf16.msra.mxu0 0
    %3523 = vmatprep.subr.bf16.mxu0 0
    %3524 = vmatpush1.bf16.msra.mxu0 0
    %3525 = vmatprep.subr.bf16.mxu0 0
    %3526 = vmatpush1.bf16.msra.mxu0 0
    %3527 = vmatprep.subr.bf16.mxu0 0
    %3528 = vmatpush1.bf16.msra.mxu0 0
    %3529 = vmatprep.mubr.bf16.mxu0 0
    %3530 = vmatmul.mubr.bf16.gmra.mrb[0].mxu0 %v3282
    %v3531 = vpop.f32.mrb[0].mxu0
    %v3532 = vadd.f32 %v3320, %v3531
    %v3533 = vpop.f32.mrb[0].mxu0
    %v3534 = vadd.f32 %v3324, %v3533
    %v3535 = vpop.f32.mrb[0].mxu0
    %v3536 = vpop.f32.mrb[0].mxu0
    %3537 = vdwg.mxu0
    %3538 = vmatprep.subr.bf16.mxu0 %v3436
    %3539 = vmatpush1.bf16.msra.mxu0 %v3435
    %3540 = vmatprep.subr.bf16.mxu0 %v3440
    %3541 = vmatpush1.bf16.msra.mxu0 %v3439
    %3542 = vmatprep.subr.bf16.mxu0 %v3444
    %3543 = vmatpush1.bf16.msra.mxu0 %v3443
    %3544 = vmatprep.subr.bf16.mxu0 %v3448
    %3545 = vmatpush1.bf16.msra.mxu0 %v3447
    %3546 = vmatprep.subr.bf16.mxu0 %v3452
    %3547 = vmatpush1.bf16.msra.mxu0 %v3451
    %3548 = vmatprep.subr.bf16.mxu0 %v3456
    %3549 = vmatpush1.bf16.msra.mxu0 %v3455
    %3550 = vmatprep.subr.bf16.mxu0 %v3460
    %3551 = vmatpush1.bf16.msra.mxu0 %v3459
    %3552 = vmatprep.subr.bf16.mxu0 %v3464
    %3553 = vmatpush1.bf16.msra.mxu0 %v3463
    %3554 = vmatprep.subr.bf16.mxu0 0
    %3555 = vmatpush1.bf16.msra.mxu0 0
    %3556 = vmatprep.subr.bf16.mxu0 0
    %3557 = vmatpush1.bf16.msra.mxu0 0
    %3558 = vmatprep.subr.bf16.mxu0 0
    %3559 = vmatpush1.bf16.msra.mxu0 0
    %3560 = vmatprep.subr.bf16.mxu0 0
    %3561 = vmatpush1.bf16.msra.mxu0 0
    %3562 = vmatprep.subr.bf16.mxu0 0
    %3563 = vmatpush1.bf16.msra.mxu0 0
    %3564 = vmatprep.subr.bf16.mxu0 0
    %3565 = vmatpush1.bf16.msra.mxu0 0
    %3566 = vmatprep.subr.bf16.mxu0 0
    %3567 = vmatpush1.bf16.msra.mxu0 0
    %3568 = vmatprep.subr.bf16.mxu0 0
    %3569 = vmatpush1.bf16.msra.mxu0 0
    %3570 = vmatprep.mubr.bf16.mxu0 0
    %3571 = vmatmul.mubr.bf16.gmra.mrb[0].mxu0 %v3282
    %v3572 = vpop.f32.mrb[0].mxu0
    %v3573 = vadd.f32 %v3328, %v3572
    %v3574 = vpop.f32.mrb[0].mxu0
    %v3575 = vadd.f32 %v3332, %v3574
    %v3576 = vpop.f32.mrb[0].mxu0
    %v3577 = vpop.f32.mrb[0].mxu0
    %3578 = vdwg.mxu0
    %v3579 = vtanh.pop %v3532
    %v3580 = vtanh.pop %v3534
    %v3581 = vtanh.pop %v3573
    %v3582 = vtanh.pop %v3575
    %v3583 = vpack.c.bf16 %v3579, %v3579
    %v3584 = vpack.c.bf16 %v3580, %v3580
    %v3585 = vpack.c.bf16 %v3581, %v3581
    %v3586 = vpack.c.bf16 %v3582, %v3582
    %v3587 = vld [vmem:[%s9] sm:$0xff]
    %v3588 = vld [vmem:[%s9 + $0x8] sm:$0xff]
    %v3589 = vld [vmem:[%s9 + $0x10] sm:$0xff]
    %v3590 = vld [vmem:[%s9 + $0x18] sm:$0xff]
    %v3591 = vld [vmem:[%s9 + $0x20] sm:$0xff]
    %v3592 = vld [vmem:[%s9 + $0x28] sm:$0xff]
    %v3593 = vld [vmem:[%s9 + $0x30] sm:$0xff]
    %v3594 = vld [vmem:[%s9 + $0x38] sm:$0xff]
    %v3595 = vld [vmem:[%s9 + $0x40] sm:$0xff]
    %v3596 = vld [vmem:[%s9 + $0x48] sm:$0xff]
    %v3597 = vld [vmem:[%s9 + $0x50] sm:$0xff]
    %v3598 = vld [vmem:[%s9 + $0x58] sm:$0xff]
    %v3599 = vld [vmem:[%s9 + $0x60] sm:$0xff]
    %v3600 = vld [vmem:[%s9 + $0x68] sm:$0xff]
    %v3601 = vld [vmem:[%s9 + $0x70] sm:$0xff]
    %v3602 = vld [vmem:[%s9 + $0x78] sm:$0xff]
    %v3603 = vld [vmem:[%s9 + $0x80] sm:$0xff]
    %v3604 = vld [vmem:[%s9 + $0x88] sm:$0xff]
    %v3605 = vld [vmem:[%s9 + $0x90] sm:$0xff]
    %v3606 = vld [vmem:[%s9 + $0x98] sm:$0xff]
    %v3607 = vld [vmem:[%s9 + $0xa0] sm:$0xff]
    %v3608 = vld [vmem:[%s9 + $0xa8] sm:$0xff]
    %v3609 = vld [vmem:[%s9 + $0xb0] sm:$0xff]
    %v3610 = vld [vmem:[%s9 + $0xb8] sm:$0xff]
    %v3611 = vld [vmem:[%s9 + $0xc0] sm:$0xff]
    %v3612 = vld [vmem:[%s9 + $0xc8] sm:$0xff]
    %v3613 = vld [vmem:[%s9 + $0xd0] sm:$0xff]
    %v3614 = vld [vmem:[%s9 + $0xd8] sm:$0xff]
    %v3615 = vld [vmem:[%s9 + $0xe0] sm:$0xff]
    %v3616 = vld [vmem:[%s9 + $0xe8] sm:$0xff]
    %v3617 = vld [vmem:[%s9 + $0xf0] sm:$0xff]
    %v3618 = vld [vmem:[%s9 + $0xf8] sm:$0xff]
    %v3619 = vld [vmem:[%s9 + $0x100] sm:$0xff]
    %v3620 = vld [vmem:[%s9 + $0x108] sm:$0xff]
    %v3621 = vld [vmem:[%s9 + $0x110] sm:$0xff]
    %v3622 = vld [vmem:[%s9 + $0x118] sm:$0xff]
    %v3623 = vld [vmem:[%s9 + $0x120] sm:$0xff]
    %v3624 = vld [vmem:[%s9 + $0x128] sm:$0xff]
    %v3625 = vld [vmem:[%s9 + $0x130] sm:$0xff]
    %v3626 = vld [vmem:[%s9 + $0x138] sm:$0xff]
    %v3627 = vld [vmem:[%s9 + $0x140] sm:$0xff]
    %v3628 = vld [vmem:[%s9 + $0x148] sm:$0xff]
    %v3629 = vld [vmem:[%s9 + $0x150] sm:$0xff]
    %v3630 = vld [vmem:[%s9 + $0x158] sm:$0xff]
    %v3631 = vld [vmem:[%s9 + $0x160] sm:$0xff]
    %v3632 = vld [vmem:[%s9 + $0x168] sm:$0xff]
    %v3633 = vld [vmem:[%s9 + $0x170] sm:$0xff]
    %v3634 = vld [vmem:[%s9 + $0x178] sm:$0xff]
    %v3635 = vld [vmem:[%s9 + $0x180] sm:$0xff]
    %v3636 = vld [vmem:[%s9 + $0x188] sm:$0xff]
    %v3637 = vld [vmem:[%s9 + $0x190] sm:$0xff]
    %v3638 = vld [vmem:[%s9 + $0x198] sm:$0xff]
    %v3639 = vld [vmem:[%s9 + $0x1a0] sm:$0xff]
    %v3640 = vld [vmem:[%s9 + $0x1a8] sm:$0xff]
    %v3641 = vld [vmem:[%s9 + $0x1b0] sm:$0xff]
    %v3642 = vld [vmem:[%s9 + $0x1b8] sm:$0xff]
    %v3643 = vld [vmem:[%s9 + $0x1c0] sm:$0xff]
    %v3644 = vld [vmem:[%s9 + $0x1c8] sm:$0xff]
    %v3645 = vld [vmem:[%s9 + $0x1d0] sm:$0xff]
    %v3646 = vld [vmem:[%s9 + $0x1d8] sm:$0xff]
    %v3647 = vld [vmem:[%s9 + $0x1e0] sm:$0xff]
    %v3648 = vld [vmem:[%s9 + $0x1e8] sm:$0xff]
    %v3649 = vld [vmem:[%s9 + $0x1f0] sm:$0xff]
    %v3650 = vld [vmem:[%s9 + $0x1f8] sm:$0xff]
    %v3651 = vld [vmem:[%s9 + $0x200] sm:$0xff]
    %v3652 = vld [vmem:[%s9 + $0x208] sm:$0xff]
    %v3653 = vld [vmem:[%s9 + $0x210] sm:$0xff]
    %v3654 = vld [vmem:[%s9 + $0x218] sm:$0xff]
    %v3655 = vld [vmem:[%s9 + $0x220] sm:$0xff]
    %v3656 = vld [vmem:[%s9 + $0x228] sm:$0xff]
    %v3657 = vld [vmem:[%s9 + $0x230] sm:$0xff]
    %v3658 = vld [vmem:[%s9 + $0x238] sm:$0xff]
    %v3659 = vld [vmem:[%s9 + $0x240] sm:$0xff]
    %v3660 = vld [vmem:[%s9 + $0x248] sm:$0xff]
    %v3661 = vld [vmem:[%s9 + $0x250] sm:$0xff]
    %v3662 = vld [vmem:[%s9 + $0x258] sm:$0xff]
    %v3663 = vld [vmem:[%s9 + $0x260] sm:$0xff]
    %v3664 = vld [vmem:[%s9 + $0x268] sm:$0xff]
    %v3665 = vld [vmem:[%s9 + $0x270] sm:$0xff]
    %v3666 = vld [vmem:[%s9 + $0x278] sm:$0xff]
    %v3667 = vld [vmem:[%s9 + $0x280] sm:$0xff]
    %v3668 = vld [vmem:[%s9 + $0x288] sm:$0xff]
    %v3669 = vld [vmem:[%s9 + $0x290] sm:$0xff]
    %v3670 = vld [vmem:[%s9 + $0x298] sm:$0xff]
    %v3671 = vld [vmem:[%s9 + $0x2a0] sm:$0xff]
    %v3672 = vld [vmem:[%s9 + $0x2a8] sm:$0xff]
    %v3673 = vld [vmem:[%s9 + $0x2b0] sm:$0xff]
    %v3674 = vld [vmem:[%s9 + $0x2b8] sm:$0xff]
    %v3675 = vld [vmem:[%s9 + $0x2c0] sm:$0xff]
    %v3676 = vld [vmem:[%s9 + $0x2c8] sm:$0xff]
    %v3677 = vld [vmem:[%s9 + $0x2d0] sm:$0xff]
    %v3678 = vld [vmem:[%s9 + $0x2d8] sm:$0xff]
    %v3679 = vld [vmem:[%s9 + $0x2e0] sm:$0xff]
    %v3680 = vld [vmem:[%s9 + $0x2e8] sm:$0xff]
    %v3681 = vld [vmem:[%s9 + $0x2f0] sm:$0xff]
    %v3682 = vld [vmem:[%s9 + $0x2f8] sm:$0xff]
    %v3683 = vld [vmem:[%s9 + $0x300] sm:$0xff]
    %v3684 = vld [vmem:[%s9 + $0x308] sm:$0xff]
    %v3685 = vld [vmem:[%s9 + $0x310] sm:$0xff]
    %v3686 = vld [vmem:[%s9 + $0x318] sm:$0xff]
    %v3687 = vld [vmem:[%s9 + $0x320] sm:$0xff]
    %v3688 = vld [vmem:[%s9 + $0x328] sm:$0xff]
    %v3689 = vld [vmem:[%s9 + $0x330] sm:$0xff]
    %v3690 = vld [vmem:[%s9 + $0x338] sm:$0xff]
    %v3691 = vld [vmem:[%s9 + $0x340] sm:$0xff]
    %v3692 = vld [vmem:[%s9 + $0x348] sm:$0xff]
    %v3693 = vld [vmem:[%s9 + $0x350] sm:$0xff]
    %v3694 = vld [vmem:[%s9 + $0x358] sm:$0xff]
    %v3695 = vld [vmem:[%s9 + $0x360] sm:$0xff]
    %v3696 = vld [vmem:[%s9 + $0x368] sm:$0xff]
    %v3697 = vld [vmem:[%s9 + $0x370] sm:$0xff]
    %v3698 = vld [vmem:[%s9 + $0x378] sm:$0xff]
    %v3699 = vld [vmem:[%s9 + $0x380] sm:$0xff]
    %v3700 = vld [vmem:[%s9 + $0x388] sm:$0xff]
    %v3701 = vld [vmem:[%s9 + $0x390] sm:$0xff]
    %v3702 = vld [vmem:[%s9 + $0x398] sm:$0xff]
    %v3703 = vld [vmem:[%s9 + $0x3a0] sm:$0xff]
    %v3704 = vld [vmem:[%s9 + $0x3a8] sm:$0xff]
    %v3705 = vld [vmem:[%s9 + $0x3b0] sm:$0xff]
    %v3706 = vld [vmem:[%s9 + $0x3b8] sm:$0xff]
    %v3707 = vld [vmem:[%s9 + $0x3c0] sm:$0xff]
    %v3708 = vld [vmem:[%s9 + $0x3c8] sm:$0xff]
    %v3709 = vld [vmem:[%s9 + $0x3d0] sm:$0xff]
    %v3710 = vld [vmem:[%s9 + $0x3d8] sm:$0xff]
    %v3711 = vld [vmem:[%s9 + $0x3e0] sm:$0xff]
    %v3712 = vld [vmem:[%s9 + $0x3e8] sm:$0xff]
    %v3713 = vld [vmem:[%s9 + $0x3f0] sm:$0xff]
    %v3714 = vld [vmem:[%s9 + $0x3f8] sm:$0xff]
    %v3715 = vld [vmem:[%s9 + $0x400] sm:$0xff]
    %v3716 = vld [vmem:[%s9 + $0x408] sm:$0xff]
    %v3717 = vld [vmem:[%s9 + $0x410] sm:$0xff]
    %v3718 = vld [vmem:[%s9 + $0x418] sm:$0xff]
    %v3719 = vld [vmem:[%s9 + $0x420] sm:$0xff]
    %v3720 = vld [vmem:[%s9 + $0x428] sm:$0xff]
    %v3721 = vld [vmem:[%s9 + $0x430] sm:$0xff]
    %v3722 = vld [vmem:[%s9 + $0x438] sm:$0xff]
    %v3723 = vld [vmem:[%s9 + $0x440] sm:$0xff]
    %v3724 = vld [vmem:[%s9 + $0x448] sm:$0xff]
    %v3725 = vld [vmem:[%s9 + $0x450] sm:$0xff]
    %v3726 = vld [vmem:[%s9 + $0x458] sm:$0xff]
    %v3727 = vld [vmem:[%s9 + $0x460] sm:$0xff]
    %v3728 = vld [vmem:[%s9 + $0x468] sm:$0xff]
    %v3729 = vld [vmem:[%s9 + $0x470] sm:$0xff]
    %v3730 = vld [vmem:[%s9 + $0x478] sm:$0xff]
    %v3731 = vld [vmem:[%s9 + $0x480] sm:$0xff]
    %v3732 = vld [vmem:[%s9 + $0x488] sm:$0xff]
    %v3733 = vld [vmem:[%s9 + $0x490] sm:$0xff]
    %v3734 = vld [vmem:[%s9 + $0x498] sm:$0xff]
    %v3735 = vld [vmem:[%s9 + $0x4a0] sm:$0xff]
    %v3736 = vld [vmem:[%s9 + $0x4a8] sm:$0xff]
    %v3737 = vld [vmem:[%s9 + $0x4b0] sm:$0xff]
    %v3738 = vld [vmem:[%s9 + $0x4b8] sm:$0xff]
    %v3739 = vld [vmem:[%s9 + $0x4c0] sm:$0xff]
    %v3740 = vld [vmem:[%s9 + $0x4c8] sm:$0xff]
    %v3741 = vld [vmem:[%s9 + $0x4d0] sm:$0xff]
    %v3742 = vld [vmem:[%s9 + $0x4d8] sm:$0xff]
    %v3743 = vld [vmem:[%s9 + $0x4e0] sm:$0xff]
    %v3744 = vld [vmem:[%s9 + $0x4e8] sm:$0xff]
    %v3745 = vld [vmem:[%s9 + $0x4f0] sm:$0xff]
    %v3746 = vld [vmem:[%s9 + $0x4f8] sm:$0xff]
    %v3747 = vld [vmem:[%s9 + $0x500] sm:$0xff]
    %v3748 = vld [vmem:[%s9 + $0x508] sm:$0xff]
    %v3749 = vld [vmem:[%s9 + $0x510] sm:$0xff]
    %v3750 = vld [vmem:[%s9 + $0x518] sm:$0xff]
    %v3751 = vld [vmem:[%s9 + $0x520] sm:$0xff]
    %v3752 = vld [vmem:[%s9 + $0x528] sm:$0xff]
    %v3753 = vld [vmem:[%s9 + $0x530] sm:$0xff]
    %v3754 = vld [vmem:[%s9 + $0x538] sm:$0xff]
    %v3755 = vld [vmem:[%s9 + $0x540] sm:$0xff]
    %v3756 = vld [vmem:[%s9 + $0x548] sm:$0xff]
    %v3757 = vld [vmem:[%s9 + $0x550] sm:$0xff]
    %v3758 = vld [vmem:[%s9 + $0x558] sm:$0xff]
    %v3759 = vld [vmem:[%s9 + $0x560] sm:$0xff]
    %v3760 = vld [vmem:[%s9 + $0x568] sm:$0xff]
    %v3761 = vld [vmem:[%s9 + $0x570] sm:$0xff]
    %v3762 = vld [vmem:[%s9 + $0x578] sm:$0xff]
    %v3763 = vld [vmem:[%s9 + $0x580] sm:$0xff]
    %v3764 = vld [vmem:[%s9 + $0x588] sm:$0xff]
    %v3765 = vld [vmem:[%s9 + $0x590] sm:$0xff]
    %v3766 = vld [vmem:[%s9 + $0x598] sm:$0xff]
    %v3767 = vld [vmem:[%s9 + $0x5a0] sm:$0xff]
    %v3768 = vld [vmem:[%s9 + $0x5a8] sm:$0xff]
    %v3769 = vld [vmem:[%s9 + $0x5b0] sm:$0xff]
    %v3770 = vld [vmem:[%s9 + $0x5b8] sm:$0xff]
    %v3771 = vld [vmem:[%s9 + $0x5c0] sm:$0xff]
    %v3772 = vld [vmem:[%s9 + $0x5c8] sm:$0xff]
    %v3773 = vld [vmem:[%s9 + $0x5d0] sm:$0xff]
    %v3774 = vld [vmem:[%s9 + $0x5d8] sm:$0xff]
    %v3775 = vld [vmem:[%s9 + $0x5e0] sm:$0xff]
    %v3776 = vld [vmem:[%s9 + $0x5e8] sm:$0xff]
    %v3777 = vld [vmem:[%s9 + $0x5f0] sm:$0xff]
    %v3778 = vld [vmem:[%s9 + $0x5f8] sm:$0xff]
    %v3779 = vld [vmem:[%s9 + $0x600] sm:$0xff]
    %v3780 = vld [vmem:[%s9 + $0x608] sm:$0xff]
    %v3781 = vld [vmem:[%s9 + $0x610] sm:$0xff]
    %v3782 = vld [vmem:[%s9 + $0x618] sm:$0xff]
    %v3783 = vld [vmem:[%s9 + $0x620] sm:$0xff]
    %v3784 = vld [vmem:[%s9 + $0x628] sm:$0xff]
    %v3785 = vld [vmem:[%s9 + $0x630] sm:$0xff]
    %v3786 = vld [vmem:[%s9 + $0x638] sm:$0xff]
    %v3787 = vld [vmem:[%s9 + $0x640] sm:$0xff]
    %v3788 = vld [vmem:[%s9 + $0x648] sm:$0xff]
    %v3789 = vld [vmem:[%s9 + $0x650] sm:$0xff]
    %v3790 = vld [vmem:[%s9 + $0x658] sm:$0xff]
    %v3791 = vld [vmem:[%s9 + $0x660] sm:$0xff]
    %v3792 = vld [vmem:[%s9 + $0x668] sm:$0xff]
    %v3793 = vld [vmem:[%s9 + $0x670] sm:$0xff]
    %v3794 = vld [vmem:[%s9 + $0x678] sm:$0xff]
    %v3795 = vld [vmem:[%s9 + $0x680] sm:$0xff]
    %v3796 = vld [vmem:[%s9 + $0x688] sm:$0xff]
    %v3797 = vld [vmem:[%s9 + $0x690] sm:$0xff]
    %v3798 = vld [vmem:[%s9 + $0x698] sm:$0xff]
    %v3799 = vld [vmem:[%s9 + $0x6a0] sm:$0xff]
    %v3800 = vld [vmem:[%s9 + $0x6a8] sm:$0xff]
    %v3801 = vld [vmem:[%s9 + $0x6b0] sm:$0xff]
    %v3802 = vld [vmem:[%s9 + $0x6b8] sm:$0xff]
    %v3803 = vld [vmem:[%s9 + $0x6c0] sm:$0xff]
    %v3804 = vld [vmem:[%s9 + $0x6c8] sm:$0xff]
    %v3805 = vld [vmem:[%s9 + $0x6d0] sm:$0xff]
    %v3806 = vld [vmem:[%s9 + $0x6d8] sm:$0xff]
    %v3807 = vld [vmem:[%s9 + $0x6e0] sm:$0xff]
    %v3808 = vld [vmem:[%s9 + $0x6e8] sm:$0xff]
    %v3809 = vld [vmem:[%s9 + $0x6f0] sm:$0xff]
    %v3810 = vld [vmem:[%s9 + $0x6f8] sm:$0xff]
    %v3811 = vld [vmem:[%s9 + $0x700] sm:$0xff]
    %v3812 = vld [vmem:[%s9 + $0x708] sm:$0xff]
    %v3813 = vld [vmem:[%s9 + $0x710] sm:$0xff]
    %v3814 = vld [vmem:[%s9 + $0x718] sm:$0xff]
    %v3815 = vld [vmem:[%s9 + $0x720] sm:$0xff]
    %v3816 = vld [vmem:[%s9 + $0x728] sm:$0xff]
    %v3817 = vld [vmem:[%s9 + $0x730] sm:$0xff]
    %v3818 = vld [vmem:[%s9 + $0x738] sm:$0xff]
    %v3819 = vld [vmem:[%s9 + $0x740] sm:$0xff]
    %v3820 = vld [vmem:[%s9 + $0x748] sm:$0xff]
    %v3821 = vld [vmem:[%s9 + $0x750] sm:$0xff]
    %v3822 = vld [vmem:[%s9 + $0x758] sm:$0xff]
    %v3823 = vld [vmem:[%s9 + $0x760] sm:$0xff]
    %v3824 = vld [vmem:[%s9 + $0x768] sm:$0xff]
    %v3825 = vld [vmem:[%s9 + $0x770] sm:$0xff]
    %v3826 = vld [vmem:[%s9 + $0x778] sm:$0xff]
    %v3827 = vld [vmem:[%s9 + $0x780] sm:$0xff]
    %v3828 = vld [vmem:[%s9 + $0x788] sm:$0xff]
    %v3829 = vld [vmem:[%s9 + $0x790] sm:$0xff]
    %v3830 = vld [vmem:[%s9 + $0x798] sm:$0xff]
    %v3831 = vld [vmem:[%s9 + $0x7a0] sm:$0xff]
    %v3832 = vld [vmem:[%s9 + $0x7a8] sm:$0xff]
    %v3833 = vld [vmem:[%s9 + $0x7b0] sm:$0xff]
    %v3834 = vld [vmem:[%s9 + $0x7b8] sm:$0xff]
    %v3835 = vld [vmem:[%s9 + $0x7c0] sm:$0xff]
    %v3836 = vld [vmem:[%s9 + $0x7c8] sm:$0xff]
    %v3837 = vld [vmem:[%s9 + $0x7d0] sm:$0xff]
    %v3838 = vld [vmem:[%s9 + $0x7d8] sm:$0xff]
    %v3839 = vld [vmem:[%s9 + $0x7e0] sm:$0xff]
    %v3840 = vld [vmem:[%s9 + $0x7e8] sm:$0xff]
    %v3841 = vld [vmem:[%s9 + $0x7f0] sm:$0xff]
    %v3842 = vld [vmem:[%s9 + $0x7f8] sm:$0xff]
    %v3843 = vld [vmem:[%s10] sm:$0xff]
    %v3845 = vlaneseq
    %v3846 = vshrl.u32 %v3845, 7
    %v3847 = vsub.s32 0, %v3846
    %v3848 = vrot.slane %v3843, %v3847
    %v3849 = vlaneseq
    %v3850 = vshrl.u32 %v3849, 7
    %v3851 = vsub.s32 1, %v3850
    %v3852 = vrot.slane %v3843, %v3851
    %v3853 = vlaneseq
    %v3854 = vshrl.u32 %v3853, 7
    %v3855 = vsub.s32 2, %v3854
    %v3856 = vrot.slane %v3843, %v3855
    %v3857 = vlaneseq
    %v3858 = vshrl.u32 %v3857, 7
    %v3859 = vsub.s32 3, %v3858
    %v3860 = vrot.slane %v3843, %v3859
    %v3861 = vlaneseq
    %v3862 = vshrl.u32 %v3861, 7
    %v3863 = vsub.s32 4, %v3862
    %v3864 = vrot.slane %v3843, %v3863
    %v3865 = vlaneseq
    %v3866 = vshrl.u32 %v3865, 7
    %v3867 = vsub.s32 5, %v3866
    %v3868 = vrot.slane %v3843, %v3867
    %v3869 = vlaneseq
    %v3870 = vshrl.u32 %v3869, 7
    %v3871 = vsub.s32 6, %v3870
    %v3872 = vrot.slane %v3843, %v3871
    %v3873 = vlaneseq
    %v3874 = vshrl.u32 %v3873, 7
    %v3875 = vsub.s32 7, %v3874
    %v3876 = vrot.slane %v3843, %v3875
    %v4141 = vunpack.c.l.b16 %v3587
    %v4142 = vunpack.c.h.b16 %v3587
    %v4143 = vunpack.c.l.b16 %v3588
    %v4144 = vunpack.c.h.b16 %v3588
    %v4145 = vunpack.c.l.b16 %v3589
    %v4146 = vunpack.c.h.b16 %v3589
    %v4147 = vunpack.c.l.b16 %v3590
    %v4148 = vunpack.c.h.b16 %v3590
    %v4149 = vunpack.c.l.b16 %v3591
    %v4150 = vunpack.c.h.b16 %v3591
    %v4151 = vunpack.c.l.b16 %v3592
    %v4152 = vunpack.c.h.b16 %v3592
    %v4153 = vunpack.c.l.b16 %v3593
    %v4154 = vunpack.c.h.b16 %v3593
    %v4155 = vunpack.c.l.b16 %v3594
    %v4156 = vunpack.c.h.b16 %v3594
    %v4157 = vunpack.c.l.b16 %v3595
    %v4158 = vunpack.c.h.b16 %v3595
    %v4159 = vunpack.c.l.b16 %v3596
    %v4160 = vunpack.c.h.b16 %v3596
    %v4161 = vunpack.c.l.b16 %v3597
    %v4162 = vunpack.c.h.b16 %v3597
    %v4163 = vunpack.c.l.b16 %v3598
    %v4164 = vunpack.c.h.b16 %v3598
    %v4165 = vunpack.c.l.b16 %v3599
    %v4166 = vunpack.c.h.b16 %v3599
    %v4167 = vunpack.c.l.b16 %v3600
    %v4168 = vunpack.c.h.b16 %v3600
    %v4169 = vunpack.c.l.b16 %v3601
    %v4170 = vunpack.c.h.b16 %v3601
    %v4171 = vunpack.c.l.b16 %v3602
    %v4172 = vunpack.c.h.b16 %v3602
    %v4173 = vunpack.c.l.b16 %v3603
    %v4174 = vunpack.c.h.b16 %v3603
    %v4175 = vunpack.c.l.b16 %v3604
    %v4176 = vunpack.c.h.b16 %v3604
    %v4177 = vunpack.c.l.b16 %v3605
    %v4178 = vunpack.c.h.b16 %v3605
    %v4179 = vunpack.c.l.b16 %v3606
    %v4180 = vunpack.c.h.b16 %v3606
    %v4181 = vunpack.c.l.b16 %v3607
    %v4182 = vunpack.c.h.b16 %v3607
    %v4183 = vunpack.c.l.b16 %v3608
    %v4184 = vunpack.c.h.b16 %v3608
    %v4185 = vunpack.c.l.b16 %v3609
    %v4186 = vunpack.c.h.b16 %v3609
    %v4187 = vunpack.c.l.b16 %v3610
    %v4188 = vunpack.c.h.b16 %v3610
    %v4189 = vunpack.c.l.b16 %v3611
    %v4190 = vunpack.c.h.b16 %v3611
    %v4191 = vunpack.c.l.b16 %v3612
    %v4192 = vunpack.c.h.b16 %v3612
    %v4193 = vunpack.c.l.b16 %v3613
    %v4194 = vunpack.c.h.b16 %v3613
    %v4195 = vunpack.c.l.b16 %v3614
    %v4196 = vunpack.c.h.b16 %v3614
    %v4197 = vunpack.c.l.b16 %v3615
    %v4198 = vunpack.c.h.b16 %v3615
    %v4199 = vunpack.c.l.b16 %v3616
    %v4200 = vunpack.c.h.b16 %v3616
    %v4201 = vunpack.c.l.b16 %v3617
    %v4202 = vunpack.c.h.b16 %v3617
    %v4203 = vunpack.c.l.b16 %v3618
    %v4204 = vunpack.c.h.b16 %v3618
    %v4205 = vunpack.c.l.b16 %v3619
    %v4206 = vunpack.c.h.b16 %v3619
    %v4207 = vunpack.c.l.b16 %v3620
    %v4208 = vunpack.c.h.b16 %v3620
    %v4209 = vunpack.c.l.b16 %v3621
    %v4210 = vunpack.c.h.b16 %v3621
    %v4211 = vunpack.c.l.b16 %v3622
    %v4212 = vunpack.c.h.b16 %v3622
    %v4213 = vunpack.c.l.b16 %v3623
    %v4214 = vunpack.c.h.b16 %v3623
    %v4215 = vunpack.c.l.b16 %v3624
    %v4216 = vunpack.c.h.b16 %v3624
    %v4217 = vunpack.c.l.b16 %v3625
    %v4218 = vunpack.c.h.b16 %v3625
    %v4219 = vunpack.c.l.b16 %v3626
    %v4220 = vunpack.c.h.b16 %v3626
    %v4221 = vunpack.c.l.b16 %v3627
    %v4222 = vunpack.c.h.b16 %v3627
    %v4223 = vunpack.c.l.b16 %v3628
    %v4224 = vunpack.c.h.b16 %v3628
    %v4225 = vunpack.c.l.b16 %v3629
    %v4226 = vunpack.c.h.b16 %v3629
    %v4227 = vunpack.c.l.b16 %v3630
    %v4228 = vunpack.c.h.b16 %v3630
    %v4229 = vunpack.c.l.b16 %v3631
    %v4230 = vunpack.c.h.b16 %v3631
    %v4231 = vunpack.c.l.b16 %v3632
    %v4232 = vunpack.c.h.b16 %v3632
    %v4233 = vunpack.c.l.b16 %v3633
    %v4234 = vunpack.c.h.b16 %v3633
    %v4235 = vunpack.c.l.b16 %v3634
    %v4236 = vunpack.c.h.b16 %v3634
    %v4237 = vunpack.c.l.b16 %v3635
    %v4238 = vunpack.c.h.b16 %v3635
    %v4239 = vunpack.c.l.b16 %v3636
    %v4240 = vunpack.c.h.b16 %v3636
    %v4241 = vunpack.c.l.b16 %v3637
    %v4242 = vunpack.c.h.b16 %v3637
    %v4243 = vunpack.c.l.b16 %v3638
    %v4244 = vunpack.c.h.b16 %v3638
    %v4245 = vunpack.c.l.b16 %v3639
    %v4246 = vunpack.c.h.b16 %v3639
    %v4247 = vunpack.c.l.b16 %v3640
    %v4248 = vunpack.c.h.b16 %v3640
    %v4249 = vunpack.c.l.b16 %v3641
    %v4250 = vunpack.c.h.b16 %v3641
    %v4251 = vunpack.c.l.b16 %v3642
    %v4252 = vunpack.c.h.b16 %v3642
    %v4253 = vunpack.c.l.b16 %v3643
    %v4254 = vunpack.c.h.b16 %v3643
    %v4255 = vunpack.c.l.b16 %v3644
    %v4256 = vunpack.c.h.b16 %v3644
    %v4257 = vunpack.c.l.b16 %v3645
    %v4258 = vunpack.c.h.b16 %v3645
    %v4259 = vunpack.c.l.b16 %v3646
    %v4260 = vunpack.c.h.b16 %v3646
    %v4261 = vunpack.c.l.b16 %v3647
    %v4262 = vunpack.c.h.b16 %v3647
    %v4263 = vunpack.c.l.b16 %v3648
    %v4264 = vunpack.c.h.b16 %v3648
    %v4265 = vunpack.c.l.b16 %v3649
    %v4266 = vunpack.c.h.b16 %v3649
    %v4267 = vunpack.c.l.b16 %v3650
    %v4268 = vunpack.c.h.b16 %v3650
    %v4269 = vunpack.c.l.b16 %v3651
    %v4270 = vunpack.c.h.b16 %v3651
    %v4271 = vunpack.c.l.b16 %v3652
    %v4272 = vunpack.c.h.b16 %v3652
    %v4273 = vunpack.c.l.b16 %v3653
    %v4274 = vunpack.c.h.b16 %v3653
    %v4275 = vunpack.c.l.b16 %v3654
    %v4276 = vunpack.c.h.b16 %v3654
    %v4277 = vunpack.c.l.b16 %v3655
    %v4278 = vunpack.c.h.b16 %v3655
    %v4279 = vunpack.c.l.b16 %v3656
    %v4280 = vunpack.c.h.b16 %v3656
    %v4281 = vunpack.c.l.b16 %v3657
    %v4282 = vunpack.c.h.b16 %v3657
    %v4283 = vunpack.c.l.b16 %v3658
    %v4284 = vunpack.c.h.b16 %v3658
    %v4285 = vunpack.c.l.b16 %v3659
    %v4286 = vunpack.c.h.b16 %v3659
    %v4287 = vunpack.c.l.b16 %v3660
    %v4288 = vunpack.c.h.b16 %v3660
    %v4289 = vunpack.c.l.b16 %v3661
    %v4290 = vunpack.c.h.b16 %v3661
    %v4291 = vunpack.c.l.b16 %v3662
    %v4292 = vunpack.c.h.b16 %v3662
    %v4293 = vunpack.c.l.b16 %v3663
    %v4294 = vunpack.c.h.b16 %v3663
    %v4295 = vunpack.c.l.b16 %v3664
    %v4296 = vunpack.c.h.b16 %v3664
    %v4297 = vunpack.c.l.b16 %v3665
    %v4298 = vunpack.c.h.b16 %v3665
    %v4299 = vunpack.c.l.b16 %v3666
    %v4300 = vunpack.c.h.b16 %v3666
    %v4301 = vunpack.c.l.b16 %v3667
    %v4302 = vunpack.c.h.b16 %v3667
    %v4303 = vunpack.c.l.b16 %v3668
    %v4304 = vunpack.c.h.b16 %v3668
    %v4305 = vunpack.c.l.b16 %v3669
    %v4306 = vunpack.c.h.b16 %v3669
    %v4307 = vunpack.c.l.b16 %v3670
    %v4308 = vunpack.c.h.b16 %v3670
    %v4309 = vunpack.c.l.b16 %v3671
    %v4310 = vunpack.c.h.b16 %v3671
    %v4311 = vunpack.c.l.b16 %v3672
    %v4312 = vunpack.c.h.b16 %v3672
    %v4313 = vunpack.c.l.b16 %v3673
    %v4314 = vunpack.c.h.b16 %v3673
    %v4315 = vunpack.c.l.b16 %v3674
    %v4316 = vunpack.c.h.b16 %v3674
    %v4317 = vunpack.c.l.b16 %v3675
    %v4318 = vunpack.c.h.b16 %v3675
    %v4319 = vunpack.c.l.b16 %v3676
    %v4320 = vunpack.c.h.b16 %v3676
    %v4321 = vunpack.c.l.b16 %v3677
    %v4322 = vunpack.c.h.b16 %v3677
    %v4323 = vunpack.c.l.b16 %v3678
    %v4324 = vunpack.c.h.b16 %v3678
    %v4325 = vunpack.c.l.b16 %v3679
    %v4326 = vunpack.c.h.b16 %v3679
    %v4327 = vunpack.c.l.b16 %v3680
    %v4328 = vunpack.c.h.b16 %v3680
    %v4329 = vunpack.c.l.b16 %v3681
    %v4330 = vunpack.c.h.b16 %v3681
    %v4331 = vunpack.c.l.b16 %v3682
    %v4332 = vunpack.c.h.b16 %v3682
    %v4333 = vunpack.c.l.b16 %v3683
    %v4334 = vunpack.c.h.b16 %v3683
    %v4335 = vunpack.c.l.b16 %v3684
    %v4336 = vunpack.c.h.b16 %v3684
    %v4337 = vunpack.c.l.b16 %v3685
    %v4338 = vunpack.c.h.b16 %v3685
    %v4339 = vunpack.c.l.b16 %v3686
    %v4340 = vunpack.c.h.b16 %v3686
    %v4341 = vunpack.c.l.b16 %v3687
    %v4342 = vunpack.c.h.b16 %v3687
    %v4343 = vunpack.c.l.b16 %v3688
    %v4344 = vunpack.c.h.b16 %v3688
    %v4345 = vunpack.c.l.b16 %v3689
    %v4346 = vunpack.c.h.b16 %v3689
    %v4347 = vunpack.c.l.b16 %v3690
    %v4348 = vunpack.c.h.b16 %v3690
    %v4349 = vunpack.c.l.b16 %v3691
    %v4350 = vunpack.c.h.b16 %v3691
    %v4351 = vunpack.c.l.b16 %v3692
    %v4352 = vunpack.c.h.b16 %v3692
    %v4353 = vunpack.c.l.b16 %v3693
    %v4354 = vunpack.c.h.b16 %v3693
    %v4355 = vunpack.c.l.b16 %v3694
    %v4356 = vunpack.c.h.b16 %v3694
    %v4357 = vunpack.c.l.b16 %v3695
    %v4358 = vunpack.c.h.b16 %v3695
    %v4359 = vunpack.c.l.b16 %v3696
    %v4360 = vunpack.c.h.b16 %v3696
    %v4361 = vunpack.c.l.b16 %v3697
    %v4362 = vunpack.c.h.b16 %v3697
    %v4363 = vunpack.c.l.b16 %v3698
    %v4364 = vunpack.c.h.b16 %v3698
    %v4365 = vunpack.c.l.b16 %v3699
    %v4366 = vunpack.c.h.b16 %v3699
    %v4367 = vunpack.c.l.b16 %v3700
    %v4368 = vunpack.c.h.b16 %v3700
    %v4369 = vunpack.c.l.b16 %v3701
    %v4370 = vunpack.c.h.b16 %v3701
    %v4371 = vunpack.c.l.b16 %v3702
    %v4372 = vunpack.c.h.b16 %v3702
    %v4373 = vunpack.c.l.b16 %v3703
    %v4374 = vunpack.c.h.b16 %v3703
    %v4375 = vunpack.c.l.b16 %v3704
    %v4376 = vunpack.c.h.b16 %v3704
    %v4377 = vunpack.c.l.b16 %v3705
    %v4378 = vunpack.c.h.b16 %v3705
    %v4379 = vunpack.c.l.b16 %v3706
    %v4380 = vunpack.c.h.b16 %v3706
    %v4381 = vunpack.c.l.b16 %v3707
    %v4382 = vunpack.c.h.b16 %v3707
    %v4383 = vunpack.c.l.b16 %v3708
    %v4384 = vunpack.c.h.b16 %v3708
    %v4385 = vunpack.c.l.b16 %v3709
    %v4386 = vunpack.c.h.b16 %v3709
    %v4387 = vunpack.c.l.b16 %v3710
    %v4388 = vunpack.c.h.b16 %v3710
    %v4389 = vunpack.c.l.b16 %v3711
    %v4390 = vunpack.c.h.b16 %v3711
    %v4391 = vunpack.c.l.b16 %v3712
    %v4392 = vunpack.c.h.b16 %v3712
    %v4393 = vunpack.c.l.b16 %v3713
    %v4394 = vunpack.c.h.b16 %v3713
    %v4395 = vunpack.c.l.b16 %v3714
    %v4396 = vunpack.c.h.b16 %v3714
    %v4397 = vunpack.c.l.b16 %v3715
    %v4398 = vunpack.c.h.b16 %v3715
    %v4399 = vunpack.c.l.b16 %v3716
    %v4400 = vunpack.c.h.b16 %v3716
    %v4401 = vunpack.c.l.b16 %v3717
    %v4402 = vunpack.c.h.b16 %v3717
    %v4403 = vunpack.c.l.b16 %v3718
    %v4404 = vunpack.c.h.b16 %v3718
    %v4405 = vunpack.c.l.b16 %v3719
    %v4406 = vunpack.c.h.b16 %v3719
    %v4407 = vunpack.c.l.b16 %v3720
    %v4408 = vunpack.c.h.b16 %v3720
    %v4409 = vunpack.c.l.b16 %v3721
    %v4410 = vunpack.c.h.b16 %v3721
    %v4411 = vunpack.c.l.b16 %v3722
    %v4412 = vunpack.c.h.b16 %v3722
    %v4413 = vunpack.c.l.b16 %v3723
    %v4414 = vunpack.c.h.b16 %v3723
    %v4415 = vunpack.c.l.b16 %v3724
    %v4416 = vunpack.c.h.b16 %v3724
    %v4417 = vunpack.c.l.b16 %v3725
    %v4418 = vunpack.c.h.b16 %v3725
    %v4419 = vunpack.c.l.b16 %v3726
    %v4420 = vunpack.c.h.b16 %v3726
    %v4421 = vunpack.c.l.b16 %v3727
    %v4422 = vunpack.c.h.b16 %v3727
    %v4423 = vunpack.c.l.b16 %v3728
    %v4424 = vunpack.c.h.b16 %v3728
    %v4425 = vunpack.c.l.b16 %v3729
    %v4426 = vunpack.c.h.b16 %v3729
    %v4427 = vunpack.c.l.b16 %v3730
    %v4428 = vunpack.c.h.b16 %v3730
    %v4429 = vunpack.c.l.b16 %v3731
    %v4430 = vunpack.c.h.b16 %v3731
    %v4431 = vunpack.c.l.b16 %v3732
    %v4432 = vunpack.c.h.b16 %v3732
    %v4433 = vunpack.c.l.b16 %v3733
    %v4434 = vunpack.c.h.b16 %v3733
    %v4435 = vunpack.c.l.b16 %v3734
    %v4436 = vunpack.c.h.b16 %v3734
    %v4437 = vunpack.c.l.b16 %v3735
    %v4438 = vunpack.c.h.b16 %v3735
    %v4439 = vunpack.c.l.b16 %v3736
    %v4440 = vunpack.c.h.b16 %v3736
    %v4441 = vunpack.c.l.b16 %v3737
    %v4442 = vunpack.c.h.b16 %v3737
    %v4443 = vunpack.c.l.b16 %v3738
    %v4444 = vunpack.c.h.b16 %v3738
    %v4445 = vunpack.c.l.b16 %v3739
    %v4446 = vunpack.c.h.b16 %v3739
    %v4447 = vunpack.c.l.b16 %v3740
    %v4448 = vunpack.c.h.b16 %v3740
    %v4449 = vunpack.c.l.b16 %v3741
    %v4450 = vunpack.c.h.b16 %v3741
    %v4451 = vunpack.c.l.b16 %v3742
    %v4452 = vunpack.c.h.b16 %v3742
    %v4453 = vunpack.c.l.b16 %v3743
    %v4454 = vunpack.c.h.b16 %v3743
    %v4455 = vunpack.c.l.b16 %v3744
    %v4456 = vunpack.c.h.b16 %v3744
    %v4457 = vunpack.c.l.b16 %v3745
    %v4458 = vunpack.c.h.b16 %v3745
    %v4459 = vunpack.c.l.b16 %v3746
    %v4460 = vunpack.c.h.b16 %v3746
    %v4461 = vunpack.c.l.b16 %v3747
    %v4462 = vunpack.c.h.b16 %v3747
    %v4463 = vunpack.c.l.b16 %v3748
    %v4464 = vunpack.c.h.b16 %v3748
    %v4465 = vunpack.c.l.b16 %v3749
    %v4466 = vunpack.c.h.b16 %v3749
    %v4467 = vunpack.c.l.b16 %v3750
    %v4468 = vunpack.c.h.b16 %v3750
    %v4469 = vunpack.c.l.b16 %v3751
    %v4470 = vunpack.c.h.b16 %v3751
    %v4471 = vunpack.c.l.b16 %v3752
    %v4472 = vunpack.c.h.b16 %v3752
    %v4473 = vunpack.c.l.b16 %v3753
    %v4474 = vunpack.c.h.b16 %v3753
    %v4475 = vunpack.c.l.b16 %v3754
    %v4476 = vunpack.c.h.b16 %v3754
    %v4477 = vunpack.c.l.b16 %v3755
    %v4478 = vunpack.c.h.b16 %v3755
    %v4479 = vunpack.c.l.b16 %v3756
    %v4480 = vunpack.c.h.b16 %v3756
    %v4481 = vunpack.c.l.b16 %v3757
    %v4482 = vunpack.c.h.b16 %v3757
    %v4483 = vunpack.c.l.b16 %v3758
    %v4484 = vunpack.c.h.b16 %v3758
    %v4485 = vunpack.c.l.b16 %v3759
    %v4486 = vunpack.c.h.b16 %v3759
    %v4487 = vunpack.c.l.b16 %v3760
    %v4488 = vunpack.c.h.b16 %v3760
    %v4489 = vunpack.c.l.b16 %v3761
    %v4490 = vunpack.c.h.b16 %v3761
    %v4491 = vunpack.c.l.b16 %v3762
    %v4492 = vunpack.c.h.b16 %v3762
    %v4493 = vunpack.c.l.b16 %v3763
    %v4494 = vunpack.c.h.b16 %v3763
    %v4495 = vunpack.c.l.b16 %v3764
    %v4496 = vunpack.c.h.b16 %v3764
    %v4497 = vunpack.c.l.b16 %v3765
    %v4498 = vunpack.c.h.b16 %v3765
    %v4499 = vunpack.c.l.b16 %v3766
    %v4500 = vunpack.c.h.b16 %v3766
    %v4501 = vunpack.c.l.b16 %v3767
    %v4502 = vunpack.c.h.b16 %v3767
    %v4503 = vunpack.c.l.b16 %v3768
    %v4504 = vunpack.c.h.b16 %v3768
    %v4505 = vunpack.c.l.b16 %v3769
    %v4506 = vunpack.c.h.b16 %v3769
    %v4507 = vunpack.c.l.b16 %v3770
    %v4508 = vunpack.c.h.b16 %v3770
    %v4509 = vunpack.c.l.b16 %v3771
    %v4510 = vunpack.c.h.b16 %v3771
    %v4511 = vunpack.c.l.b16 %v3772
    %v4512 = vunpack.c.h.b16 %v3772
    %v4513 = vunpack.c.l.b16 %v3773
    %v4514 = vunpack.c.h.b16 %v3773
    %v4515 = vunpack.c.l.b16 %v3774
    %v4516 = vunpack.c.h.b16 %v3774
    %v4517 = vunpack.c.l.b16 %v3775
    %v4518 = vunpack.c.h.b16 %v3775
    %v4519 = vunpack.c.l.b16 %v3776
    %v4520 = vunpack.c.h.b16 %v3776
    %v4521 = vunpack.c.l.b16 %v3777
    %v4522 = vunpack.c.h.b16 %v3777
    %v4523 = vunpack.c.l.b16 %v3778
    %v4524 = vunpack.c.h.b16 %v3778
    %v4525 = vunpack.c.l.b16 %v3779
    %v4526 = vunpack.c.h.b16 %v3779
    %v4527 = vunpack.c.l.b16 %v3780
    %v4528 = vunpack.c.h.b16 %v3780
    %v4529 = vunpack.c.l.b16 %v3781
    %v4530 = vunpack.c.h.b16 %v3781
    %v4531 = vunpack.c.l.b16 %v3782
    %v4532 = vunpack.c.h.b16 %v3782
    %v4533 = vunpack.c.l.b16 %v3783
    %v4534 = vunpack.c.h.b16 %v3783
    %v4535 = vunpack.c.l.b16 %v3784
    %v4536 = vunpack.c.h.b16 %v3784
    %v4537 = vunpack.c.l.b16 %v3785
    %v4538 = vunpack.c.h.b16 %v3785
    %v4539 = vunpack.c.l.b16 %v3786
    %v4540 = vunpack.c.h.b16 %v3786
    %v4541 = vunpack.c.l.b16 %v3787
    %v4542 = vunpack.c.h.b16 %v3787
    %v4543 = vunpack.c.l.b16 %v3788
    %v4544 = vunpack.c.h.b16 %v3788
    %v4545 = vunpack.c.l.b16 %v3789
    %v4546 = vunpack.c.h.b16 %v3789
    %v4547 = vunpack.c.l.b16 %v3790
    %v4548 = vunpack.c.h.b16 %v3790
    %v4549 = vunpack.c.l.b16 %v3791
    %v4550 = vunpack.c.h.b16 %v3791
    %v4551 = vunpack.c.l.b16 %v3792
    %v4552 = vunpack.c.h.b16 %v3792
    %v4553 = vunpack.c.l.b16 %v3793
    %v4554 = vunpack.c.h.b16 %v3793
    %v4555 = vunpack.c.l.b16 %v3794
    %v4556 = vunpack.c.h.b16 %v3794
    %v4557 = vunpack.c.l.b16 %v3795
    %v4558 = vunpack.c.h.b16 %v3795
    %v4559 = vunpack.c.l.b16 %v3796
    %v4560 = vunpack.c.h.b16 %v3796
    %v4561 = vunpack.c.l.b16 %v3797
    %v4562 = vunpack.c.h.b16 %v3797
    %v4563 = vunpack.c.l.b16 %v3798
    %v4564 = vunpack.c.h.b16 %v3798
    %v4565 = vunpack.c.l.b16 %v3799
    %v4566 = vunpack.c.h.b16 %v3799
    %v4567 = vunpack.c.l.b16 %v3800
    %v4568 = vunpack.c.h.b16 %v3800
    %v4569 = vunpack.c.l.b16 %v3801
    %v4570 = vunpack.c.h.b16 %v3801
    %v4571 = vunpack.c.l.b16 %v3802
    %v4572 = vunpack.c.h.b16 %v3802
    %v4573 = vunpack.c.l.b16 %v3803
    %v4574 = vunpack.c.h.b16 %v3803
    %v4575 = vunpack.c.l.b16 %v3804
    %v4576 = vunpack.c.h.b16 %v3804
    %v4577 = vunpack.c.l.b16 %v3805
    %v4578 = vunpack.c.h.b16 %v3805
    %v4579 = vunpack.c.l.b16 %v3806
    %v4580 = vunpack.c.h.b16 %v3806
    %v4581 = vunpack.c.l.b16 %v3807
    %v4582 = vunpack.c.h.b16 %v3807
    %v4583 = vunpack.c.l.b16 %v3808
    %v4584 = vunpack.c.h.b16 %v3808
    %v4585 = vunpack.c.l.b16 %v3809
    %v4586 = vunpack.c.h.b16 %v3809
    %v4587 = vunpack.c.l.b16 %v3810
    %v4588 = vunpack.c.h.b16 %v3810
    %v4589 = vunpack.c.l.b16 %v3811
    %v4590 = vunpack.c.h.b16 %v3811
    %v4591 = vunpack.c.l.b16 %v3812
    %v4592 = vunpack.c.h.b16 %v3812
    %v4593 = vunpack.c.l.b16 %v3813
    %v4594 = vunpack.c.h.b16 %v3813
    %v4595 = vunpack.c.l.b16 %v3814
    %v4596 = vunpack.c.h.b16 %v3814
    %v4597 = vunpack.c.l.b16 %v3815
    %v4598 = vunpack.c.h.b16 %v3815
    %v4599 = vunpack.c.l.b16 %v3816
    %v4600 = vunpack.c.h.b16 %v3816
    %v4601 = vunpack.c.l.b16 %v3817
    %v4602 = vunpack.c.h.b16 %v3817
    %v4603 = vunpack.c.l.b16 %v3818
    %v4604 = vunpack.c.h.b16 %v3818
    %v4605 = vunpack.c.l.b16 %v3819
    %v4606 = vunpack.c.h.b16 %v3819
    %v4607 = vunpack.c.l.b16 %v3820
    %v4608 = vunpack.c.h.b16 %v3820
    %v4609 = vunpack.c.l.b16 %v3821
    %v4610 = vunpack.c.h.b16 %v3821
    %v4611 = vunpack.c.l.b16 %v3822
    %v4612 = vunpack.c.h.b16 %v3822
    %v4613 = vunpack.c.l.b16 %v3823
    %v4614 = vunpack.c.h.b16 %v3823
    %v4615 = vunpack.c.l.b16 %v3824
    %v4616 = vunpack.c.h.b16 %v3824
    %v4617 = vunpack.c.l.b16 %v3825
    %v4618 = vunpack.c.h.b16 %v3825
    %v4619 = vunpack.c.l.b16 %v3826
    %v4620 = vunpack.c.h.b16 %v3826
    %v4621 = vunpack.c.l.b16 %v3827
    %v4622 = vunpack.c.h.b16 %v3827
    %v4623 = vunpack.c.l.b16 %v3828
    %v4624 = vunpack.c.h.b16 %v3828
    %v4625 = vunpack.c.l.b16 %v3829
    %v4626 = vunpack.c.h.b16 %v3829
    %v4627 = vunpack.c.l.b16 %v3830
    %v4628 = vunpack.c.h.b16 %v3830
    %v4629 = vunpack.c.l.b16 %v3831
    %v4630 = vunpack.c.h.b16 %v3831
    %v4631 = vunpack.c.l.b16 %v3832
    %v4632 = vunpack.c.h.b16 %v3832
    %v4633 = vunpack.c.l.b16 %v3833
    %v4634 = vunpack.c.h.b16 %v3833
    %v4635 = vunpack.c.l.b16 %v3834
    %v4636 = vunpack.c.h.b16 %v3834
    %v4637 = vunpack.c.l.b16 %v3835
    %v4638 = vunpack.c.h.b16 %v3835
    %v4639 = vunpack.c.l.b16 %v3836
    %v4640 = vunpack.c.h.b16 %v3836
    %v4641 = vunpack.c.l.b16 %v3837
    %v4642 = vunpack.c.h.b16 %v3837
    %v4643 = vunpack.c.l.b16 %v3838
    %v4644 = vunpack.c.h.b16 %v3838
    %v4645 = vunpack.c.l.b16 %v3839
    %v4646 = vunpack.c.h.b16 %v3839
    %v4647 = vunpack.c.l.b16 %v3840
    %v4648 = vunpack.c.h.b16 %v3840
    %v4649 = vunpack.c.l.b16 %v3841
    %v4650 = vunpack.c.h.b16 %v3841
    %v4651 = vunpack.c.l.b16 %v3842
    %v4652 = vunpack.c.h.b16 %v3842
    %v4653 = vpack.c.b16 %v4149, %v4141
    %v4654 = vpack.c.b16 %v4150, %v4142
    %v4655 = vpack.c.b16 %v4151, %v4143
    %v4656 = vpack.c.b16 %v4152, %v4144
    %v4657 = vpack.c.b16 %v4153, %v4145
    %v4658 = vpack.c.b16 %v4154, %v4146
    %v4659 = vpack.c.b16 %v4155, %v4147
    %v4660 = vpack.c.b16 %v4156, %v4148
    %v4661 = vpack.c.b16 %v4165, %v4157
    %v4662 = vpack.c.b16 %v4166, %v4158
    %v4663 = vpack.c.b16 %v4167, %v4159
    %v4664 = vpack.c.b16 %v4168, %v4160
    %v4665 = vpack.c.b16 %v4169, %v4161
    %v4666 = vpack.c.b16 %v4170, %v4162
    %v4667 = vpack.c.b16 %v4171, %v4163
    %v4668 = vpack.c.b16 %v4172, %v4164
    %v4669 = vpack.c.b16 %v4181, %v4173
    %v4670 = vpack.c.b16 %v4182, %v4174
    %v4671 = vpack.c.b16 %v4183, %v4175
    %v4672 = vpack.c.b16 %v4184, %v4176
    %v4673 = vpack.c.b16 %v4185, %v4177
    %v4674 = vpack.c.b16 %v4186, %v4178
    %v4675 = vpack.c.b16 %v4187, %v4179
    %v4676 = vpack.c.b16 %v4188, %v4180
    %v4677 = vpack.c.b16 %v4197, %v4189
    %v4678 = vpack.c.b16 %v4198, %v4190
    %v4679 = vpack.c.b16 %v4199, %v4191
    %v4680 = vpack.c.b16 %v4200, %v4192
    %v4681 = vpack.c.b16 %v4201, %v4193
    %v4682 = vpack.c.b16 %v4202, %v4194
    %v4683 = vpack.c.b16 %v4203, %v4195
    %v4684 = vpack.c.b16 %v4204, %v4196
    %v4685 = vpack.c.b16 %v4213, %v4205
    %v4686 = vpack.c.b16 %v4214, %v4206
    %v4687 = vpack.c.b16 %v4215, %v4207
    %v4688 = vpack.c.b16 %v4216, %v4208
    %v4689 = vpack.c.b16 %v4217, %v4209
    %v4690 = vpack.c.b16 %v4218, %v4210
    %v4691 = vpack.c.b16 %v4219, %v4211
    %v4692 = vpack.c.b16 %v4220, %v4212
    %v4693 = vpack.c.b16 %v4229, %v4221
    %v4694 = vpack.c.b16 %v4230, %v4222
    %v4695 = vpack.c.b16 %v4231, %v4223
    %v4696 = vpack.c.b16 %v4232, %v4224
    %v4697 = vpack.c.b16 %v4233, %v4225
    %v4698 = vpack.c.b16 %v4234, %v4226
    %v4699 = vpack.c.b16 %v4235, %v4227
    %v4700 = vpack.c.b16 %v4236, %v4228
    %v4701 = vpack.c.b16 %v4245, %v4237
    %v4702 = vpack.c.b16 %v4246, %v4238
    %v4703 = vpack.c.b16 %v4247, %v4239
    %v4704 = vpack.c.b16 %v4248, %v4240
    %v4705 = vpack.c.b16 %v4249, %v4241
    %v4706 = vpack.c.b16 %v4250, %v4242
    %v4707 = vpack.c.b16 %v4251, %v4243
    %v4708 = vpack.c.b16 %v4252, %v4244
    %v4709 = vpack.c.b16 %v4261, %v4253
    %v4710 = vpack.c.b16 %v4262, %v4254
    %v4711 = vpack.c.b16 %v4263, %v4255
    %v4712 = vpack.c.b16 %v4264, %v4256
    %v4713 = vpack.c.b16 %v4265, %v4257
    %v4714 = vpack.c.b16 %v4266, %v4258
    %v4715 = vpack.c.b16 %v4267, %v4259
    %v4716 = vpack.c.b16 %v4268, %v4260
    %v4717 = vpack.c.b16 %v4277, %v4269
    %v4718 = vpack.c.b16 %v4278, %v4270
    %v4719 = vpack.c.b16 %v4279, %v4271
    %v4720 = vpack.c.b16 %v4280, %v4272
    %v4721 = vpack.c.b16 %v4281, %v4273
    %v4722 = vpack.c.b16 %v4282, %v4274
    %v4723 = vpack.c.b16 %v4283, %v4275
    %v4724 = vpack.c.b16 %v4284, %v4276
    %v4725 = vpack.c.b16 %v4293, %v4285
    %v4726 = vpack.c.b16 %v4294, %v4286
    %v4727 = vpack.c.b16 %v4295, %v4287
    %v4728 = vpack.c.b16 %v4296, %v4288
    %v4729 = vpack.c.b16 %v4297, %v4289
    %v4730 = vpack.c.b16 %v4298, %v4290
    %v4731 = vpack.c.b16 %v4299, %v4291
    %v4732 = vpack.c.b16 %v4300, %v4292
    %v4733 = vpack.c.b16 %v4309, %v4301
    %v4734 = vpack.c.b16 %v4310, %v4302
    %v4735 = vpack.c.b16 %v4311, %v4303
    %v4736 = vpack.c.b16 %v4312, %v4304
    %v4737 = vpack.c.b16 %v4313, %v4305
    %v4738 = vpack.c.b16 %v4314, %v4306
    %v4739 = vpack.c.b16 %v4315, %v4307
    %v4740 = vpack.c.b16 %v4316, %v4308
    %v4741 = vpack.c.b16 %v4325, %v4317
    %v4742 = vpack.c.b16 %v4326, %v4318
    %v4743 = vpack.c.b16 %v4327, %v4319
    %v4744 = vpack.c.b16 %v4328, %v4320
    %v4745 = vpack.c.b16 %v4329, %v4321
    %v4746 = vpack.c.b16 %v4330, %v4322
    %v4747 = vpack.c.b16 %v4331, %v4323
    %v4748 = vpack.c.b16 %v4332, %v4324
    %v4749 = vpack.c.b16 %v4341, %v4333
    %v4750 = vpack.c.b16 %v4342, %v4334
    %v4751 = vpack.c.b16 %v4343, %v4335
    %v4752 = vpack.c.b16 %v4344, %v4336
    %v4753 = vpack.c.b16 %v4345, %v4337
    %v4754 = vpack.c.b16 %v4346, %v4338
    %v4755 = vpack.c.b16 %v4347, %v4339
    %v4756 = vpack.c.b16 %v4348, %v4340
    %v4757 = vpack.c.b16 %v4357, %v4349
    %v4758 = vpack.c.b16 %v4358, %v4350
    %v4759 = vpack.c.b16 %v4359, %v4351
    %v4760 = vpack.c.b16 %v4360, %v4352
    %v4761 = vpack.c.b16 %v4361, %v4353
    %v4762 = vpack.c.b16 %v4362, %v4354
    %v4763 = vpack.c.b16 %v4363, %v4355
    %v4764 = vpack.c.b16 %v4364, %v4356
    %v4765 = vpack.c.b16 %v4373, %v4365
    %v4766 = vpack.c.b16 %v4374, %v4366
    %v4767 = vpack.c.b16 %v4375, %v4367
    %v4768 = vpack.c.b16 %v4376, %v4368
    %v4769 = vpack.c.b16 %v4377, %v4369
    %v4770 = vpack.c.b16 %v4378, %v4370
    %v4771 = vpack.c.b16 %v4379, %v4371
    %v4772 = vpack.c.b16 %v4380, %v4372
    %v4773 = vpack.c.b16 %v4389, %v4381
    %v4774 = vpack.c.b16 %v4390, %v4382
    %v4775 = vpack.c.b16 %v4391, %v4383
    %v4776 = vpack.c.b16 %v4392, %v4384
    %v4777 = vpack.c.b16 %v4393, %v4385
    %v4778 = vpack.c.b16 %v4394, %v4386
    %v4779 = vpack.c.b16 %v4395, %v4387
    %v4780 = vpack.c.b16 %v4396, %v4388
    %v4781 = vpack.c.b16 %v4405, %v4397
    %v4782 = vpack.c.b16 %v4406, %v4398
    %v4783 = vpack.c.b16 %v4407, %v4399
    %v4784 = vpack.c.b16 %v4408, %v4400
    %v4785 = vpack.c.b16 %v4409, %v4401
    %v4786 = vpack.c.b16 %v4410, %v4402
    %v4787 = vpack.c.b16 %v4411, %v4403
    %v4788 = vpack.c.b16 %v4412, %v4404
    %v4789 = vpack.c.b16 %v4421, %v4413
    %v4790 = vpack.c.b16 %v4422, %v4414
    %v4791 = vpack.c.b16 %v4423, %v4415
    %v4792 = vpack.c.b16 %v4424, %v4416
    %v4793 = vpack.c.b16 %v4425, %v4417
    %v4794 = vpack.c.b16 %v4426, %v4418
    %v4795 = vpack.c.b16 %v4427, %v4419
    %v4796 = vpack.c.b16 %v4428, %v4420
    %v4797 = vpack.c.b16 %v4437, %v4429
    %v4798 = vpack.c.b16 %v4438, %v4430
    %v4799 = vpack.c.b16 %v4439, %v4431
    %v4800 = vpack.c.b16 %v4440, %v4432
    %v4801 = vpack.c.b16 %v4441, %v4433
    %v4802 = vpack.c.b16 %v4442, %v4434
    %v4803 = vpack.c.b16 %v4443, %v4435
    %v4804 = vpack.c.b16 %v4444, %v4436
    %v4805 = vpack.c.b16 %v4453, %v4445
    %v4806 = vpack.c.b16 %v4454, %v4446
    %v4807 = vpack.c.b16 %v4455, %v4447
    %v4808 = vpack.c.b16 %v4456, %v4448
    %v4809 = vpack.c.b16 %v4457, %v4449
    %v4810 = vpack.c.b16 %v4458, %v4450
    %v4811 = vpack.c.b16 %v4459, %v4451
    %v4812 = vpack.c.b16 %v4460, %v4452
    %v4813 = vpack.c.b16 %v4469, %v4461
    %v4814 = vpack.c.b16 %v4470, %v4462
    %v4815 = vpack.c.b16 %v4471, %v4463
    %v4816 = vpack.c.b16 %v4472, %v4464
    %v4817 = vpack.c.b16 %v4473, %v4465
    %v4818 = vpack.c.b16 %v4474, %v4466
    %v4819 = vpack.c.b16 %v4475, %v4467
    %v4820 = vpack.c.b16 %v4476, %v4468
    %v4821 = vpack.c.b16 %v4485, %v4477
    %v4822 = vpack.c.b16 %v4486, %v4478
    %v4823 = vpack.c.b16 %v4487, %v4479
    %v4824 = vpack.c.b16 %v4488, %v4480
    %v4825 = vpack.c.b16 %v4489, %v4481
    %v4826 = vpack.c.b16 %v4490, %v4482
    %v4827 = vpack.c.b16 %v4491, %v4483
    %v4828 = vpack.c.b16 %v4492, %v4484
    %v4829 = vpack.c.b16 %v4501, %v4493
    %v4830 = vpack.c.b16 %v4502, %v4494
    %v4831 = vpack.c.b16 %v4503, %v4495
    %v4832 = vpack.c.b16 %v4504, %v4496
    %v4833 = vpack.c.b16 %v4505, %v4497
    %v4834 = vpack.c.b16 %v4506, %v4498
    %v4835 = vpack.c.b16 %v4507, %v4499
    %v4836 = vpack.c.b16 %v4508, %v4500
    %v4837 = vpack.c.b16 %v4517, %v4509
    %v4838 = vpack.c.b16 %v4518, %v4510
    %v4839 = vpack.c.b16 %v4519, %v4511
    %v4840 = vpack.c.b16 %v4520, %v4512
    %v4841 = vpack.c.b16 %v4521, %v4513
    %v4842 = vpack.c.b16 %v4522, %v4514
    %v4843 = vpack.c.b16 %v4523, %v4515
    %v4844 = vpack.c.b16 %v4524, %v4516
    %v4845 = vpack.c.b16 %v4533, %v4525
    %v4846 = vpack.c.b16 %v4534, %v4526
    %v4847 = vpack.c.b16 %v4535, %v4527
    %v4848 = vpack.c.b16 %v4536, %v4528
    %v4849 = vpack.c.b16 %v4537, %v4529
    %v4850 = vpack.c.b16 %v4538, %v4530
    %v4851 = vpack.c.b16 %v4539, %v4531
    %v4852 = vpack.c.b16 %v4540, %v4532
    %v4853 = vpack.c.b16 %v4549, %v4541
    %v4854 = vpack.c.b16 %v4550, %v4542
    %v4855 = vpack.c.b16 %v4551, %v4543
    %v4856 = vpack.c.b16 %v4552, %v4544
    %v4857 = vpack.c.b16 %v4553, %v4545
    %v4858 = vpack.c.b16 %v4554, %v4546
    %v4859 = vpack.c.b16 %v4555, %v4547
    %v4860 = vpack.c.b16 %v4556, %v4548
    %v4861 = vpack.c.b16 %v4565, %v4557
    %v4862 = vpack.c.b16 %v4566, %v4558
    %v4863 = vpack.c.b16 %v4567, %v4559
    %v4864 = vpack.c.b16 %v4568, %v4560
    %v4865 = vpack.c.b16 %v4569, %v4561
    %v4866 = vpack.c.b16 %v4570, %v4562
    %v4867 = vpack.c.b16 %v4571, %v4563
    %v4868 = vpack.c.b16 %v4572, %v4564
    %v4869 = vpack.c.b16 %v4581, %v4573
    %v4870 = vpack.c.b16 %v4582, %v4574
    %v4871 = vpack.c.b16 %v4583, %v4575
    %v4872 = vpack.c.b16 %v4584, %v4576
    %v4873 = vpack.c.b16 %v4585, %v4577
    %v4874 = vpack.c.b16 %v4586, %v4578
    %v4875 = vpack.c.b16 %v4587, %v4579
    %v4876 = vpack.c.b16 %v4588, %v4580
    %v4877 = vpack.c.b16 %v4597, %v4589
    %v4878 = vpack.c.b16 %v4598, %v4590
    %v4879 = vpack.c.b16 %v4599, %v4591
    %v4880 = vpack.c.b16 %v4600, %v4592
    %v4881 = vpack.c.b16 %v4601, %v4593
    %v4882 = vpack.c.b16 %v4602, %v4594
    %v4883 = vpack.c.b16 %v4603, %v4595
    %v4884 = vpack.c.b16 %v4604, %v4596
    %v4885 = vpack.c.b16 %v4613, %v4605
    %v4886 = vpack.c.b16 %v4614, %v4606
    %v4887 = vpack.c.b16 %v4615, %v4607
    %v4888 = vpack.c.b16 %v4616, %v4608
    %v4889 = vpack.c.b16 %v4617, %v4609
    %v4890 = vpack.c.b16 %v4618, %v4610
    %v4891 = vpack.c.b16 %v4619, %v4611
    %v4892 = vpack.c.b16 %v4620, %v4612
    %v4893 = vpack.c.b16 %v4629, %v4621
    %v4894 = vpack.c.b16 %v4630, %v4622
    %v4895 = vpack.c.b16 %v4631, %v4623
    %v4896 = vpack.c.b16 %v4632, %v4624
    %v4897 = vpack.c.b16 %v4633, %v4625
    %v4898 = vpack.c.b16 %v4634, %v4626
    %v4899 = vpack.c.b16 %v4635, %v4627
    %v4900 = vpack.c.b16 %v4636, %v4628
    %v4901 = vpack.c.b16 %v4645, %v4637
    %v4902 = vpack.c.b16 %v4646, %v4638
    %v4903 = vpack.c.b16 %v4647, %v4639
    %v4904 = vpack.c.b16 %v4648, %v4640
    %v4905 = vpack.c.b16 %v4649, %v4641
    %v4906 = vpack.c.b16 %v4650, %v4642
    %v4907 = vpack.c.b16 %v4651, %v4643
    %v4908 = vpack.c.b16 %v4652, %v4644
    %5165 = vmatprep.subr.bf16.mxu0 %v4654
    %5166 = vmatpush1.bf16.msra.mxu0 %v4653
    %5167 = vmatprep.subr.bf16.mxu0 %v4662
    %5168 = vmatpush1.bf16.msra.mxu0 %v4661
    %5169 = vmatprep.subr.bf16.mxu0 %v4670
    %5170 = vmatpush1.bf16.msra.mxu0 %v4669
    %5171 = vmatprep.subr.bf16.mxu0 %v4678
    %5172 = vmatpush1.bf16.msra.mxu0 %v4677
    %5173 = vmatprep.subr.bf16.mxu0 %v4686
    %5174 = vmatpush1.bf16.msra.mxu0 %v4685
    %5175 = vmatprep.subr.bf16.mxu0 %v4694
    %5176 = vmatpush1.bf16.msra.mxu0 %v4693
    %5177 = vmatprep.subr.bf16.mxu0 %v4702
    %5178 = vmatpush1.bf16.msra.mxu0 %v4701
    %5179 = vmatprep.subr.bf16.mxu0 %v4710
    %5180 = vmatpush1.bf16.msra.mxu0 %v4709
    %5181 = vmatprep.subr.bf16.mxu0 %v4718
    %5182 = vmatpush1.bf16.msra.mxu0 %v4717
    %5183 = vmatprep.subr.bf16.mxu0 %v4726
    %5184 = vmatpush1.bf16.msra.mxu0 %v4725
    %5185 = vmatprep.subr.bf16.mxu0 %v4734
    %5186 = vmatpush1.bf16.msra.mxu0 %v4733
    %5187 = vmatprep.subr.bf16.mxu0 %v4742
    %5188 = vmatpush1.bf16.msra.mxu0 %v4741
    %5189 = vmatprep.subr.bf16.mxu0 %v4750
    %5190 = vmatpush1.bf16.msra.mxu0 %v4749
    %5191 = vmatprep.subr.bf16.mxu0 %v4758
    %5192 = vmatpush1.bf16.msra.mxu0 %v4757
    %5193 = vmatprep.subr.bf16.mxu0 %v4766
    %5194 = vmatpush1.bf16.msra.mxu0 %v4765
    %5195 = vmatprep.subr.bf16.mxu0 %v4774
    %5196 = vmatpush1.bf16.msra.mxu0 %v4773
    %5197 = vmatprep.mubr.bf16.mxu0 %v3584
    %5198 = vmatmul.mubr.bf16.gmra.mrb[0].mxu0 %v3583
    %v5199 = vpop.f32.mrb[0].mxu0
    %v5200 = vadd.f32 %v3848, %v5199
    %v5201 = vpop.f32.mrb[0].mxu0
    %v5202 = vadd.f32 %v3852, %v5201
    %v5203 = vpop.f32.mrb[0].mxu0
    %v5204 = vpop.f32.mrb[0].mxu0
    %5205 = vdwg.mxu0
    %5206 = vmatprep.subr.bf16.mxu0 %v4782
    %5207 = vmatpush1.bf16.msra.mxu0 %v4781
    %5208 = vmatprep.subr.bf16.mxu0 %v4790
    %5209 = vmatpush1.bf16.msra.mxu0 %v4789
    %5210 = vmatprep.subr.bf16.mxu0 %v4798
    %5211 = vmatpush1.bf16.msra.mxu0 %v4797
    %5212 = vmatprep.subr.bf16.mxu0 %v4806
    %5213 = vmatpush1.bf16.msra.mxu0 %v4805
    %5214 = vmatprep.subr.bf16.mxu0 %v4814
    %5215 = vmatpush1.bf16.msra.mxu0 %v4813
    %5216 = vmatprep.subr.bf16.mxu0 %v4822
    %5217 = vmatpush1.bf16.msra.mxu0 %v4821
    %5218 = vmatprep.subr.bf16.mxu0 %v4830
    %5219 = vmatpush1.bf16.msra.mxu0 %v4829
    %5220 = vmatprep.subr.bf16.mxu0 %v4838
    %5221 = vmatpush1.bf16.msra.mxu0 %v4837
    %5222 = vmatprep.subr.bf16.mxu0 %v4846
    %5223 = vmatpush1.bf16.msra.mxu0 %v4845
    %5224 = vmatprep.subr.bf16.mxu0 %v4854
    %5225 = vmatpush1.bf16.msra.mxu0 %v4853
    %5226 = vmatprep.subr.bf16.mxu0 %v4862
    %5227 = vmatpush1.bf16.msra.mxu0 %v4861
    %5228 = vmatprep.subr.bf16.mxu0 %v4870
    %5229 = vmatpush1.bf16.msra.mxu0 %v4869
    %5230 = vmatprep.subr.bf16.mxu0 %v4878
    %5231 = vmatpush1.bf16.msra.mxu0 %v4877
    %5232 = vmatprep.subr.bf16.mxu0 %v4886
    %5233 = vmatpush1.bf16.msra.mxu0 %v4885
    %5234 = vmatprep.subr.bf16.mxu0 %v4894
    %5235 = vmatpush1.bf16.msra.mxu0 %v4893
    %5236 = vmatprep.subr.bf16.mxu0 %v4902
    %5237 = vmatpush1.bf16.msra.mxu0 %v4901
    %5238 = vmatprep.mubr.bf16.mxu0 %v3586
    %5239 = vmatmul.mubr.bf16.gmra.mrb[0].mxu0 %v3585
    %v5240 = vpop.f32.mrb[0].mxu0
    %v5241 = vadd.f32 %v5200, %v5240
    %v5242 = vpop.f32.mrb[0].mxu0
    %v5243 = vadd.f32 %v5202, %v5242
    %v5244 = vpop.f32.mrb[0].mxu0
    %v5245 = vpop.f32.mrb[0].mxu0
    %5246 = vdwg.mxu0
    %5247 = vmatprep.subr.bf16.mxu0 %v4656
    %5248 = vmatpush1.bf16.msra.mxu0 %v4655
    %5249 = vmatprep.subr.bf16.mxu0 %v4664
    %5250 = vmatpush1.bf16.msra.mxu0 %v4663
    %5251 = vmatprep.subr.bf16.mxu0 %v4672
    %5252 = vmatpush1.bf16.msra.mxu0 %v4671
    %5253 = vmatprep.subr.bf16.mxu0 %v4680
    %5254 = vmatpush1.bf16.msra.mxu0 %v4679
    %5255 = vmatprep.subr.bf16.mxu0 %v4688
    %5256 = vmatpush1.bf16.msra.mxu0 %v4687
    %5257 = vmatprep.subr.bf16.mxu0 %v4696
    %5258 = vmatpush1.bf16.msra.mxu0 %v4695
    %5259 = vmatprep.subr.bf16.mxu0 %v4704
    %5260 = vmatpush1.bf16.msra.mxu0 %v4703
    %5261 = vmatprep.subr.bf16.mxu0 %v4712
    %5262 = vmatpush1.bf16.msra.mxu0 %v4711
    %5263 = vmatprep.subr.bf16.mxu0 %v4720
    %5264 = vmatpush1.bf16.msra.mxu0 %v4719
    %5265 = vmatprep.subr.bf16.mxu0 %v4728
    %5266 = vmatpush1.bf16.msra.mxu0 %v4727
    %5267 = vmatprep.subr.bf16.mxu0 %v4736
    %5268 = vmatpush1.bf16.msra.mxu0 %v4735
    %5269 = vmatprep.subr.bf16.mxu0 %v4744
    %5270 = vmatpush1.bf16.msra.mxu0 %v4743
    %5271 = vmatprep.subr.bf16.mxu0 %v4752
    %5272 = vmatpush1.bf16.msra.mxu0 %v4751
    %5273 = vmatprep.subr.bf16.mxu0 %v4760
    %5274 = vmatpush1.bf16.msra.mxu0 %v4759
    %5275 = vmatprep.subr.bf16.mxu0 %v4768
    %5276 = vmatpush1.bf16.msra.mxu0 %v4767
    %5277 = vmatprep.subr.bf16.mxu0 %v4776
    %5278 = vmatpush1.bf16.msra.mxu0 %v4775
    %5279 = vmatprep.mubr.bf16.mxu0 %v3584
    %5280 = vmatmul.mubr.bf16.gmra.mrb[0].mxu0 %v3583
    %v5281 = vpop.f32.mrb[0].mxu0
    %v5282 = vadd.f32 %v3856, %v5281
    %v5283 = vpop.f32.mrb[0].mxu0
    %v5284 = vadd.f32 %v3860, %v5283
    %v5285 = vpop.f32.mrb[0].mxu0
    %v5286 = vpop.f32.mrb[0].mxu0
    %5287 = vdwg.mxu0
    %5288 = vmatprep.subr.bf16.mxu0 %v4784
    %5289 = vmatpush1.bf16.msra.mxu0 %v4783
    %5290 = vmatprep.subr.bf16.mxu0 %v4792
    %5291 = vmatpush1.bf16.msra.mxu0 %v4791
    %5292 = vmatprep.subr.bf16.mxu0 %v4800
    %5293 = vmatpush1.bf16.msra.mxu0 %v4799
    %5294 = vmatprep.subr.bf16.mxu0 %v4808
    %5295 = vmatpush1.bf16.msra.mxu0 %v4807
    %5296 = vmatprep.subr.bf16.mxu0 %v4816
    %5297 = vmatpush1.bf16.msra.mxu0 %v4815
    %5298 = vmatprep.subr.bf16.mxu0 %v4824
    %5299 = vmatpush1.bf16.msra.mxu0 %v4823
    %5300 = vmatprep.subr.bf16.mxu0 %v4832
    %5301 = vmatpush1.bf16.msra.mxu0 %v4831
    %5302 = vmatprep.subr.bf16.mxu0 %v4840
    %5303 = vmatpush1.bf16.msra.mxu0 %v4839
    %5304 = vmatprep.subr.bf16.mxu0 %v4848
    %5305 = vmatpush1.bf16.msra.mxu0 %v4847
    %5306 = vmatprep.subr.bf16.mxu0 %v4856
    %5307 = vmatpush1.bf16.msra.mxu0 %v4855
    %5308 = vmatprep.subr.bf16.mxu0 %v4864
    %5309 = vmatpush1.bf16.msra.mxu0 %v4863
    %5310 = vmatprep.subr.bf16.mxu0 %v4872
    %5311 = vmatpush1.bf16.msra.mxu0 %v4871
    %5312 = vmatprep.subr.bf16.mxu0 %v4880
    %5313 = vmatpush1.bf16.msra.mxu0 %v4879
    %5314 = vmatprep.subr.bf16.mxu0 %v4888
    %5315 = vmatpush1.bf16.msra.mxu0 %v4887
    %5316 = vmatprep.subr.bf16.mxu0 %v4896
    %5317 = vmatpush1.bf16.msra.mxu0 %v4895
    %5318 = vmatprep.subr.bf16.mxu0 %v4904
    %5319 = vmatpush1.bf16.msra.mxu0 %v4903
    %5320 = vmatprep.mubr.bf16.mxu0 %v3586
    %5321 = vmatmul.mubr.bf16.gmra.mrb[0].mxu0 %v3585
    %v5322 = vpop.f32.mrb[0].mxu0
    %v5323 = vadd.f32 %v5282, %v5322
    %v5324 = vpop.f32.mrb[0].mxu0
    %v5325 = vadd.f32 %v5284, %v5324
    %v5326 = vpop.f32.mrb[0].mxu0
    %v5327 = vpop.f32.mrb[0].mxu0
    %5328 = vdwg.mxu0
    %5329 = vmatprep.subr.bf16.mxu0 %v4658
    %5330 = vmatpush1.bf16.msra.mxu0 %v4657
    %5331 = vmatprep.subr.bf16.mxu0 %v4666
    %5332 = vmatpush1.bf16.msra.mxu0 %v4665
    %5333 = vmatprep.subr.bf16.mxu0 %v4674
    %5334 = vmatpush1.bf16.msra.mxu0 %v4673
    %5335 = vmatprep.subr.bf16.mxu0 %v4682
    %5336 = vmatpush1.bf16.msra.mxu0 %v4681
    %5337 = vmatprep.subr.bf16.mxu0 %v4690
    %5338 = vmatpush1.bf16.msra.mxu0 %v4689
    %5339 = vmatprep.subr.bf16.mxu0 %v4698
    %5340 = vmatpush1.bf16.msra.mxu0 %v4697
    %5341 = vmatprep.subr.bf16.mxu0 %v4706
    %5342 = vmatpush1.bf16.msra.mxu0 %v4705
    %5343 = vmatprep.subr.bf16.mxu0 %v4714
    %5344 = vmatpush1.bf16.msra.mxu0 %v4713
    %5345 = vmatprep.subr.bf16.mxu0 %v4722
    %5346 = vmatpush1.bf16.msra.mxu0 %v4721
    %5347 = vmatprep.subr.bf16.mxu0 %v4730
    %5348 = vmatpush1.bf16.msra.mxu0 %v4729
    %5349 = vmatprep.subr.bf16.mxu0 %v4738
    %5350 = vmatpush1.bf16.msra.mxu0 %v4737
    %5351 = vmatprep.subr.bf16.mxu0 %v4746
    %5352 = vmatpush1.bf16.msra.mxu0 %v4745
    %5353 = vmatprep.subr.bf16.mxu0 %v4754
    %5354 = vmatpush1.bf16.msra.mxu0 %v4753
    %5355 = vmatprep.subr.bf16.mxu0 %v4762
    %5356 = vmatpush1.bf16.msra.mxu0 %v4761
    %5357 = vmatprep.subr.bf16.mxu0 %v4770
    %5358 = vmatpush1.bf16.msra.mxu0 %v4769
    %5359 = vmatprep.subr.bf16.mxu0 %v4778
    %5360 = vmatpush1.bf16.msra.mxu0 %v4777
    %5361 = vmatprep.mubr.bf16.mxu0 %v3584
    %5362 = vmatmul.mubr.bf16.gmra.mrb[0].mxu0 %v3583
    %v5363 = vpop.f32.mrb[0].mxu0
    %v5364 = vadd.f32 %v3864, %v5363
    %v5365 = vpop.f32.mrb[0].mxu0
    %v5366 = vadd.f32 %v3868, %v5365
    %v5367 = vpop.f32.mrb[0].mxu0
    %v5368 = vpop.f32.mrb[0].mxu0
    %5369 = vdwg.mxu0
    %5370 = vmatprep.subr.bf16.mxu0 %v4786
    %5371 = vmatpush1.bf16.msra.mxu0 %v4785
    %5372 = vmatprep.subr.bf16.mxu0 %v4794
    %5373 = vmatpush1.bf16.msra.mxu0 %v4793
    %5374 = vmatprep.subr.bf16.mxu0 %v4802
    %5375 = vmatpush1.bf16.msra.mxu0 %v4801
    %5376 = vmatprep.subr.bf16.mxu0 %v4810
    %5377 = vmatpush1.bf16.msra.mxu0 %v4809
    %5378 = vmatprep.subr.bf16.mxu0 %v4818
    %5379 = vmatpush1.bf16.msra.mxu0 %v4817
    %5380 = vmatprep.subr.bf16.mxu0 %v4826
    %5381 = vmatpush1.bf16.msra.mxu0 %v4825
    %5382 = vmatprep.subr.bf16.mxu0 %v4834
    %5383 = vmatpush1.bf16.msra.mxu0 %v4833
    %5384 = vmatprep.subr.bf16.mxu0 %v4842
    %5385 = vmatpush1.bf16.msra.mxu0 %v4841
    %5386 = vmatprep.subr.bf16.mxu0 %v4850
    %5387 = vmatpush1.bf16.msra.mxu0 %v4849
    %5388 = vmatprep.subr.bf16.mxu0 %v4858
    %5389 = vmatpush1.bf16.msra.mxu0 %v4857
    %5390 = vmatprep.subr.bf16.mxu0 %v4866
    %5391 = vmatpush1.bf16.msra.mxu0 %v4865
    %5392 = vmatprep.subr.bf16.mxu0 %v4874
    %5393 = vmatpush1.bf16.msra.mxu0 %v4873
    %5394 = vmatprep.subr.bf16.mxu0 %v4882
    %5395 = vmatpush1.bf16.msra.mxu0 %v4881
    %5396 = vmatprep.subr.bf16.mxu0 %v4890
    %5397 = vmatpush1.bf16.msra.mxu0 %v4889
    %5398 = vmatprep.subr.bf16.mxu0 %v4898
    %5399 = vmatpush1.bf16.msra.mxu0 %v4897
    %5400 = vmatprep.subr.bf16.mxu0 %v4906
    %5401 = vmatpush1.bf16.msra.mxu0 %v4905
    %5402 = vmatprep.mubr.bf16.mxu0 %v3586
    %5403 = vmatmul.mubr.bf16.gmra.mrb[0].mxu0 %v3585
    %v5404 = vpop.f32.mrb[0].mxu0
    %v5405 = vadd.f32 %v5364, %v5404
    %v5406 = vpop.f32.mrb[0].mxu0
    %v5407 = vadd.f32 %v5366, %v5406
    %v5408 = vpop.f32.mrb[0].mxu0
    %v5409 = vpop.f32.mrb[0].mxu0
    %5410 = vdwg.mxu0
    %5411 = vmatprep.subr.bf16.mxu0 %v4660
    %5412 = vmatpush1.bf16.msra.mxu0 %v4659
    %5413 = vmatprep.subr.bf16.mxu0 %v4668
    %5414 = vmatpush1.bf16.msra.mxu0 %v4667
    %5415 = vmatprep.subr.bf16.mxu0 %v4676
    %5416 = vmatpush1.bf16.msra.mxu0 %v4675
    %5417 = vmatprep.subr.bf16.mxu0 %v4684
    %5418 = vmatpush1.bf16.msra.mxu0 %v4683
    %5419 = vmatprep.subr.bf16.mxu0 %v4692
    %5420 = vmatpush1.bf16.msra.mxu0 %v4691
    %5421 = vmatprep.subr.bf16.mxu0 %v4700
    %5422 = vmatpush1.bf16.msra.mxu0 %v4699
    %5423 = vmatprep.subr.bf16.mxu0 %v4708
    %5424 = vmatpush1.bf16.msra.mxu0 %v4707
    %5425 = vmatprep.subr.bf16.mxu0 %v4716
    %5426 = vmatpush1.bf16.msra.mxu0 %v4715
    %5427 = vmatprep.subr.bf16.mxu0 %v4724
    %5428 = vmatpush1.bf16.msra.mxu0 %v4723
    %5429 = vmatprep.subr.bf16.mxu0 %v4732
    %5430 = vmatpush1.bf16.msra.mxu0 %v4731
    %5431 = vmatprep.subr.bf16.mxu0 %v4740
    %5432 = vmatpush1.bf16.msra.mxu0 %v4739
    %5433 = vmatprep.subr.bf16.mxu0 %v4748
    %5434 = vmatpush1.bf16.msra.mxu0 %v4747
    %5435 = vmatprep.subr.bf16.mxu0 %v4756
    %5436 = vmatpush1.bf16.msra.mxu0 %v4755
    %5437 = vmatprep.subr.bf16.mxu0 %v4764
    %5438 = vmatpush1.bf16.msra.mxu0 %v4763
    %5439 = vmatprep.subr.bf16.mxu0 %v4772
    %5440 = vmatpush1.bf16.msra.mxu0 %v4771
    %5441 = vmatprep.subr.bf16.mxu0 %v4780
    %5442 = vmatpush1.bf16.msra.mxu0 %v4779
    %5443 = vmatprep.mubr.bf16.mxu0 %v3584
    %5444 = vmatmul.mubr.bf16.gmra.mrb[0].mxu0 %v3583
    %v5445 = vpop.f32.mrb[0].mxu0
    %v5446 = vadd.f32 %v3872, %v5445
    %v5447 = vpop.f32.mrb[0].mxu0
    %v5448 = vadd.f32 %v3876, %v5447
    %v5449 = vpop.f32.mrb[0].mxu0
    %v5450 = vpop.f32.mrb[0].mxu0
    %5451 = vdwg.mxu0
    %5452 = vmatprep.subr.bf16.mxu0 %v4788
    %5453 = vmatpush1.bf16.msra.mxu0 %v4787
    %5454 = vmatprep.subr.bf16.mxu0 %v4796
    %5455 = vmatpush1.bf16.msra.mxu0 %v4795
    %5456 = vmatprep.subr.bf16.mxu0 %v4804
    %5457 = vmatpush1.bf16.msra.mxu0 %v4803
    %5458 = vmatprep.subr.bf16.mxu0 %v4812
    %5459 = vmatpush1.bf16.msra.mxu0 %v4811
    %5460 = vmatprep.subr.bf16.mxu0 %v4820
    %5461 = vmatpush1.bf16.msra.mxu0 %v4819
    %5462 = vmatprep.subr.bf16.mxu0 %v4828
    %5463 = vmatpush1.bf16.msra.mxu0 %v4827
    %5464 = vmatprep.subr.bf16.mxu0 %v4836
    %5465 = vmatpush1.bf16.msra.mxu0 %v4835
    %5466 = vmatprep.subr.bf16.mxu0 %v4844
    %5467 = vmatpush1.bf16.msra.mxu0 %v4843
    %5468 = vmatprep.subr.bf16.mxu0 %v4852
    %5469 = vmatpush1.bf16.msra.mxu0 %v4851
    %5470 = vmatprep.subr.bf16.mxu0 %v4860
    %5471 = vmatpush1.bf16.msra.mxu0 %v4859
    %5472 = vmatprep.subr.bf16.mxu0 %v4868
    %5473 = vmatpush1.bf16.msra.mxu0 %v4867
    %5474 = vmatprep.subr.bf16.mxu0 %v4876
    %5475 = vmatpush1.bf16.msra.mxu0 %v4875
    %5476 = vmatprep.subr.bf16.mxu0 %v4884
    %5477 = vmatpush1.bf16.msra.mxu0 %v4883
    %5478 = vmatprep.subr.bf16.mxu0 %v4892
    %5479 = vmatpush1.bf16.msra.mxu0 %v4891
    %5480 = vmatprep.subr.bf16.mxu0 %v4900
    %5481 = vmatpush1.bf16.msra.mxu0 %v4899
    %5482 = vmatprep.subr.bf16.mxu0 %v4908
    %5483 = vmatpush1.bf16.msra.mxu0 %v4907
    %5484 = vmatprep.mubr.bf16.mxu0 %v3586
    %5485 = vmatmul.mubr.bf16.gmra.mrb[0].mxu0 %v3585
    %v5486 = vpop.f32.mrb[0].mxu0
    %v5487 = vadd.f32 %v5446, %v5486
    %v5488 = vpop.f32.mrb[0].mxu0
    %v5489 = vadd.f32 %v5448, %v5488
    %v5490 = vpop.f32.mrb[0].mxu0
    %v5491 = vpop.f32.mrb[0].mxu0
    %5492 = vdwg.mxu0
    %v5493 = vtanh.pop %v5241
    %v5494 = vtanh.pop %v5243
    %v5495 = vtanh.pop %v5323
    %v5496 = vtanh.pop %v5325
    %v5497 = vtanh.pop %v5405
    %v5498 = vtanh.pop %v5407
    %v5499 = vtanh.pop %v5487
    %v5500 = vtanh.pop %v5489
    %v5501 = vpack.c.bf16 %v5493, %v5493
    %v5502 = vpack.c.bf16 %v5494, %v5494
    %v5503 = vpack.c.bf16 %v5495, %v5495
    %v5504 = vpack.c.bf16 %v5496, %v5496
    %v5505 = vpack.c.bf16 %v5497, %v5497
    %v5506 = vpack.c.bf16 %v5498, %v5498
    %v5507 = vpack.c.bf16 %v5499, %v5499
    %v5508 = vpack.c.bf16 %v5500, %v5500
    %v5509 = vld [vmem:[%s11] sm:$0xff]
    %v5510 = vld [vmem:[%s11 + $0x8] sm:$0xff]
    %v5511 = vld [vmem:[%s11 + $0x10] sm:$0xff]
    %v5512 = vld [vmem:[%s11 + $0x18] sm:$0xff]
    %v5513 = vld [vmem:[%s11 + $0x20] sm:$0xff]
    %v5514 = vld [vmem:[%s11 + $0x28] sm:$0xff]
    %v5515 = vld [vmem:[%s11 + $0x30] sm:$0xff]
    %v5516 = vld [vmem:[%s11 + $0x38] sm:$0xff]
    %v5517 = vld [vmem:[%s11 + $0x40] sm:$0xff]
    %v5518 = vld [vmem:[%s11 + $0x48] sm:$0xff]
    %v5519 = vld [vmem:[%s11 + $0x50] sm:$0xff]
    %v5520 = vld [vmem:[%s11 + $0x58] sm:$0xff]
    %v5521 = vld [vmem:[%s11 + $0x60] sm:$0xff]
    %v5522 = vld [vmem:[%s11 + $0x68] sm:$0xff]
    %v5523 = vld [vmem:[%s11 + $0x70] sm:$0xff]
    %v5524 = vld [vmem:[%s11 + $0x78] sm:$0xff]
    %v5525 = vld [vmem:[%s11 + $0x80] sm:$0xff]
    %v5526 = vld [vmem:[%s11 + $0x88] sm:$0xff]
    %v5527 = vld [vmem:[%s11 + $0x90] sm:$0xff]
    %v5528 = vld [vmem:[%s11 + $0x98] sm:$0xff]
    %v5529 = vld [vmem:[%s11 + $0xa0] sm:$0xff]
    %v5530 = vld [vmem:[%s11 + $0xa8] sm:$0xff]
    %v5531 = vld [vmem:[%s11 + $0xb0] sm:$0xff]
    %v5532 = vld [vmem:[%s11 + $0xb8] sm:$0xff]
    %v5533 = vld [vmem:[%s11 + $0xc0] sm:$0xff]
    %v5534 = vld [vmem:[%s11 + $0xc8] sm:$0xff]
    %v5535 = vld [vmem:[%s11 + $0xd0] sm:$0xff]
    %v5536 = vld [vmem:[%s11 + $0xd8] sm:$0xff]
    %v5537 = vld [vmem:[%s11 + $0xe0] sm:$0xff]
    %v5538 = vld [vmem:[%s11 + $0xe8] sm:$0xff]
    %v5539 = vld [vmem:[%s11 + $0xf0] sm:$0xff]
    %v5540 = vld [vmem:[%s11 + $0xf8] sm:$0xff]
    %v5541 = vld [vmem:[%s11 + $0x100] sm:$0xff]
    %v5542 = vld [vmem:[%s11 + $0x108] sm:$0xff]
    %v5543 = vld [vmem:[%s11 + $0x110] sm:$0xff]
    %v5544 = vld [vmem:[%s11 + $0x118] sm:$0xff]
    %v5545 = vld [vmem:[%s11 + $0x120] sm:$0xff]
    %v5546 = vld [vmem:[%s11 + $0x128] sm:$0xff]
    %v5547 = vld [vmem:[%s11 + $0x130] sm:$0xff]
    %v5548 = vld [vmem:[%s11 + $0x138] sm:$0xff]
    %v5549 = vld [vmem:[%s11 + $0x140] sm:$0xff]
    %v5550 = vld [vmem:[%s11 + $0x148] sm:$0xff]
    %v5551 = vld [vmem:[%s11 + $0x150] sm:$0xff]
    %v5552 = vld [vmem:[%s11 + $0x158] sm:$0xff]
    %v5553 = vld [vmem:[%s11 + $0x160] sm:$0xff]
    %v5554 = vld [vmem:[%s11 + $0x168] sm:$0xff]
    %v5555 = vld [vmem:[%s11 + $0x170] sm:$0xff]
    %v5556 = vld [vmem:[%s11 + $0x178] sm:$0xff]
    %v5557 = vld [vmem:[%s11 + $0x180] sm:$0xff]
    %v5558 = vld [vmem:[%s11 + $0x188] sm:$0xff]
    %v5559 = vld [vmem:[%s11 + $0x190] sm:$0xff]
    %v5560 = vld [vmem:[%s11 + $0x198] sm:$0xff]
    %v5561 = vld [vmem:[%s11 + $0x1a0] sm:$0xff]
    %v5562 = vld [vmem:[%s11 + $0x1a8] sm:$0xff]
    %v5563 = vld [vmem:[%s11 + $0x1b0] sm:$0xff]
    %v5564 = vld [vmem:[%s11 + $0x1b8] sm:$0xff]
    %v5565 = vld [vmem:[%s11 + $0x1c0] sm:$0xff]
    %v5566 = vld [vmem:[%s11 + $0x1c8] sm:$0xff]
    %v5567 = vld [vmem:[%s11 + $0x1d0] sm:$0xff]
    %v5568 = vld [vmem:[%s11 + $0x1d8] sm:$0xff]
    %v5569 = vld [vmem:[%s11 + $0x1e0] sm:$0xff]
    %v5570 = vld [vmem:[%s11 + $0x1e8] sm:$0xff]
    %v5571 = vld [vmem:[%s11 + $0x1f0] sm:$0xff]
    %v5572 = vld [vmem:[%s11 + $0x1f8] sm:$0xff]
    %v5573 = vld [vmem:[%s11 + $0x200] sm:$0xff]
    %v5574 = vld [vmem:[%s11 + $0x208] sm:$0xff]
    %v5575 = vld [vmem:[%s11 + $0x210] sm:$0xff]
    %v5576 = vld [vmem:[%s11 + $0x218] sm:$0xff]
    %v5577 = vld [vmem:[%s11 + $0x220] sm:$0xff]
    %v5578 = vld [vmem:[%s11 + $0x228] sm:$0xff]
    %v5579 = vld [vmem:[%s11 + $0x230] sm:$0xff]
    %v5580 = vld [vmem:[%s11 + $0x238] sm:$0xff]
    %v5581 = vld [vmem:[%s11 + $0x240] sm:$0xff]
    %v5582 = vld [vmem:[%s11 + $0x248] sm:$0xff]
    %v5583 = vld [vmem:[%s11 + $0x250] sm:$0xff]
    %v5584 = vld [vmem:[%s11 + $0x258] sm:$0xff]
    %v5585 = vld [vmem:[%s11 + $0x260] sm:$0xff]
    %v5586 = vld [vmem:[%s11 + $0x268] sm:$0xff]
    %v5587 = vld [vmem:[%s11 + $0x270] sm:$0xff]
    %v5588 = vld [vmem:[%s11 + $0x278] sm:$0xff]
    %v5589 = vld [vmem:[%s11 + $0x280] sm:$0xff]
    %v5590 = vld [vmem:[%s11 + $0x288] sm:$0xff]
    %v5591 = vld [vmem:[%s11 + $0x290] sm:$0xff]
    %v5592 = vld [vmem:[%s11 + $0x298] sm:$0xff]
    %v5593 = vld [vmem:[%s11 + $0x2a0] sm:$0xff]
    %v5594 = vld [vmem:[%s11 + $0x2a8] sm:$0xff]
    %v5595 = vld [vmem:[%s11 + $0x2b0] sm:$0xff]
    %v5596 = vld [vmem:[%s11 + $0x2b8] sm:$0xff]
    %v5597 = vld [vmem:[%s11 + $0x2c0] sm:$0xff]
    %v5598 = vld [vmem:[%s11 + $0x2c8] sm:$0xff]
    %v5599 = vld [vmem:[%s11 + $0x2d0] sm:$0xff]
    %v5600 = vld [vmem:[%s11 + $0x2d8] sm:$0xff]
    %v5601 = vld [vmem:[%s11 + $0x2e0] sm:$0xff]
    %v5602 = vld [vmem:[%s11 + $0x2e8] sm:$0xff]
    %v5603 = vld [vmem:[%s11 + $0x2f0] sm:$0xff]
    %v5604 = vld [vmem:[%s11 + $0x2f8] sm:$0xff]
    %v5605 = vld [vmem:[%s11 + $0x300] sm:$0xff]
    %v5606 = vld [vmem:[%s11 + $0x308] sm:$0xff]
    %v5607 = vld [vmem:[%s11 + $0x310] sm:$0xff]
    %v5608 = vld [vmem:[%s11 + $0x318] sm:$0xff]
    %v5609 = vld [vmem:[%s11 + $0x320] sm:$0xff]
    %v5610 = vld [vmem:[%s11 + $0x328] sm:$0xff]
    %v5611 = vld [vmem:[%s11 + $0x330] sm:$0xff]
    %v5612 = vld [vmem:[%s11 + $0x338] sm:$0xff]
    %v5613 = vld [vmem:[%s11 + $0x340] sm:$0xff]
    %v5614 = vld [vmem:[%s11 + $0x348] sm:$0xff]
    %v5615 = vld [vmem:[%s11 + $0x350] sm:$0xff]
    %v5616 = vld [vmem:[%s11 + $0x358] sm:$0xff]
    %v5617 = vld [vmem:[%s11 + $0x360] sm:$0xff]
    %v5618 = vld [vmem:[%s11 + $0x368] sm:$0xff]
    %v5619 = vld [vmem:[%s11 + $0x370] sm:$0xff]
    %v5620 = vld [vmem:[%s11 + $0x378] sm:$0xff]
    %v5621 = vld [vmem:[%s11 + $0x380] sm:$0xff]
    %v5622 = vld [vmem:[%s11 + $0x388] sm:$0xff]
    %v5623 = vld [vmem:[%s11 + $0x390] sm:$0xff]
    %v5624 = vld [vmem:[%s11 + $0x398] sm:$0xff]
    %v5625 = vld [vmem:[%s11 + $0x3a0] sm:$0xff]
    %v5626 = vld [vmem:[%s11 + $0x3a8] sm:$0xff]
    %v5627 = vld [vmem:[%s11 + $0x3b0] sm:$0xff]
    %v5628 = vld [vmem:[%s11 + $0x3b8] sm:$0xff]
    %v5629 = vld [vmem:[%s11 + $0x3c0] sm:$0xff]
    %v5630 = vld [vmem:[%s11 + $0x3c8] sm:$0xff]
    %v5631 = vld [vmem:[%s11 + $0x3d0] sm:$0xff]
    %v5632 = vld [vmem:[%s11 + $0x3d8] sm:$0xff]
    %v5633 = vld [vmem:[%s11 + $0x3e0] sm:$0xff]
    %v5634 = vld [vmem:[%s11 + $0x3e8] sm:$0xff]
    %v5635 = vld [vmem:[%s11 + $0x3f0] sm:$0xff]
    %v5636 = vld [vmem:[%s11 + $0x3f8] sm:$0xff]
    %v5637 = vld [vmem:[%s12] sm:$0x3]
    %v5639 = vlaneseq
    %v5640 = vshrl.u32 %v5639, 7
    %v5641 = vsub.s32 0, %v5640
    %v5642 = vrot.slane %v5637, %v5641
    %v5643 = vlaneseq
    %v5644 = vshrl.u32 %v5643, 7
    %v5645 = vsub.s32 1, %v5644
    %v5646 = vrot.slane %v5637, %v5645
    %v5777 = vunpack.c.l.b16 %v5509
    %v5778 = vunpack.c.h.b16 %v5509
    %v5779 = vunpack.c.l.b16 %v5510
    %v5780 = vunpack.c.h.b16 %v5510
    %v5781 = vunpack.c.l.b16 %v5511
    %v5782 = vunpack.c.h.b16 %v5511
    %v5783 = vunpack.c.l.b16 %v5512
    %v5784 = vunpack.c.h.b16 %v5512
    %v5785 = vunpack.c.l.b16 %v5513
    %v5786 = vunpack.c.h.b16 %v5513
    %v5787 = vunpack.c.l.b16 %v5514
    %v5788 = vunpack.c.h.b16 %v5514
    %v5789 = vunpack.c.l.b16 %v5515
    %v5790 = vunpack.c.h.b16 %v5515
    %v5791 = vunpack.c.l.b16 %v5516
    %v5792 = vunpack.c.h.b16 %v5516
    %v5793 = vunpack.c.l.b16 %v5517
    %v5794 = vunpack.c.h.b16 %v5517
    %v5795 = vunpack.c.l.b16 %v5518
    %v5796 = vunpack.c.h.b16 %v5518
    %v5797 = vunpack.c.l.b16 %v5519
    %v5798 = vunpack.c.h.b16 %v5519
    %v5799 = vunpack.c.l.b16 %v5520
    %v5800 = vunpack.c.h.b16 %v5520
    %v5801 = vunpack.c.l.b16 %v5521
    %v5802 = vunpack.c.h.b16 %v5521
    %v5803 = vunpack.c.l.b16 %v5522
    %v5804 = vunpack.c.h.b16 %v5522
    %v5805 = vunpack.c.l.b16 %v5523
    %v5806 = vunpack.c.h.b16 %v5523
    %v5807 = vunpack.c.l.b16 %v5524
    %v5808 = vunpack.c.h.b16 %v5524
    %v5809 = vunpack.c.l.b16 %v5525
    %v5810 = vunpack.c.h.b16 %v5525
    %v5811 = vunpack.c.l.b16 %v5526
    %v5812 = vunpack.c.h.b16 %v5526
    %v5813 = vunpack.c.l.b16 %v5527
    %v5814 = vunpack.c.h.b16 %v5527
    %v5815 = vunpack.c.l.b16 %v5528
    %v5816 = vunpack.c.h.b16 %v5528
    %v5817 = vunpack.c.l.b16 %v5529
    %v5818 = vunpack.c.h.b16 %v5529
    %v5819 = vunpack.c.l.b16 %v5530
    %v5820 = vunpack.c.h.b16 %v5530
    %v5821 = vunpack.c.l.b16 %v5531
    %v5822 = vunpack.c.h.b16 %v5531
    %v5823 = vunpack.c.l.b16 %v5532
    %v5824 = vunpack.c.h.b16 %v5532
    %v5825 = vunpack.c.l.b16 %v5533
    %v5826 = vunpack.c.h.b16 %v5533
    %v5827 = vunpack.c.l.b16 %v5534
    %v5828 = vunpack.c.h.b16 %v5534
    %v5829 = vunpack.c.l.b16 %v5535
    %v5830 = vunpack.c.h.b16 %v5535
    %v5831 = vunpack.c.l.b16 %v5536
    %v5832 = vunpack.c.h.b16 %v5536
    %v5833 = vunpack.c.l.b16 %v5537
    %v5834 = vunpack.c.h.b16 %v5537
    %v5835 = vunpack.c.l.b16 %v5538
    %v5836 = vunpack.c.h.b16 %v5538
    %v5837 = vunpack.c.l.b16 %v5539
    %v5838 = vunpack.c.h.b16 %v5539
    %v5839 = vunpack.c.l.b16 %v5540
    %v5840 = vunpack.c.h.b16 %v5540
    %v5841 = vunpack.c.l.b16 %v5541
    %v5842 = vunpack.c.h.b16 %v5541
    %v5843 = vunpack.c.l.b16 %v5542
    %v5844 = vunpack.c.h.b16 %v5542
    %v5845 = vunpack.c.l.b16 %v5543
    %v5846 = vunpack.c.h.b16 %v5543
    %v5847 = vunpack.c.l.b16 %v5544
    %v5848 = vunpack.c.h.b16 %v5544
    %v5849 = vunpack.c.l.b16 %v5545
    %v5850 = vunpack.c.h.b16 %v5545
    %v5851 = vunpack.c.l.b16 %v5546
    %v5852 = vunpack.c.h.b16 %v5546
    %v5853 = vunpack.c.l.b16 %v5547
    %v5854 = vunpack.c.h.b16 %v5547
    %v5855 = vunpack.c.l.b16 %v5548
    %v5856 = vunpack.c.h.b16 %v5548
    %v5857 = vunpack.c.l.b16 %v5549
    %v5858 = vunpack.c.h.b16 %v5549
    %v5859 = vunpack.c.l.b16 %v5550
    %v5860 = vunpack.c.h.b16 %v5550
    %v5861 = vunpack.c.l.b16 %v5551
    %v5862 = vunpack.c.h.b16 %v5551
    %v5863 = vunpack.c.l.b16 %v5552
    %v5864 = vunpack.c.h.b16 %v5552
    %v5865 = vunpack.c.l.b16 %v5553
    %v5866 = vunpack.c.h.b16 %v5553
    %v5867 = vunpack.c.l.b16 %v5554
    %v5868 = vunpack.c.h.b16 %v5554
    %v5869 = vunpack.c.l.b16 %v5555
    %v5870 = vunpack.c.h.b16 %v5555
    %v5871 = vunpack.c.l.b16 %v5556
    %v5872 = vunpack.c.h.b16 %v5556
    %v5873 = vunpack.c.l.b16 %v5557
    %v5874 = vunpack.c.h.b16 %v5557
    %v5875 = vunpack.c.l.b16 %v5558
    %v5876 = vunpack.c.h.b16 %v5558
    %v5877 = vunpack.c.l.b16 %v5559
    %v5878 = vunpack.c.h.b16 %v5559
    %v5879 = vunpack.c.l.b16 %v5560
    %v5880 = vunpack.c.h.b16 %v5560
    %v5881 = vunpack.c.l.b16 %v5561
    %v5882 = vunpack.c.h.b16 %v5561
    %v5883 = vunpack.c.l.b16 %v5562
    %v5884 = vunpack.c.h.b16 %v5562
    %v5885 = vunpack.c.l.b16 %v5563
    %v5886 = vunpack.c.h.b16 %v5563
    %v5887 = vunpack.c.l.b16 %v5564
    %v5888 = vunpack.c.h.b16 %v5564
    %v5889 = vunpack.c.l.b16 %v5565
    %v5890 = vunpack.c.h.b16 %v5565
    %v5891 = vunpack.c.l.b16 %v5566
    %v5892 = vunpack.c.h.b16 %v5566
    %v5893 = vunpack.c.l.b16 %v5567
    %v5894 = vunpack.c.h.b16 %v5567
    %v5895 = vunpack.c.l.b16 %v5568
    %v5896 = vunpack.c.h.b16 %v5568
    %v5897 = vunpack.c.l.b16 %v5569
    %v5898 = vunpack.c.h.b16 %v5569
    %v5899 = vunpack.c.l.b16 %v5570
    %v5900 = vunpack.c.h.b16 %v5570
    %v5901 = vunpack.c.l.b16 %v5571
    %v5902 = vunpack.c.h.b16 %v5571
    %v5903 = vunpack.c.l.b16 %v5572
    %v5904 = vunpack.c.h.b16 %v5572
    %v5905 = vunpack.c.l.b16 %v5573
    %v5906 = vunpack.c.h.b16 %v5573
    %v5907 = vunpack.c.l.b16 %v5574
    %v5908 = vunpack.c.h.b16 %v5574
    %v5909 = vunpack.c.l.b16 %v5575
    %v5910 = vunpack.c.h.b16 %v5575
    %v5911 = vunpack.c.l.b16 %v5576
    %v5912 = vunpack.c.h.b16 %v5576
    %v5913 = vunpack.c.l.b16 %v5577
    %v5914 = vunpack.c.h.b16 %v5577
    %v5915 = vunpack.c.l.b16 %v5578
    %v5916 = vunpack.c.h.b16 %v5578
    %v5917 = vunpack.c.l.b16 %v5579
    %v5918 = vunpack.c.h.b16 %v5579
    %v5919 = vunpack.c.l.b16 %v5580
    %v5920 = vunpack.c.h.b16 %v5580
    %v5921 = vunpack.c.l.b16 %v5581
    %v5922 = vunpack.c.h.b16 %v5581
    %v5923 = vunpack.c.l.b16 %v5582
    %v5924 = vunpack.c.h.b16 %v5582
    %v5925 = vunpack.c.l.b16 %v5583
    %v5926 = vunpack.c.h.b16 %v5583
    %v5927 = vunpack.c.l.b16 %v5584
    %v5928 = vunpack.c.h.b16 %v5584
    %v5929 = vunpack.c.l.b16 %v5585
    %v5930 = vunpack.c.h.b16 %v5585
    %v5931 = vunpack.c.l.b16 %v5586
    %v5932 = vunpack.c.h.b16 %v5586
    %v5933 = vunpack.c.l.b16 %v5587
    %v5934 = vunpack.c.h.b16 %v5587
    %v5935 = vunpack.c.l.b16 %v5588
    %v5936 = vunpack.c.h.b16 %v5588
    %v5937 = vunpack.c.l.b16 %v5589
    %v5938 = vunpack.c.h.b16 %v5589
    %v5939 = vunpack.c.l.b16 %v5590
    %v5940 = vunpack.c.h.b16 %v5590
    %v5941 = vunpack.c.l.b16 %v5591
    %v5942 = vunpack.c.h.b16 %v5591
    %v5943 = vunpack.c.l.b16 %v5592
    %v5944 = vunpack.c.h.b16 %v5592
    %v5945 = vunpack.c.l.b16 %v5593
    %v5946 = vunpack.c.h.b16 %v5593
    %v5947 = vunpack.c.l.b16 %v5594
    %v5948 = vunpack.c.h.b16 %v5594
    %v5949 = vunpack.c.l.b16 %v5595
    %v5950 = vunpack.c.h.b16 %v5595
    %v5951 = vunpack.c.l.b16 %v5596
    %v5952 = vunpack.c.h.b16 %v5596
    %v5953 = vunpack.c.l.b16 %v5597
    %v5954 = vunpack.c.h.b16 %v5597
    %v5955 = vunpack.c.l.b16 %v5598
    %v5956 = vunpack.c.h.b16 %v5598
    %v5957 = vunpack.c.l.b16 %v5599
    %v5958 = vunpack.c.h.b16 %v5599
    %v5959 = vunpack.c.l.b16 %v5600
    %v5960 = vunpack.c.h.b16 %v5600
    %v5961 = vunpack.c.l.b16 %v5601
    %v5962 = vunpack.c.h.b16 %v5601
    %v5963 = vunpack.c.l.b16 %v5602
    %v5964 = vunpack.c.h.b16 %v5602
    %v5965 = vunpack.c.l.b16 %v5603
    %v5966 = vunpack.c.h.b16 %v5603
    %v5967 = vunpack.c.l.b16 %v5604
    %v5968 = vunpack.c.h.b16 %v5604
    %v5969 = vunpack.c.l.b16 %v5605
    %v5970 = vunpack.c.h.b16 %v5605
    %v5971 = vunpack.c.l.b16 %v5606
    %v5972 = vunpack.c.h.b16 %v5606
    %v5973 = vunpack.c.l.b16 %v5607
    %v5974 = vunpack.c.h.b16 %v5607
    %v5975 = vunpack.c.l.b16 %v5608
    %v5976 = vunpack.c.h.b16 %v5608
    %v5977 = vunpack.c.l.b16 %v5609
    %v5978 = vunpack.c.h.b16 %v5609
    %v5979 = vunpack.c.l.b16 %v5610
    %v5980 = vunpack.c.h.b16 %v5610
    %v5981 = vunpack.c.l.b16 %v5611
    %v5982 = vunpack.c.h.b16 %v5611
    %v5983 = vunpack.c.l.b16 %v5612
    %v5984 = vunpack.c.h.b16 %v5612
    %v5985 = vunpack.c.l.b16 %v5613
    %v5986 = vunpack.c.h.b16 %v5613
    %v5987 = vunpack.c.l.b16 %v5614
    %v5988 = vunpack.c.h.b16 %v5614
    %v5989 = vunpack.c.l.b16 %v5615
    %v5990 = vunpack.c.h.b16 %v5615
    %v5991 = vunpack.c.l.b16 %v5616
    %v5992 = vunpack.c.h.b16 %v5616
    %v5993 = vunpack.c.l.b16 %v5617
    %v5994 = vunpack.c.h.b16 %v5617
    %v5995 = vunpack.c.l.b16 %v5618
    %v5996 = vunpack.c.h.b16 %v5618
    %v5997 = vunpack.c.l.b16 %v5619
    %v5998 = vunpack.c.h.b16 %v5619
    %v5999 = vunpack.c.l.b16 %v5620
    %v6000 = vunpack.c.h.b16 %v5620
    %v6001 = vunpack.c.l.b16 %v5621
    %v6002 = vunpack.c.h.b16 %v5621
    %v6003 = vunpack.c.l.b16 %v5622
    %v6004 = vunpack.c.h.b16 %v5622
    %v6005 = vunpack.c.l.b16 %v5623
    %v6006 = vunpack.c.h.b16 %v5623
    %v6007 = vunpack.c.l.b16 %v5624
    %v6008 = vunpack.c.h.b16 %v5624
    %v6009 = vunpack.c.l.b16 %v5625
    %v6010 = vunpack.c.h.b16 %v5625
    %v6011 = vunpack.c.l.b16 %v5626
    %v6012 = vunpack.c.h.b16 %v5626
    %v6013 = vunpack.c.l.b16 %v5627
    %v6014 = vunpack.c.h.b16 %v5627
    %v6015 = vunpack.c.l.b16 %v5628
    %v6016 = vunpack.c.h.b16 %v5628
    %v6017 = vunpack.c.l.b16 %v5629
    %v6018 = vunpack.c.h.b16 %v5629
    %v6019 = vunpack.c.l.b16 %v5630
    %v6020 = vunpack.c.h.b16 %v5630
    %v6021 = vunpack.c.l.b16 %v5631
    %v6022 = vunpack.c.h.b16 %v5631
    %v6023 = vunpack.c.l.b16 %v5632
    %v6024 = vunpack.c.h.b16 %v5632
    %v6025 = vunpack.c.l.b16 %v5633
    %v6026 = vunpack.c.h.b16 %v5633
    %v6027 = vunpack.c.l.b16 %v5634
    %v6028 = vunpack.c.h.b16 %v5634
    %v6029 = vunpack.c.l.b16 %v5635
    %v6030 = vunpack.c.h.b16 %v5635
    %v6031 = vunpack.c.l.b16 %v5636
    %v6032 = vunpack.c.h.b16 %v5636
    %v6033 = vpack.c.b16 %v5779, %v5777
    %v6034 = vpack.c.b16 %v5780, %v5778
    %v6035 = vpack.c.b16 %v5783, %v5781
    %v6036 = vpack.c.b16 %v5784, %v5782
    %v6037 = vpack.c.b16 %v5787, %v5785
    %v6038 = vpack.c.b16 %v5788, %v5786
    %v6039 = vpack.c.b16 %v5791, %v5789
    %v6040 = vpack.c.b16 %v5792, %v5790
    %v6041 = vpack.c.b16 %v5795, %v5793
    %v6042 = vpack.c.b16 %v5796, %v5794
    %v6043 = vpack.c.b16 %v5799, %v5797
    %v6044 = vpack.c.b16 %v5800, %v5798
    %v6045 = vpack.c.b16 %v5803, %v5801
    %v6046 = vpack.c.b16 %v5804, %v5802
    %v6047 = vpack.c.b16 %v5807, %v5805
    %v6048 = vpack.c.b16 %v5808, %v5806
    %v6049 = vpack.c.b16 %v5811, %v5809
    %v6050 = vpack.c.b16 %v5812, %v5810
    %v6051 = vpack.c.b16 %v5815, %v5813
    %v6052 = vpack.c.b16 %v5816, %v5814
    %v6053 = vpack.c.b16 %v5819, %v5817
    %v6054 = vpack.c.b16 %v5820, %v5818
    %v6055 = vpack.c.b16 %v5823, %v5821
    %v6056 = vpack.c.b16 %v5824, %v5822
    %v6057 = vpack.c.b16 %v5827, %v5825
    %v6058 = vpack.c.b16 %v5828, %v5826
    %v6059 = vpack.c.b16 %v5831, %v5829
    %v6060 = vpack.c.b16 %v5832, %v5830
    %v6061 = vpack.c.b16 %v5835, %v5833
    %v6062 = vpack.c.b16 %v5836, %v5834
    %v6063 = vpack.c.b16 %v5839, %v5837
    %v6064 = vpack.c.b16 %v5840, %v5838
    %v6065 = vpack.c.b16 %v5843, %v5841
    %v6066 = vpack.c.b16 %v5844, %v5842
    %v6067 = vpack.c.b16 %v5847, %v5845
    %v6068 = vpack.c.b16 %v5848, %v5846
    %v6069 = vpack.c.b16 %v5851, %v5849
    %v6070 = vpack.c.b16 %v5852, %v5850
    %v6071 = vpack.c.b16 %v5855, %v5853
    %v6072 = vpack.c.b16 %v5856, %v5854
    %v6073 = vpack.c.b16 %v5859, %v5857
    %v6074 = vpack.c.b16 %v5860, %v5858
    %v6075 = vpack.c.b16 %v5863, %v5861
    %v6076 = vpack.c.b16 %v5864, %v5862
    %v6077 = vpack.c.b16 %v5867, %v5865
    %v6078 = vpack.c.b16 %v5868, %v5866
    %v6079 = vpack.c.b16 %v5871, %v5869
    %v6080 = vpack.c.b16 %v5872, %v5870
    %v6081 = vpack.c.b16 %v5875, %v5873
    %v6082 = vpack.c.b16 %v5876, %v5874
    %v6083 = vpack.c.b16 %v5879, %v5877
    %v6084 = vpack.c.b16 %v5880, %v5878
    %v6085 = vpack.c.b16 %v5883, %v5881
    %v6086 = vpack.c.b16 %v5884, %v5882
    %v6087 = vpack.c.b16 %v5887, %v5885
    %v6088 = vpack.c.b16 %v5888, %v5886
    %v6089 = vpack.c.b16 %v5891, %v5889
    %v6090 = vpack.c.b16 %v5892, %v5890
    %v6091 = vpack.c.b16 %v5895, %v5893
    %v6092 = vpack.c.b16 %v5896, %v5894
    %v6093 = vpack.c.b16 %v5899, %v5897
    %v6094 = vpack.c.b16 %v5900, %v5898
    %v6095 = vpack.c.b16 %v5903, %v5901
    %v6096 = vpack.c.b16 %v5904, %v5902
    %v6097 = vpack.c.b16 %v5907, %v5905
    %v6098 = vpack.c.b16 %v5908, %v5906
    %v6099 = vpack.c.b16 %v5911, %v5909
    %v6100 = vpack.c.b16 %v5912, %v5910
    %v6101 = vpack.c.b16 %v5915, %v5913
    %v6102 = vpack.c.b16 %v5916, %v5914
    %v6103 = vpack.c.b16 %v5919, %v5917
    %v6104 = vpack.c.b16 %v5920, %v5918
    %v6105 = vpack.c.b16 %v5923, %v5921
    %v6106 = vpack.c.b16 %v5924, %v5922
    %v6107 = vpack.c.b16 %v5927, %v5925
    %v6108 = vpack.c.b16 %v5928, %v5926
    %v6109 = vpack.c.b16 %v5931, %v5929
    %v6110 = vpack.c.b16 %v5932, %v5930
    %v6111 = vpack.c.b16 %v5935, %v5933
    %v6112 = vpack.c.b16 %v5936, %v5934
    %v6113 = vpack.c.b16 %v5939, %v5937
    %v6114 = vpack.c.b16 %v5940, %v5938
    %v6115 = vpack.c.b16 %v5943, %v5941
    %v6116 = vpack.c.b16 %v5944, %v5942
    %v6117 = vpack.c.b16 %v5947, %v5945
    %v6118 = vpack.c.b16 %v5948, %v5946
    %v6119 = vpack.c.b16 %v5951, %v5949
    %v6120 = vpack.c.b16 %v5952, %v5950
    %v6121 = vpack.c.b16 %v5955, %v5953
    %v6122 = vpack.c.b16 %v5956, %v5954
    %v6123 = vpack.c.b16 %v5959, %v5957
    %v6124 = vpack.c.b16 %v5960, %v5958
    %v6125 = vpack.c.b16 %v5963, %v5961
    %v6126 = vpack.c.b16 %v5964, %v5962
    %v6127 = vpack.c.b16 %v5967, %v5965
    %v6128 = vpack.c.b16 %v5968, %v5966
    %v6129 = vpack.c.b16 %v5971, %v5969
    %v6130 = vpack.c.b16 %v5972, %v5970
    %v6131 = vpack.c.b16 %v5975, %v5973
    %v6132 = vpack.c.b16 %v5976, %v5974
    %v6133 = vpack.c.b16 %v5979, %v5977
    %v6134 = vpack.c.b16 %v5980, %v5978
    %v6135 = vpack.c.b16 %v5983, %v5981
    %v6136 = vpack.c.b16 %v5984, %v5982
    %v6137 = vpack.c.b16 %v5987, %v5985
    %v6138 = vpack.c.b16 %v5988, %v5986
    %v6139 = vpack.c.b16 %v5991, %v5989
    %v6140 = vpack.c.b16 %v5992, %v5990
    %v6141 = vpack.c.b16 %v5995, %v5993
    %v6142 = vpack.c.b16 %v5996, %v5994
    %v6143 = vpack.c.b16 %v5999, %v5997
    %v6144 = vpack.c.b16 %v6000, %v5998
    %v6145 = vpack.c.b16 %v6003, %v6001
    %v6146 = vpack.c.b16 %v6004, %v6002
    %v6147 = vpack.c.b16 %v6007, %v6005
    %v6148 = vpack.c.b16 %v6008, %v6006
    %v6149 = vpack.c.b16 %v6011, %v6009
    %v6150 = vpack.c.b16 %v6012, %v6010
    %v6151 = vpack.c.b16 %v6015, %v6013
    %v6152 = vpack.c.b16 %v6016, %v6014
    %v6153 = vpack.c.b16 %v6019, %v6017
    %v6154 = vpack.c.b16 %v6020, %v6018
    %v6155 = vpack.c.b16 %v6023, %v6021
    %v6156 = vpack.c.b16 %v6024, %v6022
    %v6157 = vpack.c.b16 %v6027, %v6025
    %v6158 = vpack.c.b16 %v6028, %v6026
    %v6159 = vpack.c.b16 %v6031, %v6029
    %v6160 = vpack.c.b16 %v6032, %v6030
    %6289 = vmatprep.subr.bf16.mxu0 %v6034
    %6290 = vmatpush1.bf16.msra.mxu0 %v6033
    %6291 = vmatprep.subr.bf16.mxu0 %v6036
    %6292 = vmatpush1.bf16.msra.mxu0 %v6035
    %6293 = vmatprep.subr.bf16.mxu0 %v6038
    %6294 = vmatpush1.bf16.msra.mxu0 %v6037
    %6295 = vmatprep.subr.bf16.mxu0 %v6040
    %6296 = vmatpush1.bf16.msra.mxu0 %v6039
    %6297 = vmatprep.subr.bf16.mxu0 %v6042
    %6298 = vmatpush1.bf16.msra.mxu0 %v6041
    %6299 = vmatprep.subr.bf16.mxu0 %v6044
    %6300 = vmatpush1.bf16.msra.mxu0 %v6043
    %6301 = vmatprep.subr.bf16.mxu0 %v6046
    %6302 = vmatpush1.bf16.msra.mxu0 %v6045
    %6303 = vmatprep.subr.bf16.mxu0 %v6048
    %6304 = vmatpush1.bf16.msra.mxu0 %v6047
    %6305 = vmatprep.subr.bf16.mxu0 %v6050
    %6306 = vmatpush1.bf16.msra.mxu0 %v6049
    %6307 = vmatprep.subr.bf16.mxu0 %v6052
    %6308 = vmatpush1.bf16.msra.mxu0 %v6051
    %6309 = vmatprep.subr.bf16.mxu0 %v6054
    %6310 = vmatpush1.bf16.msra.mxu0 %v6053
    %6311 = vmatprep.subr.bf16.mxu0 %v6056
    %6312 = vmatpush1.bf16.msra.mxu0 %v6055
    %6313 = vmatprep.subr.bf16.mxu0 %v6058
    %6314 = vmatpush1.bf16.msra.mxu0 %v6057
    %6315 = vmatprep.subr.bf16.mxu0 %v6060
    %6316 = vmatpush1.bf16.msra.mxu0 %v6059
    %6317 = vmatprep.subr.bf16.mxu0 %v6062
    %6318 = vmatpush1.bf16.msra.mxu0 %v6061
    %6319 = vmatprep.subr.bf16.mxu0 %v6064
    %6320 = vmatpush1.bf16.msra.mxu0 %v6063
    %6321 = vmatprep.mubr.bf16.mxu0 %v5502
    %6322 = vmatmul.mubr.bf16.gmra.mrb[0].mxu0 %v5501
    %v6323 = vpop.f32.mrb[0].mxu0
    %v6324 = vadd.f32 %v5642, %v6323
    %v6325 = vpop.f32.mrb[0].mxu0
    %v6326 = vadd.f32 %v5646, %v6325
    %v6327 = vpop.f32.mrb[0].mxu0
    %v6328 = vpop.f32.mrb[0].mxu0
    %6329 = vdwg.mxu0
    %6330 = vmatprep.subr.bf16.mxu0 %v6066
    %6331 = vmatpush1.bf16.msra.mxu0 %v6065
    %6332 = vmatprep.subr.bf16.mxu0 %v6068
    %6333 = vmatpush1.bf16.msra.mxu0 %v6067
    %6334 = vmatprep.subr.bf16.mxu0 %v6070
    %6335 = vmatpush1.bf16.msra.mxu0 %v6069
    %6336 = vmatprep.subr.bf16.mxu0 %v6072
    %6337 = vmatpush1.bf16.msra.mxu0 %v6071
    %6338 = vmatprep.subr.bf16.mxu0 %v6074
    %6339 = vmatpush1.bf16.msra.mxu0 %v6073
    %6340 = vmatprep.subr.bf16.mxu0 %v6076
    %6341 = vmatpush1.bf16.msra.mxu0 %v6075
    %6342 = vmatprep.subr.bf16.mxu0 %v6078
    %6343 = vmatpush1.bf16.msra.mxu0 %v6077
    %6344 = vmatprep.subr.bf16.mxu0 %v6080
    %6345 = vmatpush1.bf16.msra.mxu0 %v6079
    %6346 = vmatprep.subr.bf16.mxu0 %v6082
    %6347 = vmatpush1.bf16.msra.mxu0 %v6081
    %6348 = vmatprep.subr.bf16.mxu0 %v6084
    %6349 = vmatpush1.bf16.msra.mxu0 %v6083
    %6350 = vmatprep.subr.bf16.mxu0 %v6086
    %6351 = vmatpush1.bf16.msra.mxu0 %v6085
    %6352 = vmatprep.subr.bf16.mxu0 %v6088
    %6353 = vmatpush1.bf16.msra.mxu0 %v6087
    %6354 = vmatprep.subr.bf16.mxu0 %v6090
    %6355 = vmatpush1.bf16.msra.mxu0 %v6089
    %6356 = vmatprep.subr.bf16.mxu0 %v6092
    %6357 = vmatpush1.bf16.msra.mxu0 %v6091
    %6358 = vmatprep.subr.bf16.mxu0 %v6094
    %6359 = vmatpush1.bf16.msra.mxu0 %v6093
    %6360 = vmatprep.subr.bf16.mxu0 %v6096
    %6361 = vmatpush1.bf16.msra.mxu0 %v6095
    %6362 = vmatprep.mubr.bf16.mxu0 %v5504
    %6363 = vmatmul.mubr.bf16.gmra.mrb[0].mxu0 %v5503
    %v6364 = vpop.f32.mrb[0].mxu0
    %v6365 = vadd.f32 %v6324, %v6364
    %v6366 = vpop.f32.mrb[0].mxu0
    %v6367 = vadd.f32 %v6326, %v6366
    %v6368 = vpop.f32.mrb[0].mxu0
    %v6369 = vpop.f32.mrb[0].mxu0
    %6370 = vdwg.mxu0
    %6371 = vmatprep.subr.bf16.mxu0 %v6098
    %6372 = vmatpush1.bf16.msra.mxu0 %v6097
    %6373 = vmatprep.subr.bf16.mxu0 %v6100
    %6374 = vmatpush1.bf16.msra.mxu0 %v6099
    %6375 = vmatprep.subr.bf16.mxu0 %v6102
    %6376 = vmatpush1.bf16.msra.mxu0 %v6101
    %6377 = vmatprep.subr.bf16.mxu0 %v6104
    %6378 = vmatpush1.bf16.msra.mxu0 %v6103
    %6379 = vmatprep.subr.bf16.mxu0 %v6106
    %6380 = vmatpush1.bf16.msra.mxu0 %v6105
    %6381 = vmatprep.subr.bf16.mxu0 %v6108
    %6382 = vmatpush1.bf16.msra.mxu0 %v6107
    %6383 = vmatprep.subr.bf16.mxu0 %v6110
    %6384 = vmatpush1.bf16.msra.mxu0 %v6109
    %6385 = vmatprep.subr.bf16.mxu0 %v6112
    %6386 = vmatpush1.bf16.msra.mxu0 %v6111
    %6387 = vmatprep.subr.bf16.mxu0 %v6114
    %6388 = vmatpush1.bf16.msra.mxu0 %v6113
    %6389 = vmatprep.subr.bf16.mxu0 %v6116
    %6390 = vmatpush1.bf16.msra.mxu0 %v6115
    %6391 = vmatprep.subr.bf16.mxu0 %v6118
    %6392 = vmatpush1.bf16.msra.mxu0 %v6117
    %6393 = vmatprep.subr.bf16.mxu0 %v6120
    %6394 = vmatpush1.bf16.msra.mxu0 %v6119
    %6395 = vmatprep.subr.bf16.mxu0 %v6122
    %6396 = vmatpush1.bf16.msra.mxu0 %v6121
    %6397 = vmatprep.subr.bf16.mxu0 %v6124
    %6398 = vmatpush1.bf16.msra.mxu0 %v6123
    %6399 = vmatprep.subr.bf16.mxu0 %v6126
    %6400 = vmatpush1.bf16.msra.mxu0 %v6125
    %6401 = vmatprep.subr.bf16.mxu0 %v6128
    %6402 = vmatpush1.bf16.msra.mxu0 %v6127
    %6403 = vmatprep.mubr.bf16.mxu0 %v5506
    %6404 = vmatmul.mubr.bf16.gmra.mrb[0].mxu0 %v5505
    %v6405 = vpop.f32.mrb[0].mxu0
    %v6406 = vadd.f32 %v6365, %v6405
    %v6407 = vpop.f32.mrb[0].mxu0
    %v6408 = vadd.f32 %v6367, %v6407
    %v6409 = vpop.f32.mrb[0].mxu0
    %v6410 = vpop.f32.mrb[0].mxu0
    %6411 = vdwg.mxu0
    %6412 = vmatprep.subr.bf16.mxu0 %v6130
    %6413 = vmatpush1.bf16.msra.mxu0 %v6129
    %6414 = vmatprep.subr.bf16.mxu0 %v6132
    %6415 = vmatpush1.bf16.msra.mxu0 %v6131
    %6416 = vmatprep.subr.bf16.mxu0 %v6134
    %6417 = vmatpush1.bf16.msra.mxu0 %v6133
    %6418 = vmatprep.subr.bf16.mxu0 %v6136
    %6419 = vmatpush1.bf16.msra.mxu0 %v6135
    %6420 = vmatprep.subr.bf16.mxu0 %v6138
    %6421 = vmatpush1.bf16.msra.mxu0 %v6137
    %6422 = vmatprep.subr.bf16.mxu0 %v6140
    %6423 = vmatpush1.bf16.msra.mxu0 %v6139
    %6424 = vmatprep.subr.bf16.mxu0 %v6142
    %6425 = vmatpush1.bf16.msra.mxu0 %v6141
    %6426 = vmatprep.subr.bf16.mxu0 %v6144
    %6427 = vmatpush1.bf16.msra.mxu0 %v6143
    %6428 = vmatprep.subr.bf16.mxu0 %v6146
    %6429 = vmatpush1.bf16.msra.mxu0 %v6145
    %6430 = vmatprep.subr.bf16.mxu0 %v6148
    %6431 = vmatpush1.bf16.msra.mxu0 %v6147
    %6432 = vmatprep.subr.bf16.mxu0 %v6150
    %6433 = vmatpush1.bf16.msra.mxu0 %v6149
    %6434 = vmatprep.subr.bf16.mxu0 %v6152
    %6435 = vmatpush1.bf16.msra.mxu0 %v6151
    %6436 = vmatprep.subr.bf16.mxu0 %v6154
    %6437 = vmatpush1.bf16.msra.mxu0 %v6153
    %6438 = vmatprep.subr.bf16.mxu0 %v6156
    %6439 = vmatpush1.bf16.msra.mxu0 %v6155
    %6440 = vmatprep.subr.bf16.mxu0 %v6158
    %6441 = vmatpush1.bf16.msra.mxu0 %v6157
    %6442 = vmatprep.subr.bf16.mxu0 %v6160
    %6443 = vmatpush1.bf16.msra.mxu0 %v6159
    %6444 = vmatprep.mubr.bf16.mxu0 %v5508
    %6445 = vmatmul.mubr.bf16.gmra.mrb[0].mxu0 %v5507
    %v6446 = vpop.f32.mrb[0].mxu0
    %v6447 = vadd.f32 %v6406, %v6446
    %v6448 = vpop.f32.mrb[0].mxu0
    %v6449 = vadd.f32 %v6408, %v6448
    %v6450 = vpop.f32.mrb[0].mxu0
    %v6451 = vpop.f32.mrb[0].mxu0
    %6452 = vdwg.mxu0
    %6453 = vst [vmem:[#allocation2] sm:$0xff] %v6447
    %6454 = vst [vmem:[#allocation2 + $0x8] sm:$0xff] %v6449
    // Predicated region
    $region54: #{autoencoder_forward.1} parent=1 // pred_check
      _
    $region55: #{autoencoder_forward.1} parent=1 // pred_check_branch
      %6456 = sbr.rel (0) target = $region57
    $region56: #{autoencoder_forward.1} parent=1 // pred_region
      %s6458 = ssub.s32 256, 256
      %6459 = vsyncadd [#allocation3], %s6458
      %s6461 = sshll.u32 [#allocation2], 4
      %s6462 = int_to_ptr.vmem [resolvable:$true] %s6461
      %6464 = dma.vmem_to_hbm [thread:$0]  %s6462, 256, %s13, [#allocation3]
    $region57: #{autoencoder_forward.1} parent=1 // pred_fallthru
      _
    // Predicated region
    $region58: #{autoencoder_forward.1} parent=1 // pred_check
      _
    $region59: #{autoencoder_forward.1} parent=1 // pred_check_branch
      %6466 = sbr.rel (0) target = $region61
    $region60: #{autoencoder_forward.1} parent=1 // pred_region
      %s6468 = ssub.s32 128, 128
      %6469 = vsyncadd [#allocation5], %s6468
      %s6471 = sshll.u32 [#allocation4], 4
      %s6472 = int_to_ptr.vmem [resolvable:$true] %s6471
      %6474 = dma.vmem_to_hbm [thread:$0]  %s6472, 128, %s14, [#allocation5]
    $region61: #{autoencoder_forward.1} parent=1 // pred_fallthru
      _
    // Predicated region
    $region62: #{autoencoder_forward.1} parent=1 // pred_check
      _
    $region63: #{autoencoder_forward.1} parent=1 // pred_check_branch
      %6476 = sbr.rel (0) target = $region65
    $region64: #{autoencoder_forward.1} parent=1 // pred_region
      %6477 = dma.done [#allocation3], 256
    $region65: #{autoencoder_forward.1} parent=1 // pred_fallthru
      _
    // Predicated region
    $region66: #{autoencoder_forward.1} parent=1 // pred_check
      _
    $region67: #{autoencoder_forward.1} parent=1 // pred_check_branch
      %6479 = sbr.rel (0) target = $region69
    $region68: #{autoencoder_forward.1} parent=1 // pred_region
      %6480 = dma.done [#allocation5], 128
    $region69: #{autoencoder_forward.1} parent=1 // pred_fallthru
      _
    %6481 = vsyncpa [#allocation3], 1
    %6482 = vsyncpa [#allocation5], 1

</llo_original>
